<compile_context>
chip_gen: v6e
topology: v6e:2x2x1
jax: 0.10.0
libtpu: 0.0.40
codegen_flags: <defaults>
</compile_context>

<pallas_src>
import functools
import math

import jax
import jax.numpy as jnp
from jax.experimental import pallas as pl
from jax.experimental.pallas import tpu as pltpu


def _round_up(x, m):
    return ((x + m - 1) // m) * m


def _deepfm_kernel(idx_ref, rhs_ref, dense_ref, *refs, num_layers, k):
    """One batch tile: FM gather + FM terms + deep tower + final FC + sigmoid."""
    layer_refs = refs[:2 * num_layers]
    wfc_deep_ref, fc_ref, out_ref, x_buf = refs[2 * num_layers:]

    tb, num_feats = idx_ref.shape
    n = rhs_ref.shape[0]
    d_dense = dense_ref.shape[1]

    idx = idx_ref[...]                                          # (TB, F) int32
    lane_ids = jax.lax.broadcasted_iota(jnp.int32, (tb, n), 1)

    # ---- FM gather: ONE stacked one-hot matmul (slot-major rows f*TB + b) ----
    # bf16 LHS/RHS (MXU-native), f32 accumulation.  Compare in int/f32, cast to
    # bf16 afterwards (v5e VPU has no bf16).
    slot_onehots = [
        jnp.where(idx[:, f:f + 1] == lane_ids, 1.0, 0.0).astype(jnp.bfloat16)
        for f in range(num_feats)
    ]
    onehot = jnp.concatenate(slot_onehots, axis=0)              # (F*TB, n) bf16
    gathered = jnp.dot(onehot, rhs_ref[...],
                       preferred_element_type=jnp.float32)      # (F*TB, P) f32

    # ---- FM terms: sum over slots = static sublane-aligned slices + VPU adds ----
    acc = gathered[0:tb, :]
    for f in range(1, num_feats):
        acc = acc + gathered[f * tb:(f + 1) * tb, :]
    s = acc[:, :k]                        # sum_f V[idx]      (TB, k)
    ssq = acc[:, k:2 * k]                 # sum_f V[idx]^2    (TB, k)
    lin = acc[:, 2 * k:2 * k + 1]         # sum_f w[idx]      (TB, 1)
    inter = 0.5 * jnp.sum(s * s - ssq, axis=1, keepdims=True)   # (TB, 1)

    # ---- Deep-tower input assembled in VMEM scratch (no list + concatenate) ----
    d_deep = num_feats * k + d_dense
    pad_w = x_buf.shape[1] - d_deep
    for f in range(num_feats):
        x_buf[:, f * k:(f + 1) * k] = gathered[f * tb:(f + 1) * tb, :k]
    x_buf[:, num_feats * k:d_deep] = dense_ref[...]
    if pad_w:
        x_buf[:, d_deep:] = jnp.zeros((tb, pad_w), jnp.float32)

    x = x_buf[...]
    for layer in range(num_layers):
        w_l = layer_refs[2 * layer][...]
        b_l = layer_refs[2 * layer + 1][...]
        x = jnp.maximum(
            jnp.dot(x, w_l, preferred_element_type=jnp.float32) + b_l, 0.0)
        # nn.Dropout: identity (eval-mode forward).

    # ---- Final FC + sigmoid.  Deep projection (N=1) as VPU mul + lane reduce;
    # the three scalars come from SMEM. ----
    w_fc_lin = fc_ref[0]
    w_fc_inter = fc_ref[1]
    b_fc = fc_ref[2]
    deep = jnp.sum(x * wfc_deep_ref[...], axis=1, keepdims=True)    # (TB, 1)
    logit = lin * w_fc_lin + inter * w_fc_inter + deep + b_fc
    prob = jax.nn.sigmoid(logit)                                    # (TB, 1)

    # ---- Lane-dense store: (TB, 1) column -> (1, TB) row using only iota /
    # select / sublane-reduce (layout-safe "transpose"), then one dense store. ----
    bi = jax.lax.broadcasted_iota(jnp.int32, (tb, tb), 0)
    bj = jax.lax.broadcasted_iota(jnp.int32, (tb, tb), 1)
    row = jnp.sum(jnp.where(bi == bj, prob, 0.0), axis=0, keepdims=True)  # (1, TB)
    out_ref[...] = row.reshape(1, 1, tb)


def deepfm_forward(cat_idx, dense, w_lin, v, deep_ws, deep_bs, w_fc, b_fc,
                   *, block_b=256):
    """DeepFM forward pass (eval mode).

    cat_idx: (B, F) int32 token indices.     dense: (B, Dd) f32.
    w_lin:   (n, 1) f32 FM linear table.     v:     (n, k) f32 FM factor table.
    deep_ws / deep_bs: deep-tower Linear weights (in, out) / biases (out,) or (1, out).
    w_fc: (H_last + 2, 1) f32, rows ordered [linear, interaction, deep...].
    b_fc: (1,) or (1, 1) f32.
    Returns (B,) f32 sigmoid output.
    """
    B, F = cat_idx.shape
    n, k = v.shape
    dd = dense.shape[1]
    num_layers = len(deep_ws)
    h_last = deep_ws[-1].shape[1]

    # Fused, lane-dense FM table [V | V*V | w | pad] in bf16 (MXU-native RHS).
    p_w = max(128, _round_up(2 * k + 1, 128))
    rhs = jnp.zeros((n, p_w), jnp.float32)
    rhs = rhs.at[:, :k].set(v)
    rhs = rhs.at[:, k:2 * k].set(v * v)
    rhs = rhs.at[:, 2 * k:2 * k + 1].set(w_lin)
    rhs = rhs.astype(jnp.bfloat16)

    # Deep tower weights: pad the first layer's input rows to a lane multiple so
    # the kernel's x_buf scratch is 128-lane aligned (pad rows are zero).
    d_deep = F * k + dd
    d_pad = _round_up(d_deep, 128)
    w1 = jnp.asarray(deep_ws[0], jnp.float32)
    w1_pad = jnp.zeros((d_pad, w1.shape[1]), jnp.float32).at[:d_deep, :].set(w1)
    ws = [w1_pad] + [jnp.asarray(w, jnp.float32) for w in deep_ws[1:]]
    bs = [jnp.asarray(b, jnp.float32).reshape(1, -1) for b in deep_bs]

    # Final FC: deep weights as a row vector (VPU reduce in-kernel); the three
    # true scalars (w_linear, w_interaction, bias) travel in SMEM.
    w_fc = jnp.asarray(w_fc, jnp.float32)
    wfc_deep_t = w_fc[2:, 0].reshape(1, h_last)
    fc_scalars = jnp.stack([w_fc[0, 0], w_fc[1, 0],
                            jnp.asarray(b_fc, jnp.float32).reshape(-1)[0]])

    # Batch tiling: pad B up to a tile multiple (never one whole-batch mega-tile);
    # keep >= 4 tiles when there is enough work (v7x has 2 TensorCores).
    tb = min(block_b, _round_up(max(B, 8), 8))
    if B >= 256:
        tb = min(tb, _round_up(-(-B // 4), 8))
    tb = max(tb, 8)
    b_pad = _round_up(B, tb)
    num_tiles = b_pad // tb

    cat_idx = jnp.asarray(cat_idx, jnp.int32)
    dense = jnp.asarray(dense, jnp.float32)
    if b_pad != B:
        cat_idx = jnp.pad(cat_idx, ((0, b_pad - B), (0, 0)))
        dense = jnp.pad(dense, ((0, b_pad - B), (0, 0)))

    resident = lambda shape: pl.BlockSpec(shape, lambda i: (0, 0))

    in_specs = [
        pl.BlockSpec((tb, F), lambda i: (i, 0)),      # per-tile indices
        resident((n, p_w)),                           # fused FM table (VMEM resident)
        pl.BlockSpec((tb, dd), lambda i: (i, 0)),     # per-tile dense features
    ]
    operands = [cat_idx, rhs, dense]
    for w_l, b_l in zip(ws, bs):
        in_specs += [resident(w_l.shape), resident(b_l.shape)]
        operands += [w_l, b_l]
    in_specs += [resident(wfc_deep_t.shape),
                 pl.BlockSpec(memory_space=pltpu.MemorySpace.SMEM)]
    operands += [wfc_deep_t, fc_scalars]

    out_spec = pl.BlockSpec((1, 1, tb), lambda i: (i, 0, 0))
    out_shape = jax.ShapeDtypeStruct((num_tiles, 1, tb), jnp.float32)

    # VMEM budget from actual buffer sizes (x2 for default double buffering) plus
    # in-kernel intermediates, with headroom; never request the full physical VMEM.
    tile_io = 2 * 4 * (tb * F + tb * dd + tb)
    param_bytes = sum(int(a.size) * a.dtype.itemsize
                      for a in [operands[1]] + operands[3:])
    scratch_bytes = 4 * tb * d_pad
    interm = 3 * 2 * tb * F * n + 2 * 4 * tb * F * p_w + 4 * tb * tb + (4 << 20)
    vmem_limit = int(min(48 * 1024 * 1024,
                         max(32 * 1024 * 1024,
                             2 * (tile_io + 2 * param_bytes + scratch_bytes + interm))))

    deep_dims = [d_pad] + [w.shape[1] for w in ws]
    flops = (2 * b_pad * F * n * p_w
             + 2 * b_pad * sum(a * b for a, b in zip(deep_dims[:-1], deep_dims[1:]))
             + 2 * b_pad * (h_last + 3))
    cost = pl.CostEstimate(
        flops=int(flops),
        transcendentals=int(b_pad),
        bytes_accessed=int(4 * b_pad * (F + dd + 1) + param_bytes),
    )

    kernel = functools.partial(_deepfm_kernel, num_layers=num_layers, k=k)

    result = pl.pallas_call(
        kernel,
        out_shape=out_shape,
        grid_spec=pltpu.PrefetchScalarGridSpec(
            num_scalar_prefetch=0,
            grid=(num_tiles,),
            in_specs=in_specs,
            out_specs=out_spec,
            scratch_shapes=[pltpu.VMEM((tb, d_pad), jnp.float32)],
        ),
        compiler_params=pltpu.CompilerParams(
            dimension_semantics=("parallel",),
            vmem_limit_bytes=vmem_limit,
        ),
        cost_estimate=cost,
    )(*operands)
    return result.reshape(b_pad)[:B]


if __name__ == "__main__":
    m = 8             # categorical feature slots per example (F)
    n = 512           # vocabulary size
    k = 32            # latent factors
    dense_dim = 16
    hidden = (64, 32)
    batch = 1000      # not a tile multiple -> exercises padding; pads to 1024 =
                      # four 256-row tiles (>= 2x TensorCores on v7x).

    key = jax.random.PRNGKey(0)
    ks = jax.random.split(key, 6 + 2 * len(hidden))

    cat = jax.random.randint(ks[0], (batch, m), 0, n, dtype=jnp.int32)
    dense = 0.1 * jax.random.normal(ks[1], (batch, dense_dim), dtype=jnp.float32)

    w_lin = 0.1 * jax.random.normal(ks[2], (n, 1), dtype=jnp.float32)
    v = 0.1 * jax.random.normal(ks[3], (n, k), dtype=jnp.float32)

    dims = (m * k + dense_dim,) + hidden
    deep_ws, deep_bs = [], []
    for i in range(len(hidden)):
        scale = 1.0 / math.sqrt(dims[i])
        deep_ws.append(scale * jax.random.normal(ks[4 + 2 * i], (dims[i], dims[i + 1]),
                                                 dtype=jnp.float32))
        deep_bs.append(scale * jax.random.normal(ks[5 + 2 * i], (1, dims[i + 1]),
                                                 dtype=jnp.float32))

    fc_in_dim = hidden[-1] + 2
    w_fc = (1.0 / math.sqrt(fc_in_dim)) * jax.random.normal(
        ks[4 + 2 * len(hidden)], (fc_in_dim, 1), dtype=jnp.float32)
    b_fc = jnp.zeros((1, 1), jnp.float32)

    out = deepfm_forward(cat, dense, w_lin, v, deep_ws, deep_bs, w_fc, b_fc)
    out = jax.block_until_ready(out)
    assert out.shape == (batch,)

    # Pure-JAX references of the PyTorch DeepFM forward (eval-mode dropout).
    # Reference 1 uses the same bf16-quantized FM tables as the kernel (tight
    # check of the kernel math); reference 2 is full f32 (fidelity check).
    vq = v.astype(jnp.bfloat16).astype(jnp.float32)
    vsqq = (v * v).astype(jnp.bfloat16).astype(jnp.float32)
    wq = w_lin.astype(jnp.bfloat16).astype(jnp.float32)

    def reference(v_tab, vsq_tab, w_tab):
        lin_ref = w_tab[cat].sum(axis=1)                          # (B, 1)
        embd = v_tab[cat]                                         # (B, F, k)
        square_of_sum = embd.sum(axis=1) ** 2
        sum_of_square = vsq_tab[cat].sum(axis=1)
        inter_ref = 0.5 * (square_of_sum - sum_of_square).sum(axis=1, keepdims=True)
        x = jnp.concatenate([embd.reshape(batch, -1), dense], axis=1)
        for w_l, b_l in zip(deep_ws, deep_bs):
            x = jnp.maximum(x @ w_l + b_l, 0.0)
        fc_in = jnp.concatenate([lin_ref, inter_ref, x], axis=1)
        return jax.nn.sigmoid(fc_in @ w_fc + b_fc)[:, 0]

    ref_q = reference(vq, vsqq, wq)
    ref_f32 = reference(v, v * v, w_lin)

    err_q = float(jnp.max(jnp.abs(out - ref_q)))
    err_f = float(jnp.max(jnp.abs(out - ref_f32)))
    assert jnp.allclose(out, ref_q, atol=2e-3, rtol=2e-3), \
        f"max abs err vs bf16-table reference {err_q}"
    assert jnp.allclose(out, ref_f32, atol=1e-2, rtol=1e-2), \
        f"max abs err vs f32 reference {err_f}"

    print("KERNEL_OK")
</pallas_src>

<mosaic_0001>
module attributes {stable_mosaic.version = 11 : i64} {
  func.func @_deepfm_kernel(%arg0: i32, %arg1: memref<256x8xi32, #tpu.memory_space<vmem>>, %arg2: memref<512x128xbf16, #tpu.memory_space<vmem>>, %arg3: memref<256x16xf32, #tpu.memory_space<vmem>>, %arg4: memref<384x64xf32, #tpu.memory_space<vmem>>, %arg5: memref<1x64xf32, #tpu.memory_space<vmem>>, %arg6: memref<64x32xf32, #tpu.memory_space<vmem>>, %arg7: memref<1x32xf32, #tpu.memory_space<vmem>>, %arg8: memref<1x32xf32, #tpu.memory_space<vmem>>, %arg9: memref<3xf32, #tpu.memory_space<smem>>, %arg10: memref<1x1x256xf32, #tpu.memory_space<vmem>>, %arg11: memref<256x384xf32, #tpu.memory_space<vmem>>) attributes {dimension_semantics = [#tpu.dimension_semantics<parallel>], iteration_bounds = array<i64: 4>, scalar_prefetch = 0 : i64, scratch_operands = 1 : i64, tpu.core_type = #tpu.core_type<tc>, window_params = [{transform_indices = @transform_0, window_bounds = array<i64: 256, 8>}, {pipeline_mode = #tpu.pipeline_mode<synchronous>, transform_indices = @transform_1, window_bounds = array<i64: 512, 128>}, {transform_indices = @transform_2, window_bounds = array<i64: 256, 16>}, {pipeline_mode = #tpu.pipeline_mode<synchronous>, transform_indices = @transform_3, window_bounds = array<i64: 384, 64>}, {pipeline_mode = #tpu.pipeline_mode<synchronous>, transform_indices = @transform_4, window_bounds = array<i64: 1, 64>}, {pipeline_mode = #tpu.pipeline_mode<synchronous>, transform_indices = @transform_5, window_bounds = array<i64: 64, 32>}, {pipeline_mode = #tpu.pipeline_mode<synchronous>, transform_indices = @transform_6, window_bounds = array<i64: 1, 32>}, {pipeline_mode = #tpu.pipeline_mode<synchronous>, transform_indices = @transform_7, window_bounds = array<i64: 1, 32>}, {transform_indices = @transform_8, window_bounds = array<i64: 3>}, {transform_indices = @transform_9, window_bounds = array<i64: 1, 1, 256>}]} {
    %c0 = arith.constant 0 : index
    %c0_0 = arith.constant 0 : index
    %0 = vector.load %arg1[%c0, %c0_0] : memref<256x8xi32, #tpu.memory_space<vmem>>, vector<256x8xi32>
    %1 = tpu.iota {dimensions = array<i32: 1>} : vector<256x512xi32>
    %2 = vector.extract_strided_slice %0 {offsets = [0, 0], sizes = [256, 1], strides = [1, 1]} : vector<256x8xi32> to vector<256x1xi32>
    %3 = vector.broadcast %2 : vector<256x1xi32> to vector<256x512xi32>
    %4 = arith.cmpi eq, %3, %1 : vector<256x512xi32>
    %cst = arith.constant 1.000000e+00 : f32
    %cst_1 = arith.constant 0.000000e+00 : f32
    %5 = vector.broadcast %cst : f32 to vector<256x512xf32>
    %6 = vector.broadcast %cst_1 : f32 to vector<256x512xf32>
    %7 = arith.select %4, %5, %6 : vector<256x512xi1>, vector<256x512xf32>
    %8 = arith.truncf %7 : vector<256x512xf32> to vector<256x512xbf16>
    %9 = vector.extract_strided_slice %0 {offsets = [0, 1], sizes = [256, 1], strides = [1, 1]} : vector<256x8xi32> to vector<256x1xi32>
    %10 = vector.broadcast %9 : vector<256x1xi32> to vector<256x512xi32>
    %11 = arith.cmpi eq, %10, %1 : vector<256x512xi32>
    %cst_2 = arith.constant 1.000000e+00 : f32
    %cst_3 = arith.constant 0.000000e+00 : f32
    %12 = vector.broadcast %cst_2 : f32 to vector<256x512xf32>
    %13 = vector.broadcast %cst_3 : f32 to vector<256x512xf32>
    %14 = arith.select %11, %12, %13 : vector<256x512xi1>, vector<256x512xf32>
    %15 = arith.truncf %14 : vector<256x512xf32> to vector<256x512xbf16>
    %16 = vector.extract_strided_slice %0 {offsets = [0, 2], sizes = [256, 1], strides = [1, 1]} : vector<256x8xi32> to vector<256x1xi32>
    %17 = vector.broadcast %16 : vector<256x1xi32> to vector<256x512xi32>
    %18 = arith.cmpi eq, %17, %1 : vector<256x512xi32>
    %cst_4 = arith.constant 1.000000e+00 : f32
    %cst_5 = arith.constant 0.000000e+00 : f32
    %19 = vector.broadcast %cst_4 : f32 to vector<256x512xf32>
    %20 = vector.broadcast %cst_5 : f32 to vector<256x512xf32>
    %21 = arith.select %18, %19, %20 : vector<256x512xi1>, vector<256x512xf32>
    %22 = arith.truncf %21 : vector<256x512xf32> to vector<256x512xbf16>
    %23 = vector.extract_strided_slice %0 {offsets = [0, 3], sizes = [256, 1], strides = [1, 1]} : vector<256x8xi32> to vector<256x1xi32>
    %24 = vector.broadcast %23 : vector<256x1xi32> to vector<256x512xi32>
    %25 = arith.cmpi eq, %24, %1 : vector<256x512xi32>
    %cst_6 = arith.constant 1.000000e+00 : f32
    %cst_7 = arith.constant 0.000000e+00 : f32
    %26 = vector.broadcast %cst_6 : f32 to vector<256x512xf32>
    %27 = vector.broadcast %cst_7 : f32 to vector<256x512xf32>
    %28 = arith.select %25, %26, %27 : vector<256x512xi1>, vector<256x512xf32>
    %29 = arith.truncf %28 : vector<256x512xf32> to vector<256x512xbf16>
    %30 = vector.extract_strided_slice %0 {offsets = [0, 4], sizes = [256, 1], strides = [1, 1]} : vector<256x8xi32> to vector<256x1xi32>
    %31 = vector.broadcast %30 : vector<256x1xi32> to vector<256x512xi32>
    %32 = arith.cmpi eq, %31, %1 : vector<256x512xi32>
    %cst_8 = arith.constant 1.000000e+00 : f32
    %cst_9 = arith.constant 0.000000e+00 : f32
    %33 = vector.broadcast %cst_8 : f32 to vector<256x512xf32>
    %34 = vector.broadcast %cst_9 : f32 to vector<256x512xf32>
    %35 = arith.select %32, %33, %34 : vector<256x512xi1>, vector<256x512xf32>
    %36 = arith.truncf %35 : vector<256x512xf32> to vector<256x512xbf16>
    %37 = vector.extract_strided_slice %0 {offsets = [0, 5], sizes = [256, 1], strides = [1, 1]} : vector<256x8xi32> to vector<256x1xi32>
    %38 = vector.broadcast %37 : vector<256x1xi32> to vector<256x512xi32>
    %39 = arith.cmpi eq, %38, %1 : vector<256x512xi32>
    %cst_10 = arith.constant 1.000000e+00 : f32
    %cst_11 = arith.constant 0.000000e+00 : f32
    %40 = vector.broadcast %cst_10 : f32 to vector<256x512xf32>
    %41 = vector.broadcast %cst_11 : f32 to vector<256x512xf32>
    %42 = arith.select %39, %40, %41 : vector<256x512xi1>, vector<256x512xf32>
    %43 = arith.truncf %42 : vector<256x512xf32> to vector<256x512xbf16>
    %44 = vector.extract_strided_slice %0 {offsets = [0, 6], sizes = [256, 1], strides = [1, 1]} : vector<256x8xi32> to vector<256x1xi32>
    %45 = vector.broadcast %44 : vector<256x1xi32> to vector<256x512xi32>
    %46 = arith.cmpi eq, %45, %1 : vector<256x512xi32>
    %cst_12 = arith.constant 1.000000e+00 : f32
    %cst_13 = arith.constant 0.000000e+00 : f32
    %47 = vector.broadcast %cst_12 : f32 to vector<256x512xf32>
    %48 = vector.broadcast %cst_13 : f32 to vector<256x512xf32>
    %49 = arith.select %46, %47, %48 : vector<256x512xi1>, vector<256x512xf32>
    %50 = arith.truncf %49 : vector<256x512xf32> to vector<256x512xbf16>
    %51 = vector.extract_strided_slice %0 {offsets = [0, 7], sizes = [256, 1], strides = [1, 1]} : vector<256x8xi32> to vector<256x1xi32>
    %52 = vector.broadcast %51 : vector<256x1xi32> to vector<256x512xi32>
    %53 = arith.cmpi eq, %52, %1 : vector<256x512xi32>
    %cst_14 = arith.constant 1.000000e+00 : f32
    %cst_15 = arith.constant 0.000000e+00 : f32
    %54 = vector.broadcast %cst_14 : f32 to vector<256x512xf32>
    %55 = vector.broadcast %cst_15 : f32 to vector<256x512xf32>
    %56 = arith.select %53, %54, %55 : vector<256x512xi1>, vector<256x512xf32>
    %57 = arith.truncf %56 : vector<256x512xf32> to vector<256x512xbf16>
    %58 = tpu.concatenate %8, %15, %22, %29, %36, %43, %50, %57 in 0 : vector<256x512xbf16>, vector<256x512xbf16>, vector<256x512xbf16>, vector<256x512xbf16>, vector<256x512xbf16>, vector<256x512xbf16>, vector<256x512xbf16>, vector<256x512xbf16> -> vector<2048x512xbf16>
    %c0_16 = arith.constant 0 : index
    %c0_17 = arith.constant 0 : index
    %59 = vector.load %arg2[%c0_16, %c0_17] : memref<512x128xbf16, #tpu.memory_space<vmem>>, vector<512x128xbf16>
    %cst_18 = arith.constant dense<0.000000e+00> : vector<2048x128xf32>
    %60 = tpu.matmul %58, %59, %cst_18 {dimension_numbers = #tpu.dot_dimension_numbers<[1], [0], [0], [1], [0, 0, 1, 1], [], []>} : vector<2048x512xbf16>, vector<512x128xbf16>, vector<2048x128xf32> -> vector<2048x128xf32>
    %61 = vector.extract_strided_slice %60 {offsets = [0, 0], sizes = [256, 128], strides = [1, 1]} : vector<2048x128xf32> to vector<256x128xf32>
    %62 = vector.extract_strided_slice %60 {offsets = [256, 0], sizes = [256, 128], strides = [1, 1]} : vector<2048x128xf32> to vector<256x128xf32>
    %63 = arith.addf %61, %62 : vector<256x128xf32>
    %64 = vector.extract_strided_slice %60 {offsets = [512, 0], sizes = [256, 128], strides = [1, 1]} : vector<2048x128xf32> to vector<256x128xf32>
    %65 = arith.addf %63, %64 : vector<256x128xf32>
    %66 = vector.extract_strided_slice %60 {offsets = [768, 0], sizes = [256, 128], strides = [1, 1]} : vector<2048x128xf32> to vector<256x128xf32>
    %67 = arith.addf %65, %66 : vector<256x128xf32>
    %68 = vector.extract_strided_slice %60 {offsets = [1024, 0], sizes = [256, 128], strides = [1, 1]} : vector<2048x128xf32> to vector<256x128xf32>
    %69 = arith.addf %67, %68 : vector<256x128xf32>
    %70 = vector.extract_strided_slice %60 {offsets = [1280, 0], sizes = [256, 128], strides = [1, 1]} : vector<2048x128xf32> to vector<256x128xf32>
    %71 = arith.addf %69, %70 : vector<256x128xf32>
    %72 = vector.extract_strided_slice %60 {offsets = [1536, 0], sizes = [256, 128], strides = [1, 1]} : vector<2048x128xf32> to vector<256x128xf32>
    %73 = arith.addf %71, %72 : vector<256x128xf32>
    %74 = vector.extract_strided_slice %60 {offsets = [1792, 0], sizes = [256, 128], strides = [1, 1]} : vector<2048x128xf32> to vector<256x128xf32>
    %75 = arith.addf %73, %74 : vector<256x128xf32>
    %76 = vector.extract_strided_slice %75 {offsets = [0, 0], sizes = [256, 32], strides = [1, 1]} : vector<256x128xf32> to vector<256x32xf32>
    %77 = vector.extract_strided_slice %75 {offsets = [0, 32], sizes = [256, 32], strides = [1, 1]} : vector<256x128xf32> to vector<256x32xf32>
    %78 = vector.extract_strided_slice %75 {offsets = [0, 64], sizes = [256, 1], strides = [1, 1]} : vector<256x128xf32> to vector<256x1xf32>
    %79 = arith.mulf %76, %76 : vector<256x32xf32>
    %80 = arith.subf %79, %77 : vector<256x32xf32>
    %cst_19 = arith.constant dense<0.000000e+00> : vector<256xf32>
    %81 = vector.multi_reduction <add>, %80, %cst_19 [1] : vector<256x32xf32> to vector<256xf32>
    %82 = vector.shape_cast %81 : vector<256xf32> to vector<256x1xf32>
    %cst_20 = arith.constant 5.000000e-01 : f32
    %83 = vector.broadcast %cst_20 : f32 to vector<256x1xf32>
    %84 = arith.mulf %83, %82 : vector<256x1xf32>
    %85 = vector.extract_strided_slice %60 {offsets = [0, 0], sizes = [256, 32], strides = [1, 1]} : vector<2048x128xf32> to vector<256x32xf32>
    %c0_21 = arith.constant 0 : index
    %c0_22 = arith.constant 0 : index
    %86 = vector.load %arg11[%c0_21, %c0_22] : memref<256x384xf32, #tpu.memory_space<vmem>>, vector<256x32xf32>
    tpu.vector_store %arg11[%c0_21, %c0_22], %85 {strides = array<i32>} : memref<256x384xf32, #tpu.memory_space<vmem>>, vector<256x32xf32>,
    %87 = vector.extract_strided_slice %60 {offsets = [256, 0], sizes = [256, 32], strides = [1, 1]} : vector<2048x128xf32> to vector<256x32xf32>
    %c0_23 = arith.constant 0 : index
    %c32 = arith.constant 32 : index
    %88 = vector.load %arg11[%c0_23, %c32] : memref<256x384xf32, #tpu.memory_space<vmem>>, vector<256x32xf32>
    tpu.vector_store %arg11[%c0_23, %c32], %87 {strides = array<i32>} : memref<256x384xf32, #tpu.memory_space<vmem>>, vector<256x32xf32>,
    %89 = vector.extract_strided_slice %60 {offsets = [512, 0], sizes = [256, 32], strides = [1, 1]} : vector<2048x128xf32> to vector<256x32xf32>
    %c0_24 = arith.constant 0 : index
    %c64 = arith.constant 64 : index
    %90 = vector.load %arg11[%c0_24, %c64] : memref<256x384xf32, #tpu.memory_space<vmem>>, vector<256x32xf32>
    tpu.vector_store %arg11[%c0_24, %c64], %89 {strides = array<i32>} : memref<256x384xf32, #tpu.memory_space<vmem>>, vector<256x32xf32>,
    %91 = vector.extract_strided_slice %60 {offsets = [768, 0], sizes = [256, 32], strides = [1, 1]} : vector<2048x128xf32> to vector<256x32xf32>
    %c0_25 = arith.constant 0 : index
    %c96 = arith.constant 96 : index
    %92 = vector.load %arg11[%c0_25, %c96] : memref<256x384xf32, #tpu.memory_space<vmem>>, vector<256x32xf32>
    tpu.vector_store %arg11[%c0_25, %c96], %91 {strides = array<i32>} : memref<256x384xf32, #tpu.memory_space<vmem>>, vector<256x32xf32>,
    %93 = vector.extract_strided_slice %60 {offsets = [1024, 0], sizes = [256, 32], strides = [1, 1]} : vector<2048x128xf32> to vector<256x32xf32>
    %c0_26 = arith.constant 0 : index
    %c128 = arith.constant 128 : index
    %94 = vector.load %arg11[%c0_26, %c128] : memref<256x384xf32, #tpu.memory_space<vmem>>, vector<256x32xf32>
    tpu.vector_store %arg11[%c0_26, %c128], %93 {strides = array<i32>} : memref<256x384xf32, #tpu.memory_space<vmem>>, vector<256x32xf32>,
    %95 = vector.extract_strided_slice %60 {offsets = [1280, 0], sizes = [256, 32], strides = [1, 1]} : vector<2048x128xf32> to vector<256x32xf32>
    %c0_27 = arith.constant 0 : index
    %c160 = arith.constant 160 : index
    %96 = vector.load %arg11[%c0_27, %c160] : memref<256x384xf32, #tpu.memory_space<vmem>>, vector<256x32xf32>
    tpu.vector_store %arg11[%c0_27, %c160], %95 {strides = array<i32>} : memref<256x384xf32, #tpu.memory_space<vmem>>, vector<256x32xf32>,
    %97 = vector.extract_strided_slice %60 {offsets = [1536, 0], sizes = [256, 32], strides = [1, 1]} : vector<2048x128xf32> to vector<256x32xf32>
    %c0_28 = arith.constant 0 : index
    %c192 = arith.constant 192 : index
    %98 = vector.load %arg11[%c0_28, %c192] : memref<256x384xf32, #tpu.memory_space<vmem>>, vector<256x32xf32>
    tpu.vector_store %arg11[%c0_28, %c192], %97 {strides = array<i32>} : memref<256x384xf32, #tpu.memory_space<vmem>>, vector<256x32xf32>,
    %99 = vector.extract_strided_slice %60 {offsets = [1792, 0], sizes = [256, 32], strides = [1, 1]} : vector<2048x128xf32> to vector<256x32xf32>
    %c0_29 = arith.constant 0 : index
    %c224 = arith.constant 224 : index
    %100 = vector.load %arg11[%c0_29, %c224] : memref<256x384xf32, #tpu.memory_space<vmem>>, vector<256x32xf32>
    tpu.vector_store %arg11[%c0_29, %c224], %99 {strides = array<i32>} : memref<256x384xf32, #tpu.memory_space<vmem>>, vector<256x32xf32>,
    %c0_30 = arith.constant 0 : index
    %c0_31 = arith.constant 0 : index
    %101 = vector.load %arg3[%c0_30, %c0_31] : memref<256x16xf32, #tpu.memory_space<vmem>>, vector<256x16xf32>
    %c0_32 = arith.constant 0 : index
    %c256 = arith.constant 256 : index
    %102 = vector.load %arg11[%c0_32, %c256] : memref<256x384xf32, #tpu.memory_space<vmem>>, vector<256x16xf32>
    tpu.vector_store %arg11[%c0_32, %c256], %101 {strides = array<i32>} : memref<256x384xf32, #tpu.memory_space<vmem>>, vector<256x16xf32>,
    %cst_33 = arith.constant 0.000000e+00 : f32
    %103 = vector.broadcast %cst_33 : f32 to vector<256x112xf32>
    %c0_34 = arith.constant 0 : index
    %c272 = arith.constant 272 : index
    %104 = vector.load %arg11[%c0_34, %c272] : memref<256x384xf32, #tpu.memory_space<vmem>>, vector<256x112xf32>
    tpu.vector_store %arg11[%c0_34, %c272], %103 {strides = array<i32>} : memref<256x384xf32, #tpu.memory_space<vmem>>, vector<256x112xf32>,
    %c0_35 = arith.constant 0 : index
    %c0_36 = arith.constant 0 : index
    %105 = vector.load %arg11[%c0_35, %c0_36] : memref<256x384xf32, #tpu.memory_space<vmem>>, vector<256x384xf32>
    %c0_37 = arith.constant 0 : index
    %c0_38 = arith.constant 0 : index
    %106 = vector.load %arg4[%c0_37, %c0_38] : memref<384x64xf32, #tpu.memory_space<vmem>>, vector<384x64xf32>
    %c0_39 = arith.constant 0 : index
    %c0_40 = arith.constant 0 : index
    %107 = vector.load %arg5[%c0_39, %c0_40] : memref<1x64xf32, #tpu.memory_space<vmem>>, vector<1x64xf32>
    %cst_41 = arith.constant dense<0.000000e+00> : vector<256x64xf32>
    %108 = tpu.matmul %105, %106, %cst_41 {dimension_numbers = #tpu.dot_dimension_numbers<[1], [0], [0], [1], [0, 0, 1, 1], [], []>} : vector<256x384xf32>, vector<384x64xf32>, vector<256x64xf32> -> vector<256x64xf32>
    %109 = vector.broadcast %107 : vector<1x64xf32> to vector<256x64xf32>
    %110 = arith.addf %108, %109 : vector<256x64xf32>
    %cst_42 = arith.constant 0.000000e+00 : f32
    %111 = vector.broadcast %cst_42 : f32 to vector<256x64xf32>
    %112 = arith.maximumf %110, %111 : vector<256x64xf32>
    %c0_43 = arith.constant 0 : index
    %c0_44 = arith.constant 0 : index
    %113 = vector.load %arg6[%c0_43, %c0_44] : memref<64x32xf32, #tpu.memory_space<vmem>>, vector<64x32xf32>
    %c0_45 = arith.constant 0 : index
    %c0_46 = arith.constant 0 : index
    %114 = vector.load %arg7[%c0_45, %c0_46] : memref<1x32xf32, #tpu.memory_space<vmem>>, vector<1x32xf32>
    %cst_47 = arith.constant dense<0.000000e+00> : vector<256x32xf32>
    %115 = tpu.matmul %112, %113, %cst_47 {dimension_numbers = #tpu.dot_dimension_numbers<[1], [0], [0], [1], [0, 0, 1, 1], [], []>} : vector<256x64xf32>, vector<64x32xf32>, vector<256x32xf32> -> vector<256x32xf32>
    %116 = vector.broadcast %114 : vector<1x32xf32> to vector<256x32xf32>
    %117 = arith.addf %115, %116 : vector<256x32xf32>
    %cst_48 = arith.constant 0.000000e+00 : f32
    %118 = vector.broadcast %cst_48 : f32 to vector<256x32xf32>
    %119 = arith.maximumf %117, %118 : vector<256x32xf32>
    %c0_49 = arith.constant 0 : index
    %120 = memref.load %arg9[%c0_49] : memref<3xf32, #tpu.memory_space<smem>>
    %c1 = arith.constant 1 : index
    %121 = memref.load %arg9[%c1] : memref<3xf32, #tpu.memory_space<smem>>
    %c2 = arith.constant 2 : index
    %122 = memref.load %arg9[%c2] : memref<3xf32, #tpu.memory_space<smem>>
    %c0_50 = arith.constant 0 : index
    %c0_51 = arith.constant 0 : index
    %123 = vector.load %arg8[%c0_50, %c0_51] : memref<1x32xf32, #tpu.memory_space<vmem>>, vector<1x32xf32>
    %124 = vector.broadcast %123 : vector<1x32xf32> to vector<256x32xf32>
    %125 = arith.mulf %119, %124 : vector<256x32xf32>
    %cst_52 = arith.constant dense<0.000000e+00> : vector<256xf32>
    %126 = vector.multi_reduction <add>, %125, %cst_52 [1] : vector<256x32xf32> to vector<256xf32>
    %127 = vector.shape_cast %126 : vector<256xf32> to vector<256x1xf32>
    %128 = vector.broadcast %120 : f32 to vector<256x1xf32>
    %129 = arith.mulf %78, %128 : vector<256x1xf32>
    %130 = vector.broadcast %121 : f32 to vector<256x1xf32>
    %131 = arith.mulf %84, %130 : vector<256x1xf32>
    %132 = arith.addf %129, %131 : vector<256x1xf32>
    %133 = arith.addf %132, %127 : vector<256x1xf32>
    %134 = vector.broadcast %122 : f32 to vector<256x1xf32>
    %135 = arith.addf %133, %134 : vector<256x1xf32>
    %136 = arith.negf %135 : vector<256x1xf32>
    %137 = math.exp %136 : vector<256x1xf32>
    %cst_53 = arith.constant 1.000000e+00 : f32
    %138 = vector.broadcast %cst_53 : f32 to vector<256x1xf32>
    %139 = arith.addf %138, %137 : vector<256x1xf32>
    %140 = arith.divf %138, %139 : vector<256x1xf32>
    %141 = tpu.iota {dimensions = array<i32: 0>} : vector<256x256xi32>
    %142 = tpu.iota {dimensions = array<i32: 1>} : vector<256x256xi32>
    %143 = arith.cmpi eq, %141, %142 : vector<256x256xi32>
    %cst_54 = arith.constant 0.000000e+00 : f32
    %144 = vector.shape_cast %140 : vector<256x1xf32> to vector<256x1xf32>
    %145 = vector.broadcast %144 : vector<256x1xf32> to vector<256x256xf32>
    %146 = vector.broadcast %cst_54 : f32 to vector<256x256xf32>
    %147 = arith.select %143, %145, %146 : vector<256x256xi1>, vector<256x256xf32>
    %cst_55 = arith.constant dense<0.000000e+00> : vector<256xf32>
    %148 = vector.multi_reduction <add>, %147, %cst_55 [0] : vector<256x256xf32> to vector<256xf32>
    %149 = vector.shape_cast %148 : vector<256xf32> to vector<1x256xf32>
    %150 = vector.shape_cast %149 : vector<1x256xf32> to vector<1x1x256xf32>
    %c0_56 = arith.constant 0 : index
    %c0_57 = arith.constant 0 : index
    %c0_58 = arith.constant 0 : index
    %151 = vector.load %arg10[%c0_56, %c0_57, %c0_58] : memref<1x1x256xf32, #tpu.memory_space<vmem>>, vector<1x1x256xf32>
    tpu.vector_store %arg10[%c0_56, %c0_57, %c0_58], %150 {strides = array<i32>} : memref<1x1x256xf32, #tpu.memory_space<vmem>>, vector<1x1x256xf32>,
    return
  }
  func.func @transform_0(%arg0: i32) -> (i32, i32) {
    %c0_i32 = arith.constant 0 : i32
    %c0_i32_0 = arith.constant 0 : i32
    return %arg0, %c0_i32 : i32, i32
  }
  func.func @transform_1(%arg0: i32) -> (i32, i32) {
    %c0_i32 = arith.constant 0 : i32
    %c0_i32_0 = arith.constant 0 : i32
    %c0_i32_1 = arith.constant 0 : i32
    return %c0_i32, %c0_i32_0 : i32, i32
  }
  func.func @transform_2(%arg0: i32) -> (i32, i32) {
    %c0_i32 = arith.constant 0 : i32
    %c0_i32_0 = arith.constant 0 : i32
    return %arg0, %c0_i32 : i32, i32
  }
  func.func @transform_3(%arg0: i32) -> (i32, i32) {
    %c0_i32 = arith.constant 0 : i32
    %c0_i32_0 = arith.constant 0 : i32
    %c0_i32_1 = arith.constant 0 : i32
    return %c0_i32, %c0_i32_0 : i32, i32
  }
  func.func @transform_4(%arg0: i32) -> (i32, i32) {
    %c0_i32 = arith.constant 0 : i32
    %c0_i32_0 = arith.constant 0 : i32
    %c0_i32_1 = arith.constant 0 : i32
    return %c0_i32, %c0_i32_0 : i32, i32
  }
  func.func @transform_5(%arg0: i32) -> (i32, i32) {
    %c0_i32 = arith.constant 0 : i32
    %c0_i32_0 = arith.constant 0 : i32
    %c0_i32_1 = arith.constant 0 : i32
    return %c0_i32, %c0_i32_0 : i32, i32
  }
  func.func @transform_6(%arg0: i32) -> (i32, i32) {
    %c0_i32 = arith.constant 0 : i32
    %c0_i32_0 = arith.constant 0 : i32
    %c0_i32_1 = arith.constant 0 : i32
    return %c0_i32, %c0_i32_0 : i32, i32
  }
  func.func @transform_7(%arg0: i32) -> (i32, i32) {
    %c0_i32 = arith.constant 0 : i32
    %c0_i32_0 = arith.constant 0 : i32
    %c0_i32_1 = arith.constant 0 : i32
    return %c0_i32, %c0_i32_0 : i32, i32
  }
  func.func @transform_8(%arg0: i32) -> i32 {
    %c0_i32 = arith.constant 0 : i32
    %c0_i32_0 = arith.constant 0 : i32
    return %c0_i32 : i32
  }
  func.func @transform_9(%arg0: i32) -> (i32, i32, i32) {
    %c0_i32 = arith.constant 0 : i32
    %c0_i32_0 = arith.constant 0 : i32
    %c0_i32_1 = arith.constant 0 : i32
    return %arg0, %c0_i32, %c0_i32_0 : i32, i32, i32
  }
}

</mosaic_0001>

<llo_original>
// kernel: tpu_custom_call.1
$region0: #{tpu_custom_call.1}
  #allocation0 [shape = 'u32[]', space=smem, size = 0x4, offset = 0x4, fixed_abs, tag = 'smem constant byte address 0x4 - core index']
  #allocation1 [shape = 'u32[144,128]{1,0:T(1,128)}', space=vmem, size = 0x12000, scoped, tag = 'internal scratch']
  #allocation2 [shape = 'f32[256,384]{1,0:T(8,128)}', space=vmem, size = 0x60000, scoped, tag = 'scratch operand']
  %s0 = inlined_call_operand.vmem [shape: s32[1024,8], index: 0, kind: input, shape index: {}]
  %s1 = inlined_call_operand.vmem [shape: bf16[512,128], index: 1, kind: input, shape index: {}]
  %s2 = inlined_call_operand.vmem [shape: f32[1024,16], index: 2, kind: input, shape index: {}]
  %s3 = inlined_call_operand.vmem [shape: f32[384,64], index: 3, kind: input, shape index: {}]
  %s4 = inlined_call_operand.vmem [shape: f32[1,64], index: 4, kind: input, shape index: {}]
  %s5 = inlined_call_operand.vmem [shape: f32[64,32], index: 5, kind: input, shape index: {}]
  %s6 = inlined_call_operand.vmem [shape: f32[1,32], index: 6, kind: input, shape index: {}]
  %s7 = inlined_call_operand.vmem [shape: f32[1,32], index: 7, kind: input, shape index: {}]
  %s8 = inlined_call_operand.vmem [shape: f32[3], index: 8, kind: input, shape index: {}]
  %s9 = inlined_call_operand.hbm [shape: f32[4,1,256], index: 9, kind: output, shape index: {}]
  %s10 = sld [smem:[#allocation0]]
  $region73: #{tpu_custom_call.1} parent=0
    _
  %s12 = ssub.s32 1, %s10
  %s13 = scalar_select 0, %s12, %s10
  $region1: #{tpu_custom_call.1} parent=0
    #allocation3 [shape = 'u8[512]{0}', space=smem, size = 0x200, scoped, tag = 'input window, operand 8, single buffered']
    #allocation4 [shape = 's32[2]{0}', space=sflag, size = 0x8, scoped, tag = 'scoped memory for tpu_custom_call.1']
    #allocation5 [shape = 's32[2]{0}', space=sflag, size = 0x8, scoped, tag = 'scoped memory for tpu_custom_call.1']
    #allocation6 [shape = 'u8[2048]{0}', space=vmem, size = 0x800, scoped, tag = 'output window, operand 0']
    %14 = vsyncpa [#allocation5], 0
    %15 = vsyncpa [#allocation4], 0
    %s16 = scalar_lea.sflag [#allocation4], 1
    %17 = vsyncpa %s16, 0
    loop: start=0, step=1, limit=6
    $region2: #{tpu_custom_call.1} parent=1 // loop_pre_header
      _
    $region3: #{tpu_custom_call.1} parent=1 // loop_header
      %s19 = sphi 0, %s23
      %p20 = scmp.ge.s32.totalorder %s19, 6
      %s29 = sphi 0, %s31
      %s32 = sphi 0, %s29
      %s33 = sphi 0, %s32
      %s49 = sphi 0, %s33
      %s53 = sphi 0, %s53
      %s55 = sphi 0, %s53
      %s56 = sphi 0, %s55
      %s70 = sphi 0, %s56
      %s76 = sphi 0, %s78
      %s79 = sphi 0, %s76
      %s80 = sphi 0, %s79
      %s96 = sphi 0, %s80
      %s100 = sphi 0, %s100
      %s102 = sphi 0, %s100
      %s103 = sphi 0, %s102
      %s117 = sphi 0, %s103
      %s121 = sphi 0, %s121
      %s123 = sphi 0, %s121
      %s124 = sphi 0, %s123
      %s138 = sphi 0, %s124
      %s142 = sphi 0, %s142
      %s144 = sphi 0, %s142
      %s145 = sphi 0, %s144
      %s159 = sphi 0, %s145
      %s163 = sphi 0, %s163
      %s165 = sphi 0, %s163
      %s166 = sphi 0, %s165
      %s180 = sphi 0, %s166
      %s184 = sphi 0, %s184
      %s186 = sphi 0, %s184
      %s187 = sphi 0, %s186
      %s201 = sphi 0, %s187
      %s205 = sphi 0, %s205
      %s207 = sphi 0, %s205
      %s208 = sphi 0, %s207
      %s222 = sphi 0, %s208
      %s228 = sphi 0, %s230
      %s231 = sphi 0, %s228
      %s232 = sphi 0, %s231
      %s248 = sphi 0, %s232
    $region4: #{tpu_custom_call.1} parent=1 // loop_header_branch
      %22 = sbr.rel (%p20) target = $region8
    $region5: #{tpu_custom_call.1} parent=1 // loop_body
      %s24 = ssub.s32 %s19, 1
      %s25 = ssub.s32 %s19, 2
      %s26 = sadd.s32 %s19, 1
      %s27 = ssub.s32 %s19, %s26
      %p28 = scmp.eq.s32.totalorder %s27, 0
      %s30 = sadd.s32 %s29, 1
      %s31 = scalar_select %p28, %s29, %s30
      %p34 = pneg %p28
      %p35 = scmp.eq.s32.totalorder %s19, 3
      %p36 = por %p34, %p35
      %p37 = scmp.ne.s32.totalorder %s29, %s32
      %p38 = scmp.eq.s32.totalorder %s19, 0
      %p39 = por %p37, %p38
      %p40 = scmp.ne.s32.totalorder %s29, %s32
      %p41 = scmp.eq.s32.totalorder %s24, 3
      %p42 = por %p40, %p41
      %p43 = scmp.ne.s32.totalorder %s32, %s33
      %p44 = scmp.eq.s32.totalorder %s24, 0
      %p45 = por %p43, %p44
      %p46 = scmp.ne.s32.totalorder %s32, %s33
      %p47 = scmp.eq.s32.totalorder %s25, 3
      %p48 = por %p46, %p47
      %p50 = scmp.ne.s32.totalorder %s33, %s49
      %p51 = scmp.eq.s32.totalorder %s25, 0
      %p52 = por %p50, %p51
      %s54 = sadd.s32 %s53, 1
      %p57 = scmp.eq.s32.totalorder %s19, 3
      %p58 = scmp.ne.s32.totalorder %s53, %s55
      %p59 = scmp.eq.s32.totalorder %s19, 0
      %p60 = por %p58, %p59
      %p61 = scmp.ne.s32.totalorder %s53, %s55
      %p62 = scmp.eq.s32.totalorder %s24, 3
      %p63 = por %p61, %p62
      %p64 = scmp.ne.s32.totalorder %s55, %s56
      %p65 = scmp.eq.s32.totalorder %s24, 0
      %p66 = por %p64, %p65
      %p67 = scmp.ne.s32.totalorder %s55, %s56
      %p68 = scmp.eq.s32.totalorder %s25, 3
      %p69 = por %p67, %p68
      %p71 = scmp.ne.s32.totalorder %s56, %s70
      %p72 = scmp.eq.s32.totalorder %s25, 0
      %p73 = por %p71, %p72
      %s74 = ssub.s32 %s19, %s26
      %p75 = scmp.eq.s32.totalorder %s74, 0
      %s77 = sadd.s32 %s76, 1
      %s78 = scalar_select %p75, %s76, %s77
      %p81 = pneg %p75
      %p82 = scmp.eq.s32.totalorder %s19, 3
      %p83 = por %p81, %p82
      %p84 = scmp.ne.s32.totalorder %s76, %s79
      %p85 = scmp.eq.s32.totalorder %s19, 0
      %p86 = por %p84, %p85
      %p87 = scmp.ne.s32.totalorder %s76, %s79
      %p88 = scmp.eq.s32.totalorder %s24, 3
      %p89 = por %p87, %p88
      %p90 = scmp.ne.s32.totalorder %s79, %s80
      %p91 = scmp.eq.s32.totalorder %s24, 0
      %p92 = por %p90, %p91
      %p93 = scmp.ne.s32.totalorder %s79, %s80
      %p94 = scmp.eq.s32.totalorder %s25, 3
      %p95 = por %p93, %p94
      %p97 = scmp.ne.s32.totalorder %s80, %s96
      %p98 = scmp.eq.s32.totalorder %s25, 0
      %p99 = por %p97, %p98
      %s101 = sadd.s32 %s100, 1
      %p104 = scmp.eq.s32.totalorder %s19, 3
      %p105 = scmp.ne.s32.totalorder %s100, %s102
      %p106 = scmp.eq.s32.totalorder %s19, 0
      %p107 = por %p105, %p106
      %p108 = scmp.ne.s32.totalorder %s100, %s102
      %p109 = scmp.eq.s32.totalorder %s24, 3
      %p110 = por %p108, %p109
      %p111 = scmp.ne.s32.totalorder %s102, %s103
      %p112 = scmp.eq.s32.totalorder %s24, 0
      %p113 = por %p111, %p112
      %p114 = scmp.ne.s32.totalorder %s102, %s103
      %p115 = scmp.eq.s32.totalorder %s25, 3
      %p116 = por %p114, %p115
      %p118 = scmp.ne.s32.totalorder %s103, %s117
      %p119 = scmp.eq.s32.totalorder %s25, 0
      %p120 = por %p118, %p119
      %s122 = sadd.s32 %s121, 1
      %p125 = scmp.eq.s32.totalorder %s19, 3
      %p126 = scmp.ne.s32.totalorder %s121, %s123
      %p127 = scmp.eq.s32.totalorder %s19, 0
      %p128 = por %p126, %p127
      %p129 = scmp.ne.s32.totalorder %s121, %s123
      %p130 = scmp.eq.s32.totalorder %s24, 3
      %p131 = por %p129, %p130
      %p132 = scmp.ne.s32.totalorder %s123, %s124
      %p133 = scmp.eq.s32.totalorder %s24, 0
      %p134 = por %p132, %p133
      %p135 = scmp.ne.s32.totalorder %s123, %s124
      %p136 = scmp.eq.s32.totalorder %s25, 3
      %p137 = por %p135, %p136
      %p139 = scmp.ne.s32.totalorder %s124, %s138
      %p140 = scmp.eq.s32.totalorder %s25, 0
      %p141 = por %p139, %p140
      %s143 = sadd.s32 %s142, 1
      %p146 = scmp.eq.s32.totalorder %s19, 3
      %p147 = scmp.ne.s32.totalorder %s142, %s144
      %p148 = scmp.eq.s32.totalorder %s19, 0
      %p149 = por %p147, %p148
      %p150 = scmp.ne.s32.totalorder %s142, %s144
      %p151 = scmp.eq.s32.totalorder %s24, 3
      %p152 = por %p150, %p151
      %p153 = scmp.ne.s32.totalorder %s144, %s145
      %p154 = scmp.eq.s32.totalorder %s24, 0
      %p155 = por %p153, %p154
      %p156 = scmp.ne.s32.totalorder %s144, %s145
      %p157 = scmp.eq.s32.totalorder %s25, 3
      %p158 = por %p156, %p157
      %p160 = scmp.ne.s32.totalorder %s145, %s159
      %p161 = scmp.eq.s32.totalorder %s25, 0
      %p162 = por %p160, %p161
      %s164 = sadd.s32 %s163, 1
      %p167 = scmp.eq.s32.totalorder %s19, 3
      %p168 = scmp.ne.s32.totalorder %s163, %s165
      %p169 = scmp.eq.s32.totalorder %s19, 0
      %p170 = por %p168, %p169
      %p171 = scmp.ne.s32.totalorder %s163, %s165
      %p172 = scmp.eq.s32.totalorder %s24, 3
      %p173 = por %p171, %p172
      %p174 = scmp.ne.s32.totalorder %s165, %s166
      %p175 = scmp.eq.s32.totalorder %s24, 0
      %p176 = por %p174, %p175
      %p177 = scmp.ne.s32.totalorder %s165, %s166
      %p178 = scmp.eq.s32.totalorder %s25, 3
      %p179 = por %p177, %p178
      %p181 = scmp.ne.s32.totalorder %s166, %s180
      %p182 = scmp.eq.s32.totalorder %s25, 0
      %p183 = por %p181, %p182
      %s185 = sadd.s32 %s184, 1
      %p188 = scmp.eq.s32.totalorder %s19, 3
      %p189 = scmp.ne.s32.totalorder %s184, %s186
      %p190 = scmp.eq.s32.totalorder %s19, 0
      %p191 = por %p189, %p190
      %p192 = scmp.ne.s32.totalorder %s184, %s186
      %p193 = scmp.eq.s32.totalorder %s24, 3
      %p194 = por %p192, %p193
      %p195 = scmp.ne.s32.totalorder %s186, %s187
      %p196 = scmp.eq.s32.totalorder %s24, 0
      %p197 = por %p195, %p196
      %p198 = scmp.ne.s32.totalorder %s186, %s187
      %p199 = scmp.eq.s32.totalorder %s25, 3
      %p200 = por %p198, %p199
      %p202 = scmp.ne.s32.totalorder %s187, %s201
      %p203 = scmp.eq.s32.totalorder %s25, 0
      %p204 = por %p202, %p203
      %s206 = sadd.s32 %s205, 1
      %p209 = scmp.eq.s32.totalorder %s19, 3
      %p210 = scmp.ne.s32.totalorder %s205, %s207
      %p211 = scmp.eq.s32.totalorder %s19, 0
      %p212 = por %p210, %p211
      %p213 = scmp.ne.s32.totalorder %s205, %s207
      %p214 = scmp.eq.s32.totalorder %s24, 3
      %p215 = por %p213, %p214
      %p216 = scmp.ne.s32.totalorder %s207, %s208
      %p217 = scmp.eq.s32.totalorder %s24, 0
      %p218 = por %p216, %p217
      %p219 = scmp.ne.s32.totalorder %s207, %s208
      %p220 = scmp.eq.s32.totalorder %s25, 3
      %p221 = por %p219, %p220
      %p223 = scmp.ne.s32.totalorder %s208, %s222
      %p224 = scmp.eq.s32.totalorder %s25, 0
      %p225 = por %p223, %p224
      %s226 = ssub.s32 %s19, %s26
      %p227 = scmp.eq.s32.totalorder %s226, 0
      %s229 = sadd.s32 %s228, 1
      %s230 = scalar_select %p227, %s228, %s229
      %p233 = pneg %p227
      %p234 = scmp.eq.s32.totalorder %s19, 3
      %p235 = por %p233, %p234
      %p236 = scmp.ne.s32.totalorder %s228, %s231
      %p237 = scmp.eq.s32.totalorder %s19, 0
      %p238 = por %p236, %p237
      %p239 = scmp.ne.s32.totalorder %s228, %s231
      %p240 = scmp.eq.s32.totalorder %s24, 3
      %p241 = por %p239, %p240
      %p242 = scmp.ne.s32.totalorder %s231, %s232
      %p243 = scmp.eq.s32.totalorder %s24, 0
      %p244 = por %p242, %p243
      %p245 = scmp.ne.s32.totalorder %s231, %s232
      %p246 = scmp.eq.s32.totalorder %s25, 3
      %p247 = por %p245, %p246
      %p249 = scmp.ne.s32.totalorder %s232, %s248
      %p250 = scmp.eq.s32.totalorder %s25, 0
      %p251 = por %p249, %p250
      %p252 = scmp.le.s32.totalorder 1, %s19
      %p253 = scmp.lt.s32.totalorder %s19, 5
      %p254 = pnand %p252, %p253
      %p255 = pneg %p254
      // Predicated region
      $region9: #{tpu_custom_call.1} parent=5 // pred_check
        _
      $region10: #{tpu_custom_call.1} parent=5 // pred_check_branch
        %257 = sbr.rel (%p254) target = $region12
      $region11: #{tpu_custom_call.1} parent=5 // pred_region
        %s258 = ssub.s32 %s19, 1
        // Predicated region
        $region13: #{tpu_custom_call.1} parent=11 // pred_check
          %p259 = pneg %p66
        $region14: #{tpu_custom_call.1} parent=11 // pred_check_branch
          %261 = sbr.rel (%p259) target = $region16
        $region15: #{tpu_custom_call.1} parent=11 // pred_region
          _
        $region16: #{tpu_custom_call.1} parent=11 // pred_fallthru
          _
        // Predicated region
        $region17: #{tpu_custom_call.1} parent=11 // pred_check
          %p262 = pneg %p113
        $region18: #{tpu_custom_call.1} parent=11 // pred_check_branch
          %264 = sbr.rel (%p262) target = $region20
        $region19: #{tpu_custom_call.1} parent=11 // pred_region
          _
        $region20: #{tpu_custom_call.1} parent=11 // pred_fallthru
          _
        // Predicated region
        $region21: #{tpu_custom_call.1} parent=11 // pred_check
          %p265 = pneg %p134
        $region22: #{tpu_custom_call.1} parent=11 // pred_check_branch
          %267 = sbr.rel (%p265) target = $region24
        $region23: #{tpu_custom_call.1} parent=11 // pred_region
          _
        $region24: #{tpu_custom_call.1} parent=11 // pred_fallthru
          _
        // Predicated region
        $region25: #{tpu_custom_call.1} parent=11 // pred_check
          %p268 = pneg %p155
        $region26: #{tpu_custom_call.1} parent=11 // pred_check_branch
          %270 = sbr.rel (%p268) target = $region28
        $region27: #{tpu_custom_call.1} parent=11 // pred_region
          _
        $region28: #{tpu_custom_call.1} parent=11 // pred_fallthru
          _
        // Predicated region
        $region29: #{tpu_custom_call.1} parent=11 // pred_check
          %p271 = pneg %p176
        $region30: #{tpu_custom_call.1} parent=11 // pred_check_branch
          %273 = sbr.rel (%p271) target = $region32
        $region31: #{tpu_custom_call.1} parent=11 // pred_region
          _
        $region32: #{tpu_custom_call.1} parent=11 // pred_fallthru
          _
        // Predicated region
        $region33: #{tpu_custom_call.1} parent=11 // pred_check
          %p274 = pneg %p197
        $region34: #{tpu_custom_call.1} parent=11 // pred_check_branch
          %276 = sbr.rel (%p274) target = $region36
        $region35: #{tpu_custom_call.1} parent=11 // pred_region
          _
        $region36: #{tpu_custom_call.1} parent=11 // pred_fallthru
          _
        // Predicated region
        $region37: #{tpu_custom_call.1} parent=11 // pred_check
          %p277 = pneg %p218
        $region38: #{tpu_custom_call.1} parent=11 // pred_check_branch
          %279 = sbr.rel (%p277) target = $region40
        $region39: #{tpu_custom_call.1} parent=11 // pred_region
          %s281 = ssub.s32 16, 16
          %282 = vsyncadd [#allocation5], %s281
          %s284 = sshll.u32 %s8, 4
          %s285 = int_to_ptr.vmem [resolvable:$true] %s284
          %287 = dma.vmem_to_smem %s285, 16, [#allocation3], [#allocation5]
        $region40: #{tpu_custom_call.1} parent=11 // pred_fallthru
          _
      $region12: #{tpu_custom_call.1} parent=5 // pred_fallthru
        _
      %p288 = scmp.lt.s32.totalorder %s19, 4
      // Predicated region
      $region41: #{tpu_custom_call.1} parent=5 // pred_check
        %p289 = pneg %p288
      $region42: #{tpu_custom_call.1} parent=5 // pred_check_branch
        %291 = sbr.rel (%p289) target = $region44
      $region43: #{tpu_custom_call.1} parent=5 // pred_region
        // Predicated region
        $region45: #{tpu_custom_call.1} parent=43 // pred_check
          %p292 = pneg %p39
        $region46: #{tpu_custom_call.1} parent=43 // pred_check_branch
          %294 = sbr.rel (%p292) target = $region48
        $region47: #{tpu_custom_call.1} parent=43 // pred_region
          %s295 = smul.u32 32, %s19
          %p296 = scmp.lt.s32.totalorder %s295, 127
          %s297 = scalar_select %p296, %s295, 127
          %s298 = smul.addr %s297, 8
          %s299 = scalar_lea.vmem %s0, %s298
          %s300 = smul.u32 32, %s19
        $region48: #{tpu_custom_call.1} parent=43 // pred_fallthru
          _
        // Predicated region
        $region49: #{tpu_custom_call.1} parent=43 // pred_check
          %p301 = pneg %p86
        $region50: #{tpu_custom_call.1} parent=43 // pred_check_branch
          %303 = sbr.rel (%p301) target = $region52
        $region51: #{tpu_custom_call.1} parent=43 // pred_region
          %s304 = smul.u32 32, %s19
          %p305 = scmp.lt.s32.totalorder %s304, 127
          %s306 = scalar_select %p305, %s304, 127
          %s307 = smul.addr %s306, 8
          %s308 = scalar_lea.vmem %s2, %s307
          %s309 = smul.u32 32, %s19
        $region52: #{tpu_custom_call.1} parent=43 // pred_fallthru
          _
      $region44: #{tpu_custom_call.1} parent=5 // pred_fallthru
        _
      %p310 = scmp.le.s32.totalorder 1, %s19
      %p311 = scmp.lt.s32.totalorder %s19, 5
      %p312 = pnand %p310, %p311
      %p313 = pneg %p312
      // Predicated region
      $region53: #{tpu_custom_call.1} parent=5 // pred_check
        _
      $region54: #{tpu_custom_call.1} parent=5 // pred_check_branch
        %315 = sbr.rel (%p312) target = $region56
      $region55: #{tpu_custom_call.1} parent=5 // pred_region
        %s316 = ssub.s32 %s19, 1
        // Predicated region
        $region57: #{tpu_custom_call.1} parent=55 // pred_check
          %p317 = pneg %p218
        $region58: #{tpu_custom_call.1} parent=55 // pred_check_branch
          %319 = sbr.rel (%p317) target = $region60
        $region59: #{tpu_custom_call.1} parent=55 // pred_region
          %320 = dma.done [#allocation5], 16
        $region60: #{tpu_custom_call.1} parent=55 // pred_fallthru
          _
        %321 = sfence
        %s322 = smul.u32 32, %s24
        %p323 = scmp.lt.s32.totalorder %s322, 127
        %s324 = scalar_select %p323, %s322, 127
        %s325 = smul.addr %s324, 8
        %s326 = scalar_lea.vmem %s0, %s325
        %p327 = pneg %p45
        %p328 = pneg %p42
        %p329 = pneg %p66
        %p330 = pneg %p63
        %s331 = smul.u32 32, %s24
        %p332 = scmp.lt.s32.totalorder %s331, 127
        %s333 = scalar_select %p332, %s331, 127
        %s334 = smul.addr %s333, 8
        %s335 = scalar_lea.vmem %s2, %s334
        %p336 = pneg %p92
        %p337 = pneg %p89
        %p338 = pneg %p113
        %p339 = pneg %p110
        %p340 = pneg %p134
        %p341 = pneg %p131
        %p342 = pneg %p155
        %p343 = pneg %p152
        %p344 = pneg %p176
        %p345 = pneg %p173
        %p346 = pneg %p197
        %p347 = pneg %p194
        %p348 = pneg %p218
        %p349 = pneg %p215
        %p350 = pneg %p244
        %p351 = pneg %p241
        %s352 = sand.u32 %s231, 1
        %s353 = scalar_lea.sflag [#allocation4], %s352
        %s354 = sand.u32 %s231, 1
        %s355 = smul.addr %s354, 2
        %s356 = scalar_lea.vmem [#allocation6], %s355
        %s357 = smul.u32 32, %s24
        %p358 = scmp.lt.s32.totalorder %s357, 127
        %s359 = scalar_select %p358, %s357, 127
        %s360 = smul.addr %s359, 8
        %s361 = scalar_lea.vmem %s0, %s360
        %s362 = smul.u32 32, %s24
        %s363 = smul.u32 32, %s24
        %p364 = scmp.lt.s32.totalorder %s363, 127
        %s365 = scalar_select %p364, %s363, 127
        %s366 = smul.addr %s365, 8
        %s367 = scalar_lea.vmem %s2, %s366
        %s368 = smul.u32 32, %s24
        %v370 = vld [vmem:[%s361] sm:$0xff]
        %v371 = vld [vmem:[%s361 + $0x8] sm:$0xff]
        %v372 = vld [vmem:[%s361 + $0x10] sm:$0xff]
        %v373 = vld [vmem:[%s361 + $0x18] sm:$0xff]
        %v374 = vld [vmem:[%s361 + $0x20] sm:$0xff]
        %v375 = vld [vmem:[%s361 + $0x28] sm:$0xff]
        %v376 = vld [vmem:[%s361 + $0x30] sm:$0xff]
        %v377 = vld [vmem:[%s361 + $0x38] sm:$0xff]
        %v378 = vld [vmem:[%s361 + $0x40] sm:$0xff]
        %v379 = vld [vmem:[%s361 + $0x48] sm:$0xff]
        %v380 = vld [vmem:[%s361 + $0x50] sm:$0xff]
        %v381 = vld [vmem:[%s361 + $0x58] sm:$0xff]
        %v382 = vld [vmem:[%s361 + $0x60] sm:$0xff]
        %v383 = vld [vmem:[%s361 + $0x68] sm:$0xff]
        %v384 = vld [vmem:[%s361 + $0x70] sm:$0xff]
        %v385 = vld [vmem:[%s361 + $0x78] sm:$0xff]
        %v386 = vld [vmem:[%s361 + $0x80] sm:$0xff]
        %v387 = vld [vmem:[%s361 + $0x88] sm:$0xff]
        %v388 = vld [vmem:[%s361 + $0x90] sm:$0xff]
        %v389 = vld [vmem:[%s361 + $0x98] sm:$0xff]
        %v390 = vld [vmem:[%s361 + $0xa0] sm:$0xff]
        %v391 = vld [vmem:[%s361 + $0xa8] sm:$0xff]
        %v392 = vld [vmem:[%s361 + $0xb0] sm:$0xff]
        %v393 = vld [vmem:[%s361 + $0xb8] sm:$0xff]
        %v394 = vld [vmem:[%s361 + $0xc0] sm:$0xff]
        %v395 = vld [vmem:[%s361 + $0xc8] sm:$0xff]
        %v396 = vld [vmem:[%s361 + $0xd0] sm:$0xff]
        %v397 = vld [vmem:[%s361 + $0xd8] sm:$0xff]
        %v398 = vld [vmem:[%s361 + $0xe0] sm:$0xff]
        %v399 = vld [vmem:[%s361 + $0xe8] sm:$0xff]
        %v400 = vld [vmem:[%s361 + $0xf0] sm:$0xff]
        %v401 = vld [vmem:[%s361 + $0xf8] sm:$0xff]
        %v402 = vlaneseq
        %v403 = vand.u32 %v402, 127
        %v404 = vadd.s32 %v403, 128
        %v405 = vadd.s32 %v403, 256
        %v406 = vadd.s32 %v403, 384
        %407 = vset.pattern.permute.xlu0 0
        %408 = vperm.xlu0 %407, %v370
        %v409 = vpop.permute.xlu0 %408
        %410 = vset.pattern.permute.xlu0 0
        %411 = vperm.xlu0 %410, %v371
        %v412 = vpop.permute.xlu0 %411
        %413 = vset.pattern.permute.xlu0 0
        %414 = vperm.xlu0 %413, %v372
        %v415 = vpop.permute.xlu0 %414
        %416 = vset.pattern.permute.xlu0 0
        %417 = vperm.xlu0 %416, %v373
        %v418 = vpop.permute.xlu0 %417
        %419 = vset.pattern.permute.xlu0 0
        %420 = vperm.xlu0 %419, %v374
        %v421 = vpop.permute.xlu0 %420
        %422 = vset.pattern.permute.xlu0 0
        %423 = vperm.xlu0 %422, %v375
        %v424 = vpop.permute.xlu0 %423
        %425 = vset.pattern.permute.xlu0 0
        %426 = vperm.xlu0 %425, %v376
        %v427 = vpop.permute.xlu0 %426
        %428 = vset.pattern.permute.xlu0 0
        %429 = vperm.xlu0 %428, %v377
        %v430 = vpop.permute.xlu0 %429
        %431 = vset.pattern.permute.xlu0 0
        %432 = vperm.xlu0 %431, %v378
        %v433 = vpop.permute.xlu0 %432
        %434 = vset.pattern.permute.xlu0 0
        %435 = vperm.xlu0 %434, %v379
        %v436 = vpop.permute.xlu0 %435
        %437 = vset.pattern.permute.xlu0 0
        %438 = vperm.xlu0 %437, %v380
        %v439 = vpop.permute.xlu0 %438
        %440 = vset.pattern.permute.xlu0 0
        %441 = vperm.xlu0 %440, %v381
        %v442 = vpop.permute.xlu0 %441
        %443 = vset.pattern.permute.xlu0 0
        %444 = vperm.xlu0 %443, %v382
        %v445 = vpop.permute.xlu0 %444
        %446 = vset.pattern.permute.xlu0 0
        %447 = vperm.xlu0 %446, %v383
        %v448 = vpop.permute.xlu0 %447
        %449 = vset.pattern.permute.xlu0 0
        %450 = vperm.xlu0 %449, %v384
        %v451 = vpop.permute.xlu0 %450
        %452 = vset.pattern.permute.xlu0 0
        %453 = vperm.xlu0 %452, %v385
        %v454 = vpop.permute.xlu0 %453
        %455 = vset.pattern.permute.xlu0 0
        %456 = vperm.xlu0 %455, %v386
        %v457 = vpop.permute.xlu0 %456
        %458 = vset.pattern.permute.xlu0 0
        %459 = vperm.xlu0 %458, %v387
        %v460 = vpop.permute.xlu0 %459
        %461 = vset.pattern.permute.xlu0 0
        %462 = vperm.xlu0 %461, %v388
        %v463 = vpop.permute.xlu0 %462
        %464 = vset.pattern.permute.xlu0 0
        %465 = vperm.xlu0 %464, %v389
        %v466 = vpop.permute.xlu0 %465
        %467 = vset.pattern.permute.xlu0 0
        %468 = vperm.xlu0 %467, %v390
        %v469 = vpop.permute.xlu0 %468
        %470 = vset.pattern.permute.xlu0 0
        %471 = vperm.xlu0 %470, %v391
        %v472 = vpop.permute.xlu0 %471
        %473 = vset.pattern.permute.xlu0 0
        %474 = vperm.xlu0 %473, %v392
        %v475 = vpop.permute.xlu0 %474
        %476 = vset.pattern.permute.xlu0 0
        %477 = vperm.xlu0 %476, %v393
        %v478 = vpop.permute.xlu0 %477
        %479 = vset.pattern.permute.xlu0 0
        %480 = vperm.xlu0 %479, %v394
        %v481 = vpop.permute.xlu0 %480
        %482 = vset.pattern.permute.xlu0 0
        %483 = vperm.xlu0 %482, %v395
        %v484 = vpop.permute.xlu0 %483
        %485 = vset.pattern.permute.xlu0 0
        %486 = vperm.xlu0 %485, %v396
        %v487 = vpop.permute.xlu0 %486
        %488 = vset.pattern.permute.xlu0 0
        %489 = vperm.xlu0 %488, %v397
        %v490 = vpop.permute.xlu0 %489
        %491 = vset.pattern.permute.xlu0 0
        %492 = vperm.xlu0 %491, %v398
        %v493 = vpop.permute.xlu0 %492
        %494 = vset.pattern.permute.xlu0 0
        %495 = vperm.xlu0 %494, %v399
        %v496 = vpop.permute.xlu0 %495
        %497 = vset.pattern.permute.xlu0 0
        %498 = vperm.xlu0 %497, %v400
        %v499 = vpop.permute.xlu0 %498
        %500 = vset.pattern.permute.xlu0 0
        %501 = vperm.xlu0 %500, %v401
        %v502 = vpop.permute.xlu0 %501
        %vm503 = vcmp.eq.s32.totalorder %v409, %v403
        %vm504 = vcmp.eq.s32.totalorder %v409, %v404
        %vm505 = vcmp.eq.s32.totalorder %v409, %v405
        %vm506 = vcmp.eq.s32.totalorder %v409, %v406
        %vm507 = vcmp.eq.s32.totalorder %v412, %v403
        %vm508 = vcmp.eq.s32.totalorder %v412, %v404
        %vm509 = vcmp.eq.s32.totalorder %v412, %v405
        %vm510 = vcmp.eq.s32.totalorder %v412, %v406
        %vm511 = vcmp.eq.s32.totalorder %v415, %v403
        %vm512 = vcmp.eq.s32.totalorder %v415, %v404
        %vm513 = vcmp.eq.s32.totalorder %v415, %v405
        %vm514 = vcmp.eq.s32.totalorder %v415, %v406
        %vm515 = vcmp.eq.s32.totalorder %v418, %v403
        %vm516 = vcmp.eq.s32.totalorder %v418, %v404
        %vm517 = vcmp.eq.s32.totalorder %v418, %v405
        %vm518 = vcmp.eq.s32.totalorder %v418, %v406
        %vm519 = vcmp.eq.s32.totalorder %v421, %v403
        %vm520 = vcmp.eq.s32.totalorder %v421, %v404
        %vm521 = vcmp.eq.s32.totalorder %v421, %v405
        %vm522 = vcmp.eq.s32.totalorder %v421, %v406
        %vm523 = vcmp.eq.s32.totalorder %v424, %v403
        %vm524 = vcmp.eq.s32.totalorder %v424, %v404
        %vm525 = vcmp.eq.s32.totalorder %v424, %v405
        %vm526 = vcmp.eq.s32.totalorder %v424, %v406
        %vm527 = vcmp.eq.s32.totalorder %v427, %v403
        %vm528 = vcmp.eq.s32.totalorder %v427, %v404
        %vm529 = vcmp.eq.s32.totalorder %v427, %v405
        %vm530 = vcmp.eq.s32.totalorder %v427, %v406
        %vm531 = vcmp.eq.s32.totalorder %v430, %v403
        %vm532 = vcmp.eq.s32.totalorder %v430, %v404
        %vm533 = vcmp.eq.s32.totalorder %v430, %v405
        %vm534 = vcmp.eq.s32.totalorder %v430, %v406
        %vm535 = vcmp.eq.s32.totalorder %v433, %v403
        %vm536 = vcmp.eq.s32.totalorder %v433, %v404
        %vm537 = vcmp.eq.s32.totalorder %v433, %v405
        %vm538 = vcmp.eq.s32.totalorder %v433, %v406
        %vm539 = vcmp.eq.s32.totalorder %v436, %v403
        %vm540 = vcmp.eq.s32.totalorder %v436, %v404
        %vm541 = vcmp.eq.s32.totalorder %v436, %v405
        %vm542 = vcmp.eq.s32.totalorder %v436, %v406
        %vm543 = vcmp.eq.s32.totalorder %v439, %v403
        %vm544 = vcmp.eq.s32.totalorder %v439, %v404
        %vm545 = vcmp.eq.s32.totalorder %v439, %v405
        %vm546 = vcmp.eq.s32.totalorder %v439, %v406
        %vm547 = vcmp.eq.s32.totalorder %v442, %v403
        %vm548 = vcmp.eq.s32.totalorder %v442, %v404
        %vm549 = vcmp.eq.s32.totalorder %v442, %v405
        %vm550 = vcmp.eq.s32.totalorder %v442, %v406
        %vm551 = vcmp.eq.s32.totalorder %v445, %v403
        %vm552 = vcmp.eq.s32.totalorder %v445, %v404
        %vm553 = vcmp.eq.s32.totalorder %v445, %v405
        %vm554 = vcmp.eq.s32.totalorder %v445, %v406
        %vm555 = vcmp.eq.s32.totalorder %v448, %v403
        %vm556 = vcmp.eq.s32.totalorder %v448, %v404
        %vm557 = vcmp.eq.s32.totalorder %v448, %v405
        %vm558 = vcmp.eq.s32.totalorder %v448, %v406
        %vm559 = vcmp.eq.s32.totalorder %v451, %v403
        %vm560 = vcmp.eq.s32.totalorder %v451, %v404
        %vm561 = vcmp.eq.s32.totalorder %v451, %v405
        %vm562 = vcmp.eq.s32.totalorder %v451, %v406
        %vm563 = vcmp.eq.s32.totalorder %v454, %v403
        %vm564 = vcmp.eq.s32.totalorder %v454, %v404
        %vm565 = vcmp.eq.s32.totalorder %v454, %v405
        %vm566 = vcmp.eq.s32.totalorder %v454, %v406
        %vm567 = vcmp.eq.s32.totalorder %v457, %v403
        %vm568 = vcmp.eq.s32.totalorder %v457, %v404
        %vm569 = vcmp.eq.s32.totalorder %v457, %v405
        %vm570 = vcmp.eq.s32.totalorder %v457, %v406
        %vm571 = vcmp.eq.s32.totalorder %v460, %v403
        %vm572 = vcmp.eq.s32.totalorder %v460, %v404
        %vm573 = vcmp.eq.s32.totalorder %v460, %v405
        %vm574 = vcmp.eq.s32.totalorder %v460, %v406
        %vm575 = vcmp.eq.s32.totalorder %v463, %v403
        %vm576 = vcmp.eq.s32.totalorder %v463, %v404
        %vm577 = vcmp.eq.s32.totalorder %v463, %v405
        %vm578 = vcmp.eq.s32.totalorder %v463, %v406
        %vm579 = vcmp.eq.s32.totalorder %v466, %v403
        %vm580 = vcmp.eq.s32.totalorder %v466, %v404
        %vm581 = vcmp.eq.s32.totalorder %v466, %v405
        %vm582 = vcmp.eq.s32.totalorder %v466, %v406
        %vm583 = vcmp.eq.s32.totalorder %v469, %v403
        %vm584 = vcmp.eq.s32.totalorder %v469, %v404
        %vm585 = vcmp.eq.s32.totalorder %v469, %v405
        %vm586 = vcmp.eq.s32.totalorder %v469, %v406
        %vm587 = vcmp.eq.s32.totalorder %v472, %v403
        %vm588 = vcmp.eq.s32.totalorder %v472, %v404
        %vm589 = vcmp.eq.s32.totalorder %v472, %v405
        %vm590 = vcmp.eq.s32.totalorder %v472, %v406
        %vm591 = vcmp.eq.s32.totalorder %v475, %v403
        %vm592 = vcmp.eq.s32.totalorder %v475, %v404
        %vm593 = vcmp.eq.s32.totalorder %v475, %v405
        %vm594 = vcmp.eq.s32.totalorder %v475, %v406
        %vm595 = vcmp.eq.s32.totalorder %v478, %v403
        %vm596 = vcmp.eq.s32.totalorder %v478, %v404
        %vm597 = vcmp.eq.s32.totalorder %v478, %v405
        %vm598 = vcmp.eq.s32.totalorder %v478, %v406
        %vm599 = vcmp.eq.s32.totalorder %v481, %v403
        %vm600 = vcmp.eq.s32.totalorder %v481, %v404
        %vm601 = vcmp.eq.s32.totalorder %v481, %v405
        %vm602 = vcmp.eq.s32.totalorder %v481, %v406
        %vm603 = vcmp.eq.s32.totalorder %v484, %v403
        %vm604 = vcmp.eq.s32.totalorder %v484, %v404
        %vm605 = vcmp.eq.s32.totalorder %v484, %v405
        %vm606 = vcmp.eq.s32.totalorder %v484, %v406
        %vm607 = vcmp.eq.s32.totalorder %v487, %v403
        %vm608 = vcmp.eq.s32.totalorder %v487, %v404
        %vm609 = vcmp.eq.s32.totalorder %v487, %v405
        %vm610 = vcmp.eq.s32.totalorder %v487, %v406
        %vm611 = vcmp.eq.s32.totalorder %v490, %v403
        %vm612 = vcmp.eq.s32.totalorder %v490, %v404
        %vm613 = vcmp.eq.s32.totalorder %v490, %v405
        %vm614 = vcmp.eq.s32.totalorder %v490, %v406
        %vm615 = vcmp.eq.s32.totalorder %v493, %v403
        %vm616 = vcmp.eq.s32.totalorder %v493, %v404
        %vm617 = vcmp.eq.s32.totalorder %v493, %v405
        %vm618 = vcmp.eq.s32.totalorder %v493, %v406
        %vm619 = vcmp.eq.s32.totalorder %v496, %v403
        %vm620 = vcmp.eq.s32.totalorder %v496, %v404
        %vm621 = vcmp.eq.s32.totalorder %v496, %v405
        %vm622 = vcmp.eq.s32.totalorder %v496, %v406
        %vm623 = vcmp.eq.s32.totalorder %v499, %v403
        %vm624 = vcmp.eq.s32.totalorder %v499, %v404
        %vm625 = vcmp.eq.s32.totalorder %v499, %v405
        %vm626 = vcmp.eq.s32.totalorder %v499, %v406
        %vm627 = vcmp.eq.s32.totalorder %v502, %v403
        %vm628 = vcmp.eq.s32.totalorder %v502, %v404
        %vm629 = vcmp.eq.s32.totalorder %v502, %v405
        %vm630 = vcmp.eq.s32.totalorder %v502, %v406
        %v631 = vsel %vm503, 1.0, 0.0
        %v632 = vsel %vm504, 1.0, 0.0
        %v633 = vsel %vm505, 1.0, 0.0
        %v634 = vsel %vm506, 1.0, 0.0
        %v635 = vsel %vm507, 1.0, 0.0
        %v636 = vsel %vm508, 1.0, 0.0
        %v637 = vsel %vm509, 1.0, 0.0
        %v638 = vsel %vm510, 1.0, 0.0
        %v639 = vsel %vm511, 1.0, 0.0
        %v640 = vsel %vm512, 1.0, 0.0
        %v641 = vsel %vm513, 1.0, 0.0
        %v642 = vsel %vm514, 1.0, 0.0
        %v643 = vsel %vm515, 1.0, 0.0
        %v644 = vsel %vm516, 1.0, 0.0
        %v645 = vsel %vm517, 1.0, 0.0
        %v646 = vsel %vm518, 1.0, 0.0
        %v647 = vsel %vm519, 1.0, 0.0
        %v648 = vsel %vm520, 1.0, 0.0
        %v649 = vsel %vm521, 1.0, 0.0
        %v650 = vsel %vm522, 1.0, 0.0
        %v651 = vsel %vm523, 1.0, 0.0
        %v652 = vsel %vm524, 1.0, 0.0
        %v653 = vsel %vm525, 1.0, 0.0
        %v654 = vsel %vm526, 1.0, 0.0
        %v655 = vsel %vm527, 1.0, 0.0
        %v656 = vsel %vm528, 1.0, 0.0
        %v657 = vsel %vm529, 1.0, 0.0
        %v658 = vsel %vm530, 1.0, 0.0
        %v659 = vsel %vm531, 1.0, 0.0
        %v660 = vsel %vm532, 1.0, 0.0
        %v661 = vsel %vm533, 1.0, 0.0
        %v662 = vsel %vm534, 1.0, 0.0
        %v663 = vsel %vm535, 1.0, 0.0
        %v664 = vsel %vm536, 1.0, 0.0
        %v665 = vsel %vm537, 1.0, 0.0
        %v666 = vsel %vm538, 1.0, 0.0
        %v667 = vsel %vm539, 1.0, 0.0
        %v668 = vsel %vm540, 1.0, 0.0
        %v669 = vsel %vm541, 1.0, 0.0
        %v670 = vsel %vm542, 1.0, 0.0
        %v671 = vsel %vm543, 1.0, 0.0
        %v672 = vsel %vm544, 1.0, 0.0
        %v673 = vsel %vm545, 1.0, 0.0
        %v674 = vsel %vm546, 1.0, 0.0
        %v675 = vsel %vm547, 1.0, 0.0
        %v676 = vsel %vm548, 1.0, 0.0
        %v677 = vsel %vm549, 1.0, 0.0
        %v678 = vsel %vm550, 1.0, 0.0
        %v679 = vsel %vm551, 1.0, 0.0
        %v680 = vsel %vm552, 1.0, 0.0
        %v681 = vsel %vm553, 1.0, 0.0
        %v682 = vsel %vm554, 1.0, 0.0
        %v683 = vsel %vm555, 1.0, 0.0
        %v684 = vsel %vm556, 1.0, 0.0
        %v685 = vsel %vm557, 1.0, 0.0
        %v686 = vsel %vm558, 1.0, 0.0
        %v687 = vsel %vm559, 1.0, 0.0
        %v688 = vsel %vm560, 1.0, 0.0
        %v689 = vsel %vm561, 1.0, 0.0
        %v690 = vsel %vm562, 1.0, 0.0
        %v691 = vsel %vm563, 1.0, 0.0
        %v692 = vsel %vm564, 1.0, 0.0
        %v693 = vsel %vm565, 1.0, 0.0
        %v694 = vsel %vm566, 1.0, 0.0
        %v695 = vsel %vm567, 1.0, 0.0
        %v696 = vsel %vm568, 1.0, 0.0
        %v697 = vsel %vm569, 1.0, 0.0
        %v698 = vsel %vm570, 1.0, 0.0
        %v699 = vsel %vm571, 1.0, 0.0
        %v700 = vsel %vm572, 1.0, 0.0
        %v701 = vsel %vm573, 1.0, 0.0
        %v702 = vsel %vm574, 1.0, 0.0
        %v703 = vsel %vm575, 1.0, 0.0
        %v704 = vsel %vm576, 1.0, 0.0
        %v705 = vsel %vm577, 1.0, 0.0
        %v706 = vsel %vm578, 1.0, 0.0
        %v707 = vsel %vm579, 1.0, 0.0
        %v708 = vsel %vm580, 1.0, 0.0
        %v709 = vsel %vm581, 1.0, 0.0
        %v710 = vsel %vm582, 1.0, 0.0
        %v711 = vsel %vm583, 1.0, 0.0
        %v712 = vsel %vm584, 1.0, 0.0
        %v713 = vsel %vm585, 1.0, 0.0
        %v714 = vsel %vm586, 1.0, 0.0
        %v715 = vsel %vm587, 1.0, 0.0
        %v716 = vsel %vm588, 1.0, 0.0
        %v717 = vsel %vm589, 1.0, 0.0
        %v718 = vsel %vm590, 1.0, 0.0
        %v719 = vsel %vm591, 1.0, 0.0
        %v720 = vsel %vm592, 1.0, 0.0
        %v721 = vsel %vm593, 1.0, 0.0
        %v722 = vsel %vm594, 1.0, 0.0
        %v723 = vsel %vm595, 1.0, 0.0
        %v724 = vsel %vm596, 1.0, 0.0
        %v725 = vsel %vm597, 1.0, 0.0
        %v726 = vsel %vm598, 1.0, 0.0
        %v727 = vsel %vm599, 1.0, 0.0
        %v728 = vsel %vm600, 1.0, 0.0
        %v729 = vsel %vm601, 1.0, 0.0
        %v730 = vsel %vm602, 1.0, 0.0
        %v731 = vsel %vm603, 1.0, 0.0
        %v732 = vsel %vm604, 1.0, 0.0
        %v733 = vsel %vm605, 1.0, 0.0
        %v734 = vsel %vm606, 1.0, 0.0
        %v735 = vsel %vm607, 1.0, 0.0
        %v736 = vsel %vm608, 1.0, 0.0
        %v737 = vsel %vm609, 1.0, 0.0
        %v738 = vsel %vm610, 1.0, 0.0
        %v739 = vsel %vm611, 1.0, 0.0
        %v740 = vsel %vm612, 1.0, 0.0
        %v741 = vsel %vm613, 1.0, 0.0
        %v742 = vsel %vm614, 1.0, 0.0
        %v743 = vsel %vm615, 1.0, 0.0
        %v744 = vsel %vm616, 1.0, 0.0
        %v745 = vsel %vm617, 1.0, 0.0
        %v746 = vsel %vm618, 1.0, 0.0
        %v747 = vsel %vm619, 1.0, 0.0
        %v748 = vsel %vm620, 1.0, 0.0
        %v749 = vsel %vm621, 1.0, 0.0
        %v750 = vsel %vm622, 1.0, 0.0
        %v751 = vsel %vm623, 1.0, 0.0
        %v752 = vsel %vm624, 1.0, 0.0
        %v753 = vsel %vm625, 1.0, 0.0
        %v754 = vsel %vm626, 1.0, 0.0
        %v755 = vsel %vm627, 1.0, 0.0
        %v756 = vsel %vm628, 1.0, 0.0
        %v757 = vsel %vm629, 1.0, 0.0
        %v758 = vsel %vm630, 1.0, 0.0
        %v759 = vpack.c.bf16 %v635, %v631
        %v760 = vpack.c.bf16 %v636, %v632
        %v761 = vpack.c.bf16 %v637, %v633
        %v762 = vpack.c.bf16 %v638, %v634
        %v763 = vpack.c.bf16 %v643, %v639
        %v764 = vpack.c.bf16 %v644, %v640
        %v765 = vpack.c.bf16 %v645, %v641
        %v766 = vpack.c.bf16 %v646, %v642
        %v767 = vpack.c.bf16 %v651, %v647
        %v768 = vpack.c.bf16 %v652, %v648
        %v769 = vpack.c.bf16 %v653, %v649
        %v770 = vpack.c.bf16 %v654, %v650
        %v771 = vpack.c.bf16 %v659, %v655
        %v772 = vpack.c.bf16 %v660, %v656
        %v773 = vpack.c.bf16 %v661, %v657
        %v774 = vpack.c.bf16 %v662, %v658
        %v775 = vpack.c.bf16 %v667, %v663
        %v776 = vpack.c.bf16 %v668, %v664
        %v777 = vpack.c.bf16 %v669, %v665
        %v778 = vpack.c.bf16 %v670, %v666
        %v779 = vpack.c.bf16 %v675, %v671
        %v780 = vpack.c.bf16 %v676, %v672
        %v781 = vpack.c.bf16 %v677, %v673
        %v782 = vpack.c.bf16 %v678, %v674
        %v783 = vpack.c.bf16 %v683, %v679
        %v784 = vpack.c.bf16 %v684, %v680
        %v785 = vpack.c.bf16 %v685, %v681
        %v786 = vpack.c.bf16 %v686, %v682
        %v787 = vpack.c.bf16 %v691, %v687
        %v788 = vpack.c.bf16 %v692, %v688
        %v789 = vpack.c.bf16 %v693, %v689
        %v790 = vpack.c.bf16 %v694, %v690
        %v791 = vpack.c.bf16 %v699, %v695
        %v792 = vpack.c.bf16 %v700, %v696
        %v793 = vpack.c.bf16 %v701, %v697
        %v794 = vpack.c.bf16 %v702, %v698
        %v795 = vpack.c.bf16 %v707, %v703
        %v796 = vpack.c.bf16 %v708, %v704
        %v797 = vpack.c.bf16 %v709, %v705
        %v798 = vpack.c.bf16 %v710, %v706
        %v799 = vpack.c.bf16 %v715, %v711
        %v800 = vpack.c.bf16 %v716, %v712
        %v801 = vpack.c.bf16 %v717, %v713
        %v802 = vpack.c.bf16 %v718, %v714
        %v803 = vpack.c.bf16 %v723, %v719
        %v804 = vpack.c.bf16 %v724, %v720
        %v805 = vpack.c.bf16 %v725, %v721
        %v806 = vpack.c.bf16 %v726, %v722
        %v807 = vpack.c.bf16 %v731, %v727
        %v808 = vpack.c.bf16 %v732, %v728
        %v809 = vpack.c.bf16 %v733, %v729
        %v810 = vpack.c.bf16 %v734, %v730
        %v811 = vpack.c.bf16 %v739, %v735
        %v812 = vpack.c.bf16 %v740, %v736
        %v813 = vpack.c.bf16 %v741, %v737
        %v814 = vpack.c.bf16 %v742, %v738
        %v815 = vpack.c.bf16 %v747, %v743
        %v816 = vpack.c.bf16 %v748, %v744
        %v817 = vpack.c.bf16 %v749, %v745
        %v818 = vpack.c.bf16 %v750, %v746
        %v819 = vpack.c.bf16 %v755, %v751
        %v820 = vpack.c.bf16 %v756, %v752
        %v821 = vpack.c.bf16 %v757, %v753
        %v822 = vpack.c.bf16 %v758, %v754
        %823 = vset.pattern.permute.xlu0 1
        %824 = vperm.xlu0 %823, %v370
        %v825 = vpop.permute.xlu0 %824
        %826 = vset.pattern.permute.xlu0 1
        %827 = vperm.xlu0 %826, %v371
        %v828 = vpop.permute.xlu0 %827
        %829 = vset.pattern.permute.xlu0 1
        %830 = vperm.xlu0 %829, %v372
        %v831 = vpop.permute.xlu0 %830
        %832 = vset.pattern.permute.xlu0 1
        %833 = vperm.xlu0 %832, %v373
        %v834 = vpop.permute.xlu0 %833
        %835 = vset.pattern.permute.xlu0 1
        %836 = vperm.xlu0 %835, %v374
        %v837 = vpop.permute.xlu0 %836
        %838 = vset.pattern.permute.xlu0 1
        %839 = vperm.xlu0 %838, %v375
        %v840 = vpop.permute.xlu0 %839
        %841 = vset.pattern.permute.xlu0 1
        %842 = vperm.xlu0 %841, %v376
        %v843 = vpop.permute.xlu0 %842
        %844 = vset.pattern.permute.xlu0 1
        %845 = vperm.xlu0 %844, %v377
        %v846 = vpop.permute.xlu0 %845
        %847 = vset.pattern.permute.xlu0 1
        %848 = vperm.xlu0 %847, %v378
        %v849 = vpop.permute.xlu0 %848
        %850 = vset.pattern.permute.xlu0 1
        %851 = vperm.xlu0 %850, %v379
        %v852 = vpop.permute.xlu0 %851
        %853 = vset.pattern.permute.xlu0 1
        %854 = vperm.xlu0 %853, %v380
        %v855 = vpop.permute.xlu0 %854
        %856 = vset.pattern.permute.xlu0 1
        %857 = vperm.xlu0 %856, %v381
        %v858 = vpop.permute.xlu0 %857
        %859 = vset.pattern.permute.xlu0 1
        %860 = vperm.xlu0 %859, %v382
        %v861 = vpop.permute.xlu0 %860
        %862 = vset.pattern.permute.xlu0 1
        %863 = vperm.xlu0 %862, %v383
        %v864 = vpop.permute.xlu0 %863
        %865 = vset.pattern.permute.xlu0 1
        %866 = vperm.xlu0 %865, %v384
        %v867 = vpop.permute.xlu0 %866
        %868 = vset.pattern.permute.xlu0 1
        %869 = vperm.xlu0 %868, %v385
        %v870 = vpop.permute.xlu0 %869
        %871 = vset.pattern.permute.xlu0 1
        %872 = vperm.xlu0 %871, %v386
        %v873 = vpop.permute.xlu0 %872
        %874 = vset.pattern.permute.xlu0 1
        %875 = vperm.xlu0 %874, %v387
        %v876 = vpop.permute.xlu0 %875
        %877 = vset.pattern.permute.xlu0 1
        %878 = vperm.xlu0 %877, %v388
        %v879 = vpop.permute.xlu0 %878
        %880 = vset.pattern.permute.xlu0 1
        %881 = vperm.xlu0 %880, %v389
        %v882 = vpop.permute.xlu0 %881
        %883 = vset.pattern.permute.xlu0 1
        %884 = vperm.xlu0 %883, %v390
        %v885 = vpop.permute.xlu0 %884
        %886 = vset.pattern.permute.xlu0 1
        %887 = vperm.xlu0 %886, %v391
        %v888 = vpop.permute.xlu0 %887
        %889 = vset.pattern.permute.xlu0 1
        %890 = vperm.xlu0 %889, %v392
        %v891 = vpop.permute.xlu0 %890
        %892 = vset.pattern.permute.xlu0 1
        %893 = vperm.xlu0 %892, %v393
        %v894 = vpop.permute.xlu0 %893
        %895 = vset.pattern.permute.xlu0 1
        %896 = vperm.xlu0 %895, %v394
        %v897 = vpop.permute.xlu0 %896
        %898 = vset.pattern.permute.xlu0 1
        %899 = vperm.xlu0 %898, %v395
        %v900 = vpop.permute.xlu0 %899
        %901 = vset.pattern.permute.xlu0 1
        %902 = vperm.xlu0 %901, %v396
        %v903 = vpop.permute.xlu0 %902
        %904 = vset.pattern.permute.xlu0 1
        %905 = vperm.xlu0 %904, %v397
        %v906 = vpop.permute.xlu0 %905
        %907 = vset.pattern.permute.xlu0 1
        %908 = vperm.xlu0 %907, %v398
        %v909 = vpop.permute.xlu0 %908
        %910 = vset.pattern.permute.xlu0 1
        %911 = vperm.xlu0 %910, %v399
        %v912 = vpop.permute.xlu0 %911
        %913 = vset.pattern.permute.xlu0 1
        %914 = vperm.xlu0 %913, %v400
        %v915 = vpop.permute.xlu0 %914
        %916 = vset.pattern.permute.xlu0 1
        %917 = vperm.xlu0 %916, %v401
        %v918 = vpop.permute.xlu0 %917
        %vm919 = vcmp.eq.s32.totalorder %v825, %v403
        %vm920 = vcmp.eq.s32.totalorder %v825, %v404
        %vm921 = vcmp.eq.s32.totalorder %v825, %v405
        %vm922 = vcmp.eq.s32.totalorder %v825, %v406
        %vm923 = vcmp.eq.s32.totalorder %v828, %v403
        %vm924 = vcmp.eq.s32.totalorder %v828, %v404
        %vm925 = vcmp.eq.s32.totalorder %v828, %v405
        %vm926 = vcmp.eq.s32.totalorder %v828, %v406
        %vm927 = vcmp.eq.s32.totalorder %v831, %v403
        %vm928 = vcmp.eq.s32.totalorder %v831, %v404
        %vm929 = vcmp.eq.s32.totalorder %v831, %v405
        %vm930 = vcmp.eq.s32.totalorder %v831, %v406
        %vm931 = vcmp.eq.s32.totalorder %v834, %v403
        %vm932 = vcmp.eq.s32.totalorder %v834, %v404
        %vm933 = vcmp.eq.s32.totalorder %v834, %v405
        %vm934 = vcmp.eq.s32.totalorder %v834, %v406
        %vm935 = vcmp.eq.s32.totalorder %v837, %v403
        %vm936 = vcmp.eq.s32.totalorder %v837, %v404
        %vm937 = vcmp.eq.s32.totalorder %v837, %v405
        %vm938 = vcmp.eq.s32.totalorder %v837, %v406
        %vm939 = vcmp.eq.s32.totalorder %v840, %v403
        %vm940 = vcmp.eq.s32.totalorder %v840, %v404
        %vm941 = vcmp.eq.s32.totalorder %v840, %v405
        %vm942 = vcmp.eq.s32.totalorder %v840, %v406
        %vm943 = vcmp.eq.s32.totalorder %v843, %v403
        %vm944 = vcmp.eq.s32.totalorder %v843, %v404
        %vm945 = vcmp.eq.s32.totalorder %v843, %v405
        %vm946 = vcmp.eq.s32.totalorder %v843, %v406
        %vm947 = vcmp.eq.s32.totalorder %v846, %v403
        %vm948 = vcmp.eq.s32.totalorder %v846, %v404
        %vm949 = vcmp.eq.s32.totalorder %v846, %v405
        %vm950 = vcmp.eq.s32.totalorder %v846, %v406
        %vm951 = vcmp.eq.s32.totalorder %v849, %v403
        %vm952 = vcmp.eq.s32.totalorder %v849, %v404
        %vm953 = vcmp.eq.s32.totalorder %v849, %v405
        %vm954 = vcmp.eq.s32.totalorder %v849, %v406
        %vm955 = vcmp.eq.s32.totalorder %v852, %v403
        %vm956 = vcmp.eq.s32.totalorder %v852, %v404
        %vm957 = vcmp.eq.s32.totalorder %v852, %v405
        %vm958 = vcmp.eq.s32.totalorder %v852, %v406
        %vm959 = vcmp.eq.s32.totalorder %v855, %v403
        %vm960 = vcmp.eq.s32.totalorder %v855, %v404
        %vm961 = vcmp.eq.s32.totalorder %v855, %v405
        %vm962 = vcmp.eq.s32.totalorder %v855, %v406
        %vm963 = vcmp.eq.s32.totalorder %v858, %v403
        %vm964 = vcmp.eq.s32.totalorder %v858, %v404
        %vm965 = vcmp.eq.s32.totalorder %v858, %v405
        %vm966 = vcmp.eq.s32.totalorder %v858, %v406
        %vm967 = vcmp.eq.s32.totalorder %v861, %v403
        %vm968 = vcmp.eq.s32.totalorder %v861, %v404
        %vm969 = vcmp.eq.s32.totalorder %v861, %v405
        %vm970 = vcmp.eq.s32.totalorder %v861, %v406
        %vm971 = vcmp.eq.s32.totalorder %v864, %v403
        %vm972 = vcmp.eq.s32.totalorder %v864, %v404
        %vm973 = vcmp.eq.s32.totalorder %v864, %v405
        %vm974 = vcmp.eq.s32.totalorder %v864, %v406
        %vm975 = vcmp.eq.s32.totalorder %v867, %v403
        %vm976 = vcmp.eq.s32.totalorder %v867, %v404
        %vm977 = vcmp.eq.s32.totalorder %v867, %v405
        %vm978 = vcmp.eq.s32.totalorder %v867, %v406
        %vm979 = vcmp.eq.s32.totalorder %v870, %v403
        %vm980 = vcmp.eq.s32.totalorder %v870, %v404
        %vm981 = vcmp.eq.s32.totalorder %v870, %v405
        %vm982 = vcmp.eq.s32.totalorder %v870, %v406
        %vm983 = vcmp.eq.s32.totalorder %v873, %v403
        %vm984 = vcmp.eq.s32.totalorder %v873, %v404
        %vm985 = vcmp.eq.s32.totalorder %v873, %v405
        %vm986 = vcmp.eq.s32.totalorder %v873, %v406
        %vm987 = vcmp.eq.s32.totalorder %v876, %v403
        %vm988 = vcmp.eq.s32.totalorder %v876, %v404
        %vm989 = vcmp.eq.s32.totalorder %v876, %v405
        %vm990 = vcmp.eq.s32.totalorder %v876, %v406
        %vm991 = vcmp.eq.s32.totalorder %v879, %v403
        %vm992 = vcmp.eq.s32.totalorder %v879, %v404
        %vm993 = vcmp.eq.s32.totalorder %v879, %v405
        %vm994 = vcmp.eq.s32.totalorder %v879, %v406
        %vm995 = vcmp.eq.s32.totalorder %v882, %v403
        %vm996 = vcmp.eq.s32.totalorder %v882, %v404
        %vm997 = vcmp.eq.s32.totalorder %v882, %v405
        %vm998 = vcmp.eq.s32.totalorder %v882, %v406
        %vm999 = vcmp.eq.s32.totalorder %v885, %v403
        %vm1000 = vcmp.eq.s32.totalorder %v885, %v404
        %vm1001 = vcmp.eq.s32.totalorder %v885, %v405
        %vm1002 = vcmp.eq.s32.totalorder %v885, %v406
        %vm1003 = vcmp.eq.s32.totalorder %v888, %v403
        %vm1004 = vcmp.eq.s32.totalorder %v888, %v404
        %vm1005 = vcmp.eq.s32.totalorder %v888, %v405
        %vm1006 = vcmp.eq.s32.totalorder %v888, %v406
        %vm1007 = vcmp.eq.s32.totalorder %v891, %v403
        %vm1008 = vcmp.eq.s32.totalorder %v891, %v404
        %vm1009 = vcmp.eq.s32.totalorder %v891, %v405
        %vm1010 = vcmp.eq.s32.totalorder %v891, %v406
        %vm1011 = vcmp.eq.s32.totalorder %v894, %v403
        %vm1012 = vcmp.eq.s32.totalorder %v894, %v404
        %vm1013 = vcmp.eq.s32.totalorder %v894, %v405
        %vm1014 = vcmp.eq.s32.totalorder %v894, %v406
        %vm1015 = vcmp.eq.s32.totalorder %v897, %v403
        %vm1016 = vcmp.eq.s32.totalorder %v897, %v404
        %vm1017 = vcmp.eq.s32.totalorder %v897, %v405
        %vm1018 = vcmp.eq.s32.totalorder %v897, %v406
        %vm1019 = vcmp.eq.s32.totalorder %v900, %v403
        %vm1020 = vcmp.eq.s32.totalorder %v900, %v404
        %vm1021 = vcmp.eq.s32.totalorder %v900, %v405
        %vm1022 = vcmp.eq.s32.totalorder %v900, %v406
        %vm1023 = vcmp.eq.s32.totalorder %v903, %v403
        %vm1024 = vcmp.eq.s32.totalorder %v903, %v404
        %vm1025 = vcmp.eq.s32.totalorder %v903, %v405
        %vm1026 = vcmp.eq.s32.totalorder %v903, %v406
        %vm1027 = vcmp.eq.s32.totalorder %v906, %v403
        %vm1028 = vcmp.eq.s32.totalorder %v906, %v404
        %vm1029 = vcmp.eq.s32.totalorder %v906, %v405
        %vm1030 = vcmp.eq.s32.totalorder %v906, %v406
        %vm1031 = vcmp.eq.s32.totalorder %v909, %v403
        %vm1032 = vcmp.eq.s32.totalorder %v909, %v404
        %vm1033 = vcmp.eq.s32.totalorder %v909, %v405
        %vm1034 = vcmp.eq.s32.totalorder %v909, %v406
        %vm1035 = vcmp.eq.s32.totalorder %v912, %v403
        %vm1036 = vcmp.eq.s32.totalorder %v912, %v404
        %vm1037 = vcmp.eq.s32.totalorder %v912, %v405
        %vm1038 = vcmp.eq.s32.totalorder %v912, %v406
        %vm1039 = vcmp.eq.s32.totalorder %v915, %v403
        %vm1040 = vcmp.eq.s32.totalorder %v915, %v404
        %vm1041 = vcmp.eq.s32.totalorder %v915, %v405
        %vm1042 = vcmp.eq.s32.totalorder %v915, %v406
        %vm1043 = vcmp.eq.s32.totalorder %v918, %v403
        %vm1044 = vcmp.eq.s32.totalorder %v918, %v404
        %vm1045 = vcmp.eq.s32.totalorder %v918, %v405
        %vm1046 = vcmp.eq.s32.totalorder %v918, %v406
        %v1047 = vsel %vm919, 1.0, 0.0
        %v1048 = vsel %vm920, 1.0, 0.0
        %v1049 = vsel %vm921, 1.0, 0.0
        %v1050 = vsel %vm922, 1.0, 0.0
        %v1051 = vsel %vm923, 1.0, 0.0
        %v1052 = vsel %vm924, 1.0, 0.0
        %v1053 = vsel %vm925, 1.0, 0.0
        %v1054 = vsel %vm926, 1.0, 0.0
        %v1055 = vsel %vm927, 1.0, 0.0
        %v1056 = vsel %vm928, 1.0, 0.0
        %v1057 = vsel %vm929, 1.0, 0.0
        %v1058 = vsel %vm930, 1.0, 0.0
        %v1059 = vsel %vm931, 1.0, 0.0
        %v1060 = vsel %vm932, 1.0, 0.0
        %v1061 = vsel %vm933, 1.0, 0.0
        %v1062 = vsel %vm934, 1.0, 0.0
        %v1063 = vsel %vm935, 1.0, 0.0
        %v1064 = vsel %vm936, 1.0, 0.0
        %v1065 = vsel %vm937, 1.0, 0.0
        %v1066 = vsel %vm938, 1.0, 0.0
        %v1067 = vsel %vm939, 1.0, 0.0
        %v1068 = vsel %vm940, 1.0, 0.0
        %v1069 = vsel %vm941, 1.0, 0.0
        %v1070 = vsel %vm942, 1.0, 0.0
        %v1071 = vsel %vm943, 1.0, 0.0
        %v1072 = vsel %vm944, 1.0, 0.0
        %v1073 = vsel %vm945, 1.0, 0.0
        %v1074 = vsel %vm946, 1.0, 0.0
        %v1075 = vsel %vm947, 1.0, 0.0
        %v1076 = vsel %vm948, 1.0, 0.0
        %v1077 = vsel %vm949, 1.0, 0.0
        %v1078 = vsel %vm950, 1.0, 0.0
        %v1079 = vsel %vm951, 1.0, 0.0
        %v1080 = vsel %vm952, 1.0, 0.0
        %v1081 = vsel %vm953, 1.0, 0.0
        %v1082 = vsel %vm954, 1.0, 0.0
        %v1083 = vsel %vm955, 1.0, 0.0
        %v1084 = vsel %vm956, 1.0, 0.0
        %v1085 = vsel %vm957, 1.0, 0.0
        %v1086 = vsel %vm958, 1.0, 0.0
        %v1087 = vsel %vm959, 1.0, 0.0
        %v1088 = vsel %vm960, 1.0, 0.0
        %v1089 = vsel %vm961, 1.0, 0.0
        %v1090 = vsel %vm962, 1.0, 0.0
        %v1091 = vsel %vm963, 1.0, 0.0
        %v1092 = vsel %vm964, 1.0, 0.0
        %v1093 = vsel %vm965, 1.0, 0.0
        %v1094 = vsel %vm966, 1.0, 0.0
        %v1095 = vsel %vm967, 1.0, 0.0
        %v1096 = vsel %vm968, 1.0, 0.0
        %v1097 = vsel %vm969, 1.0, 0.0
        %v1098 = vsel %vm970, 1.0, 0.0
        %v1099 = vsel %vm971, 1.0, 0.0
        %v1100 = vsel %vm972, 1.0, 0.0
        %v1101 = vsel %vm973, 1.0, 0.0
        %v1102 = vsel %vm974, 1.0, 0.0
        %v1103 = vsel %vm975, 1.0, 0.0
        %v1104 = vsel %vm976, 1.0, 0.0
        %v1105 = vsel %vm977, 1.0, 0.0
        %v1106 = vsel %vm978, 1.0, 0.0
        %v1107 = vsel %vm979, 1.0, 0.0
        %v1108 = vsel %vm980, 1.0, 0.0
        %v1109 = vsel %vm981, 1.0, 0.0
        %v1110 = vsel %vm982, 1.0, 0.0
        %v1111 = vsel %vm983, 1.0, 0.0
        %v1112 = vsel %vm984, 1.0, 0.0
        %v1113 = vsel %vm985, 1.0, 0.0
        %v1114 = vsel %vm986, 1.0, 0.0
        %v1115 = vsel %vm987, 1.0, 0.0
        %v1116 = vsel %vm988, 1.0, 0.0
        %v1117 = vsel %vm989, 1.0, 0.0
        %v1118 = vsel %vm990, 1.0, 0.0
        %v1119 = vsel %vm991, 1.0, 0.0
        %v1120 = vsel %vm992, 1.0, 0.0
        %v1121 = vsel %vm993, 1.0, 0.0
        %v1122 = vsel %vm994, 1.0, 0.0
        %v1123 = vsel %vm995, 1.0, 0.0
        %v1124 = vsel %vm996, 1.0, 0.0
        %v1125 = vsel %vm997, 1.0, 0.0
        %v1126 = vsel %vm998, 1.0, 0.0
        %v1127 = vsel %vm999, 1.0, 0.0
        %v1128 = vsel %vm1000, 1.0, 0.0
        %v1129 = vsel %vm1001, 1.0, 0.0
        %v1130 = vsel %vm1002, 1.0, 0.0
        %v1131 = vsel %vm1003, 1.0, 0.0
        %v1132 = vsel %vm1004, 1.0, 0.0
        %v1133 = vsel %vm1005, 1.0, 0.0
        %v1134 = vsel %vm1006, 1.0, 0.0
        %v1135 = vsel %vm1007, 1.0, 0.0
        %v1136 = vsel %vm1008, 1.0, 0.0
        %v1137 = vsel %vm1009, 1.0, 0.0
        %v1138 = vsel %vm1010, 1.0, 0.0
        %v1139 = vsel %vm1011, 1.0, 0.0
        %v1140 = vsel %vm1012, 1.0, 0.0
        %v1141 = vsel %vm1013, 1.0, 0.0
        %v1142 = vsel %vm1014, 1.0, 0.0
        %v1143 = vsel %vm1015, 1.0, 0.0
        %v1144 = vsel %vm1016, 1.0, 0.0
        %v1145 = vsel %vm1017, 1.0, 0.0
        %v1146 = vsel %vm1018, 1.0, 0.0
        %v1147 = vsel %vm1019, 1.0, 0.0
        %v1148 = vsel %vm1020, 1.0, 0.0
        %v1149 = vsel %vm1021, 1.0, 0.0
        %v1150 = vsel %vm1022, 1.0, 0.0
        %v1151 = vsel %vm1023, 1.0, 0.0
        %v1152 = vsel %vm1024, 1.0, 0.0
        %v1153 = vsel %vm1025, 1.0, 0.0
        %v1154 = vsel %vm1026, 1.0, 0.0
        %v1155 = vsel %vm1027, 1.0, 0.0
        %v1156 = vsel %vm1028, 1.0, 0.0
        %v1157 = vsel %vm1029, 1.0, 0.0
        %v1158 = vsel %vm1030, 1.0, 0.0
        %v1159 = vsel %vm1031, 1.0, 0.0
        %v1160 = vsel %vm1032, 1.0, 0.0
        %v1161 = vsel %vm1033, 1.0, 0.0
        %v1162 = vsel %vm1034, 1.0, 0.0
        %v1163 = vsel %vm1035, 1.0, 0.0
        %v1164 = vsel %vm1036, 1.0, 0.0
        %v1165 = vsel %vm1037, 1.0, 0.0
        %v1166 = vsel %vm1038, 1.0, 0.0
        %v1167 = vsel %vm1039, 1.0, 0.0
        %v1168 = vsel %vm1040, 1.0, 0.0
        %v1169 = vsel %vm1041, 1.0, 0.0
        %v1170 = vsel %vm1042, 1.0, 0.0
        %v1171 = vsel %vm1043, 1.0, 0.0
        %v1172 = vsel %vm1044, 1.0, 0.0
        %v1173 = vsel %vm1045, 1.0, 0.0
        %v1174 = vsel %vm1046, 1.0, 0.0
        %v1175 = vpack.c.bf16 %v1051, %v1047
        %v1176 = vpack.c.bf16 %v1052, %v1048
        %v1177 = vpack.c.bf16 %v1053, %v1049
        %v1178 = vpack.c.bf16 %v1054, %v1050
        %v1179 = vpack.c.bf16 %v1059, %v1055
        %v1180 = vpack.c.bf16 %v1060, %v1056
        %v1181 = vpack.c.bf16 %v1061, %v1057
        %v1182 = vpack.c.bf16 %v1062, %v1058
        %v1183 = vpack.c.bf16 %v1067, %v1063
        %v1184 = vpack.c.bf16 %v1068, %v1064
        %v1185 = vpack.c.bf16 %v1069, %v1065
        %v1186 = vpack.c.bf16 %v1070, %v1066
        %v1187 = vpack.c.bf16 %v1075, %v1071
        %v1188 = vpack.c.bf16 %v1076, %v1072
        %v1189 = vpack.c.bf16 %v1077, %v1073
        %v1190 = vpack.c.bf16 %v1078, %v1074
        %v1191 = vpack.c.bf16 %v1083, %v1079
        %v1192 = vpack.c.bf16 %v1084, %v1080
        %v1193 = vpack.c.bf16 %v1085, %v1081
        %v1194 = vpack.c.bf16 %v1086, %v1082
        %v1195 = vpack.c.bf16 %v1091, %v1087
        %v1196 = vpack.c.bf16 %v1092, %v1088
        %v1197 = vpack.c.bf16 %v1093, %v1089
        %v1198 = vpack.c.bf16 %v1094, %v1090
        %v1199 = vpack.c.bf16 %v1099, %v1095
        %v1200 = vpack.c.bf16 %v1100, %v1096
        %v1201 = vpack.c.bf16 %v1101, %v1097
        %v1202 = vpack.c.bf16 %v1102, %v1098
        %v1203 = vpack.c.bf16 %v1107, %v1103
        %v1204 = vpack.c.bf16 %v1108, %v1104
        %v1205 = vpack.c.bf16 %v1109, %v1105
        %v1206 = vpack.c.bf16 %v1110, %v1106
        %v1207 = vpack.c.bf16 %v1115, %v1111
        %v1208 = vpack.c.bf16 %v1116, %v1112
        %v1209 = vpack.c.bf16 %v1117, %v1113
        %v1210 = vpack.c.bf16 %v1118, %v1114
        %v1211 = vpack.c.bf16 %v1123, %v1119
        %v1212 = vpack.c.bf16 %v1124, %v1120
        %v1213 = vpack.c.bf16 %v1125, %v1121
        %v1214 = vpack.c.bf16 %v1126, %v1122
        %v1215 = vpack.c.bf16 %v1131, %v1127
        %v1216 = vpack.c.bf16 %v1132, %v1128
        %v1217 = vpack.c.bf16 %v1133, %v1129
        %v1218 = vpack.c.bf16 %v1134, %v1130
        %v1219 = vpack.c.bf16 %v1139, %v1135
        %v1220 = vpack.c.bf16 %v1140, %v1136
        %v1221 = vpack.c.bf16 %v1141, %v1137
        %v1222 = vpack.c.bf16 %v1142, %v1138
        %v1223 = vpack.c.bf16 %v1147, %v1143
        %v1224 = vpack.c.bf16 %v1148, %v1144
        %v1225 = vpack.c.bf16 %v1149, %v1145
        %v1226 = vpack.c.bf16 %v1150, %v1146
        %v1227 = vpack.c.bf16 %v1155, %v1151
        %v1228 = vpack.c.bf16 %v1156, %v1152
        %v1229 = vpack.c.bf16 %v1157, %v1153
        %v1230 = vpack.c.bf16 %v1158, %v1154
        %v1231 = vpack.c.bf16 %v1163, %v1159
        %v1232 = vpack.c.bf16 %v1164, %v1160
        %v1233 = vpack.c.bf16 %v1165, %v1161
        %v1234 = vpack.c.bf16 %v1166, %v1162
        %v1235 = vpack.c.bf16 %v1171, %v1167
        %v1236 = vpack.c.bf16 %v1172, %v1168
        %v1237 = vpack.c.bf16 %v1173, %v1169
        %v1238 = vpack.c.bf16 %v1174, %v1170
        %1239 = vset.pattern.permute.xlu0 2
        %1240 = vperm.xlu0 %1239, %v370
        %v1241 = vpop.permute.xlu0 %1240
        %1242 = vset.pattern.permute.xlu0 2
        %1243 = vperm.xlu0 %1242, %v371
        %v1244 = vpop.permute.xlu0 %1243
        %1245 = vset.pattern.permute.xlu0 2
        %1246 = vperm.xlu0 %1245, %v372
        %v1247 = vpop.permute.xlu0 %1246
        %1248 = vset.pattern.permute.xlu0 2
        %1249 = vperm.xlu0 %1248, %v373
        %v1250 = vpop.permute.xlu0 %1249
        %1251 = vset.pattern.permute.xlu0 2
        %1252 = vperm.xlu0 %1251, %v374
        %v1253 = vpop.permute.xlu0 %1252
        %1254 = vset.pattern.permute.xlu0 2
        %1255 = vperm.xlu0 %1254, %v375
        %v1256 = vpop.permute.xlu0 %1255
        %1257 = vset.pattern.permute.xlu0 2
        %1258 = vperm.xlu0 %1257, %v376
        %v1259 = vpop.permute.xlu0 %1258
        %1260 = vset.pattern.permute.xlu0 2
        %1261 = vperm.xlu0 %1260, %v377
        %v1262 = vpop.permute.xlu0 %1261
        %1263 = vset.pattern.permute.xlu0 2
        %1264 = vperm.xlu0 %1263, %v378
        %v1265 = vpop.permute.xlu0 %1264
        %1266 = vset.pattern.permute.xlu0 2
        %1267 = vperm.xlu0 %1266, %v379
        %v1268 = vpop.permute.xlu0 %1267
        %1269 = vset.pattern.permute.xlu0 2
        %1270 = vperm.xlu0 %1269, %v380
        %v1271 = vpop.permute.xlu0 %1270
        %1272 = vset.pattern.permute.xlu0 2
        %1273 = vperm.xlu0 %1272, %v381
        %v1274 = vpop.permute.xlu0 %1273
        %1275 = vset.pattern.permute.xlu0 2
        %1276 = vperm.xlu0 %1275, %v382
        %v1277 = vpop.permute.xlu0 %1276
        %1278 = vset.pattern.permute.xlu0 2
        %1279 = vperm.xlu0 %1278, %v383
        %v1280 = vpop.permute.xlu0 %1279
        %1281 = vset.pattern.permute.xlu0 2
        %1282 = vperm.xlu0 %1281, %v384
        %v1283 = vpop.permute.xlu0 %1282
        %1284 = vset.pattern.permute.xlu0 2
        %1285 = vperm.xlu0 %1284, %v385
        %v1286 = vpop.permute.xlu0 %1285
        %1287 = vset.pattern.permute.xlu0 2
        %1288 = vperm.xlu0 %1287, %v386
        %v1289 = vpop.permute.xlu0 %1288
        %1290 = vset.pattern.permute.xlu0 2
        %1291 = vperm.xlu0 %1290, %v387
        %v1292 = vpop.permute.xlu0 %1291
        %1293 = vset.pattern.permute.xlu0 2
        %1294 = vperm.xlu0 %1293, %v388
        %v1295 = vpop.permute.xlu0 %1294
        %1296 = vset.pattern.permute.xlu0 2
        %1297 = vperm.xlu0 %1296, %v389
        %v1298 = vpop.permute.xlu0 %1297
        %1299 = vset.pattern.permute.xlu0 2
        %1300 = vperm.xlu0 %1299, %v390
        %v1301 = vpop.permute.xlu0 %1300
        %1302 = vset.pattern.permute.xlu0 2
        %1303 = vperm.xlu0 %1302, %v391
        %v1304 = vpop.permute.xlu0 %1303
        %1305 = vset.pattern.permute.xlu0 2
        %1306 = vperm.xlu0 %1305, %v392
        %v1307 = vpop.permute.xlu0 %1306
        %1308 = vset.pattern.permute.xlu0 2
        %1309 = vperm.xlu0 %1308, %v393
        %v1310 = vpop.permute.xlu0 %1309
        %1311 = vset.pattern.permute.xlu0 2
        %1312 = vperm.xlu0 %1311, %v394
        %v1313 = vpop.permute.xlu0 %1312
        %1314 = vset.pattern.permute.xlu0 2
        %1315 = vperm.xlu0 %1314, %v395
        %v1316 = vpop.permute.xlu0 %1315
        %1317 = vset.pattern.permute.xlu0 2
        %1318 = vperm.xlu0 %1317, %v396
        %v1319 = vpop.permute.xlu0 %1318
        %1320 = vset.pattern.permute.xlu0 2
        %1321 = vperm.xlu0 %1320, %v397
        %v1322 = vpop.permute.xlu0 %1321
        %1323 = vset.pattern.permute.xlu0 2
        %1324 = vperm.xlu0 %1323, %v398
        %v1325 = vpop.permute.xlu0 %1324
        %1326 = vset.pattern.permute.xlu0 2
        %1327 = vperm.xlu0 %1326, %v399
        %v1328 = vpop.permute.xlu0 %1327
        %1329 = vset.pattern.permute.xlu0 2
        %1330 = vperm.xlu0 %1329, %v400
        %v1331 = vpop.permute.xlu0 %1330
        %1332 = vset.pattern.permute.xlu0 2
        %1333 = vperm.xlu0 %1332, %v401
        %v1334 = vpop.permute.xlu0 %1333
        %vm1335 = vcmp.eq.s32.totalorder %v1241, %v403
        %vm1336 = vcmp.eq.s32.totalorder %v1241, %v404
        %vm1337 = vcmp.eq.s32.totalorder %v1241, %v405
        %vm1338 = vcmp.eq.s32.totalorder %v1241, %v406
        %vm1339 = vcmp.eq.s32.totalorder %v1244, %v403
        %vm1340 = vcmp.eq.s32.totalorder %v1244, %v404
        %vm1341 = vcmp.eq.s32.totalorder %v1244, %v405
        %vm1342 = vcmp.eq.s32.totalorder %v1244, %v406
        %vm1343 = vcmp.eq.s32.totalorder %v1247, %v403
        %vm1344 = vcmp.eq.s32.totalorder %v1247, %v404
        %vm1345 = vcmp.eq.s32.totalorder %v1247, %v405
        %vm1346 = vcmp.eq.s32.totalorder %v1247, %v406
        %vm1347 = vcmp.eq.s32.totalorder %v1250, %v403
        %vm1348 = vcmp.eq.s32.totalorder %v1250, %v404
        %vm1349 = vcmp.eq.s32.totalorder %v1250, %v405
        %vm1350 = vcmp.eq.s32.totalorder %v1250, %v406
        %vm1351 = vcmp.eq.s32.totalorder %v1253, %v403
        %vm1352 = vcmp.eq.s32.totalorder %v1253, %v404
        %vm1353 = vcmp.eq.s32.totalorder %v1253, %v405
        %vm1354 = vcmp.eq.s32.totalorder %v1253, %v406
        %vm1355 = vcmp.eq.s32.totalorder %v1256, %v403
        %vm1356 = vcmp.eq.s32.totalorder %v1256, %v404
        %vm1357 = vcmp.eq.s32.totalorder %v1256, %v405
        %vm1358 = vcmp.eq.s32.totalorder %v1256, %v406
        %vm1359 = vcmp.eq.s32.totalorder %v1259, %v403
        %vm1360 = vcmp.eq.s32.totalorder %v1259, %v404
        %vm1361 = vcmp.eq.s32.totalorder %v1259, %v405
        %vm1362 = vcmp.eq.s32.totalorder %v1259, %v406
        %vm1363 = vcmp.eq.s32.totalorder %v1262, %v403
        %vm1364 = vcmp.eq.s32.totalorder %v1262, %v404
        %vm1365 = vcmp.eq.s32.totalorder %v1262, %v405
        %vm1366 = vcmp.eq.s32.totalorder %v1262, %v406
        %vm1367 = vcmp.eq.s32.totalorder %v1265, %v403
        %vm1368 = vcmp.eq.s32.totalorder %v1265, %v404
        %vm1369 = vcmp.eq.s32.totalorder %v1265, %v405
        %vm1370 = vcmp.eq.s32.totalorder %v1265, %v406
        %vm1371 = vcmp.eq.s32.totalorder %v1268, %v403
        %vm1372 = vcmp.eq.s32.totalorder %v1268, %v404
        %vm1373 = vcmp.eq.s32.totalorder %v1268, %v405
        %vm1374 = vcmp.eq.s32.totalorder %v1268, %v406
        %vm1375 = vcmp.eq.s32.totalorder %v1271, %v403
        %vm1376 = vcmp.eq.s32.totalorder %v1271, %v404
        %vm1377 = vcmp.eq.s32.totalorder %v1271, %v405
        %vm1378 = vcmp.eq.s32.totalorder %v1271, %v406
        %vm1379 = vcmp.eq.s32.totalorder %v1274, %v403
        %vm1380 = vcmp.eq.s32.totalorder %v1274, %v404
        %vm1381 = vcmp.eq.s32.totalorder %v1274, %v405
        %vm1382 = vcmp.eq.s32.totalorder %v1274, %v406
        %vm1383 = vcmp.eq.s32.totalorder %v1277, %v403
        %vm1384 = vcmp.eq.s32.totalorder %v1277, %v404
        %vm1385 = vcmp.eq.s32.totalorder %v1277, %v405
        %vm1386 = vcmp.eq.s32.totalorder %v1277, %v406
        %vm1387 = vcmp.eq.s32.totalorder %v1280, %v403
        %vm1388 = vcmp.eq.s32.totalorder %v1280, %v404
        %vm1389 = vcmp.eq.s32.totalorder %v1280, %v405
        %vm1390 = vcmp.eq.s32.totalorder %v1280, %v406
        %vm1391 = vcmp.eq.s32.totalorder %v1283, %v403
        %vm1392 = vcmp.eq.s32.totalorder %v1283, %v404
        %vm1393 = vcmp.eq.s32.totalorder %v1283, %v405
        %vm1394 = vcmp.eq.s32.totalorder %v1283, %v406
        %vm1395 = vcmp.eq.s32.totalorder %v1286, %v403
        %vm1396 = vcmp.eq.s32.totalorder %v1286, %v404
        %vm1397 = vcmp.eq.s32.totalorder %v1286, %v405
        %vm1398 = vcmp.eq.s32.totalorder %v1286, %v406
        %vm1399 = vcmp.eq.s32.totalorder %v1289, %v403
        %vm1400 = vcmp.eq.s32.totalorder %v1289, %v404
        %vm1401 = vcmp.eq.s32.totalorder %v1289, %v405
        %vm1402 = vcmp.eq.s32.totalorder %v1289, %v406
        %vm1403 = vcmp.eq.s32.totalorder %v1292, %v403
        %vm1404 = vcmp.eq.s32.totalorder %v1292, %v404
        %vm1405 = vcmp.eq.s32.totalorder %v1292, %v405
        %vm1406 = vcmp.eq.s32.totalorder %v1292, %v406
        %vm1407 = vcmp.eq.s32.totalorder %v1295, %v403
        %vm1408 = vcmp.eq.s32.totalorder %v1295, %v404
        %vm1409 = vcmp.eq.s32.totalorder %v1295, %v405
        %vm1410 = vcmp.eq.s32.totalorder %v1295, %v406
        %vm1411 = vcmp.eq.s32.totalorder %v1298, %v403
        %vm1412 = vcmp.eq.s32.totalorder %v1298, %v404
        %vm1413 = vcmp.eq.s32.totalorder %v1298, %v405
        %vm1414 = vcmp.eq.s32.totalorder %v1298, %v406
        %vm1415 = vcmp.eq.s32.totalorder %v1301, %v403
        %vm1416 = vcmp.eq.s32.totalorder %v1301, %v404
        %vm1417 = vcmp.eq.s32.totalorder %v1301, %v405
        %vm1418 = vcmp.eq.s32.totalorder %v1301, %v406
        %vm1419 = vcmp.eq.s32.totalorder %v1304, %v403
        %vm1420 = vcmp.eq.s32.totalorder %v1304, %v404
        %vm1421 = vcmp.eq.s32.totalorder %v1304, %v405
        %vm1422 = vcmp.eq.s32.totalorder %v1304, %v406
        %vm1423 = vcmp.eq.s32.totalorder %v1307, %v403
        %vm1424 = vcmp.eq.s32.totalorder %v1307, %v404
        %vm1425 = vcmp.eq.s32.totalorder %v1307, %v405
        %vm1426 = vcmp.eq.s32.totalorder %v1307, %v406
        %vm1427 = vcmp.eq.s32.totalorder %v1310, %v403
        %vm1428 = vcmp.eq.s32.totalorder %v1310, %v404
        %vm1429 = vcmp.eq.s32.totalorder %v1310, %v405
        %vm1430 = vcmp.eq.s32.totalorder %v1310, %v406
        %vm1431 = vcmp.eq.s32.totalorder %v1313, %v403
        %vm1432 = vcmp.eq.s32.totalorder %v1313, %v404
        %vm1433 = vcmp.eq.s32.totalorder %v1313, %v405
        %vm1434 = vcmp.eq.s32.totalorder %v1313, %v406
        %vm1435 = vcmp.eq.s32.totalorder %v1316, %v403
        %vm1436 = vcmp.eq.s32.totalorder %v1316, %v404
        %vm1437 = vcmp.eq.s32.totalorder %v1316, %v405
        %vm1438 = vcmp.eq.s32.totalorder %v1316, %v406
        %vm1439 = vcmp.eq.s32.totalorder %v1319, %v403
        %vm1440 = vcmp.eq.s32.totalorder %v1319, %v404
        %vm1441 = vcmp.eq.s32.totalorder %v1319, %v405
        %vm1442 = vcmp.eq.s32.totalorder %v1319, %v406
        %vm1443 = vcmp.eq.s32.totalorder %v1322, %v403
        %vm1444 = vcmp.eq.s32.totalorder %v1322, %v404
        %vm1445 = vcmp.eq.s32.totalorder %v1322, %v405
        %vm1446 = vcmp.eq.s32.totalorder %v1322, %v406
        %vm1447 = vcmp.eq.s32.totalorder %v1325, %v403
        %vm1448 = vcmp.eq.s32.totalorder %v1325, %v404
        %vm1449 = vcmp.eq.s32.totalorder %v1325, %v405
        %vm1450 = vcmp.eq.s32.totalorder %v1325, %v406
        %vm1451 = vcmp.eq.s32.totalorder %v1328, %v403
        %vm1452 = vcmp.eq.s32.totalorder %v1328, %v404
        %vm1453 = vcmp.eq.s32.totalorder %v1328, %v405
        %vm1454 = vcmp.eq.s32.totalorder %v1328, %v406
        %vm1455 = vcmp.eq.s32.totalorder %v1331, %v403
        %vm1456 = vcmp.eq.s32.totalorder %v1331, %v404
        %vm1457 = vcmp.eq.s32.totalorder %v1331, %v405
        %vm1458 = vcmp.eq.s32.totalorder %v1331, %v406
        %vm1459 = vcmp.eq.s32.totalorder %v1334, %v403
        %vm1460 = vcmp.eq.s32.totalorder %v1334, %v404
        %vm1461 = vcmp.eq.s32.totalorder %v1334, %v405
        %vm1462 = vcmp.eq.s32.totalorder %v1334, %v406
        %v1463 = vsel %vm1335, 1.0, 0.0
        %v1464 = vsel %vm1336, 1.0, 0.0
        %v1465 = vsel %vm1337, 1.0, 0.0
        %v1466 = vsel %vm1338, 1.0, 0.0
        %v1467 = vsel %vm1339, 1.0, 0.0
        %v1468 = vsel %vm1340, 1.0, 0.0
        %v1469 = vsel %vm1341, 1.0, 0.0
        %v1470 = vsel %vm1342, 1.0, 0.0
        %v1471 = vsel %vm1343, 1.0, 0.0
        %v1472 = vsel %vm1344, 1.0, 0.0
        %v1473 = vsel %vm1345, 1.0, 0.0
        %v1474 = vsel %vm1346, 1.0, 0.0
        %v1475 = vsel %vm1347, 1.0, 0.0
        %v1476 = vsel %vm1348, 1.0, 0.0
        %v1477 = vsel %vm1349, 1.0, 0.0
        %v1478 = vsel %vm1350, 1.0, 0.0
        %v1479 = vsel %vm1351, 1.0, 0.0
        %v1480 = vsel %vm1352, 1.0, 0.0
        %v1481 = vsel %vm1353, 1.0, 0.0
        %v1482 = vsel %vm1354, 1.0, 0.0
        %v1483 = vsel %vm1355, 1.0, 0.0
        %v1484 = vsel %vm1356, 1.0, 0.0
        %v1485 = vsel %vm1357, 1.0, 0.0
        %v1486 = vsel %vm1358, 1.0, 0.0
        %v1487 = vsel %vm1359, 1.0, 0.0
        %v1488 = vsel %vm1360, 1.0, 0.0
        %v1489 = vsel %vm1361, 1.0, 0.0
        %v1490 = vsel %vm1362, 1.0, 0.0
        %v1491 = vsel %vm1363, 1.0, 0.0
        %v1492 = vsel %vm1364, 1.0, 0.0
        %v1493 = vsel %vm1365, 1.0, 0.0
        %v1494 = vsel %vm1366, 1.0, 0.0
        %v1495 = vsel %vm1367, 1.0, 0.0
        %v1496 = vsel %vm1368, 1.0, 0.0
        %v1497 = vsel %vm1369, 1.0, 0.0
        %v1498 = vsel %vm1370, 1.0, 0.0
        %v1499 = vsel %vm1371, 1.0, 0.0
        %v1500 = vsel %vm1372, 1.0, 0.0
        %v1501 = vsel %vm1373, 1.0, 0.0
        %v1502 = vsel %vm1374, 1.0, 0.0
        %v1503 = vsel %vm1375, 1.0, 0.0
        %v1504 = vsel %vm1376, 1.0, 0.0
        %v1505 = vsel %vm1377, 1.0, 0.0
        %v1506 = vsel %vm1378, 1.0, 0.0
        %v1507 = vsel %vm1379, 1.0, 0.0
        %v1508 = vsel %vm1380, 1.0, 0.0
        %v1509 = vsel %vm1381, 1.0, 0.0
        %v1510 = vsel %vm1382, 1.0, 0.0
        %v1511 = vsel %vm1383, 1.0, 0.0
        %v1512 = vsel %vm1384, 1.0, 0.0
        %v1513 = vsel %vm1385, 1.0, 0.0
        %v1514 = vsel %vm1386, 1.0, 0.0
        %v1515 = vsel %vm1387, 1.0, 0.0
        %v1516 = vsel %vm1388, 1.0, 0.0
        %v1517 = vsel %vm1389, 1.0, 0.0
        %v1518 = vsel %vm1390, 1.0, 0.0
        %v1519 = vsel %vm1391, 1.0, 0.0
        %v1520 = vsel %vm1392, 1.0, 0.0
        %v1521 = vsel %vm1393, 1.0, 0.0
        %v1522 = vsel %vm1394, 1.0, 0.0
        %v1523 = vsel %vm1395, 1.0, 0.0
        %v1524 = vsel %vm1396, 1.0, 0.0
        %v1525 = vsel %vm1397, 1.0, 0.0
        %v1526 = vsel %vm1398, 1.0, 0.0
        %v1527 = vsel %vm1399, 1.0, 0.0
        %v1528 = vsel %vm1400, 1.0, 0.0
        %v1529 = vsel %vm1401, 1.0, 0.0
        %v1530 = vsel %vm1402, 1.0, 0.0
        %v1531 = vsel %vm1403, 1.0, 0.0
        %v1532 = vsel %vm1404, 1.0, 0.0
        %v1533 = vsel %vm1405, 1.0, 0.0
        %v1534 = vsel %vm1406, 1.0, 0.0
        %v1535 = vsel %vm1407, 1.0, 0.0
        %v1536 = vsel %vm1408, 1.0, 0.0
        %v1537 = vsel %vm1409, 1.0, 0.0
        %v1538 = vsel %vm1410, 1.0, 0.0
        %v1539 = vsel %vm1411, 1.0, 0.0
        %v1540 = vsel %vm1412, 1.0, 0.0
        %v1541 = vsel %vm1413, 1.0, 0.0
        %v1542 = vsel %vm1414, 1.0, 0.0
        %v1543 = vsel %vm1415, 1.0, 0.0
        %v1544 = vsel %vm1416, 1.0, 0.0
        %v1545 = vsel %vm1417, 1.0, 0.0
        %v1546 = vsel %vm1418, 1.0, 0.0
        %v1547 = vsel %vm1419, 1.0, 0.0
        %v1548 = vsel %vm1420, 1.0, 0.0
        %v1549 = vsel %vm1421, 1.0, 0.0
        %v1550 = vsel %vm1422, 1.0, 0.0
        %v1551 = vsel %vm1423, 1.0, 0.0
        %v1552 = vsel %vm1424, 1.0, 0.0
        %v1553 = vsel %vm1425, 1.0, 0.0
        %v1554 = vsel %vm1426, 1.0, 0.0
        %v1555 = vsel %vm1427, 1.0, 0.0
        %v1556 = vsel %vm1428, 1.0, 0.0
        %v1557 = vsel %vm1429, 1.0, 0.0
        %v1558 = vsel %vm1430, 1.0, 0.0
        %v1559 = vsel %vm1431, 1.0, 0.0
        %v1560 = vsel %vm1432, 1.0, 0.0
        %v1561 = vsel %vm1433, 1.0, 0.0
        %v1562 = vsel %vm1434, 1.0, 0.0
        %v1563 = vsel %vm1435, 1.0, 0.0
        %v1564 = vsel %vm1436, 1.0, 0.0
        %v1565 = vsel %vm1437, 1.0, 0.0
        %v1566 = vsel %vm1438, 1.0, 0.0
        %v1567 = vsel %vm1439, 1.0, 0.0
        %v1568 = vsel %vm1440, 1.0, 0.0
        %v1569 = vsel %vm1441, 1.0, 0.0
        %v1570 = vsel %vm1442, 1.0, 0.0
        %v1571 = vsel %vm1443, 1.0, 0.0
        %v1572 = vsel %vm1444, 1.0, 0.0
        %v1573 = vsel %vm1445, 1.0, 0.0
        %v1574 = vsel %vm1446, 1.0, 0.0
        %v1575 = vsel %vm1447, 1.0, 0.0
        %v1576 = vsel %vm1448, 1.0, 0.0
        %v1577 = vsel %vm1449, 1.0, 0.0
        %v1578 = vsel %vm1450, 1.0, 0.0
        %v1579 = vsel %vm1451, 1.0, 0.0
        %v1580 = vsel %vm1452, 1.0, 0.0
        %v1581 = vsel %vm1453, 1.0, 0.0
        %v1582 = vsel %vm1454, 1.0, 0.0
        %v1583 = vsel %vm1455, 1.0, 0.0
        %v1584 = vsel %vm1456, 1.0, 0.0
        %v1585 = vsel %vm1457, 1.0, 0.0
        %v1586 = vsel %vm1458, 1.0, 0.0
        %v1587 = vsel %vm1459, 1.0, 0.0
        %v1588 = vsel %vm1460, 1.0, 0.0
        %v1589 = vsel %vm1461, 1.0, 0.0
        %v1590 = vsel %vm1462, 1.0, 0.0
        %v1591 = vpack.c.bf16 %v1467, %v1463
        %v1592 = vpack.c.bf16 %v1468, %v1464
        %v1593 = vpack.c.bf16 %v1469, %v1465
        %v1594 = vpack.c.bf16 %v1470, %v1466
        %v1595 = vpack.c.bf16 %v1475, %v1471
        %v1596 = vpack.c.bf16 %v1476, %v1472
        %v1597 = vpack.c.bf16 %v1477, %v1473
        %v1598 = vpack.c.bf16 %v1478, %v1474
        %v1599 = vpack.c.bf16 %v1483, %v1479
        %v1600 = vpack.c.bf16 %v1484, %v1480
        %v1601 = vpack.c.bf16 %v1485, %v1481
        %v1602 = vpack.c.bf16 %v1486, %v1482
        %v1603 = vpack.c.bf16 %v1491, %v1487
        %v1604 = vpack.c.bf16 %v1492, %v1488
        %v1605 = vpack.c.bf16 %v1493, %v1489
        %v1606 = vpack.c.bf16 %v1494, %v1490
        %v1607 = vpack.c.bf16 %v1499, %v1495
        %v1608 = vpack.c.bf16 %v1500, %v1496
        %v1609 = vpack.c.bf16 %v1501, %v1497
        %v1610 = vpack.c.bf16 %v1502, %v1498
        %v1611 = vpack.c.bf16 %v1507, %v1503
        %v1612 = vpack.c.bf16 %v1508, %v1504
        %v1613 = vpack.c.bf16 %v1509, %v1505
        %v1614 = vpack.c.bf16 %v1510, %v1506
        %v1615 = vpack.c.bf16 %v1515, %v1511
        %v1616 = vpack.c.bf16 %v1516, %v1512
        %v1617 = vpack.c.bf16 %v1517, %v1513
        %v1618 = vpack.c.bf16 %v1518, %v1514
        %v1619 = vpack.c.bf16 %v1523, %v1519
        %v1620 = vpack.c.bf16 %v1524, %v1520
        %v1621 = vpack.c.bf16 %v1525, %v1521
        %v1622 = vpack.c.bf16 %v1526, %v1522
        %v1623 = vpack.c.bf16 %v1531, %v1527
        %v1624 = vpack.c.bf16 %v1532, %v1528
        %v1625 = vpack.c.bf16 %v1533, %v1529
        %v1626 = vpack.c.bf16 %v1534, %v1530
        %v1627 = vpack.c.bf16 %v1539, %v1535
        %v1628 = vpack.c.bf16 %v1540, %v1536
        %v1629 = vpack.c.bf16 %v1541, %v1537
        %v1630 = vpack.c.bf16 %v1542, %v1538
        %v1631 = vpack.c.bf16 %v1547, %v1543
        %v1632 = vpack.c.bf16 %v1548, %v1544
        %v1633 = vpack.c.bf16 %v1549, %v1545
        %v1634 = vpack.c.bf16 %v1550, %v1546
        %v1635 = vpack.c.bf16 %v1555, %v1551
        %v1636 = vpack.c.bf16 %v1556, %v1552
        %v1637 = vpack.c.bf16 %v1557, %v1553
        %v1638 = vpack.c.bf16 %v1558, %v1554
        %v1639 = vpack.c.bf16 %v1563, %v1559
        %v1640 = vpack.c.bf16 %v1564, %v1560
        %v1641 = vpack.c.bf16 %v1565, %v1561
        %v1642 = vpack.c.bf16 %v1566, %v1562
        %v1643 = vpack.c.bf16 %v1571, %v1567
        %v1644 = vpack.c.bf16 %v1572, %v1568
        %v1645 = vpack.c.bf16 %v1573, %v1569
        %v1646 = vpack.c.bf16 %v1574, %v1570
        %v1647 = vpack.c.bf16 %v1579, %v1575
        %v1648 = vpack.c.bf16 %v1580, %v1576
        %v1649 = vpack.c.bf16 %v1581, %v1577
        %v1650 = vpack.c.bf16 %v1582, %v1578
        %v1651 = vpack.c.bf16 %v1587, %v1583
        %v1652 = vpack.c.bf16 %v1588, %v1584
        %v1653 = vpack.c.bf16 %v1589, %v1585
        %v1654 = vpack.c.bf16 %v1590, %v1586
        %1655 = vset.pattern.permute.xlu0 3
        %1656 = vperm.xlu0 %1655, %v370
        %v1657 = vpop.permute.xlu0 %1656
        %1658 = vset.pattern.permute.xlu0 3
        %1659 = vperm.xlu0 %1658, %v371
        %v1660 = vpop.permute.xlu0 %1659
        %1661 = vset.pattern.permute.xlu0 3
        %1662 = vperm.xlu0 %1661, %v372
        %v1663 = vpop.permute.xlu0 %1662
        %1664 = vset.pattern.permute.xlu0 3
        %1665 = vperm.xlu0 %1664, %v373
        %v1666 = vpop.permute.xlu0 %1665
        %1667 = vset.pattern.permute.xlu0 3
        %1668 = vperm.xlu0 %1667, %v374
        %v1669 = vpop.permute.xlu0 %1668
        %1670 = vset.pattern.permute.xlu0 3
        %1671 = vperm.xlu0 %1670, %v375
        %v1672 = vpop.permute.xlu0 %1671
        %1673 = vset.pattern.permute.xlu0 3
        %1674 = vperm.xlu0 %1673, %v376
        %v1675 = vpop.permute.xlu0 %1674
        %1676 = vset.pattern.permute.xlu0 3
        %1677 = vperm.xlu0 %1676, %v377
        %v1678 = vpop.permute.xlu0 %1677
        %1679 = vset.pattern.permute.xlu0 3
        %1680 = vperm.xlu0 %1679, %v378
        %v1681 = vpop.permute.xlu0 %1680
        %1682 = vset.pattern.permute.xlu0 3
        %1683 = vperm.xlu0 %1682, %v379
        %v1684 = vpop.permute.xlu0 %1683
        %1685 = vset.pattern.permute.xlu0 3
        %1686 = vperm.xlu0 %1685, %v380
        %v1687 = vpop.permute.xlu0 %1686
        %1688 = vset.pattern.permute.xlu0 3
        %1689 = vperm.xlu0 %1688, %v381
        %v1690 = vpop.permute.xlu0 %1689
        %1691 = vset.pattern.permute.xlu0 3
        %1692 = vperm.xlu0 %1691, %v382
        %v1693 = vpop.permute.xlu0 %1692
        %1694 = vset.pattern.permute.xlu0 3
        %1695 = vperm.xlu0 %1694, %v383
        %v1696 = vpop.permute.xlu0 %1695
        %1697 = vset.pattern.permute.xlu0 3
        %1698 = vperm.xlu0 %1697, %v384
        %v1699 = vpop.permute.xlu0 %1698
        %1700 = vset.pattern.permute.xlu0 3
        %1701 = vperm.xlu0 %1700, %v385
        %v1702 = vpop.permute.xlu0 %1701
        %1703 = vset.pattern.permute.xlu0 3
        %1704 = vperm.xlu0 %1703, %v386
        %v1705 = vpop.permute.xlu0 %1704
        %1706 = vset.pattern.permute.xlu0 3
        %1707 = vperm.xlu0 %1706, %v387
        %v1708 = vpop.permute.xlu0 %1707
        %1709 = vset.pattern.permute.xlu0 3
        %1710 = vperm.xlu0 %1709, %v388
        %v1711 = vpop.permute.xlu0 %1710
        %1712 = vset.pattern.permute.xlu0 3
        %1713 = vperm.xlu0 %1712, %v389
        %v1714 = vpop.permute.xlu0 %1713
        %1715 = vset.pattern.permute.xlu0 3
        %1716 = vperm.xlu0 %1715, %v390
        %v1717 = vpop.permute.xlu0 %1716
        %1718 = vset.pattern.permute.xlu0 3
        %1719 = vperm.xlu0 %1718, %v391
        %v1720 = vpop.permute.xlu0 %1719
        %1721 = vset.pattern.permute.xlu0 3
        %1722 = vperm.xlu0 %1721, %v392
        %v1723 = vpop.permute.xlu0 %1722
        %1724 = vset.pattern.permute.xlu0 3
        %1725 = vperm.xlu0 %1724, %v393
        %v1726 = vpop.permute.xlu0 %1725
        %1727 = vset.pattern.permute.xlu0 3
        %1728 = vperm.xlu0 %1727, %v394
        %v1729 = vpop.permute.xlu0 %1728
        %1730 = vset.pattern.permute.xlu0 3
        %1731 = vperm.xlu0 %1730, %v395
        %v1732 = vpop.permute.xlu0 %1731
        %1733 = vset.pattern.permute.xlu0 3
        %1734 = vperm.xlu0 %1733, %v396
        %v1735 = vpop.permute.xlu0 %1734
        %1736 = vset.pattern.permute.xlu0 3
        %1737 = vperm.xlu0 %1736, %v397
        %v1738 = vpop.permute.xlu0 %1737
        %1739 = vset.pattern.permute.xlu0 3
        %1740 = vperm.xlu0 %1739, %v398
        %v1741 = vpop.permute.xlu0 %1740
        %1742 = vset.pattern.permute.xlu0 3
        %1743 = vperm.xlu0 %1742, %v399
        %v1744 = vpop.permute.xlu0 %1743
        %1745 = vset.pattern.permute.xlu0 3
        %1746 = vperm.xlu0 %1745, %v400
        %v1747 = vpop.permute.xlu0 %1746
        %1748 = vset.pattern.permute.xlu0 3
        %1749 = vperm.xlu0 %1748, %v401
        %v1750 = vpop.permute.xlu0 %1749
        %vm1751 = vcmp.eq.s32.totalorder %v1657, %v403
        %vm1752 = vcmp.eq.s32.totalorder %v1657, %v404
        %vm1753 = vcmp.eq.s32.totalorder %v1657, %v405
        %vm1754 = vcmp.eq.s32.totalorder %v1657, %v406
        %vm1755 = vcmp.eq.s32.totalorder %v1660, %v403
        %vm1756 = vcmp.eq.s32.totalorder %v1660, %v404
        %vm1757 = vcmp.eq.s32.totalorder %v1660, %v405
        %vm1758 = vcmp.eq.s32.totalorder %v1660, %v406
        %vm1759 = vcmp.eq.s32.totalorder %v1663, %v403
        %vm1760 = vcmp.eq.s32.totalorder %v1663, %v404
        %vm1761 = vcmp.eq.s32.totalorder %v1663, %v405
        %vm1762 = vcmp.eq.s32.totalorder %v1663, %v406
        %vm1763 = vcmp.eq.s32.totalorder %v1666, %v403
        %vm1764 = vcmp.eq.s32.totalorder %v1666, %v404
        %vm1765 = vcmp.eq.s32.totalorder %v1666, %v405
        %vm1766 = vcmp.eq.s32.totalorder %v1666, %v406
        %vm1767 = vcmp.eq.s32.totalorder %v1669, %v403
        %vm1768 = vcmp.eq.s32.totalorder %v1669, %v404
        %vm1769 = vcmp.eq.s32.totalorder %v1669, %v405
        %vm1770 = vcmp.eq.s32.totalorder %v1669, %v406
        %vm1771 = vcmp.eq.s32.totalorder %v1672, %v403
        %vm1772 = vcmp.eq.s32.totalorder %v1672, %v404
        %vm1773 = vcmp.eq.s32.totalorder %v1672, %v405
        %vm1774 = vcmp.eq.s32.totalorder %v1672, %v406
        %vm1775 = vcmp.eq.s32.totalorder %v1675, %v403
        %vm1776 = vcmp.eq.s32.totalorder %v1675, %v404
        %vm1777 = vcmp.eq.s32.totalorder %v1675, %v405
        %vm1778 = vcmp.eq.s32.totalorder %v1675, %v406
        %vm1779 = vcmp.eq.s32.totalorder %v1678, %v403
        %vm1780 = vcmp.eq.s32.totalorder %v1678, %v404
        %vm1781 = vcmp.eq.s32.totalorder %v1678, %v405
        %vm1782 = vcmp.eq.s32.totalorder %v1678, %v406
        %vm1783 = vcmp.eq.s32.totalorder %v1681, %v403
        %vm1784 = vcmp.eq.s32.totalorder %v1681, %v404
        %vm1785 = vcmp.eq.s32.totalorder %v1681, %v405
        %vm1786 = vcmp.eq.s32.totalorder %v1681, %v406
        %vm1787 = vcmp.eq.s32.totalorder %v1684, %v403
        %vm1788 = vcmp.eq.s32.totalorder %v1684, %v404
        %vm1789 = vcmp.eq.s32.totalorder %v1684, %v405
        %vm1790 = vcmp.eq.s32.totalorder %v1684, %v406
        %vm1791 = vcmp.eq.s32.totalorder %v1687, %v403
        %vm1792 = vcmp.eq.s32.totalorder %v1687, %v404
        %vm1793 = vcmp.eq.s32.totalorder %v1687, %v405
        %vm1794 = vcmp.eq.s32.totalorder %v1687, %v406
        %vm1795 = vcmp.eq.s32.totalorder %v1690, %v403
        %vm1796 = vcmp.eq.s32.totalorder %v1690, %v404
        %vm1797 = vcmp.eq.s32.totalorder %v1690, %v405
        %vm1798 = vcmp.eq.s32.totalorder %v1690, %v406
        %vm1799 = vcmp.eq.s32.totalorder %v1693, %v403
        %vm1800 = vcmp.eq.s32.totalorder %v1693, %v404
        %vm1801 = vcmp.eq.s32.totalorder %v1693, %v405
        %vm1802 = vcmp.eq.s32.totalorder %v1693, %v406
        %vm1803 = vcmp.eq.s32.totalorder %v1696, %v403
        %vm1804 = vcmp.eq.s32.totalorder %v1696, %v404
        %vm1805 = vcmp.eq.s32.totalorder %v1696, %v405
        %vm1806 = vcmp.eq.s32.totalorder %v1696, %v406
        %vm1807 = vcmp.eq.s32.totalorder %v1699, %v403
        %vm1808 = vcmp.eq.s32.totalorder %v1699, %v404
        %vm1809 = vcmp.eq.s32.totalorder %v1699, %v405
        %vm1810 = vcmp.eq.s32.totalorder %v1699, %v406
        %vm1811 = vcmp.eq.s32.totalorder %v1702, %v403
        %vm1812 = vcmp.eq.s32.totalorder %v1702, %v404
        %vm1813 = vcmp.eq.s32.totalorder %v1702, %v405
        %vm1814 = vcmp.eq.s32.totalorder %v1702, %v406
        %vm1815 = vcmp.eq.s32.totalorder %v1705, %v403
        %vm1816 = vcmp.eq.s32.totalorder %v1705, %v404
        %vm1817 = vcmp.eq.s32.totalorder %v1705, %v405
        %vm1818 = vcmp.eq.s32.totalorder %v1705, %v406
        %vm1819 = vcmp.eq.s32.totalorder %v1708, %v403
        %vm1820 = vcmp.eq.s32.totalorder %v1708, %v404
        %vm1821 = vcmp.eq.s32.totalorder %v1708, %v405
        %vm1822 = vcmp.eq.s32.totalorder %v1708, %v406
        %vm1823 = vcmp.eq.s32.totalorder %v1711, %v403
        %vm1824 = vcmp.eq.s32.totalorder %v1711, %v404
        %vm1825 = vcmp.eq.s32.totalorder %v1711, %v405
        %vm1826 = vcmp.eq.s32.totalorder %v1711, %v406
        %vm1827 = vcmp.eq.s32.totalorder %v1714, %v403
        %vm1828 = vcmp.eq.s32.totalorder %v1714, %v404
        %vm1829 = vcmp.eq.s32.totalorder %v1714, %v405
        %vm1830 = vcmp.eq.s32.totalorder %v1714, %v406
        %vm1831 = vcmp.eq.s32.totalorder %v1717, %v403
        %vm1832 = vcmp.eq.s32.totalorder %v1717, %v404
        %vm1833 = vcmp.eq.s32.totalorder %v1717, %v405
        %vm1834 = vcmp.eq.s32.totalorder %v1717, %v406
        %vm1835 = vcmp.eq.s32.totalorder %v1720, %v403
        %vm1836 = vcmp.eq.s32.totalorder %v1720, %v404
        %vm1837 = vcmp.eq.s32.totalorder %v1720, %v405
        %vm1838 = vcmp.eq.s32.totalorder %v1720, %v406
        %vm1839 = vcmp.eq.s32.totalorder %v1723, %v403
        %vm1840 = vcmp.eq.s32.totalorder %v1723, %v404
        %vm1841 = vcmp.eq.s32.totalorder %v1723, %v405
        %vm1842 = vcmp.eq.s32.totalorder %v1723, %v406
        %vm1843 = vcmp.eq.s32.totalorder %v1726, %v403
        %vm1844 = vcmp.eq.s32.totalorder %v1726, %v404
        %vm1845 = vcmp.eq.s32.totalorder %v1726, %v405
        %vm1846 = vcmp.eq.s32.totalorder %v1726, %v406
        %vm1847 = vcmp.eq.s32.totalorder %v1729, %v403
        %vm1848 = vcmp.eq.s32.totalorder %v1729, %v404
        %vm1849 = vcmp.eq.s32.totalorder %v1729, %v405
        %vm1850 = vcmp.eq.s32.totalorder %v1729, %v406
        %vm1851 = vcmp.eq.s32.totalorder %v1732, %v403
        %vm1852 = vcmp.eq.s32.totalorder %v1732, %v404
        %vm1853 = vcmp.eq.s32.totalorder %v1732, %v405
        %vm1854 = vcmp.eq.s32.totalorder %v1732, %v406
        %vm1855 = vcmp.eq.s32.totalorder %v1735, %v403
        %vm1856 = vcmp.eq.s32.totalorder %v1735, %v404
        %vm1857 = vcmp.eq.s32.totalorder %v1735, %v405
        %vm1858 = vcmp.eq.s32.totalorder %v1735, %v406
        %vm1859 = vcmp.eq.s32.totalorder %v1738, %v403
        %vm1860 = vcmp.eq.s32.totalorder %v1738, %v404
        %vm1861 = vcmp.eq.s32.totalorder %v1738, %v405
        %vm1862 = vcmp.eq.s32.totalorder %v1738, %v406
        %vm1863 = vcmp.eq.s32.totalorder %v1741, %v403
        %vm1864 = vcmp.eq.s32.totalorder %v1741, %v404
        %vm1865 = vcmp.eq.s32.totalorder %v1741, %v405
        %vm1866 = vcmp.eq.s32.totalorder %v1741, %v406
        %vm1867 = vcmp.eq.s32.totalorder %v1744, %v403
        %vm1868 = vcmp.eq.s32.totalorder %v1744, %v404
        %vm1869 = vcmp.eq.s32.totalorder %v1744, %v405
        %vm1870 = vcmp.eq.s32.totalorder %v1744, %v406
        %vm1871 = vcmp.eq.s32.totalorder %v1747, %v403
        %vm1872 = vcmp.eq.s32.totalorder %v1747, %v404
        %vm1873 = vcmp.eq.s32.totalorder %v1747, %v405
        %vm1874 = vcmp.eq.s32.totalorder %v1747, %v406
        %vm1875 = vcmp.eq.s32.totalorder %v1750, %v403
        %vm1876 = vcmp.eq.s32.totalorder %v1750, %v404
        %vm1877 = vcmp.eq.s32.totalorder %v1750, %v405
        %vm1878 = vcmp.eq.s32.totalorder %v1750, %v406
        %v1879 = vsel %vm1751, 1.0, 0.0
        %v1880 = vsel %vm1752, 1.0, 0.0
        %v1881 = vsel %vm1753, 1.0, 0.0
        %v1882 = vsel %vm1754, 1.0, 0.0
        %v1883 = vsel %vm1755, 1.0, 0.0
        %v1884 = vsel %vm1756, 1.0, 0.0
        %v1885 = vsel %vm1757, 1.0, 0.0
        %v1886 = vsel %vm1758, 1.0, 0.0
        %v1887 = vsel %vm1759, 1.0, 0.0
        %v1888 = vsel %vm1760, 1.0, 0.0
        %v1889 = vsel %vm1761, 1.0, 0.0
        %v1890 = vsel %vm1762, 1.0, 0.0
        %v1891 = vsel %vm1763, 1.0, 0.0
        %v1892 = vsel %vm1764, 1.0, 0.0
        %v1893 = vsel %vm1765, 1.0, 0.0
        %v1894 = vsel %vm1766, 1.0, 0.0
        %v1895 = vsel %vm1767, 1.0, 0.0
        %v1896 = vsel %vm1768, 1.0, 0.0
        %v1897 = vsel %vm1769, 1.0, 0.0
        %v1898 = vsel %vm1770, 1.0, 0.0
        %v1899 = vsel %vm1771, 1.0, 0.0
        %v1900 = vsel %vm1772, 1.0, 0.0
        %v1901 = vsel %vm1773, 1.0, 0.0
        %v1902 = vsel %vm1774, 1.0, 0.0
        %v1903 = vsel %vm1775, 1.0, 0.0
        %v1904 = vsel %vm1776, 1.0, 0.0
        %v1905 = vsel %vm1777, 1.0, 0.0
        %v1906 = vsel %vm1778, 1.0, 0.0
        %v1907 = vsel %vm1779, 1.0, 0.0
        %v1908 = vsel %vm1780, 1.0, 0.0
        %v1909 = vsel %vm1781, 1.0, 0.0
        %v1910 = vsel %vm1782, 1.0, 0.0
        %v1911 = vsel %vm1783, 1.0, 0.0
        %v1912 = vsel %vm1784, 1.0, 0.0
        %v1913 = vsel %vm1785, 1.0, 0.0
        %v1914 = vsel %vm1786, 1.0, 0.0
        %v1915 = vsel %vm1787, 1.0, 0.0
        %v1916 = vsel %vm1788, 1.0, 0.0
        %v1917 = vsel %vm1789, 1.0, 0.0
        %v1918 = vsel %vm1790, 1.0, 0.0
        %v1919 = vsel %vm1791, 1.0, 0.0
        %v1920 = vsel %vm1792, 1.0, 0.0
        %v1921 = vsel %vm1793, 1.0, 0.0
        %v1922 = vsel %vm1794, 1.0, 0.0
        %v1923 = vsel %vm1795, 1.0, 0.0
        %v1924 = vsel %vm1796, 1.0, 0.0
        %v1925 = vsel %vm1797, 1.0, 0.0
        %v1926 = vsel %vm1798, 1.0, 0.0
        %v1927 = vsel %vm1799, 1.0, 0.0
        %v1928 = vsel %vm1800, 1.0, 0.0
        %v1929 = vsel %vm1801, 1.0, 0.0
        %v1930 = vsel %vm1802, 1.0, 0.0
        %v1931 = vsel %vm1803, 1.0, 0.0
        %v1932 = vsel %vm1804, 1.0, 0.0
        %v1933 = vsel %vm1805, 1.0, 0.0
        %v1934 = vsel %vm1806, 1.0, 0.0
        %v1935 = vsel %vm1807, 1.0, 0.0
        %v1936 = vsel %vm1808, 1.0, 0.0
        %v1937 = vsel %vm1809, 1.0, 0.0
        %v1938 = vsel %vm1810, 1.0, 0.0
        %v1939 = vsel %vm1811, 1.0, 0.0
        %v1940 = vsel %vm1812, 1.0, 0.0
        %v1941 = vsel %vm1813, 1.0, 0.0
        %v1942 = vsel %vm1814, 1.0, 0.0
        %v1943 = vsel %vm1815, 1.0, 0.0
        %v1944 = vsel %vm1816, 1.0, 0.0
        %v1945 = vsel %vm1817, 1.0, 0.0
        %v1946 = vsel %vm1818, 1.0, 0.0
        %v1947 = vsel %vm1819, 1.0, 0.0
        %v1948 = vsel %vm1820, 1.0, 0.0
        %v1949 = vsel %vm1821, 1.0, 0.0
        %v1950 = vsel %vm1822, 1.0, 0.0
        %v1951 = vsel %vm1823, 1.0, 0.0
        %v1952 = vsel %vm1824, 1.0, 0.0
        %v1953 = vsel %vm1825, 1.0, 0.0
        %v1954 = vsel %vm1826, 1.0, 0.0
        %v1955 = vsel %vm1827, 1.0, 0.0
        %v1956 = vsel %vm1828, 1.0, 0.0
        %v1957 = vsel %vm1829, 1.0, 0.0
        %v1958 = vsel %vm1830, 1.0, 0.0
        %v1959 = vsel %vm1831, 1.0, 0.0
        %v1960 = vsel %vm1832, 1.0, 0.0
        %v1961 = vsel %vm1833, 1.0, 0.0
        %v1962 = vsel %vm1834, 1.0, 0.0
        %v1963 = vsel %vm1835, 1.0, 0.0
        %v1964 = vsel %vm1836, 1.0, 0.0
        %v1965 = vsel %vm1837, 1.0, 0.0
        %v1966 = vsel %vm1838, 1.0, 0.0
        %v1967 = vsel %vm1839, 1.0, 0.0
        %v1968 = vsel %vm1840, 1.0, 0.0
        %v1969 = vsel %vm1841, 1.0, 0.0
        %v1970 = vsel %vm1842, 1.0, 0.0
        %v1971 = vsel %vm1843, 1.0, 0.0
        %v1972 = vsel %vm1844, 1.0, 0.0
        %v1973 = vsel %vm1845, 1.0, 0.0
        %v1974 = vsel %vm1846, 1.0, 0.0
        %v1975 = vsel %vm1847, 1.0, 0.0
        %v1976 = vsel %vm1848, 1.0, 0.0
        %v1977 = vsel %vm1849, 1.0, 0.0
        %v1978 = vsel %vm1850, 1.0, 0.0
        %v1979 = vsel %vm1851, 1.0, 0.0
        %v1980 = vsel %vm1852, 1.0, 0.0
        %v1981 = vsel %vm1853, 1.0, 0.0
        %v1982 = vsel %vm1854, 1.0, 0.0
        %v1983 = vsel %vm1855, 1.0, 0.0
        %v1984 = vsel %vm1856, 1.0, 0.0
        %v1985 = vsel %vm1857, 1.0, 0.0
        %v1986 = vsel %vm1858, 1.0, 0.0
        %v1987 = vsel %vm1859, 1.0, 0.0
        %v1988 = vsel %vm1860, 1.0, 0.0
        %v1989 = vsel %vm1861, 1.0, 0.0
        %v1990 = vsel %vm1862, 1.0, 0.0
        %v1991 = vsel %vm1863, 1.0, 0.0
        %v1992 = vsel %vm1864, 1.0, 0.0
        %v1993 = vsel %vm1865, 1.0, 0.0
        %v1994 = vsel %vm1866, 1.0, 0.0
        %v1995 = vsel %vm1867, 1.0, 0.0
        %v1996 = vsel %vm1868, 1.0, 0.0
        %v1997 = vsel %vm1869, 1.0, 0.0
        %v1998 = vsel %vm1870, 1.0, 0.0
        %v1999 = vsel %vm1871, 1.0, 0.0
        %v2000 = vsel %vm1872, 1.0, 0.0
        %v2001 = vsel %vm1873, 1.0, 0.0
        %v2002 = vsel %vm1874, 1.0, 0.0
        %v2003 = vsel %vm1875, 1.0, 0.0
        %v2004 = vsel %vm1876, 1.0, 0.0
        %v2005 = vsel %vm1877, 1.0, 0.0
        %v2006 = vsel %vm1878, 1.0, 0.0
        %v2007 = vpack.c.bf16 %v1883, %v1879
        %v2008 = vpack.c.bf16 %v1884, %v1880
        %v2009 = vpack.c.bf16 %v1885, %v1881
        %v2010 = vpack.c.bf16 %v1886, %v1882
        %v2011 = vpack.c.bf16 %v1891, %v1887
        %v2012 = vpack.c.bf16 %v1892, %v1888
        %v2013 = vpack.c.bf16 %v1893, %v1889
        %v2014 = vpack.c.bf16 %v1894, %v1890
        %v2015 = vpack.c.bf16 %v1899, %v1895
        %v2016 = vpack.c.bf16 %v1900, %v1896
        %v2017 = vpack.c.bf16 %v1901, %v1897
        %v2018 = vpack.c.bf16 %v1902, %v1898
        %v2019 = vpack.c.bf16 %v1907, %v1903
        %v2020 = vpack.c.bf16 %v1908, %v1904
        %v2021 = vpack.c.bf16 %v1909, %v1905
        %v2022 = vpack.c.bf16 %v1910, %v1906
        %v2023 = vpack.c.bf16 %v1915, %v1911
        %v2024 = vpack.c.bf16 %v1916, %v1912
        %v2025 = vpack.c.bf16 %v1917, %v1913
        %v2026 = vpack.c.bf16 %v1918, %v1914
        %v2027 = vpack.c.bf16 %v1923, %v1919
        %v2028 = vpack.c.bf16 %v1924, %v1920
        %v2029 = vpack.c.bf16 %v1925, %v1921
        %v2030 = vpack.c.bf16 %v1926, %v1922
        %v2031 = vpack.c.bf16 %v1931, %v1927
        %v2032 = vpack.c.bf16 %v1932, %v1928
        %v2033 = vpack.c.bf16 %v1933, %v1929
        %v2034 = vpack.c.bf16 %v1934, %v1930
        %v2035 = vpack.c.bf16 %v1939, %v1935
        %v2036 = vpack.c.bf16 %v1940, %v1936
        %v2037 = vpack.c.bf16 %v1941, %v1937
        %v2038 = vpack.c.bf16 %v1942, %v1938
        %v2039 = vpack.c.bf16 %v1947, %v1943
        %v2040 = vpack.c.bf16 %v1948, %v1944
        %v2041 = vpack.c.bf16 %v1949, %v1945
        %v2042 = vpack.c.bf16 %v1950, %v1946
        %v2043 = vpack.c.bf16 %v1955, %v1951
        %v2044 = vpack.c.bf16 %v1956, %v1952
        %v2045 = vpack.c.bf16 %v1957, %v1953
        %v2046 = vpack.c.bf16 %v1958, %v1954
        %v2047 = vpack.c.bf16 %v1963, %v1959
        %v2048 = vpack.c.bf16 %v1964, %v1960
        %v2049 = vpack.c.bf16 %v1965, %v1961
        %v2050 = vpack.c.bf16 %v1966, %v1962
        %v2051 = vpack.c.bf16 %v1971, %v1967
        %v2052 = vpack.c.bf16 %v1972, %v1968
        %v2053 = vpack.c.bf16 %v1973, %v1969
        %v2054 = vpack.c.bf16 %v1974, %v1970
        %v2055 = vpack.c.bf16 %v1979, %v1975
        %v2056 = vpack.c.bf16 %v1980, %v1976
        %v2057 = vpack.c.bf16 %v1981, %v1977
        %v2058 = vpack.c.bf16 %v1982, %v1978
        %v2059 = vpack.c.bf16 %v1987, %v1983
        %v2060 = vpack.c.bf16 %v1988, %v1984
        %v2061 = vpack.c.bf16 %v1989, %v1985
        %v2062 = vpack.c.bf16 %v1990, %v1986
        %v2063 = vpack.c.bf16 %v1995, %v1991
        %v2064 = vpack.c.bf16 %v1996, %v1992
        %v2065 = vpack.c.bf16 %v1997, %v1993
        %v2066 = vpack.c.bf16 %v1998, %v1994
        %v2067 = vpack.c.bf16 %v2003, %v1999
        %v2068 = vpack.c.bf16 %v2004, %v2000
        %v2069 = vpack.c.bf16 %v2005, %v2001
        %v2070 = vpack.c.bf16 %v2006, %v2002
        %2071 = vset.pattern.permute.xlu0 4
        %2072 = vperm.xlu0 %2071, %v370
        %v2073 = vpop.permute.xlu0 %2072
        %2074 = vset.pattern.permute.xlu0 4
        %2075 = vperm.xlu0 %2074, %v371
        %v2076 = vpop.permute.xlu0 %2075
        %2077 = vset.pattern.permute.xlu0 4
        %2078 = vperm.xlu0 %2077, %v372
        %v2079 = vpop.permute.xlu0 %2078
        %2080 = vset.pattern.permute.xlu0 4
        %2081 = vperm.xlu0 %2080, %v373
        %v2082 = vpop.permute.xlu0 %2081
        %2083 = vset.pattern.permute.xlu0 4
        %2084 = vperm.xlu0 %2083, %v374
        %v2085 = vpop.permute.xlu0 %2084
        %2086 = vset.pattern.permute.xlu0 4
        %2087 = vperm.xlu0 %2086, %v375
        %v2088 = vpop.permute.xlu0 %2087
        %2089 = vset.pattern.permute.xlu0 4
        %2090 = vperm.xlu0 %2089, %v376
        %v2091 = vpop.permute.xlu0 %2090
        %2092 = vset.pattern.permute.xlu0 4
        %2093 = vperm.xlu0 %2092, %v377
        %v2094 = vpop.permute.xlu0 %2093
        %2095 = vset.pattern.permute.xlu0 4
        %2096 = vperm.xlu0 %2095, %v378
        %v2097 = vpop.permute.xlu0 %2096
        %2098 = vset.pattern.permute.xlu0 4
        %2099 = vperm.xlu0 %2098, %v379
        %v2100 = vpop.permute.xlu0 %2099
        %2101 = vset.pattern.permute.xlu0 4
        %2102 = vperm.xlu0 %2101, %v380
        %v2103 = vpop.permute.xlu0 %2102
        %2104 = vset.pattern.permute.xlu0 4
        %2105 = vperm.xlu0 %2104, %v381
        %v2106 = vpop.permute.xlu0 %2105
        %2107 = vset.pattern.permute.xlu0 4
        %2108 = vperm.xlu0 %2107, %v382
        %v2109 = vpop.permute.xlu0 %2108
        %2110 = vset.pattern.permute.xlu0 4
        %2111 = vperm.xlu0 %2110, %v383
        %v2112 = vpop.permute.xlu0 %2111
        %2113 = vset.pattern.permute.xlu0 4
        %2114 = vperm.xlu0 %2113, %v384
        %v2115 = vpop.permute.xlu0 %2114
        %2116 = vset.pattern.permute.xlu0 4
        %2117 = vperm.xlu0 %2116, %v385
        %v2118 = vpop.permute.xlu0 %2117
        %2119 = vset.pattern.permute.xlu0 4
        %2120 = vperm.xlu0 %2119, %v386
        %v2121 = vpop.permute.xlu0 %2120
        %2122 = vset.pattern.permute.xlu0 4
        %2123 = vperm.xlu0 %2122, %v387
        %v2124 = vpop.permute.xlu0 %2123
        %2125 = vset.pattern.permute.xlu0 4
        %2126 = vperm.xlu0 %2125, %v388
        %v2127 = vpop.permute.xlu0 %2126
        %2128 = vset.pattern.permute.xlu0 4
        %2129 = vperm.xlu0 %2128, %v389
        %v2130 = vpop.permute.xlu0 %2129
        %2131 = vset.pattern.permute.xlu0 4
        %2132 = vperm.xlu0 %2131, %v390
        %v2133 = vpop.permute.xlu0 %2132
        %2134 = vset.pattern.permute.xlu0 4
        %2135 = vperm.xlu0 %2134, %v391
        %v2136 = vpop.permute.xlu0 %2135
        %2137 = vset.pattern.permute.xlu0 4
        %2138 = vperm.xlu0 %2137, %v392
        %v2139 = vpop.permute.xlu0 %2138
        %2140 = vset.pattern.permute.xlu0 4
        %2141 = vperm.xlu0 %2140, %v393
        %v2142 = vpop.permute.xlu0 %2141
        %2143 = vset.pattern.permute.xlu0 4
        %2144 = vperm.xlu0 %2143, %v394
        %v2145 = vpop.permute.xlu0 %2144
        %2146 = vset.pattern.permute.xlu0 4
        %2147 = vperm.xlu0 %2146, %v395
        %v2148 = vpop.permute.xlu0 %2147
        %2149 = vset.pattern.permute.xlu0 4
        %2150 = vperm.xlu0 %2149, %v396
        %v2151 = vpop.permute.xlu0 %2150
        %2152 = vset.pattern.permute.xlu0 4
        %2153 = vperm.xlu0 %2152, %v397
        %v2154 = vpop.permute.xlu0 %2153
        %2155 = vset.pattern.permute.xlu0 4
        %2156 = vperm.xlu0 %2155, %v398
        %v2157 = vpop.permute.xlu0 %2156
        %2158 = vset.pattern.permute.xlu0 4
        %2159 = vperm.xlu0 %2158, %v399
        %v2160 = vpop.permute.xlu0 %2159
        %2161 = vset.pattern.permute.xlu0 4
        %2162 = vperm.xlu0 %2161, %v400
        %v2163 = vpop.permute.xlu0 %2162
        %2164 = vset.pattern.permute.xlu0 4
        %2165 = vperm.xlu0 %2164, %v401
        %v2166 = vpop.permute.xlu0 %2165
        %vm2167 = vcmp.eq.s32.totalorder %v2073, %v403
        %vm2168 = vcmp.eq.s32.totalorder %v2073, %v404
        %vm2169 = vcmp.eq.s32.totalorder %v2073, %v405
        %vm2170 = vcmp.eq.s32.totalorder %v2073, %v406
        %vm2171 = vcmp.eq.s32.totalorder %v2076, %v403
        %vm2172 = vcmp.eq.s32.totalorder %v2076, %v404
        %vm2173 = vcmp.eq.s32.totalorder %v2076, %v405
        %vm2174 = vcmp.eq.s32.totalorder %v2076, %v406
        %vm2175 = vcmp.eq.s32.totalorder %v2079, %v403
        %vm2176 = vcmp.eq.s32.totalorder %v2079, %v404
        %vm2177 = vcmp.eq.s32.totalorder %v2079, %v405
        %vm2178 = vcmp.eq.s32.totalorder %v2079, %v406
        %vm2179 = vcmp.eq.s32.totalorder %v2082, %v403
        %vm2180 = vcmp.eq.s32.totalorder %v2082, %v404
        %vm2181 = vcmp.eq.s32.totalorder %v2082, %v405
        %vm2182 = vcmp.eq.s32.totalorder %v2082, %v406
        %vm2183 = vcmp.eq.s32.totalorder %v2085, %v403
        %vm2184 = vcmp.eq.s32.totalorder %v2085, %v404
        %vm2185 = vcmp.eq.s32.totalorder %v2085, %v405
        %vm2186 = vcmp.eq.s32.totalorder %v2085, %v406
        %vm2187 = vcmp.eq.s32.totalorder %v2088, %v403
        %vm2188 = vcmp.eq.s32.totalorder %v2088, %v404
        %vm2189 = vcmp.eq.s32.totalorder %v2088, %v405
        %vm2190 = vcmp.eq.s32.totalorder %v2088, %v406
        %vm2191 = vcmp.eq.s32.totalorder %v2091, %v403
        %vm2192 = vcmp.eq.s32.totalorder %v2091, %v404
        %vm2193 = vcmp.eq.s32.totalorder %v2091, %v405
        %vm2194 = vcmp.eq.s32.totalorder %v2091, %v406
        %vm2195 = vcmp.eq.s32.totalorder %v2094, %v403
        %vm2196 = vcmp.eq.s32.totalorder %v2094, %v404
        %vm2197 = vcmp.eq.s32.totalorder %v2094, %v405
        %vm2198 = vcmp.eq.s32.totalorder %v2094, %v406
        %vm2199 = vcmp.eq.s32.totalorder %v2097, %v403
        %vm2200 = vcmp.eq.s32.totalorder %v2097, %v404
        %vm2201 = vcmp.eq.s32.totalorder %v2097, %v405
        %vm2202 = vcmp.eq.s32.totalorder %v2097, %v406
        %vm2203 = vcmp.eq.s32.totalorder %v2100, %v403
        %vm2204 = vcmp.eq.s32.totalorder %v2100, %v404
        %vm2205 = vcmp.eq.s32.totalorder %v2100, %v405
        %vm2206 = vcmp.eq.s32.totalorder %v2100, %v406
        %vm2207 = vcmp.eq.s32.totalorder %v2103, %v403
        %vm2208 = vcmp.eq.s32.totalorder %v2103, %v404
        %vm2209 = vcmp.eq.s32.totalorder %v2103, %v405
        %vm2210 = vcmp.eq.s32.totalorder %v2103, %v406
        %vm2211 = vcmp.eq.s32.totalorder %v2106, %v403
        %vm2212 = vcmp.eq.s32.totalorder %v2106, %v404
        %vm2213 = vcmp.eq.s32.totalorder %v2106, %v405
        %vm2214 = vcmp.eq.s32.totalorder %v2106, %v406
        %vm2215 = vcmp.eq.s32.totalorder %v2109, %v403
        %vm2216 = vcmp.eq.s32.totalorder %v2109, %v404
        %vm2217 = vcmp.eq.s32.totalorder %v2109, %v405
        %vm2218 = vcmp.eq.s32.totalorder %v2109, %v406
        %vm2219 = vcmp.eq.s32.totalorder %v2112, %v403
        %vm2220 = vcmp.eq.s32.totalorder %v2112, %v404
        %vm2221 = vcmp.eq.s32.totalorder %v2112, %v405
        %vm2222 = vcmp.eq.s32.totalorder %v2112, %v406
        %vm2223 = vcmp.eq.s32.totalorder %v2115, %v403
        %vm2224 = vcmp.eq.s32.totalorder %v2115, %v404
        %vm2225 = vcmp.eq.s32.totalorder %v2115, %v405
        %vm2226 = vcmp.eq.s32.totalorder %v2115, %v406
        %vm2227 = vcmp.eq.s32.totalorder %v2118, %v403
        %vm2228 = vcmp.eq.s32.totalorder %v2118, %v404
        %vm2229 = vcmp.eq.s32.totalorder %v2118, %v405
        %vm2230 = vcmp.eq.s32.totalorder %v2118, %v406
        %vm2231 = vcmp.eq.s32.totalorder %v2121, %v403
        %vm2232 = vcmp.eq.s32.totalorder %v2121, %v404
        %vm2233 = vcmp.eq.s32.totalorder %v2121, %v405
        %vm2234 = vcmp.eq.s32.totalorder %v2121, %v406
        %vm2235 = vcmp.eq.s32.totalorder %v2124, %v403
        %vm2236 = vcmp.eq.s32.totalorder %v2124, %v404
        %vm2237 = vcmp.eq.s32.totalorder %v2124, %v405
        %vm2238 = vcmp.eq.s32.totalorder %v2124, %v406
        %vm2239 = vcmp.eq.s32.totalorder %v2127, %v403
        %vm2240 = vcmp.eq.s32.totalorder %v2127, %v404
        %vm2241 = vcmp.eq.s32.totalorder %v2127, %v405
        %vm2242 = vcmp.eq.s32.totalorder %v2127, %v406
        %vm2243 = vcmp.eq.s32.totalorder %v2130, %v403
        %vm2244 = vcmp.eq.s32.totalorder %v2130, %v404
        %vm2245 = vcmp.eq.s32.totalorder %v2130, %v405
        %vm2246 = vcmp.eq.s32.totalorder %v2130, %v406
        %vm2247 = vcmp.eq.s32.totalorder %v2133, %v403
        %vm2248 = vcmp.eq.s32.totalorder %v2133, %v404
        %vm2249 = vcmp.eq.s32.totalorder %v2133, %v405
        %vm2250 = vcmp.eq.s32.totalorder %v2133, %v406
        %vm2251 = vcmp.eq.s32.totalorder %v2136, %v403
        %vm2252 = vcmp.eq.s32.totalorder %v2136, %v404
        %vm2253 = vcmp.eq.s32.totalorder %v2136, %v405
        %vm2254 = vcmp.eq.s32.totalorder %v2136, %v406
        %vm2255 = vcmp.eq.s32.totalorder %v2139, %v403
        %vm2256 = vcmp.eq.s32.totalorder %v2139, %v404
        %vm2257 = vcmp.eq.s32.totalorder %v2139, %v405
        %vm2258 = vcmp.eq.s32.totalorder %v2139, %v406
        %vm2259 = vcmp.eq.s32.totalorder %v2142, %v403
        %vm2260 = vcmp.eq.s32.totalorder %v2142, %v404
        %vm2261 = vcmp.eq.s32.totalorder %v2142, %v405
        %vm2262 = vcmp.eq.s32.totalorder %v2142, %v406
        %vm2263 = vcmp.eq.s32.totalorder %v2145, %v403
        %vm2264 = vcmp.eq.s32.totalorder %v2145, %v404
        %vm2265 = vcmp.eq.s32.totalorder %v2145, %v405
        %vm2266 = vcmp.eq.s32.totalorder %v2145, %v406
        %vm2267 = vcmp.eq.s32.totalorder %v2148, %v403
        %vm2268 = vcmp.eq.s32.totalorder %v2148, %v404
        %vm2269 = vcmp.eq.s32.totalorder %v2148, %v405
        %vm2270 = vcmp.eq.s32.totalorder %v2148, %v406
        %vm2271 = vcmp.eq.s32.totalorder %v2151, %v403
        %vm2272 = vcmp.eq.s32.totalorder %v2151, %v404
        %vm2273 = vcmp.eq.s32.totalorder %v2151, %v405
        %vm2274 = vcmp.eq.s32.totalorder %v2151, %v406
        %vm2275 = vcmp.eq.s32.totalorder %v2154, %v403
        %vm2276 = vcmp.eq.s32.totalorder %v2154, %v404
        %vm2277 = vcmp.eq.s32.totalorder %v2154, %v405
        %vm2278 = vcmp.eq.s32.totalorder %v2154, %v406
        %vm2279 = vcmp.eq.s32.totalorder %v2157, %v403
        %vm2280 = vcmp.eq.s32.totalorder %v2157, %v404
        %vm2281 = vcmp.eq.s32.totalorder %v2157, %v405
        %vm2282 = vcmp.eq.s32.totalorder %v2157, %v406
        %vm2283 = vcmp.eq.s32.totalorder %v2160, %v403
        %vm2284 = vcmp.eq.s32.totalorder %v2160, %v404
        %vm2285 = vcmp.eq.s32.totalorder %v2160, %v405
        %vm2286 = vcmp.eq.s32.totalorder %v2160, %v406
        %vm2287 = vcmp.eq.s32.totalorder %v2163, %v403
        %vm2288 = vcmp.eq.s32.totalorder %v2163, %v404
        %vm2289 = vcmp.eq.s32.totalorder %v2163, %v405
        %vm2290 = vcmp.eq.s32.totalorder %v2163, %v406
        %vm2291 = vcmp.eq.s32.totalorder %v2166, %v403
        %vm2292 = vcmp.eq.s32.totalorder %v2166, %v404
        %vm2293 = vcmp.eq.s32.totalorder %v2166, %v405
        %vm2294 = vcmp.eq.s32.totalorder %v2166, %v406
        %v2295 = vsel %vm2167, 1.0, 0.0
        %v2296 = vsel %vm2168, 1.0, 0.0
        %v2297 = vsel %vm2169, 1.0, 0.0
        %v2298 = vsel %vm2170, 1.0, 0.0
        %v2299 = vsel %vm2171, 1.0, 0.0
        %v2300 = vsel %vm2172, 1.0, 0.0
        %v2301 = vsel %vm2173, 1.0, 0.0
        %v2302 = vsel %vm2174, 1.0, 0.0
        %v2303 = vsel %vm2175, 1.0, 0.0
        %v2304 = vsel %vm2176, 1.0, 0.0
        %v2305 = vsel %vm2177, 1.0, 0.0
        %v2306 = vsel %vm2178, 1.0, 0.0
        %v2307 = vsel %vm2179, 1.0, 0.0
        %v2308 = vsel %vm2180, 1.0, 0.0
        %v2309 = vsel %vm2181, 1.0, 0.0
        %v2310 = vsel %vm2182, 1.0, 0.0
        %v2311 = vsel %vm2183, 1.0, 0.0
        %v2312 = vsel %vm2184, 1.0, 0.0
        %v2313 = vsel %vm2185, 1.0, 0.0
        %v2314 = vsel %vm2186, 1.0, 0.0
        %v2315 = vsel %vm2187, 1.0, 0.0
        %v2316 = vsel %vm2188, 1.0, 0.0
        %v2317 = vsel %vm2189, 1.0, 0.0
        %v2318 = vsel %vm2190, 1.0, 0.0
        %v2319 = vsel %vm2191, 1.0, 0.0
        %v2320 = vsel %vm2192, 1.0, 0.0
        %v2321 = vsel %vm2193, 1.0, 0.0
        %v2322 = vsel %vm2194, 1.0, 0.0
        %v2323 = vsel %vm2195, 1.0, 0.0
        %v2324 = vsel %vm2196, 1.0, 0.0
        %v2325 = vsel %vm2197, 1.0, 0.0
        %v2326 = vsel %vm2198, 1.0, 0.0
        %v2327 = vsel %vm2199, 1.0, 0.0
        %v2328 = vsel %vm2200, 1.0, 0.0
        %v2329 = vsel %vm2201, 1.0, 0.0
        %v2330 = vsel %vm2202, 1.0, 0.0
        %v2331 = vsel %vm2203, 1.0, 0.0
        %v2332 = vsel %vm2204, 1.0, 0.0
        %v2333 = vsel %vm2205, 1.0, 0.0
        %v2334 = vsel %vm2206, 1.0, 0.0
        %v2335 = vsel %vm2207, 1.0, 0.0
        %v2336 = vsel %vm2208, 1.0, 0.0
        %v2337 = vsel %vm2209, 1.0, 0.0
        %v2338 = vsel %vm2210, 1.0, 0.0
        %v2339 = vsel %vm2211, 1.0, 0.0
        %v2340 = vsel %vm2212, 1.0, 0.0
        %v2341 = vsel %vm2213, 1.0, 0.0
        %v2342 = vsel %vm2214, 1.0, 0.0
        %v2343 = vsel %vm2215, 1.0, 0.0
        %v2344 = vsel %vm2216, 1.0, 0.0
        %v2345 = vsel %vm2217, 1.0, 0.0
        %v2346 = vsel %vm2218, 1.0, 0.0
        %v2347 = vsel %vm2219, 1.0, 0.0
        %v2348 = vsel %vm2220, 1.0, 0.0
        %v2349 = vsel %vm2221, 1.0, 0.0
        %v2350 = vsel %vm2222, 1.0, 0.0
        %v2351 = vsel %vm2223, 1.0, 0.0
        %v2352 = vsel %vm2224, 1.0, 0.0
        %v2353 = vsel %vm2225, 1.0, 0.0
        %v2354 = vsel %vm2226, 1.0, 0.0
        %v2355 = vsel %vm2227, 1.0, 0.0
        %v2356 = vsel %vm2228, 1.0, 0.0
        %v2357 = vsel %vm2229, 1.0, 0.0
        %v2358 = vsel %vm2230, 1.0, 0.0
        %v2359 = vsel %vm2231, 1.0, 0.0
        %v2360 = vsel %vm2232, 1.0, 0.0
        %v2361 = vsel %vm2233, 1.0, 0.0
        %v2362 = vsel %vm2234, 1.0, 0.0
        %v2363 = vsel %vm2235, 1.0, 0.0
        %v2364 = vsel %vm2236, 1.0, 0.0
        %v2365 = vsel %vm2237, 1.0, 0.0
        %v2366 = vsel %vm2238, 1.0, 0.0
        %v2367 = vsel %vm2239, 1.0, 0.0
        %v2368 = vsel %vm2240, 1.0, 0.0
        %v2369 = vsel %vm2241, 1.0, 0.0
        %v2370 = vsel %vm2242, 1.0, 0.0
        %v2371 = vsel %vm2243, 1.0, 0.0
        %v2372 = vsel %vm2244, 1.0, 0.0
        %v2373 = vsel %vm2245, 1.0, 0.0
        %v2374 = vsel %vm2246, 1.0, 0.0
        %v2375 = vsel %vm2247, 1.0, 0.0
        %v2376 = vsel %vm2248, 1.0, 0.0
        %v2377 = vsel %vm2249, 1.0, 0.0
        %v2378 = vsel %vm2250, 1.0, 0.0
        %v2379 = vsel %vm2251, 1.0, 0.0
        %v2380 = vsel %vm2252, 1.0, 0.0
        %v2381 = vsel %vm2253, 1.0, 0.0
        %v2382 = vsel %vm2254, 1.0, 0.0
        %v2383 = vsel %vm2255, 1.0, 0.0
        %v2384 = vsel %vm2256, 1.0, 0.0
        %v2385 = vsel %vm2257, 1.0, 0.0
        %v2386 = vsel %vm2258, 1.0, 0.0
        %v2387 = vsel %vm2259, 1.0, 0.0
        %v2388 = vsel %vm2260, 1.0, 0.0
        %v2389 = vsel %vm2261, 1.0, 0.0
        %v2390 = vsel %vm2262, 1.0, 0.0
        %v2391 = vsel %vm2263, 1.0, 0.0
        %v2392 = vsel %vm2264, 1.0, 0.0
        %v2393 = vsel %vm2265, 1.0, 0.0
        %v2394 = vsel %vm2266, 1.0, 0.0
        %v2395 = vsel %vm2267, 1.0, 0.0
        %v2396 = vsel %vm2268, 1.0, 0.0
        %v2397 = vsel %vm2269, 1.0, 0.0
        %v2398 = vsel %vm2270, 1.0, 0.0
        %v2399 = vsel %vm2271, 1.0, 0.0
        %v2400 = vsel %vm2272, 1.0, 0.0
        %v2401 = vsel %vm2273, 1.0, 0.0
        %v2402 = vsel %vm2274, 1.0, 0.0
        %v2403 = vsel %vm2275, 1.0, 0.0
        %v2404 = vsel %vm2276, 1.0, 0.0
        %v2405 = vsel %vm2277, 1.0, 0.0
        %v2406 = vsel %vm2278, 1.0, 0.0
        %v2407 = vsel %vm2279, 1.0, 0.0
        %v2408 = vsel %vm2280, 1.0, 0.0
        %v2409 = vsel %vm2281, 1.0, 0.0
        %v2410 = vsel %vm2282, 1.0, 0.0
        %v2411 = vsel %vm2283, 1.0, 0.0
        %v2412 = vsel %vm2284, 1.0, 0.0
        %v2413 = vsel %vm2285, 1.0, 0.0
        %v2414 = vsel %vm2286, 1.0, 0.0
        %v2415 = vsel %vm2287, 1.0, 0.0
        %v2416 = vsel %vm2288, 1.0, 0.0
        %v2417 = vsel %vm2289, 1.0, 0.0
        %v2418 = vsel %vm2290, 1.0, 0.0
        %v2419 = vsel %vm2291, 1.0, 0.0
        %v2420 = vsel %vm2292, 1.0, 0.0
        %v2421 = vsel %vm2293, 1.0, 0.0
        %v2422 = vsel %vm2294, 1.0, 0.0
        %v2423 = vpack.c.bf16 %v2299, %v2295
        %v2424 = vpack.c.bf16 %v2300, %v2296
        %v2425 = vpack.c.bf16 %v2301, %v2297
        %v2426 = vpack.c.bf16 %v2302, %v2298
        %v2427 = vpack.c.bf16 %v2307, %v2303
        %v2428 = vpack.c.bf16 %v2308, %v2304
        %v2429 = vpack.c.bf16 %v2309, %v2305
        %v2430 = vpack.c.bf16 %v2310, %v2306
        %v2431 = vpack.c.bf16 %v2315, %v2311
        %v2432 = vpack.c.bf16 %v2316, %v2312
        %v2433 = vpack.c.bf16 %v2317, %v2313
        %v2434 = vpack.c.bf16 %v2318, %v2314
        %v2435 = vpack.c.bf16 %v2323, %v2319
        %v2436 = vpack.c.bf16 %v2324, %v2320
        %v2437 = vpack.c.bf16 %v2325, %v2321
        %v2438 = vpack.c.bf16 %v2326, %v2322
        %v2439 = vpack.c.bf16 %v2331, %v2327
        %v2440 = vpack.c.bf16 %v2332, %v2328
        %v2441 = vpack.c.bf16 %v2333, %v2329
        %v2442 = vpack.c.bf16 %v2334, %v2330
        %v2443 = vpack.c.bf16 %v2339, %v2335
        %v2444 = vpack.c.bf16 %v2340, %v2336
        %v2445 = vpack.c.bf16 %v2341, %v2337
        %v2446 = vpack.c.bf16 %v2342, %v2338
        %v2447 = vpack.c.bf16 %v2347, %v2343
        %v2448 = vpack.c.bf16 %v2348, %v2344
        %v2449 = vpack.c.bf16 %v2349, %v2345
        %v2450 = vpack.c.bf16 %v2350, %v2346
        %v2451 = vpack.c.bf16 %v2355, %v2351
        %v2452 = vpack.c.bf16 %v2356, %v2352
        %v2453 = vpack.c.bf16 %v2357, %v2353
        %v2454 = vpack.c.bf16 %v2358, %v2354
        %v2455 = vpack.c.bf16 %v2363, %v2359
        %v2456 = vpack.c.bf16 %v2364, %v2360
        %v2457 = vpack.c.bf16 %v2365, %v2361
        %v2458 = vpack.c.bf16 %v2366, %v2362
        %v2459 = vpack.c.bf16 %v2371, %v2367
        %v2460 = vpack.c.bf16 %v2372, %v2368
        %v2461 = vpack.c.bf16 %v2373, %v2369
        %v2462 = vpack.c.bf16 %v2374, %v2370
        %v2463 = vpack.c.bf16 %v2379, %v2375
        %v2464 = vpack.c.bf16 %v2380, %v2376
        %v2465 = vpack.c.bf16 %v2381, %v2377
        %v2466 = vpack.c.bf16 %v2382, %v2378
        %v2467 = vpack.c.bf16 %v2387, %v2383
        %v2468 = vpack.c.bf16 %v2388, %v2384
        %v2469 = vpack.c.bf16 %v2389, %v2385
        %v2470 = vpack.c.bf16 %v2390, %v2386
        %v2471 = vpack.c.bf16 %v2395, %v2391
        %v2472 = vpack.c.bf16 %v2396, %v2392
        %v2473 = vpack.c.bf16 %v2397, %v2393
        %v2474 = vpack.c.bf16 %v2398, %v2394
        %v2475 = vpack.c.bf16 %v2403, %v2399
        %v2476 = vpack.c.bf16 %v2404, %v2400
        %v2477 = vpack.c.bf16 %v2405, %v2401
        %v2478 = vpack.c.bf16 %v2406, %v2402
        %v2479 = vpack.c.bf16 %v2411, %v2407
        %v2480 = vpack.c.bf16 %v2412, %v2408
        %v2481 = vpack.c.bf16 %v2413, %v2409
        %v2482 = vpack.c.bf16 %v2414, %v2410
        %v2483 = vpack.c.bf16 %v2419, %v2415
        %v2484 = vpack.c.bf16 %v2420, %v2416
        %v2485 = vpack.c.bf16 %v2421, %v2417
        %v2486 = vpack.c.bf16 %v2422, %v2418
        %2487 = vset.pattern.permute.xlu0 5
        %2488 = vperm.xlu0 %2487, %v370
        %v2489 = vpop.permute.xlu0 %2488
        %2490 = vset.pattern.permute.xlu0 5
        %2491 = vperm.xlu0 %2490, %v371
        %v2492 = vpop.permute.xlu0 %2491
        %2493 = vset.pattern.permute.xlu0 5
        %2494 = vperm.xlu0 %2493, %v372
        %v2495 = vpop.permute.xlu0 %2494
        %2496 = vset.pattern.permute.xlu0 5
        %2497 = vperm.xlu0 %2496, %v373
        %v2498 = vpop.permute.xlu0 %2497
        %2499 = vset.pattern.permute.xlu0 5
        %2500 = vperm.xlu0 %2499, %v374
        %v2501 = vpop.permute.xlu0 %2500
        %2502 = vset.pattern.permute.xlu0 5
        %2503 = vperm.xlu0 %2502, %v375
        %v2504 = vpop.permute.xlu0 %2503
        %2505 = vset.pattern.permute.xlu0 5
        %2506 = vperm.xlu0 %2505, %v376
        %v2507 = vpop.permute.xlu0 %2506
        %2508 = vset.pattern.permute.xlu0 5
        %2509 = vperm.xlu0 %2508, %v377
        %v2510 = vpop.permute.xlu0 %2509
        %2511 = vset.pattern.permute.xlu0 5
        %2512 = vperm.xlu0 %2511, %v378
        %v2513 = vpop.permute.xlu0 %2512
        %2514 = vset.pattern.permute.xlu0 5
        %2515 = vperm.xlu0 %2514, %v379
        %v2516 = vpop.permute.xlu0 %2515
        %2517 = vset.pattern.permute.xlu0 5
        %2518 = vperm.xlu0 %2517, %v380
        %v2519 = vpop.permute.xlu0 %2518
        %2520 = vset.pattern.permute.xlu0 5
        %2521 = vperm.xlu0 %2520, %v381
        %v2522 = vpop.permute.xlu0 %2521
        %2523 = vset.pattern.permute.xlu0 5
        %2524 = vperm.xlu0 %2523, %v382
        %v2525 = vpop.permute.xlu0 %2524
        %2526 = vset.pattern.permute.xlu0 5
        %2527 = vperm.xlu0 %2526, %v383
        %v2528 = vpop.permute.xlu0 %2527
        %2529 = vset.pattern.permute.xlu0 5
        %2530 = vperm.xlu0 %2529, %v384
        %v2531 = vpop.permute.xlu0 %2530
        %2532 = vset.pattern.permute.xlu0 5
        %2533 = vperm.xlu0 %2532, %v385
        %v2534 = vpop.permute.xlu0 %2533
        %2535 = vset.pattern.permute.xlu0 5
        %2536 = vperm.xlu0 %2535, %v386
        %v2537 = vpop.permute.xlu0 %2536
        %2538 = vset.pattern.permute.xlu0 5
        %2539 = vperm.xlu0 %2538, %v387
        %v2540 = vpop.permute.xlu0 %2539
        %2541 = vset.pattern.permute.xlu0 5
        %2542 = vperm.xlu0 %2541, %v388
        %v2543 = vpop.permute.xlu0 %2542
        %2544 = vset.pattern.permute.xlu0 5
        %2545 = vperm.xlu0 %2544, %v389
        %v2546 = vpop.permute.xlu0 %2545
        %2547 = vset.pattern.permute.xlu0 5
        %2548 = vperm.xlu0 %2547, %v390
        %v2549 = vpop.permute.xlu0 %2548
        %2550 = vset.pattern.permute.xlu0 5
        %2551 = vperm.xlu0 %2550, %v391
        %v2552 = vpop.permute.xlu0 %2551
        %2553 = vset.pattern.permute.xlu0 5
        %2554 = vperm.xlu0 %2553, %v392
        %v2555 = vpop.permute.xlu0 %2554
        %2556 = vset.pattern.permute.xlu0 5
        %2557 = vperm.xlu0 %2556, %v393
        %v2558 = vpop.permute.xlu0 %2557
        %2559 = vset.pattern.permute.xlu0 5
        %2560 = vperm.xlu0 %2559, %v394
        %v2561 = vpop.permute.xlu0 %2560
        %2562 = vset.pattern.permute.xlu0 5
        %2563 = vperm.xlu0 %2562, %v395
        %v2564 = vpop.permute.xlu0 %2563
        %2565 = vset.pattern.permute.xlu0 5
        %2566 = vperm.xlu0 %2565, %v396
        %v2567 = vpop.permute.xlu0 %2566
        %2568 = vset.pattern.permute.xlu0 5
        %2569 = vperm.xlu0 %2568, %v397
        %v2570 = vpop.permute.xlu0 %2569
        %2571 = vset.pattern.permute.xlu0 5
        %2572 = vperm.xlu0 %2571, %v398
        %v2573 = vpop.permute.xlu0 %2572
        %2574 = vset.pattern.permute.xlu0 5
        %2575 = vperm.xlu0 %2574, %v399
        %v2576 = vpop.permute.xlu0 %2575
        %2577 = vset.pattern.permute.xlu0 5
        %2578 = vperm.xlu0 %2577, %v400
        %v2579 = vpop.permute.xlu0 %2578
        %2580 = vset.pattern.permute.xlu0 5
        %2581 = vperm.xlu0 %2580, %v401
        %v2582 = vpop.permute.xlu0 %2581
        %vm2583 = vcmp.eq.s32.totalorder %v2489, %v403
        %vm2584 = vcmp.eq.s32.totalorder %v2489, %v404
        %vm2585 = vcmp.eq.s32.totalorder %v2489, %v405
        %vm2586 = vcmp.eq.s32.totalorder %v2489, %v406
        %vm2587 = vcmp.eq.s32.totalorder %v2492, %v403
        %vm2588 = vcmp.eq.s32.totalorder %v2492, %v404
        %vm2589 = vcmp.eq.s32.totalorder %v2492, %v405
        %vm2590 = vcmp.eq.s32.totalorder %v2492, %v406
        %vm2591 = vcmp.eq.s32.totalorder %v2495, %v403
        %vm2592 = vcmp.eq.s32.totalorder %v2495, %v404
        %vm2593 = vcmp.eq.s32.totalorder %v2495, %v405
        %vm2594 = vcmp.eq.s32.totalorder %v2495, %v406
        %vm2595 = vcmp.eq.s32.totalorder %v2498, %v403
        %vm2596 = vcmp.eq.s32.totalorder %v2498, %v404
        %vm2597 = vcmp.eq.s32.totalorder %v2498, %v405
        %vm2598 = vcmp.eq.s32.totalorder %v2498, %v406
        %vm2599 = vcmp.eq.s32.totalorder %v2501, %v403
        %vm2600 = vcmp.eq.s32.totalorder %v2501, %v404
        %vm2601 = vcmp.eq.s32.totalorder %v2501, %v405
        %vm2602 = vcmp.eq.s32.totalorder %v2501, %v406
        %vm2603 = vcmp.eq.s32.totalorder %v2504, %v403
        %vm2604 = vcmp.eq.s32.totalorder %v2504, %v404
        %vm2605 = vcmp.eq.s32.totalorder %v2504, %v405
        %vm2606 = vcmp.eq.s32.totalorder %v2504, %v406
        %vm2607 = vcmp.eq.s32.totalorder %v2507, %v403
        %vm2608 = vcmp.eq.s32.totalorder %v2507, %v404
        %vm2609 = vcmp.eq.s32.totalorder %v2507, %v405
        %vm2610 = vcmp.eq.s32.totalorder %v2507, %v406
        %vm2611 = vcmp.eq.s32.totalorder %v2510, %v403
        %vm2612 = vcmp.eq.s32.totalorder %v2510, %v404
        %vm2613 = vcmp.eq.s32.totalorder %v2510, %v405
        %vm2614 = vcmp.eq.s32.totalorder %v2510, %v406
        %vm2615 = vcmp.eq.s32.totalorder %v2513, %v403
        %vm2616 = vcmp.eq.s32.totalorder %v2513, %v404
        %vm2617 = vcmp.eq.s32.totalorder %v2513, %v405
        %vm2618 = vcmp.eq.s32.totalorder %v2513, %v406
        %vm2619 = vcmp.eq.s32.totalorder %v2516, %v403
        %vm2620 = vcmp.eq.s32.totalorder %v2516, %v404
        %vm2621 = vcmp.eq.s32.totalorder %v2516, %v405
        %vm2622 = vcmp.eq.s32.totalorder %v2516, %v406
        %vm2623 = vcmp.eq.s32.totalorder %v2519, %v403
        %vm2624 = vcmp.eq.s32.totalorder %v2519, %v404
        %vm2625 = vcmp.eq.s32.totalorder %v2519, %v405
        %vm2626 = vcmp.eq.s32.totalorder %v2519, %v406
        %vm2627 = vcmp.eq.s32.totalorder %v2522, %v403
        %vm2628 = vcmp.eq.s32.totalorder %v2522, %v404
        %vm2629 = vcmp.eq.s32.totalorder %v2522, %v405
        %vm2630 = vcmp.eq.s32.totalorder %v2522, %v406
        %vm2631 = vcmp.eq.s32.totalorder %v2525, %v403
        %vm2632 = vcmp.eq.s32.totalorder %v2525, %v404
        %vm2633 = vcmp.eq.s32.totalorder %v2525, %v405
        %vm2634 = vcmp.eq.s32.totalorder %v2525, %v406
        %vm2635 = vcmp.eq.s32.totalorder %v2528, %v403
        %vm2636 = vcmp.eq.s32.totalorder %v2528, %v404
        %vm2637 = vcmp.eq.s32.totalorder %v2528, %v405
        %vm2638 = vcmp.eq.s32.totalorder %v2528, %v406
        %vm2639 = vcmp.eq.s32.totalorder %v2531, %v403
        %vm2640 = vcmp.eq.s32.totalorder %v2531, %v404
        %vm2641 = vcmp.eq.s32.totalorder %v2531, %v405
        %vm2642 = vcmp.eq.s32.totalorder %v2531, %v406
        %vm2643 = vcmp.eq.s32.totalorder %v2534, %v403
        %vm2644 = vcmp.eq.s32.totalorder %v2534, %v404
        %vm2645 = vcmp.eq.s32.totalorder %v2534, %v405
        %vm2646 = vcmp.eq.s32.totalorder %v2534, %v406
        %vm2647 = vcmp.eq.s32.totalorder %v2537, %v403
        %vm2648 = vcmp.eq.s32.totalorder %v2537, %v404
        %vm2649 = vcmp.eq.s32.totalorder %v2537, %v405
        %vm2650 = vcmp.eq.s32.totalorder %v2537, %v406
        %vm2651 = vcmp.eq.s32.totalorder %v2540, %v403
        %vm2652 = vcmp.eq.s32.totalorder %v2540, %v404
        %vm2653 = vcmp.eq.s32.totalorder %v2540, %v405
        %vm2654 = vcmp.eq.s32.totalorder %v2540, %v406
        %vm2655 = vcmp.eq.s32.totalorder %v2543, %v403
        %vm2656 = vcmp.eq.s32.totalorder %v2543, %v404
        %vm2657 = vcmp.eq.s32.totalorder %v2543, %v405
        %vm2658 = vcmp.eq.s32.totalorder %v2543, %v406
        %vm2659 = vcmp.eq.s32.totalorder %v2546, %v403
        %vm2660 = vcmp.eq.s32.totalorder %v2546, %v404
        %vm2661 = vcmp.eq.s32.totalorder %v2546, %v405
        %vm2662 = vcmp.eq.s32.totalorder %v2546, %v406
        %vm2663 = vcmp.eq.s32.totalorder %v2549, %v403
        %vm2664 = vcmp.eq.s32.totalorder %v2549, %v404
        %vm2665 = vcmp.eq.s32.totalorder %v2549, %v405
        %vm2666 = vcmp.eq.s32.totalorder %v2549, %v406
        %vm2667 = vcmp.eq.s32.totalorder %v2552, %v403
        %vm2668 = vcmp.eq.s32.totalorder %v2552, %v404
        %vm2669 = vcmp.eq.s32.totalorder %v2552, %v405
        %vm2670 = vcmp.eq.s32.totalorder %v2552, %v406
        %vm2671 = vcmp.eq.s32.totalorder %v2555, %v403
        %vm2672 = vcmp.eq.s32.totalorder %v2555, %v404
        %vm2673 = vcmp.eq.s32.totalorder %v2555, %v405
        %vm2674 = vcmp.eq.s32.totalorder %v2555, %v406
        %vm2675 = vcmp.eq.s32.totalorder %v2558, %v403
        %vm2676 = vcmp.eq.s32.totalorder %v2558, %v404
        %vm2677 = vcmp.eq.s32.totalorder %v2558, %v405
        %vm2678 = vcmp.eq.s32.totalorder %v2558, %v406
        %vm2679 = vcmp.eq.s32.totalorder %v2561, %v403
        %vm2680 = vcmp.eq.s32.totalorder %v2561, %v404
        %vm2681 = vcmp.eq.s32.totalorder %v2561, %v405
        %vm2682 = vcmp.eq.s32.totalorder %v2561, %v406
        %vm2683 = vcmp.eq.s32.totalorder %v2564, %v403
        %vm2684 = vcmp.eq.s32.totalorder %v2564, %v404
        %vm2685 = vcmp.eq.s32.totalorder %v2564, %v405
        %vm2686 = vcmp.eq.s32.totalorder %v2564, %v406
        %vm2687 = vcmp.eq.s32.totalorder %v2567, %v403
        %vm2688 = vcmp.eq.s32.totalorder %v2567, %v404
        %vm2689 = vcmp.eq.s32.totalorder %v2567, %v405
        %vm2690 = vcmp.eq.s32.totalorder %v2567, %v406
        %vm2691 = vcmp.eq.s32.totalorder %v2570, %v403
        %vm2692 = vcmp.eq.s32.totalorder %v2570, %v404
        %vm2693 = vcmp.eq.s32.totalorder %v2570, %v405
        %vm2694 = vcmp.eq.s32.totalorder %v2570, %v406
        %vm2695 = vcmp.eq.s32.totalorder %v2573, %v403
        %vm2696 = vcmp.eq.s32.totalorder %v2573, %v404
        %vm2697 = vcmp.eq.s32.totalorder %v2573, %v405
        %vm2698 = vcmp.eq.s32.totalorder %v2573, %v406
        %vm2699 = vcmp.eq.s32.totalorder %v2576, %v403
        %vm2700 = vcmp.eq.s32.totalorder %v2576, %v404
        %vm2701 = vcmp.eq.s32.totalorder %v2576, %v405
        %vm2702 = vcmp.eq.s32.totalorder %v2576, %v406
        %vm2703 = vcmp.eq.s32.totalorder %v2579, %v403
        %vm2704 = vcmp.eq.s32.totalorder %v2579, %v404
        %vm2705 = vcmp.eq.s32.totalorder %v2579, %v405
        %vm2706 = vcmp.eq.s32.totalorder %v2579, %v406
        %vm2707 = vcmp.eq.s32.totalorder %v2582, %v403
        %vm2708 = vcmp.eq.s32.totalorder %v2582, %v404
        %vm2709 = vcmp.eq.s32.totalorder %v2582, %v405
        %vm2710 = vcmp.eq.s32.totalorder %v2582, %v406
        %v2711 = vsel %vm2583, 1.0, 0.0
        %v2712 = vsel %vm2584, 1.0, 0.0
        %v2713 = vsel %vm2585, 1.0, 0.0
        %v2714 = vsel %vm2586, 1.0, 0.0
        %v2715 = vsel %vm2587, 1.0, 0.0
        %v2716 = vsel %vm2588, 1.0, 0.0
        %v2717 = vsel %vm2589, 1.0, 0.0
        %v2718 = vsel %vm2590, 1.0, 0.0
        %v2719 = vsel %vm2591, 1.0, 0.0
        %v2720 = vsel %vm2592, 1.0, 0.0
        %v2721 = vsel %vm2593, 1.0, 0.0
        %v2722 = vsel %vm2594, 1.0, 0.0
        %v2723 = vsel %vm2595, 1.0, 0.0
        %v2724 = vsel %vm2596, 1.0, 0.0
        %v2725 = vsel %vm2597, 1.0, 0.0
        %v2726 = vsel %vm2598, 1.0, 0.0
        %v2727 = vsel %vm2599, 1.0, 0.0
        %v2728 = vsel %vm2600, 1.0, 0.0
        %v2729 = vsel %vm2601, 1.0, 0.0
        %v2730 = vsel %vm2602, 1.0, 0.0
        %v2731 = vsel %vm2603, 1.0, 0.0
        %v2732 = vsel %vm2604, 1.0, 0.0
        %v2733 = vsel %vm2605, 1.0, 0.0
        %v2734 = vsel %vm2606, 1.0, 0.0
        %v2735 = vsel %vm2607, 1.0, 0.0
        %v2736 = vsel %vm2608, 1.0, 0.0
        %v2737 = vsel %vm2609, 1.0, 0.0
        %v2738 = vsel %vm2610, 1.0, 0.0
        %v2739 = vsel %vm2611, 1.0, 0.0
        %v2740 = vsel %vm2612, 1.0, 0.0
        %v2741 = vsel %vm2613, 1.0, 0.0
        %v2742 = vsel %vm2614, 1.0, 0.0
        %v2743 = vsel %vm2615, 1.0, 0.0
        %v2744 = vsel %vm2616, 1.0, 0.0
        %v2745 = vsel %vm2617, 1.0, 0.0
        %v2746 = vsel %vm2618, 1.0, 0.0
        %v2747 = vsel %vm2619, 1.0, 0.0
        %v2748 = vsel %vm2620, 1.0, 0.0
        %v2749 = vsel %vm2621, 1.0, 0.0
        %v2750 = vsel %vm2622, 1.0, 0.0
        %v2751 = vsel %vm2623, 1.0, 0.0
        %v2752 = vsel %vm2624, 1.0, 0.0
        %v2753 = vsel %vm2625, 1.0, 0.0
        %v2754 = vsel %vm2626, 1.0, 0.0
        %v2755 = vsel %vm2627, 1.0, 0.0
        %v2756 = vsel %vm2628, 1.0, 0.0
        %v2757 = vsel %vm2629, 1.0, 0.0
        %v2758 = vsel %vm2630, 1.0, 0.0
        %v2759 = vsel %vm2631, 1.0, 0.0
        %v2760 = vsel %vm2632, 1.0, 0.0
        %v2761 = vsel %vm2633, 1.0, 0.0
        %v2762 = vsel %vm2634, 1.0, 0.0
        %v2763 = vsel %vm2635, 1.0, 0.0
        %v2764 = vsel %vm2636, 1.0, 0.0
        %v2765 = vsel %vm2637, 1.0, 0.0
        %v2766 = vsel %vm2638, 1.0, 0.0
        %v2767 = vsel %vm2639, 1.0, 0.0
        %v2768 = vsel %vm2640, 1.0, 0.0
        %v2769 = vsel %vm2641, 1.0, 0.0
        %v2770 = vsel %vm2642, 1.0, 0.0
        %v2771 = vsel %vm2643, 1.0, 0.0
        %v2772 = vsel %vm2644, 1.0, 0.0
        %v2773 = vsel %vm2645, 1.0, 0.0
        %v2774 = vsel %vm2646, 1.0, 0.0
        %v2775 = vsel %vm2647, 1.0, 0.0
        %v2776 = vsel %vm2648, 1.0, 0.0
        %v2777 = vsel %vm2649, 1.0, 0.0
        %v2778 = vsel %vm2650, 1.0, 0.0
        %v2779 = vsel %vm2651, 1.0, 0.0
        %v2780 = vsel %vm2652, 1.0, 0.0
        %v2781 = vsel %vm2653, 1.0, 0.0
        %v2782 = vsel %vm2654, 1.0, 0.0
        %v2783 = vsel %vm2655, 1.0, 0.0
        %v2784 = vsel %vm2656, 1.0, 0.0
        %v2785 = vsel %vm2657, 1.0, 0.0
        %v2786 = vsel %vm2658, 1.0, 0.0
        %v2787 = vsel %vm2659, 1.0, 0.0
        %v2788 = vsel %vm2660, 1.0, 0.0
        %v2789 = vsel %vm2661, 1.0, 0.0
        %v2790 = vsel %vm2662, 1.0, 0.0
        %v2791 = vsel %vm2663, 1.0, 0.0
        %v2792 = vsel %vm2664, 1.0, 0.0
        %v2793 = vsel %vm2665, 1.0, 0.0
        %v2794 = vsel %vm2666, 1.0, 0.0
        %v2795 = vsel %vm2667, 1.0, 0.0
        %v2796 = vsel %vm2668, 1.0, 0.0
        %v2797 = vsel %vm2669, 1.0, 0.0
        %v2798 = vsel %vm2670, 1.0, 0.0
        %v2799 = vsel %vm2671, 1.0, 0.0
        %v2800 = vsel %vm2672, 1.0, 0.0
        %v2801 = vsel %vm2673, 1.0, 0.0
        %v2802 = vsel %vm2674, 1.0, 0.0
        %v2803 = vsel %vm2675, 1.0, 0.0
        %v2804 = vsel %vm2676, 1.0, 0.0
        %v2805 = vsel %vm2677, 1.0, 0.0
        %v2806 = vsel %vm2678, 1.0, 0.0
        %v2807 = vsel %vm2679, 1.0, 0.0
        %v2808 = vsel %vm2680, 1.0, 0.0
        %v2809 = vsel %vm2681, 1.0, 0.0
        %v2810 = vsel %vm2682, 1.0, 0.0
        %v2811 = vsel %vm2683, 1.0, 0.0
        %v2812 = vsel %vm2684, 1.0, 0.0
        %v2813 = vsel %vm2685, 1.0, 0.0
        %v2814 = vsel %vm2686, 1.0, 0.0
        %v2815 = vsel %vm2687, 1.0, 0.0
        %v2816 = vsel %vm2688, 1.0, 0.0
        %v2817 = vsel %vm2689, 1.0, 0.0
        %v2818 = vsel %vm2690, 1.0, 0.0
        %v2819 = vsel %vm2691, 1.0, 0.0
        %v2820 = vsel %vm2692, 1.0, 0.0
        %v2821 = vsel %vm2693, 1.0, 0.0
        %v2822 = vsel %vm2694, 1.0, 0.0
        %v2823 = vsel %vm2695, 1.0, 0.0
        %v2824 = vsel %vm2696, 1.0, 0.0
        %v2825 = vsel %vm2697, 1.0, 0.0
        %v2826 = vsel %vm2698, 1.0, 0.0
        %v2827 = vsel %vm2699, 1.0, 0.0
        %v2828 = vsel %vm2700, 1.0, 0.0
        %v2829 = vsel %vm2701, 1.0, 0.0
        %v2830 = vsel %vm2702, 1.0, 0.0
        %v2831 = vsel %vm2703, 1.0, 0.0
        %v2832 = vsel %vm2704, 1.0, 0.0
        %v2833 = vsel %vm2705, 1.0, 0.0
        %v2834 = vsel %vm2706, 1.0, 0.0
        %v2835 = vsel %vm2707, 1.0, 0.0
        %v2836 = vsel %vm2708, 1.0, 0.0
        %v2837 = vsel %vm2709, 1.0, 0.0
        %v2838 = vsel %vm2710, 1.0, 0.0
        %v2839 = vpack.c.bf16 %v2715, %v2711
        %v2840 = vpack.c.bf16 %v2716, %v2712
        %v2841 = vpack.c.bf16 %v2717, %v2713
        %v2842 = vpack.c.bf16 %v2718, %v2714
        %v2843 = vpack.c.bf16 %v2723, %v2719
        %v2844 = vpack.c.bf16 %v2724, %v2720
        %v2845 = vpack.c.bf16 %v2725, %v2721
        %v2846 = vpack.c.bf16 %v2726, %v2722
        %v2847 = vpack.c.bf16 %v2731, %v2727
        %v2848 = vpack.c.bf16 %v2732, %v2728
        %v2849 = vpack.c.bf16 %v2733, %v2729
        %v2850 = vpack.c.bf16 %v2734, %v2730
        %v2851 = vpack.c.bf16 %v2739, %v2735
        %v2852 = vpack.c.bf16 %v2740, %v2736
        %v2853 = vpack.c.bf16 %v2741, %v2737
        %v2854 = vpack.c.bf16 %v2742, %v2738
        %v2855 = vpack.c.bf16 %v2747, %v2743
        %v2856 = vpack.c.bf16 %v2748, %v2744
        %v2857 = vpack.c.bf16 %v2749, %v2745
        %v2858 = vpack.c.bf16 %v2750, %v2746
        %v2859 = vpack.c.bf16 %v2755, %v2751
        %v2860 = vpack.c.bf16 %v2756, %v2752
        %v2861 = vpack.c.bf16 %v2757, %v2753
        %v2862 = vpack.c.bf16 %v2758, %v2754
        %v2863 = vpack.c.bf16 %v2763, %v2759
        %v2864 = vpack.c.bf16 %v2764, %v2760
        %v2865 = vpack.c.bf16 %v2765, %v2761
        %v2866 = vpack.c.bf16 %v2766, %v2762
        %v2867 = vpack.c.bf16 %v2771, %v2767
        %v2868 = vpack.c.bf16 %v2772, %v2768
        %v2869 = vpack.c.bf16 %v2773, %v2769
        %v2870 = vpack.c.bf16 %v2774, %v2770
        %v2871 = vpack.c.bf16 %v2779, %v2775
        %v2872 = vpack.c.bf16 %v2780, %v2776
        %v2873 = vpack.c.bf16 %v2781, %v2777
        %v2874 = vpack.c.bf16 %v2782, %v2778
        %v2875 = vpack.c.bf16 %v2787, %v2783
        %v2876 = vpack.c.bf16 %v2788, %v2784
        %v2877 = vpack.c.bf16 %v2789, %v2785
        %v2878 = vpack.c.bf16 %v2790, %v2786
        %v2879 = vpack.c.bf16 %v2795, %v2791
        %v2880 = vpack.c.bf16 %v2796, %v2792
        %v2881 = vpack.c.bf16 %v2797, %v2793
        %v2882 = vpack.c.bf16 %v2798, %v2794
        %v2883 = vpack.c.bf16 %v2803, %v2799
        %v2884 = vpack.c.bf16 %v2804, %v2800
        %v2885 = vpack.c.bf16 %v2805, %v2801
        %v2886 = vpack.c.bf16 %v2806, %v2802
        %v2887 = vpack.c.bf16 %v2811, %v2807
        %v2888 = vpack.c.bf16 %v2812, %v2808
        %v2889 = vpack.c.bf16 %v2813, %v2809
        %v2890 = vpack.c.bf16 %v2814, %v2810
        %v2891 = vpack.c.bf16 %v2819, %v2815
        %v2892 = vpack.c.bf16 %v2820, %v2816
        %v2893 = vpack.c.bf16 %v2821, %v2817
        %v2894 = vpack.c.bf16 %v2822, %v2818
        %v2895 = vpack.c.bf16 %v2827, %v2823
        %v2896 = vpack.c.bf16 %v2828, %v2824
        %v2897 = vpack.c.bf16 %v2829, %v2825
        %v2898 = vpack.c.bf16 %v2830, %v2826
        %v2899 = vpack.c.bf16 %v2835, %v2831
        %v2900 = vpack.c.bf16 %v2836, %v2832
        %v2901 = vpack.c.bf16 %v2837, %v2833
        %v2902 = vpack.c.bf16 %v2838, %v2834
        %2903 = vset.pattern.permute.xlu0 6
        %2904 = vperm.xlu0 %2903, %v370
        %v2905 = vpop.permute.xlu0 %2904
        %2906 = vset.pattern.permute.xlu0 6
        %2907 = vperm.xlu0 %2906, %v371
        %v2908 = vpop.permute.xlu0 %2907
        %2909 = vset.pattern.permute.xlu0 6
        %2910 = vperm.xlu0 %2909, %v372
        %v2911 = vpop.permute.xlu0 %2910
        %2912 = vset.pattern.permute.xlu0 6
        %2913 = vperm.xlu0 %2912, %v373
        %v2914 = vpop.permute.xlu0 %2913
        %2915 = vset.pattern.permute.xlu0 6
        %2916 = vperm.xlu0 %2915, %v374
        %v2917 = vpop.permute.xlu0 %2916
        %2918 = vset.pattern.permute.xlu0 6
        %2919 = vperm.xlu0 %2918, %v375
        %v2920 = vpop.permute.xlu0 %2919
        %2921 = vset.pattern.permute.xlu0 6
        %2922 = vperm.xlu0 %2921, %v376
        %v2923 = vpop.permute.xlu0 %2922
        %2924 = vset.pattern.permute.xlu0 6
        %2925 = vperm.xlu0 %2924, %v377
        %v2926 = vpop.permute.xlu0 %2925
        %2927 = vset.pattern.permute.xlu0 6
        %2928 = vperm.xlu0 %2927, %v378
        %v2929 = vpop.permute.xlu0 %2928
        %2930 = vset.pattern.permute.xlu0 6
        %2931 = vperm.xlu0 %2930, %v379
        %v2932 = vpop.permute.xlu0 %2931
        %2933 = vset.pattern.permute.xlu0 6
        %2934 = vperm.xlu0 %2933, %v380
        %v2935 = vpop.permute.xlu0 %2934
        %2936 = vset.pattern.permute.xlu0 6
        %2937 = vperm.xlu0 %2936, %v381
        %v2938 = vpop.permute.xlu0 %2937
        %2939 = vset.pattern.permute.xlu0 6
        %2940 = vperm.xlu0 %2939, %v382
        %v2941 = vpop.permute.xlu0 %2940
        %2942 = vset.pattern.permute.xlu0 6
        %2943 = vperm.xlu0 %2942, %v383
        %v2944 = vpop.permute.xlu0 %2943
        %2945 = vset.pattern.permute.xlu0 6
        %2946 = vperm.xlu0 %2945, %v384
        %v2947 = vpop.permute.xlu0 %2946
        %2948 = vset.pattern.permute.xlu0 6
        %2949 = vperm.xlu0 %2948, %v385
        %v2950 = vpop.permute.xlu0 %2949
        %2951 = vset.pattern.permute.xlu0 6
        %2952 = vperm.xlu0 %2951, %v386
        %v2953 = vpop.permute.xlu0 %2952
        %2954 = vset.pattern.permute.xlu0 6
        %2955 = vperm.xlu0 %2954, %v387
        %v2956 = vpop.permute.xlu0 %2955
        %2957 = vset.pattern.permute.xlu0 6
        %2958 = vperm.xlu0 %2957, %v388
        %v2959 = vpop.permute.xlu0 %2958
        %2960 = vset.pattern.permute.xlu0 6
        %2961 = vperm.xlu0 %2960, %v389
        %v2962 = vpop.permute.xlu0 %2961
        %2963 = vset.pattern.permute.xlu0 6
        %2964 = vperm.xlu0 %2963, %v390
        %v2965 = vpop.permute.xlu0 %2964
        %2966 = vset.pattern.permute.xlu0 6
        %2967 = vperm.xlu0 %2966, %v391
        %v2968 = vpop.permute.xlu0 %2967
        %2969 = vset.pattern.permute.xlu0 6
        %2970 = vperm.xlu0 %2969, %v392
        %v2971 = vpop.permute.xlu0 %2970
        %2972 = vset.pattern.permute.xlu0 6
        %2973 = vperm.xlu0 %2972, %v393
        %v2974 = vpop.permute.xlu0 %2973
        %2975 = vset.pattern.permute.xlu0 6
        %2976 = vperm.xlu0 %2975, %v394
        %v2977 = vpop.permute.xlu0 %2976
        %2978 = vset.pattern.permute.xlu0 6
        %2979 = vperm.xlu0 %2978, %v395
        %v2980 = vpop.permute.xlu0 %2979
        %2981 = vset.pattern.permute.xlu0 6
        %2982 = vperm.xlu0 %2981, %v396
        %v2983 = vpop.permute.xlu0 %2982
        %2984 = vset.pattern.permute.xlu0 6
        %2985 = vperm.xlu0 %2984, %v397
        %v2986 = vpop.permute.xlu0 %2985
        %2987 = vset.pattern.permute.xlu0 6
        %2988 = vperm.xlu0 %2987, %v398
        %v2989 = vpop.permute.xlu0 %2988
        %2990 = vset.pattern.permute.xlu0 6
        %2991 = vperm.xlu0 %2990, %v399
        %v2992 = vpop.permute.xlu0 %2991
        %2993 = vset.pattern.permute.xlu0 6
        %2994 = vperm.xlu0 %2993, %v400
        %v2995 = vpop.permute.xlu0 %2994
        %2996 = vset.pattern.permute.xlu0 6
        %2997 = vperm.xlu0 %2996, %v401
        %v2998 = vpop.permute.xlu0 %2997
        %vm2999 = vcmp.eq.s32.totalorder %v2905, %v403
        %vm3000 = vcmp.eq.s32.totalorder %v2905, %v404
        %vm3001 = vcmp.eq.s32.totalorder %v2905, %v405
        %vm3002 = vcmp.eq.s32.totalorder %v2905, %v406
        %vm3003 = vcmp.eq.s32.totalorder %v2908, %v403
        %vm3004 = vcmp.eq.s32.totalorder %v2908, %v404
        %vm3005 = vcmp.eq.s32.totalorder %v2908, %v405
        %vm3006 = vcmp.eq.s32.totalorder %v2908, %v406
        %vm3007 = vcmp.eq.s32.totalorder %v2911, %v403
        %vm3008 = vcmp.eq.s32.totalorder %v2911, %v404
        %vm3009 = vcmp.eq.s32.totalorder %v2911, %v405
        %vm3010 = vcmp.eq.s32.totalorder %v2911, %v406
        %vm3011 = vcmp.eq.s32.totalorder %v2914, %v403
        %vm3012 = vcmp.eq.s32.totalorder %v2914, %v404
        %vm3013 = vcmp.eq.s32.totalorder %v2914, %v405
        %vm3014 = vcmp.eq.s32.totalorder %v2914, %v406
        %vm3015 = vcmp.eq.s32.totalorder %v2917, %v403
        %vm3016 = vcmp.eq.s32.totalorder %v2917, %v404
        %vm3017 = vcmp.eq.s32.totalorder %v2917, %v405
        %vm3018 = vcmp.eq.s32.totalorder %v2917, %v406
        %vm3019 = vcmp.eq.s32.totalorder %v2920, %v403
        %vm3020 = vcmp.eq.s32.totalorder %v2920, %v404
        %vm3021 = vcmp.eq.s32.totalorder %v2920, %v405
        %vm3022 = vcmp.eq.s32.totalorder %v2920, %v406
        %vm3023 = vcmp.eq.s32.totalorder %v2923, %v403
        %vm3024 = vcmp.eq.s32.totalorder %v2923, %v404
        %vm3025 = vcmp.eq.s32.totalorder %v2923, %v405
        %vm3026 = vcmp.eq.s32.totalorder %v2923, %v406
        %vm3027 = vcmp.eq.s32.totalorder %v2926, %v403
        %vm3028 = vcmp.eq.s32.totalorder %v2926, %v404
        %vm3029 = vcmp.eq.s32.totalorder %v2926, %v405
        %vm3030 = vcmp.eq.s32.totalorder %v2926, %v406
        %vm3031 = vcmp.eq.s32.totalorder %v2929, %v403
        %vm3032 = vcmp.eq.s32.totalorder %v2929, %v404
        %vm3033 = vcmp.eq.s32.totalorder %v2929, %v405
        %vm3034 = vcmp.eq.s32.totalorder %v2929, %v406
        %vm3035 = vcmp.eq.s32.totalorder %v2932, %v403
        %vm3036 = vcmp.eq.s32.totalorder %v2932, %v404
        %vm3037 = vcmp.eq.s32.totalorder %v2932, %v405
        %vm3038 = vcmp.eq.s32.totalorder %v2932, %v406
        %vm3039 = vcmp.eq.s32.totalorder %v2935, %v403
        %vm3040 = vcmp.eq.s32.totalorder %v2935, %v404
        %vm3041 = vcmp.eq.s32.totalorder %v2935, %v405
        %vm3042 = vcmp.eq.s32.totalorder %v2935, %v406
        %vm3043 = vcmp.eq.s32.totalorder %v2938, %v403
        %vm3044 = vcmp.eq.s32.totalorder %v2938, %v404
        %vm3045 = vcmp.eq.s32.totalorder %v2938, %v405
        %vm3046 = vcmp.eq.s32.totalorder %v2938, %v406
        %vm3047 = vcmp.eq.s32.totalorder %v2941, %v403
        %vm3048 = vcmp.eq.s32.totalorder %v2941, %v404
        %vm3049 = vcmp.eq.s32.totalorder %v2941, %v405
        %vm3050 = vcmp.eq.s32.totalorder %v2941, %v406
        %vm3051 = vcmp.eq.s32.totalorder %v2944, %v403
        %vm3052 = vcmp.eq.s32.totalorder %v2944, %v404
        %vm3053 = vcmp.eq.s32.totalorder %v2944, %v405
        %vm3054 = vcmp.eq.s32.totalorder %v2944, %v406
        %vm3055 = vcmp.eq.s32.totalorder %v2947, %v403
        %vm3056 = vcmp.eq.s32.totalorder %v2947, %v404
        %vm3057 = vcmp.eq.s32.totalorder %v2947, %v405
        %vm3058 = vcmp.eq.s32.totalorder %v2947, %v406
        %vm3059 = vcmp.eq.s32.totalorder %v2950, %v403
        %vm3060 = vcmp.eq.s32.totalorder %v2950, %v404
        %vm3061 = vcmp.eq.s32.totalorder %v2950, %v405
        %vm3062 = vcmp.eq.s32.totalorder %v2950, %v406
        %vm3063 = vcmp.eq.s32.totalorder %v2953, %v403
        %vm3064 = vcmp.eq.s32.totalorder %v2953, %v404
        %vm3065 = vcmp.eq.s32.totalorder %v2953, %v405
        %vm3066 = vcmp.eq.s32.totalorder %v2953, %v406
        %vm3067 = vcmp.eq.s32.totalorder %v2956, %v403
        %vm3068 = vcmp.eq.s32.totalorder %v2956, %v404
        %vm3069 = vcmp.eq.s32.totalorder %v2956, %v405
        %vm3070 = vcmp.eq.s32.totalorder %v2956, %v406
        %vm3071 = vcmp.eq.s32.totalorder %v2959, %v403
        %vm3072 = vcmp.eq.s32.totalorder %v2959, %v404
        %vm3073 = vcmp.eq.s32.totalorder %v2959, %v405
        %vm3074 = vcmp.eq.s32.totalorder %v2959, %v406
        %vm3075 = vcmp.eq.s32.totalorder %v2962, %v403
        %vm3076 = vcmp.eq.s32.totalorder %v2962, %v404
        %vm3077 = vcmp.eq.s32.totalorder %v2962, %v405
        %vm3078 = vcmp.eq.s32.totalorder %v2962, %v406
        %vm3079 = vcmp.eq.s32.totalorder %v2965, %v403
        %vm3080 = vcmp.eq.s32.totalorder %v2965, %v404
        %vm3081 = vcmp.eq.s32.totalorder %v2965, %v405
        %vm3082 = vcmp.eq.s32.totalorder %v2965, %v406
        %vm3083 = vcmp.eq.s32.totalorder %v2968, %v403
        %vm3084 = vcmp.eq.s32.totalorder %v2968, %v404
        %vm3085 = vcmp.eq.s32.totalorder %v2968, %v405
        %vm3086 = vcmp.eq.s32.totalorder %v2968, %v406
        %vm3087 = vcmp.eq.s32.totalorder %v2971, %v403
        %vm3088 = vcmp.eq.s32.totalorder %v2971, %v404
        %vm3089 = vcmp.eq.s32.totalorder %v2971, %v405
        %vm3090 = vcmp.eq.s32.totalorder %v2971, %v406
        %vm3091 = vcmp.eq.s32.totalorder %v2974, %v403
        %vm3092 = vcmp.eq.s32.totalorder %v2974, %v404
        %vm3093 = vcmp.eq.s32.totalorder %v2974, %v405
        %vm3094 = vcmp.eq.s32.totalorder %v2974, %v406
        %vm3095 = vcmp.eq.s32.totalorder %v2977, %v403
        %vm3096 = vcmp.eq.s32.totalorder %v2977, %v404
        %vm3097 = vcmp.eq.s32.totalorder %v2977, %v405
        %vm3098 = vcmp.eq.s32.totalorder %v2977, %v406
        %vm3099 = vcmp.eq.s32.totalorder %v2980, %v403
        %vm3100 = vcmp.eq.s32.totalorder %v2980, %v404
        %vm3101 = vcmp.eq.s32.totalorder %v2980, %v405
        %vm3102 = vcmp.eq.s32.totalorder %v2980, %v406
        %vm3103 = vcmp.eq.s32.totalorder %v2983, %v403
        %vm3104 = vcmp.eq.s32.totalorder %v2983, %v404
        %vm3105 = vcmp.eq.s32.totalorder %v2983, %v405
        %vm3106 = vcmp.eq.s32.totalorder %v2983, %v406
        %vm3107 = vcmp.eq.s32.totalorder %v2986, %v403
        %vm3108 = vcmp.eq.s32.totalorder %v2986, %v404
        %vm3109 = vcmp.eq.s32.totalorder %v2986, %v405
        %vm3110 = vcmp.eq.s32.totalorder %v2986, %v406
        %vm3111 = vcmp.eq.s32.totalorder %v2989, %v403
        %vm3112 = vcmp.eq.s32.totalorder %v2989, %v404
        %vm3113 = vcmp.eq.s32.totalorder %v2989, %v405
        %vm3114 = vcmp.eq.s32.totalorder %v2989, %v406
        %vm3115 = vcmp.eq.s32.totalorder %v2992, %v403
        %vm3116 = vcmp.eq.s32.totalorder %v2992, %v404
        %vm3117 = vcmp.eq.s32.totalorder %v2992, %v405
        %vm3118 = vcmp.eq.s32.totalorder %v2992, %v406
        %vm3119 = vcmp.eq.s32.totalorder %v2995, %v403
        %vm3120 = vcmp.eq.s32.totalorder %v2995, %v404
        %vm3121 = vcmp.eq.s32.totalorder %v2995, %v405
        %vm3122 = vcmp.eq.s32.totalorder %v2995, %v406
        %vm3123 = vcmp.eq.s32.totalorder %v2998, %v403
        %vm3124 = vcmp.eq.s32.totalorder %v2998, %v404
        %vm3125 = vcmp.eq.s32.totalorder %v2998, %v405
        %vm3126 = vcmp.eq.s32.totalorder %v2998, %v406
        %v3127 = vsel %vm2999, 1.0, 0.0
        %v3128 = vsel %vm3000, 1.0, 0.0
        %v3129 = vsel %vm3001, 1.0, 0.0
        %v3130 = vsel %vm3002, 1.0, 0.0
        %v3131 = vsel %vm3003, 1.0, 0.0
        %v3132 = vsel %vm3004, 1.0, 0.0
        %v3133 = vsel %vm3005, 1.0, 0.0
        %v3134 = vsel %vm3006, 1.0, 0.0
        %v3135 = vsel %vm3007, 1.0, 0.0
        %v3136 = vsel %vm3008, 1.0, 0.0
        %v3137 = vsel %vm3009, 1.0, 0.0
        %v3138 = vsel %vm3010, 1.0, 0.0
        %v3139 = vsel %vm3011, 1.0, 0.0
        %v3140 = vsel %vm3012, 1.0, 0.0
        %v3141 = vsel %vm3013, 1.0, 0.0
        %v3142 = vsel %vm3014, 1.0, 0.0
        %v3143 = vsel %vm3015, 1.0, 0.0
        %v3144 = vsel %vm3016, 1.0, 0.0
        %v3145 = vsel %vm3017, 1.0, 0.0
        %v3146 = vsel %vm3018, 1.0, 0.0
        %v3147 = vsel %vm3019, 1.0, 0.0
        %v3148 = vsel %vm3020, 1.0, 0.0
        %v3149 = vsel %vm3021, 1.0, 0.0
        %v3150 = vsel %vm3022, 1.0, 0.0
        %v3151 = vsel %vm3023, 1.0, 0.0
        %v3152 = vsel %vm3024, 1.0, 0.0
        %v3153 = vsel %vm3025, 1.0, 0.0
        %v3154 = vsel %vm3026, 1.0, 0.0
        %v3155 = vsel %vm3027, 1.0, 0.0
        %v3156 = vsel %vm3028, 1.0, 0.0
        %v3157 = vsel %vm3029, 1.0, 0.0
        %v3158 = vsel %vm3030, 1.0, 0.0
        %v3159 = vsel %vm3031, 1.0, 0.0
        %v3160 = vsel %vm3032, 1.0, 0.0
        %v3161 = vsel %vm3033, 1.0, 0.0
        %v3162 = vsel %vm3034, 1.0, 0.0
        %v3163 = vsel %vm3035, 1.0, 0.0
        %v3164 = vsel %vm3036, 1.0, 0.0
        %v3165 = vsel %vm3037, 1.0, 0.0
        %v3166 = vsel %vm3038, 1.0, 0.0
        %v3167 = vsel %vm3039, 1.0, 0.0
        %v3168 = vsel %vm3040, 1.0, 0.0
        %v3169 = vsel %vm3041, 1.0, 0.0
        %v3170 = vsel %vm3042, 1.0, 0.0
        %v3171 = vsel %vm3043, 1.0, 0.0
        %v3172 = vsel %vm3044, 1.0, 0.0
        %v3173 = vsel %vm3045, 1.0, 0.0
        %v3174 = vsel %vm3046, 1.0, 0.0
        %v3175 = vsel %vm3047, 1.0, 0.0
        %v3176 = vsel %vm3048, 1.0, 0.0
        %v3177 = vsel %vm3049, 1.0, 0.0
        %v3178 = vsel %vm3050, 1.0, 0.0
        %v3179 = vsel %vm3051, 1.0, 0.0
        %v3180 = vsel %vm3052, 1.0, 0.0
        %v3181 = vsel %vm3053, 1.0, 0.0
        %v3182 = vsel %vm3054, 1.0, 0.0
        %v3183 = vsel %vm3055, 1.0, 0.0
        %v3184 = vsel %vm3056, 1.0, 0.0
        %v3185 = vsel %vm3057, 1.0, 0.0
        %v3186 = vsel %vm3058, 1.0, 0.0
        %v3187 = vsel %vm3059, 1.0, 0.0
        %v3188 = vsel %vm3060, 1.0, 0.0
        %v3189 = vsel %vm3061, 1.0, 0.0
        %v3190 = vsel %vm3062, 1.0, 0.0
        %v3191 = vsel %vm3063, 1.0, 0.0
        %v3192 = vsel %vm3064, 1.0, 0.0
        %v3193 = vsel %vm3065, 1.0, 0.0
        %v3194 = vsel %vm3066, 1.0, 0.0
        %v3195 = vsel %vm3067, 1.0, 0.0
        %v3196 = vsel %vm3068, 1.0, 0.0
        %v3197 = vsel %vm3069, 1.0, 0.0
        %v3198 = vsel %vm3070, 1.0, 0.0
        %v3199 = vsel %vm3071, 1.0, 0.0
        %v3200 = vsel %vm3072, 1.0, 0.0
        %v3201 = vsel %vm3073, 1.0, 0.0
        %v3202 = vsel %vm3074, 1.0, 0.0
        %v3203 = vsel %vm3075, 1.0, 0.0
        %v3204 = vsel %vm3076, 1.0, 0.0
        %v3205 = vsel %vm3077, 1.0, 0.0
        %v3206 = vsel %vm3078, 1.0, 0.0
        %v3207 = vsel %vm3079, 1.0, 0.0
        %v3208 = vsel %vm3080, 1.0, 0.0
        %v3209 = vsel %vm3081, 1.0, 0.0
        %v3210 = vsel %vm3082, 1.0, 0.0
        %v3211 = vsel %vm3083, 1.0, 0.0
        %v3212 = vsel %vm3084, 1.0, 0.0
        %v3213 = vsel %vm3085, 1.0, 0.0
        %v3214 = vsel %vm3086, 1.0, 0.0
        %v3215 = vsel %vm3087, 1.0, 0.0
        %v3216 = vsel %vm3088, 1.0, 0.0
        %v3217 = vsel %vm3089, 1.0, 0.0
        %v3218 = vsel %vm3090, 1.0, 0.0
        %v3219 = vsel %vm3091, 1.0, 0.0
        %v3220 = vsel %vm3092, 1.0, 0.0
        %v3221 = vsel %vm3093, 1.0, 0.0
        %v3222 = vsel %vm3094, 1.0, 0.0
        %v3223 = vsel %vm3095, 1.0, 0.0
        %v3224 = vsel %vm3096, 1.0, 0.0
        %v3225 = vsel %vm3097, 1.0, 0.0
        %v3226 = vsel %vm3098, 1.0, 0.0
        %v3227 = vsel %vm3099, 1.0, 0.0
        %v3228 = vsel %vm3100, 1.0, 0.0
        %v3229 = vsel %vm3101, 1.0, 0.0
        %v3230 = vsel %vm3102, 1.0, 0.0
        %v3231 = vsel %vm3103, 1.0, 0.0
        %v3232 = vsel %vm3104, 1.0, 0.0
        %v3233 = vsel %vm3105, 1.0, 0.0
        %v3234 = vsel %vm3106, 1.0, 0.0
        %v3235 = vsel %vm3107, 1.0, 0.0
        %v3236 = vsel %vm3108, 1.0, 0.0
        %v3237 = vsel %vm3109, 1.0, 0.0
        %v3238 = vsel %vm3110, 1.0, 0.0
        %v3239 = vsel %vm3111, 1.0, 0.0
        %v3240 = vsel %vm3112, 1.0, 0.0
        %v3241 = vsel %vm3113, 1.0, 0.0
        %v3242 = vsel %vm3114, 1.0, 0.0
        %v3243 = vsel %vm3115, 1.0, 0.0
        %v3244 = vsel %vm3116, 1.0, 0.0
        %v3245 = vsel %vm3117, 1.0, 0.0
        %v3246 = vsel %vm3118, 1.0, 0.0
        %v3247 = vsel %vm3119, 1.0, 0.0
        %v3248 = vsel %vm3120, 1.0, 0.0
        %v3249 = vsel %vm3121, 1.0, 0.0
        %v3250 = vsel %vm3122, 1.0, 0.0
        %v3251 = vsel %vm3123, 1.0, 0.0
        %v3252 = vsel %vm3124, 1.0, 0.0
        %v3253 = vsel %vm3125, 1.0, 0.0
        %v3254 = vsel %vm3126, 1.0, 0.0
        %v3255 = vpack.c.bf16 %v3131, %v3127
        %v3256 = vpack.c.bf16 %v3132, %v3128
        %v3257 = vpack.c.bf16 %v3133, %v3129
        %v3258 = vpack.c.bf16 %v3134, %v3130
        %v3259 = vpack.c.bf16 %v3139, %v3135
        %v3260 = vpack.c.bf16 %v3140, %v3136
        %v3261 = vpack.c.bf16 %v3141, %v3137
        %v3262 = vpack.c.bf16 %v3142, %v3138
        %v3263 = vpack.c.bf16 %v3147, %v3143
        %v3264 = vpack.c.bf16 %v3148, %v3144
        %v3265 = vpack.c.bf16 %v3149, %v3145
        %v3266 = vpack.c.bf16 %v3150, %v3146
        %v3267 = vpack.c.bf16 %v3155, %v3151
        %v3268 = vpack.c.bf16 %v3156, %v3152
        %v3269 = vpack.c.bf16 %v3157, %v3153
        %v3270 = vpack.c.bf16 %v3158, %v3154
        %v3271 = vpack.c.bf16 %v3163, %v3159
        %v3272 = vpack.c.bf16 %v3164, %v3160
        %v3273 = vpack.c.bf16 %v3165, %v3161
        %v3274 = vpack.c.bf16 %v3166, %v3162
        %v3275 = vpack.c.bf16 %v3171, %v3167
        %v3276 = vpack.c.bf16 %v3172, %v3168
        %v3277 = vpack.c.bf16 %v3173, %v3169
        %v3278 = vpack.c.bf16 %v3174, %v3170
        %v3279 = vpack.c.bf16 %v3179, %v3175
        %v3280 = vpack.c.bf16 %v3180, %v3176
        %v3281 = vpack.c.bf16 %v3181, %v3177
        %v3282 = vpack.c.bf16 %v3182, %v3178
        %v3283 = vpack.c.bf16 %v3187, %v3183
        %v3284 = vpack.c.bf16 %v3188, %v3184
        %v3285 = vpack.c.bf16 %v3189, %v3185
        %v3286 = vpack.c.bf16 %v3190, %v3186
        %v3287 = vpack.c.bf16 %v3195, %v3191
        %v3288 = vpack.c.bf16 %v3196, %v3192
        %v3289 = vpack.c.bf16 %v3197, %v3193
        %v3290 = vpack.c.bf16 %v3198, %v3194
        %v3291 = vpack.c.bf16 %v3203, %v3199
        %v3292 = vpack.c.bf16 %v3204, %v3200
        %v3293 = vpack.c.bf16 %v3205, %v3201
        %v3294 = vpack.c.bf16 %v3206, %v3202
        %v3295 = vpack.c.bf16 %v3211, %v3207
        %v3296 = vpack.c.bf16 %v3212, %v3208
        %v3297 = vpack.c.bf16 %v3213, %v3209
        %v3298 = vpack.c.bf16 %v3214, %v3210
        %v3299 = vpack.c.bf16 %v3219, %v3215
        %v3300 = vpack.c.bf16 %v3220, %v3216
        %v3301 = vpack.c.bf16 %v3221, %v3217
        %v3302 = vpack.c.bf16 %v3222, %v3218
        %v3303 = vpack.c.bf16 %v3227, %v3223
        %v3304 = vpack.c.bf16 %v3228, %v3224
        %v3305 = vpack.c.bf16 %v3229, %v3225
        %v3306 = vpack.c.bf16 %v3230, %v3226
        %v3307 = vpack.c.bf16 %v3235, %v3231
        %v3308 = vpack.c.bf16 %v3236, %v3232
        %v3309 = vpack.c.bf16 %v3237, %v3233
        %v3310 = vpack.c.bf16 %v3238, %v3234
        %v3311 = vpack.c.bf16 %v3243, %v3239
        %v3312 = vpack.c.bf16 %v3244, %v3240
        %v3313 = vpack.c.bf16 %v3245, %v3241
        %v3314 = vpack.c.bf16 %v3246, %v3242
        %v3315 = vpack.c.bf16 %v3251, %v3247
        %v3316 = vpack.c.bf16 %v3252, %v3248
        %v3317 = vpack.c.bf16 %v3253, %v3249
        %v3318 = vpack.c.bf16 %v3254, %v3250
        %3319 = vset.pattern.permute.xlu0 7
        %3320 = vperm.xlu0 %3319, %v370
        %v3321 = vpop.permute.xlu0 %3320
        %3322 = vset.pattern.permute.xlu0 7
        %3323 = vperm.xlu0 %3322, %v371
        %v3324 = vpop.permute.xlu0 %3323
        %3325 = vset.pattern.permute.xlu0 7
        %3326 = vperm.xlu0 %3325, %v372
        %v3327 = vpop.permute.xlu0 %3326
        %3328 = vset.pattern.permute.xlu0 7
        %3329 = vperm.xlu0 %3328, %v373
        %v3330 = vpop.permute.xlu0 %3329
        %3331 = vset.pattern.permute.xlu0 7
        %3332 = vperm.xlu0 %3331, %v374
        %v3333 = vpop.permute.xlu0 %3332
        %3334 = vset.pattern.permute.xlu0 7
        %3335 = vperm.xlu0 %3334, %v375
        %v3336 = vpop.permute.xlu0 %3335
        %3337 = vset.pattern.permute.xlu0 7
        %3338 = vperm.xlu0 %3337, %v376
        %v3339 = vpop.permute.xlu0 %3338
        %3340 = vset.pattern.permute.xlu0 7
        %3341 = vperm.xlu0 %3340, %v377
        %v3342 = vpop.permute.xlu0 %3341
        %3343 = vset.pattern.permute.xlu0 7
        %3344 = vperm.xlu0 %3343, %v378
        %v3345 = vpop.permute.xlu0 %3344
        %3346 = vset.pattern.permute.xlu0 7
        %3347 = vperm.xlu0 %3346, %v379
        %v3348 = vpop.permute.xlu0 %3347
        %3349 = vset.pattern.permute.xlu0 7
        %3350 = vperm.xlu0 %3349, %v380
        %v3351 = vpop.permute.xlu0 %3350
        %3352 = vset.pattern.permute.xlu0 7
        %3353 = vperm.xlu0 %3352, %v381
        %v3354 = vpop.permute.xlu0 %3353
        %3355 = vset.pattern.permute.xlu0 7
        %3356 = vperm.xlu0 %3355, %v382
        %v3357 = vpop.permute.xlu0 %3356
        %3358 = vset.pattern.permute.xlu0 7
        %3359 = vperm.xlu0 %3358, %v383
        %v3360 = vpop.permute.xlu0 %3359
        %3361 = vset.pattern.permute.xlu0 7
        %3362 = vperm.xlu0 %3361, %v384
        %v3363 = vpop.permute.xlu0 %3362
        %3364 = vset.pattern.permute.xlu0 7
        %3365 = vperm.xlu0 %3364, %v385
        %v3366 = vpop.permute.xlu0 %3365
        %3367 = vset.pattern.permute.xlu0 7
        %3368 = vperm.xlu0 %3367, %v386
        %v3369 = vpop.permute.xlu0 %3368
        %3370 = vset.pattern.permute.xlu0 7
        %3371 = vperm.xlu0 %3370, %v387
        %v3372 = vpop.permute.xlu0 %3371
        %3373 = vset.pattern.permute.xlu0 7
        %3374 = vperm.xlu0 %3373, %v388
        %v3375 = vpop.permute.xlu0 %3374
        %3376 = vset.pattern.permute.xlu0 7
        %3377 = vperm.xlu0 %3376, %v389
        %v3378 = vpop.permute.xlu0 %3377
        %3379 = vset.pattern.permute.xlu0 7
        %3380 = vperm.xlu0 %3379, %v390
        %v3381 = vpop.permute.xlu0 %3380
        %3382 = vset.pattern.permute.xlu0 7
        %3383 = vperm.xlu0 %3382, %v391
        %v3384 = vpop.permute.xlu0 %3383
        %3385 = vset.pattern.permute.xlu0 7
        %3386 = vperm.xlu0 %3385, %v392
        %v3387 = vpop.permute.xlu0 %3386
        %3388 = vset.pattern.permute.xlu0 7
        %3389 = vperm.xlu0 %3388, %v393
        %v3390 = vpop.permute.xlu0 %3389
        %3391 = vset.pattern.permute.xlu0 7
        %3392 = vperm.xlu0 %3391, %v394
        %v3393 = vpop.permute.xlu0 %3392
        %3394 = vset.pattern.permute.xlu0 7
        %3395 = vperm.xlu0 %3394, %v395
        %v3396 = vpop.permute.xlu0 %3395
        %3397 = vset.pattern.permute.xlu0 7
        %3398 = vperm.xlu0 %3397, %v396
        %v3399 = vpop.permute.xlu0 %3398
        %3400 = vset.pattern.permute.xlu0 7
        %3401 = vperm.xlu0 %3400, %v397
        %v3402 = vpop.permute.xlu0 %3401
        %3403 = vset.pattern.permute.xlu0 7
        %3404 = vperm.xlu0 %3403, %v398
        %v3405 = vpop.permute.xlu0 %3404
        %3406 = vset.pattern.permute.xlu0 7
        %3407 = vperm.xlu0 %3406, %v399
        %v3408 = vpop.permute.xlu0 %3407
        %3409 = vset.pattern.permute.xlu0 7
        %3410 = vperm.xlu0 %3409, %v400
        %v3411 = vpop.permute.xlu0 %3410
        %3412 = vset.pattern.permute.xlu0 7
        %3413 = vperm.xlu0 %3412, %v401
        %v3414 = vpop.permute.xlu0 %3413
        %vm3415 = vcmp.eq.s32.totalorder %v3321, %v403
        %vm3416 = vcmp.eq.s32.totalorder %v3321, %v404
        %vm3417 = vcmp.eq.s32.totalorder %v3321, %v405
        %vm3418 = vcmp.eq.s32.totalorder %v3321, %v406
        %vm3419 = vcmp.eq.s32.totalorder %v3324, %v403
        %vm3420 = vcmp.eq.s32.totalorder %v3324, %v404
        %vm3421 = vcmp.eq.s32.totalorder %v3324, %v405
        %vm3422 = vcmp.eq.s32.totalorder %v3324, %v406
        %vm3423 = vcmp.eq.s32.totalorder %v3327, %v403
        %vm3424 = vcmp.eq.s32.totalorder %v3327, %v404
        %vm3425 = vcmp.eq.s32.totalorder %v3327, %v405
        %vm3426 = vcmp.eq.s32.totalorder %v3327, %v406
        %vm3427 = vcmp.eq.s32.totalorder %v3330, %v403
        %vm3428 = vcmp.eq.s32.totalorder %v3330, %v404
        %vm3429 = vcmp.eq.s32.totalorder %v3330, %v405
        %vm3430 = vcmp.eq.s32.totalorder %v3330, %v406
        %vm3431 = vcmp.eq.s32.totalorder %v3333, %v403
        %vm3432 = vcmp.eq.s32.totalorder %v3333, %v404
        %vm3433 = vcmp.eq.s32.totalorder %v3333, %v405
        %vm3434 = vcmp.eq.s32.totalorder %v3333, %v406
        %vm3435 = vcmp.eq.s32.totalorder %v3336, %v403
        %vm3436 = vcmp.eq.s32.totalorder %v3336, %v404
        %vm3437 = vcmp.eq.s32.totalorder %v3336, %v405
        %vm3438 = vcmp.eq.s32.totalorder %v3336, %v406
        %vm3439 = vcmp.eq.s32.totalorder %v3339, %v403
        %vm3440 = vcmp.eq.s32.totalorder %v3339, %v404
        %vm3441 = vcmp.eq.s32.totalorder %v3339, %v405
        %vm3442 = vcmp.eq.s32.totalorder %v3339, %v406
        %vm3443 = vcmp.eq.s32.totalorder %v3342, %v403
        %vm3444 = vcmp.eq.s32.totalorder %v3342, %v404
        %vm3445 = vcmp.eq.s32.totalorder %v3342, %v405
        %vm3446 = vcmp.eq.s32.totalorder %v3342, %v406
        %vm3447 = vcmp.eq.s32.totalorder %v3345, %v403
        %vm3448 = vcmp.eq.s32.totalorder %v3345, %v404
        %vm3449 = vcmp.eq.s32.totalorder %v3345, %v405
        %vm3450 = vcmp.eq.s32.totalorder %v3345, %v406
        %vm3451 = vcmp.eq.s32.totalorder %v3348, %v403
        %vm3452 = vcmp.eq.s32.totalorder %v3348, %v404
        %vm3453 = vcmp.eq.s32.totalorder %v3348, %v405
        %vm3454 = vcmp.eq.s32.totalorder %v3348, %v406
        %vm3455 = vcmp.eq.s32.totalorder %v3351, %v403
        %vm3456 = vcmp.eq.s32.totalorder %v3351, %v404
        %vm3457 = vcmp.eq.s32.totalorder %v3351, %v405
        %vm3458 = vcmp.eq.s32.totalorder %v3351, %v406
        %vm3459 = vcmp.eq.s32.totalorder %v3354, %v403
        %vm3460 = vcmp.eq.s32.totalorder %v3354, %v404
        %vm3461 = vcmp.eq.s32.totalorder %v3354, %v405
        %vm3462 = vcmp.eq.s32.totalorder %v3354, %v406
        %vm3463 = vcmp.eq.s32.totalorder %v3357, %v403
        %vm3464 = vcmp.eq.s32.totalorder %v3357, %v404
        %vm3465 = vcmp.eq.s32.totalorder %v3357, %v405
        %vm3466 = vcmp.eq.s32.totalorder %v3357, %v406
        %vm3467 = vcmp.eq.s32.totalorder %v3360, %v403
        %vm3468 = vcmp.eq.s32.totalorder %v3360, %v404
        %vm3469 = vcmp.eq.s32.totalorder %v3360, %v405
        %vm3470 = vcmp.eq.s32.totalorder %v3360, %v406
        %vm3471 = vcmp.eq.s32.totalorder %v3363, %v403
        %vm3472 = vcmp.eq.s32.totalorder %v3363, %v404
        %vm3473 = vcmp.eq.s32.totalorder %v3363, %v405
        %vm3474 = vcmp.eq.s32.totalorder %v3363, %v406
        %vm3475 = vcmp.eq.s32.totalorder %v3366, %v403
        %vm3476 = vcmp.eq.s32.totalorder %v3366, %v404
        %vm3477 = vcmp.eq.s32.totalorder %v3366, %v405
        %vm3478 = vcmp.eq.s32.totalorder %v3366, %v406
        %vm3479 = vcmp.eq.s32.totalorder %v3369, %v403
        %vm3480 = vcmp.eq.s32.totalorder %v3369, %v404
        %vm3481 = vcmp.eq.s32.totalorder %v3369, %v405
        %vm3482 = vcmp.eq.s32.totalorder %v3369, %v406
        %vm3483 = vcmp.eq.s32.totalorder %v3372, %v403
        %vm3484 = vcmp.eq.s32.totalorder %v3372, %v404
        %vm3485 = vcmp.eq.s32.totalorder %v3372, %v405
        %vm3486 = vcmp.eq.s32.totalorder %v3372, %v406
        %vm3487 = vcmp.eq.s32.totalorder %v3375, %v403
        %vm3488 = vcmp.eq.s32.totalorder %v3375, %v404
        %vm3489 = vcmp.eq.s32.totalorder %v3375, %v405
        %vm3490 = vcmp.eq.s32.totalorder %v3375, %v406
        %vm3491 = vcmp.eq.s32.totalorder %v3378, %v403
        %vm3492 = vcmp.eq.s32.totalorder %v3378, %v404
        %vm3493 = vcmp.eq.s32.totalorder %v3378, %v405
        %vm3494 = vcmp.eq.s32.totalorder %v3378, %v406
        %vm3495 = vcmp.eq.s32.totalorder %v3381, %v403
        %vm3496 = vcmp.eq.s32.totalorder %v3381, %v404
        %vm3497 = vcmp.eq.s32.totalorder %v3381, %v405
        %vm3498 = vcmp.eq.s32.totalorder %v3381, %v406
        %vm3499 = vcmp.eq.s32.totalorder %v3384, %v403
        %vm3500 = vcmp.eq.s32.totalorder %v3384, %v404
        %vm3501 = vcmp.eq.s32.totalorder %v3384, %v405
        %vm3502 = vcmp.eq.s32.totalorder %v3384, %v406
        %vm3503 = vcmp.eq.s32.totalorder %v3387, %v403
        %vm3504 = vcmp.eq.s32.totalorder %v3387, %v404
        %vm3505 = vcmp.eq.s32.totalorder %v3387, %v405
        %vm3506 = vcmp.eq.s32.totalorder %v3387, %v406
        %vm3507 = vcmp.eq.s32.totalorder %v3390, %v403
        %vm3508 = vcmp.eq.s32.totalorder %v3390, %v404
        %vm3509 = vcmp.eq.s32.totalorder %v3390, %v405
        %vm3510 = vcmp.eq.s32.totalorder %v3390, %v406
        %vm3511 = vcmp.eq.s32.totalorder %v3393, %v403
        %vm3512 = vcmp.eq.s32.totalorder %v3393, %v404
        %vm3513 = vcmp.eq.s32.totalorder %v3393, %v405
        %vm3514 = vcmp.eq.s32.totalorder %v3393, %v406
        %vm3515 = vcmp.eq.s32.totalorder %v3396, %v403
        %vm3516 = vcmp.eq.s32.totalorder %v3396, %v404
        %vm3517 = vcmp.eq.s32.totalorder %v3396, %v405
        %vm3518 = vcmp.eq.s32.totalorder %v3396, %v406
        %vm3519 = vcmp.eq.s32.totalorder %v3399, %v403
        %vm3520 = vcmp.eq.s32.totalorder %v3399, %v404
        %vm3521 = vcmp.eq.s32.totalorder %v3399, %v405
        %vm3522 = vcmp.eq.s32.totalorder %v3399, %v406
        %vm3523 = vcmp.eq.s32.totalorder %v3402, %v403
        %vm3524 = vcmp.eq.s32.totalorder %v3402, %v404
        %vm3525 = vcmp.eq.s32.totalorder %v3402, %v405
        %vm3526 = vcmp.eq.s32.totalorder %v3402, %v406
        %vm3527 = vcmp.eq.s32.totalorder %v3405, %v403
        %vm3528 = vcmp.eq.s32.totalorder %v3405, %v404
        %vm3529 = vcmp.eq.s32.totalorder %v3405, %v405
        %vm3530 = vcmp.eq.s32.totalorder %v3405, %v406
        %vm3531 = vcmp.eq.s32.totalorder %v3408, %v403
        %vm3532 = vcmp.eq.s32.totalorder %v3408, %v404
        %vm3533 = vcmp.eq.s32.totalorder %v3408, %v405
        %vm3534 = vcmp.eq.s32.totalorder %v3408, %v406
        %vm3535 = vcmp.eq.s32.totalorder %v3411, %v403
        %vm3536 = vcmp.eq.s32.totalorder %v3411, %v404
        %vm3537 = vcmp.eq.s32.totalorder %v3411, %v405
        %vm3538 = vcmp.eq.s32.totalorder %v3411, %v406
        %vm3539 = vcmp.eq.s32.totalorder %v3414, %v403
        %vm3540 = vcmp.eq.s32.totalorder %v3414, %v404
        %vm3541 = vcmp.eq.s32.totalorder %v3414, %v405
        %vm3542 = vcmp.eq.s32.totalorder %v3414, %v406
        %v3543 = vsel %vm3415, 1.0, 0.0
        %v3544 = vsel %vm3416, 1.0, 0.0
        %v3545 = vsel %vm3417, 1.0, 0.0
        %v3546 = vsel %vm3418, 1.0, 0.0
        %v3547 = vsel %vm3419, 1.0, 0.0
        %v3548 = vsel %vm3420, 1.0, 0.0
        %v3549 = vsel %vm3421, 1.0, 0.0
        %v3550 = vsel %vm3422, 1.0, 0.0
        %v3551 = vsel %vm3423, 1.0, 0.0
        %v3552 = vsel %vm3424, 1.0, 0.0
        %v3553 = vsel %vm3425, 1.0, 0.0
        %v3554 = vsel %vm3426, 1.0, 0.0
        %v3555 = vsel %vm3427, 1.0, 0.0
        %v3556 = vsel %vm3428, 1.0, 0.0
        %v3557 = vsel %vm3429, 1.0, 0.0
        %v3558 = vsel %vm3430, 1.0, 0.0
        %v3559 = vsel %vm3431, 1.0, 0.0
        %v3560 = vsel %vm3432, 1.0, 0.0
        %v3561 = vsel %vm3433, 1.0, 0.0
        %v3562 = vsel %vm3434, 1.0, 0.0
        %v3563 = vsel %vm3435, 1.0, 0.0
        %v3564 = vsel %vm3436, 1.0, 0.0
        %v3565 = vsel %vm3437, 1.0, 0.0
        %v3566 = vsel %vm3438, 1.0, 0.0
        %v3567 = vsel %vm3439, 1.0, 0.0
        %v3568 = vsel %vm3440, 1.0, 0.0
        %v3569 = vsel %vm3441, 1.0, 0.0
        %v3570 = vsel %vm3442, 1.0, 0.0
        %v3571 = vsel %vm3443, 1.0, 0.0
        %v3572 = vsel %vm3444, 1.0, 0.0
        %v3573 = vsel %vm3445, 1.0, 0.0
        %v3574 = vsel %vm3446, 1.0, 0.0
        %v3575 = vsel %vm3447, 1.0, 0.0
        %v3576 = vsel %vm3448, 1.0, 0.0
        %v3577 = vsel %vm3449, 1.0, 0.0
        %v3578 = vsel %vm3450, 1.0, 0.0
        %v3579 = vsel %vm3451, 1.0, 0.0
        %v3580 = vsel %vm3452, 1.0, 0.0
        %v3581 = vsel %vm3453, 1.0, 0.0
        %v3582 = vsel %vm3454, 1.0, 0.0
        %v3583 = vsel %vm3455, 1.0, 0.0
        %v3584 = vsel %vm3456, 1.0, 0.0
        %v3585 = vsel %vm3457, 1.0, 0.0
        %v3586 = vsel %vm3458, 1.0, 0.0
        %v3587 = vsel %vm3459, 1.0, 0.0
        %v3588 = vsel %vm3460, 1.0, 0.0
        %v3589 = vsel %vm3461, 1.0, 0.0
        %v3590 = vsel %vm3462, 1.0, 0.0
        %v3591 = vsel %vm3463, 1.0, 0.0
        %v3592 = vsel %vm3464, 1.0, 0.0
        %v3593 = vsel %vm3465, 1.0, 0.0
        %v3594 = vsel %vm3466, 1.0, 0.0
        %v3595 = vsel %vm3467, 1.0, 0.0
        %v3596 = vsel %vm3468, 1.0, 0.0
        %v3597 = vsel %vm3469, 1.0, 0.0
        %v3598 = vsel %vm3470, 1.0, 0.0
        %v3599 = vsel %vm3471, 1.0, 0.0
        %v3600 = vsel %vm3472, 1.0, 0.0
        %v3601 = vsel %vm3473, 1.0, 0.0
        %v3602 = vsel %vm3474, 1.0, 0.0
        %v3603 = vsel %vm3475, 1.0, 0.0
        %v3604 = vsel %vm3476, 1.0, 0.0
        %v3605 = vsel %vm3477, 1.0, 0.0
        %v3606 = vsel %vm3478, 1.0, 0.0
        %v3607 = vsel %vm3479, 1.0, 0.0
        %v3608 = vsel %vm3480, 1.0, 0.0
        %v3609 = vsel %vm3481, 1.0, 0.0
        %v3610 = vsel %vm3482, 1.0, 0.0
        %v3611 = vsel %vm3483, 1.0, 0.0
        %v3612 = vsel %vm3484, 1.0, 0.0
        %v3613 = vsel %vm3485, 1.0, 0.0
        %v3614 = vsel %vm3486, 1.0, 0.0
        %v3615 = vsel %vm3487, 1.0, 0.0
        %v3616 = vsel %vm3488, 1.0, 0.0
        %v3617 = vsel %vm3489, 1.0, 0.0
        %v3618 = vsel %vm3490, 1.0, 0.0
        %v3619 = vsel %vm3491, 1.0, 0.0
        %v3620 = vsel %vm3492, 1.0, 0.0
        %v3621 = vsel %vm3493, 1.0, 0.0
        %v3622 = vsel %vm3494, 1.0, 0.0
        %v3623 = vsel %vm3495, 1.0, 0.0
        %v3624 = vsel %vm3496, 1.0, 0.0
        %v3625 = vsel %vm3497, 1.0, 0.0
        %v3626 = vsel %vm3498, 1.0, 0.0
        %v3627 = vsel %vm3499, 1.0, 0.0
        %v3628 = vsel %vm3500, 1.0, 0.0
        %v3629 = vsel %vm3501, 1.0, 0.0
        %v3630 = vsel %vm3502, 1.0, 0.0
        %v3631 = vsel %vm3503, 1.0, 0.0
        %v3632 = vsel %vm3504, 1.0, 0.0
        %v3633 = vsel %vm3505, 1.0, 0.0
        %v3634 = vsel %vm3506, 1.0, 0.0
        %v3635 = vsel %vm3507, 1.0, 0.0
        %v3636 = vsel %vm3508, 1.0, 0.0
        %v3637 = vsel %vm3509, 1.0, 0.0
        %v3638 = vsel %vm3510, 1.0, 0.0
        %v3639 = vsel %vm3511, 1.0, 0.0
        %v3640 = vsel %vm3512, 1.0, 0.0
        %v3641 = vsel %vm3513, 1.0, 0.0
        %v3642 = vsel %vm3514, 1.0, 0.0
        %v3643 = vsel %vm3515, 1.0, 0.0
        %v3644 = vsel %vm3516, 1.0, 0.0
        %v3645 = vsel %vm3517, 1.0, 0.0
        %v3646 = vsel %vm3518, 1.0, 0.0
        %v3647 = vsel %vm3519, 1.0, 0.0
        %v3648 = vsel %vm3520, 1.0, 0.0
        %v3649 = vsel %vm3521, 1.0, 0.0
        %v3650 = vsel %vm3522, 1.0, 0.0
        %v3651 = vsel %vm3523, 1.0, 0.0
        %v3652 = vsel %vm3524, 1.0, 0.0
        %v3653 = vsel %vm3525, 1.0, 0.0
        %v3654 = vsel %vm3526, 1.0, 0.0
        %v3655 = vsel %vm3527, 1.0, 0.0
        %v3656 = vsel %vm3528, 1.0, 0.0
        %v3657 = vsel %vm3529, 1.0, 0.0
        %v3658 = vsel %vm3530, 1.0, 0.0
        %v3659 = vsel %vm3531, 1.0, 0.0
        %v3660 = vsel %vm3532, 1.0, 0.0
        %v3661 = vsel %vm3533, 1.0, 0.0
        %v3662 = vsel %vm3534, 1.0, 0.0
        %v3663 = vsel %vm3535, 1.0, 0.0
        %v3664 = vsel %vm3536, 1.0, 0.0
        %v3665 = vsel %vm3537, 1.0, 0.0
        %v3666 = vsel %vm3538, 1.0, 0.0
        %v3667 = vsel %vm3539, 1.0, 0.0
        %v3668 = vsel %vm3540, 1.0, 0.0
        %v3669 = vsel %vm3541, 1.0, 0.0
        %v3670 = vsel %vm3542, 1.0, 0.0
        %v3671 = vpack.c.bf16 %v3547, %v3543
        %v3672 = vpack.c.bf16 %v3548, %v3544
        %v3673 = vpack.c.bf16 %v3549, %v3545
        %v3674 = vpack.c.bf16 %v3550, %v3546
        %v3675 = vpack.c.bf16 %v3555, %v3551
        %v3676 = vpack.c.bf16 %v3556, %v3552
        %v3677 = vpack.c.bf16 %v3557, %v3553
        %v3678 = vpack.c.bf16 %v3558, %v3554
        %v3679 = vpack.c.bf16 %v3563, %v3559
        %v3680 = vpack.c.bf16 %v3564, %v3560
        %v3681 = vpack.c.bf16 %v3565, %v3561
        %v3682 = vpack.c.bf16 %v3566, %v3562
        %v3683 = vpack.c.bf16 %v3571, %v3567
        %v3684 = vpack.c.bf16 %v3572, %v3568
        %v3685 = vpack.c.bf16 %v3573, %v3569
        %v3686 = vpack.c.bf16 %v3574, %v3570
        %v3687 = vpack.c.bf16 %v3579, %v3575
        %v3688 = vpack.c.bf16 %v3580, %v3576
        %v3689 = vpack.c.bf16 %v3581, %v3577
        %v3690 = vpack.c.bf16 %v3582, %v3578
        %v3691 = vpack.c.bf16 %v3587, %v3583
        %v3692 = vpack.c.bf16 %v3588, %v3584
        %v3693 = vpack.c.bf16 %v3589, %v3585
        %v3694 = vpack.c.bf16 %v3590, %v3586
        %v3695 = vpack.c.bf16 %v3595, %v3591
        %v3696 = vpack.c.bf16 %v3596, %v3592
        %v3697 = vpack.c.bf16 %v3597, %v3593
        %v3698 = vpack.c.bf16 %v3598, %v3594
        %v3699 = vpack.c.bf16 %v3603, %v3599
        %v3700 = vpack.c.bf16 %v3604, %v3600
        %v3701 = vpack.c.bf16 %v3605, %v3601
        %v3702 = vpack.c.bf16 %v3606, %v3602
        %v3703 = vpack.c.bf16 %v3611, %v3607
        %v3704 = vpack.c.bf16 %v3612, %v3608
        %v3705 = vpack.c.bf16 %v3613, %v3609
        %v3706 = vpack.c.bf16 %v3614, %v3610
        %v3707 = vpack.c.bf16 %v3619, %v3615
        %v3708 = vpack.c.bf16 %v3620, %v3616
        %v3709 = vpack.c.bf16 %v3621, %v3617
        %v3710 = vpack.c.bf16 %v3622, %v3618
        %v3711 = vpack.c.bf16 %v3627, %v3623
        %v3712 = vpack.c.bf16 %v3628, %v3624
        %v3713 = vpack.c.bf16 %v3629, %v3625
        %v3714 = vpack.c.bf16 %v3630, %v3626
        %v3715 = vpack.c.bf16 %v3635, %v3631
        %v3716 = vpack.c.bf16 %v3636, %v3632
        %v3717 = vpack.c.bf16 %v3637, %v3633
        %v3718 = vpack.c.bf16 %v3638, %v3634
        %v3719 = vpack.c.bf16 %v3643, %v3639
        %v3720 = vpack.c.bf16 %v3644, %v3640
        %v3721 = vpack.c.bf16 %v3645, %v3641
        %v3722 = vpack.c.bf16 %v3646, %v3642
        %v3723 = vpack.c.bf16 %v3651, %v3647
        %v3724 = vpack.c.bf16 %v3652, %v3648
        %v3725 = vpack.c.bf16 %v3653, %v3649
        %v3726 = vpack.c.bf16 %v3654, %v3650
        %v3727 = vpack.c.bf16 %v3659, %v3655
        %v3728 = vpack.c.bf16 %v3660, %v3656
        %v3729 = vpack.c.bf16 %v3661, %v3657
        %v3730 = vpack.c.bf16 %v3662, %v3658
        %v3731 = vpack.c.bf16 %v3667, %v3663
        %v3732 = vpack.c.bf16 %v3668, %v3664
        %v3733 = vpack.c.bf16 %v3669, %v3665
        %v3734 = vpack.c.bf16 %v3670, %v3666
        %v3735 = vld [vmem:[%s1] sm:$0xf]
        %v3736 = vld [vmem:[%s1 + $0x4] sm:$0xf]
        %v3737 = vld [vmem:[%s1 + $0x8] sm:$0xf]
        %v3738 = vld [vmem:[%s1 + $0xc] sm:$0xf]
        %v3739 = vld [vmem:[%s1 + $0x10] sm:$0xf]
        %v3740 = vld [vmem:[%s1 + $0x14] sm:$0xf]
        %v3741 = vld [vmem:[%s1 + $0x18] sm:$0xf]
        %v3742 = vld [vmem:[%s1 + $0x1c] sm:$0xf]
        %v3743 = vld [vmem:[%s1 + $0x20] sm:$0xf]
        %v3744 = vld [vmem:[%s1 + $0x24] sm:$0xf]
        %v3745 = vld [vmem:[%s1 + $0x28] sm:$0xf]
        %v3746 = vld [vmem:[%s1 + $0x2c] sm:$0xf]
        %v3747 = vld [vmem:[%s1 + $0x30] sm:$0xf]
        %v3748 = vld [vmem:[%s1 + $0x34] sm:$0xf]
        %v3749 = vld [vmem:[%s1 + $0x38] sm:$0xf]
        %v3750 = vld [vmem:[%s1 + $0x3c] sm:$0xf]
        %v3751 = vld [vmem:[%s1 + $0x40] sm:$0xf]
        %v3752 = vld [vmem:[%s1 + $0x44] sm:$0xf]
        %v3753 = vld [vmem:[%s1 + $0x48] sm:$0xf]
        %v3754 = vld [vmem:[%s1 + $0x4c] sm:$0xf]
        %v3755 = vld [vmem:[%s1 + $0x50] sm:$0xf]
        %v3756 = vld [vmem:[%s1 + $0x54] sm:$0xf]
        %v3757 = vld [vmem:[%s1 + $0x58] sm:$0xf]
        %v3758 = vld [vmem:[%s1 + $0x5c] sm:$0xf]
        %v3759 = vld [vmem:[%s1 + $0x60] sm:$0xf]
        %v3760 = vld [vmem:[%s1 + $0x64] sm:$0xf]
        %v3761 = vld [vmem:[%s1 + $0x68] sm:$0xf]
        %v3762 = vld [vmem:[%s1 + $0x6c] sm:$0xf]
        %v3763 = vld [vmem:[%s1 + $0x70] sm:$0xf]
        %v3764 = vld [vmem:[%s1 + $0x74] sm:$0xf]
        %v3765 = vld [vmem:[%s1 + $0x78] sm:$0xf]
        %v3766 = vld [vmem:[%s1 + $0x7c] sm:$0xf]
        %v3767 = vld [vmem:[%s1 + $0x80] sm:$0xf]
        %v3768 = vld [vmem:[%s1 + $0x84] sm:$0xf]
        %v3769 = vld [vmem:[%s1 + $0x88] sm:$0xf]
        %v3770 = vld [vmem:[%s1 + $0x8c] sm:$0xf]
        %v3771 = vld [vmem:[%s1 + $0x90] sm:$0xf]
        %v3772 = vld [vmem:[%s1 + $0x94] sm:$0xf]
        %v3773 = vld [vmem:[%s1 + $0x98] sm:$0xf]
        %v3774 = vld [vmem:[%s1 + $0x9c] sm:$0xf]
        %v3775 = vld [vmem:[%s1 + $0xa0] sm:$0xf]
        %v3776 = vld [vmem:[%s1 + $0xa4] sm:$0xf]
        %v3777 = vld [vmem:[%s1 + $0xa8] sm:$0xf]
        %v3778 = vld [vmem:[%s1 + $0xac] sm:$0xf]
        %v3779 = vld [vmem:[%s1 + $0xb0] sm:$0xf]
        %v3780 = vld [vmem:[%s1 + $0xb4] sm:$0xf]
        %v3781 = vld [vmem:[%s1 + $0xb8] sm:$0xf]
        %v3782 = vld [vmem:[%s1 + $0xbc] sm:$0xf]
        %v3783 = vld [vmem:[%s1 + $0xc0] sm:$0xf]
        %v3784 = vld [vmem:[%s1 + $0xc4] sm:$0xf]
        %v3785 = vld [vmem:[%s1 + $0xc8] sm:$0xf]
        %v3786 = vld [vmem:[%s1 + $0xcc] sm:$0xf]
        %v3787 = vld [vmem:[%s1 + $0xd0] sm:$0xf]
        %v3788 = vld [vmem:[%s1 + $0xd4] sm:$0xf]
        %v3789 = vld [vmem:[%s1 + $0xd8] sm:$0xf]
        %v3790 = vld [vmem:[%s1 + $0xdc] sm:$0xf]
        %v3791 = vld [vmem:[%s1 + $0xe0] sm:$0xf]
        %v3792 = vld [vmem:[%s1 + $0xe4] sm:$0xf]
        %v3793 = vld [vmem:[%s1 + $0xe8] sm:$0xf]
        %v3794 = vld [vmem:[%s1 + $0xec] sm:$0xf]
        %v3795 = vld [vmem:[%s1 + $0xf0] sm:$0xf]
        %v3796 = vld [vmem:[%s1 + $0xf4] sm:$0xf]
        %v3797 = vld [vmem:[%s1 + $0xf8] sm:$0xf]
        %v3798 = vld [vmem:[%s1 + $0xfc] sm:$0xf]
        %v3863 = vunpack.c.l.b16 %v3735
        %v3864 = vunpack.c.l.b16 %v3736
        %v3865 = vunpack.c.l.b16 %v3737
        %v3866 = vunpack.c.l.b16 %v3738
        %v3867 = vunpack.c.l.b16 %v3739
        %v3868 = vunpack.c.l.b16 %v3740
        %v3869 = vunpack.c.l.b16 %v3741
        %v3870 = vunpack.c.l.b16 %v3742
        %v3871 = vunpack.c.l.b16 %v3743
        %v3872 = vunpack.c.l.b16 %v3744
        %v3873 = vunpack.c.l.b16 %v3745
        %v3874 = vunpack.c.l.b16 %v3746
        %v3875 = vunpack.c.l.b16 %v3747
        %v3876 = vunpack.c.l.b16 %v3748
        %v3877 = vunpack.c.l.b16 %v3749
        %v3878 = vunpack.c.l.b16 %v3750
        %v3879 = vunpack.c.l.b16 %v3751
        %v3880 = vunpack.c.l.b16 %v3752
        %v3881 = vunpack.c.l.b16 %v3753
        %v3882 = vunpack.c.l.b16 %v3754
        %v3883 = vunpack.c.l.b16 %v3755
        %v3884 = vunpack.c.l.b16 %v3756
        %v3885 = vunpack.c.l.b16 %v3757
        %v3886 = vunpack.c.l.b16 %v3758
        %v3887 = vunpack.c.l.b16 %v3759
        %v3888 = vunpack.c.l.b16 %v3760
        %v3889 = vunpack.c.l.b16 %v3761
        %v3890 = vunpack.c.l.b16 %v3762
        %v3891 = vunpack.c.l.b16 %v3763
        %v3892 = vunpack.c.l.b16 %v3764
        %v3893 = vunpack.c.l.b16 %v3765
        %v3894 = vunpack.c.l.b16 %v3766
        %v3895 = vunpack.c.l.b16 %v3767
        %v3896 = vunpack.c.l.b16 %v3768
        %v3897 = vunpack.c.l.b16 %v3769
        %v3898 = vunpack.c.l.b16 %v3770
        %v3899 = vunpack.c.l.b16 %v3771
        %v3900 = vunpack.c.l.b16 %v3772
        %v3901 = vunpack.c.l.b16 %v3773
        %v3902 = vunpack.c.l.b16 %v3774
        %v3903 = vunpack.c.l.b16 %v3775
        %v3904 = vunpack.c.l.b16 %v3776
        %v3905 = vunpack.c.l.b16 %v3777
        %v3906 = vunpack.c.l.b16 %v3778
        %v3907 = vunpack.c.l.b16 %v3779
        %v3908 = vunpack.c.l.b16 %v3780
        %v3909 = vunpack.c.l.b16 %v3781
        %v3910 = vunpack.c.l.b16 %v3782
        %v3911 = vunpack.c.l.b16 %v3783
        %v3912 = vunpack.c.l.b16 %v3784
        %v3913 = vunpack.c.l.b16 %v3785
        %v3914 = vunpack.c.l.b16 %v3786
        %v3915 = vunpack.c.l.b16 %v3787
        %v3916 = vunpack.c.l.b16 %v3788
        %v3917 = vunpack.c.l.b16 %v3789
        %v3918 = vunpack.c.l.b16 %v3790
        %v3919 = vunpack.c.l.b16 %v3791
        %v3920 = vunpack.c.l.b16 %v3792
        %v3921 = vunpack.c.l.b16 %v3793
        %v3922 = vunpack.c.l.b16 %v3794
        %v3923 = vunpack.c.l.b16 %v3795
        %v3924 = vunpack.c.l.b16 %v3796
        %v3925 = vunpack.c.l.b16 %v3797
        %v3926 = vunpack.c.l.b16 %v3798
        %v3927 = vpack.c.b16 %v3864, %v3863
        %v3928 = vpack.c.b16 %v3866, %v3865
        %v3929 = vpack.c.b16 %v3868, %v3867
        %v3930 = vpack.c.b16 %v3870, %v3869
        %v3931 = vpack.c.b16 %v3872, %v3871
        %v3932 = vpack.c.b16 %v3874, %v3873
        %v3933 = vpack.c.b16 %v3876, %v3875
        %v3934 = vpack.c.b16 %v3878, %v3877
        %v3935 = vpack.c.b16 %v3880, %v3879
        %v3936 = vpack.c.b16 %v3882, %v3881
        %v3937 = vpack.c.b16 %v3884, %v3883
        %v3938 = vpack.c.b16 %v3886, %v3885
        %v3939 = vpack.c.b16 %v3888, %v3887
        %v3940 = vpack.c.b16 %v3890, %v3889
        %v3941 = vpack.c.b16 %v3892, %v3891
        %v3942 = vpack.c.b16 %v3894, %v3893
        %v3943 = vpack.c.b16 %v3896, %v3895
        %v3944 = vpack.c.b16 %v3898, %v3897
        %v3945 = vpack.c.b16 %v3900, %v3899
        %v3946 = vpack.c.b16 %v3902, %v3901
        %v3947 = vpack.c.b16 %v3904, %v3903
        %v3948 = vpack.c.b16 %v3906, %v3905
        %v3949 = vpack.c.b16 %v3908, %v3907
        %v3950 = vpack.c.b16 %v3910, %v3909
        %v3951 = vpack.c.b16 %v3912, %v3911
        %v3952 = vpack.c.b16 %v3914, %v3913
        %v3953 = vpack.c.b16 %v3916, %v3915
        %v3954 = vpack.c.b16 %v3918, %v3917
        %v3955 = vpack.c.b16 %v3920, %v3919
        %v3956 = vpack.c.b16 %v3922, %v3921
        %v3957 = vpack.c.b16 %v3924, %v3923
        %v3958 = vpack.c.b16 %v3926, %v3925
        %3991 = vmatprep.subr.bf16.mxu0 0
        %3992 = vmatpush1.bf16.msra.mxu0 %v3934
        %3993 = vmatprep.subr.bf16.mxu0 0
        %3994 = vmatpush1.bf16.msra.mxu0 %v3933
        %3995 = vmatprep.subr.bf16.mxu0 0
        %3996 = vmatpush1.bf16.msra.mxu0 %v3932
        %3997 = vmatprep.subr.bf16.mxu0 0
        %3998 = vmatpush1.bf16.msra.mxu0 %v3931
        %3999 = vmatprep.subr.bf16.mxu0 0
        %4000 = vmatpush1.bf16.msra.mxu0 %v3930
        %4001 = vmatprep.subr.bf16.mxu0 0
        %4002 = vmatpush1.bf16.msra.mxu0 %v3929
        %4003 = vmatprep.subr.bf16.mxu0 0
        %4004 = vmatpush1.bf16.msra.mxu0 %v3928
        %4005 = vmatprep.subr.bf16.mxu0 0
        %4006 = vmatpush1.bf16.msra.mxu0 %v3927
        %4007 = vmatprep.subr.bf16.mxu0 0
        %4008 = vmatpush2.bf16.msra.mxu0 %v3942
        %4009 = vmatprep.subr.bf16.mxu0 0
        %4010 = vmatpush2.bf16.msra.mxu0 %v3941
        %4011 = vmatprep.subr.bf16.mxu0 0
        %4012 = vmatpush2.bf16.msra.mxu0 %v3940
        %4013 = vmatprep.subr.bf16.mxu0 0
        %4014 = vmatpush2.bf16.msra.mxu0 %v3939
        %4015 = vmatprep.subr.bf16.mxu0 0
        %4016 = vmatpush2.bf16.msra.mxu0 %v3938
        %4017 = vmatprep.subr.bf16.mxu0 0
        %4018 = vmatpush2.bf16.msra.mxu0 %v3937
        %4019 = vmatprep.subr.bf16.mxu0 0
        %4020 = vmatpush2.bf16.msra.mxu0 %v3936
        %4021 = vmatprep.subr.bf16.mxu0 0
        %4022 = vmatpush2.bf16.msra.mxu0 %v3935
        %4023 = vmatprep.mubr.bf16.mxu0 %v760
        %4024 = vmatmul.mubr.bf16.gmra.mxu0 %v759
        %v4025 = vpop.f32.mrf.mxu0
        %v4026 = vadd.f32 0.0, %v4025
        %v4027 = vpop.f32.mrf.mxu0
        %v4028 = vpop.f32.mrf.mxu0
        %v4029 = vadd.f32 0.0, %v4028
        %v4030 = vpop.f32.mrf.mxu0
        %4031 = vmatprep.mubr.bf16.mxu0 %v764
        %4032 = vmatmul.mubr.bf16.gmra.mxu0 %v763
        %v4033 = vpop.f32.mrf.mxu0
        %v4034 = vadd.f32 0.0, %v4033
        %v4035 = vpop.f32.mrf.mxu0
        %v4036 = vpop.f32.mrf.mxu0
        %v4037 = vadd.f32 0.0, %v4036
        %v4038 = vpop.f32.mrf.mxu0
        %4039 = vmatprep.mubr.bf16.mxu0 %v768
        %4040 = vmatmul.mubr.bf16.gmra.mxu0 %v767
        %v4041 = vpop.f32.mrf.mxu0
        %v4042 = vadd.f32 0.0, %v4041
        %v4043 = vpop.f32.mrf.mxu0
        %v4044 = vpop.f32.mrf.mxu0
        %v4045 = vadd.f32 0.0, %v4044
        %v4046 = vpop.f32.mrf.mxu0
        %4047 = vmatprep.mubr.bf16.mxu0 %v772
        %4048 = vmatmul.mubr.bf16.gmra.mxu0 %v771
        %v4049 = vpop.f32.mrf.mxu0
        %v4050 = vadd.f32 0.0, %v4049
        %v4051 = vpop.f32.mrf.mxu0
        %v4052 = vpop.f32.mrf.mxu0
        %v4053 = vadd.f32 0.0, %v4052
        %v4054 = vpop.f32.mrf.mxu0
        %4055 = vmatprep.mubr.bf16.mxu0 %v776
        %4056 = vmatmul.mubr.bf16.gmra.mxu0 %v775
        %v4057 = vpop.f32.mrf.mxu0
        %v4058 = vadd.f32 0.0, %v4057
        %v4059 = vpop.f32.mrf.mxu0
        %v4060 = vpop.f32.mrf.mxu0
        %v4061 = vadd.f32 0.0, %v4060
        %v4062 = vpop.f32.mrf.mxu0
        %4063 = vmatprep.mubr.bf16.mxu0 %v780
        %4064 = vmatmul.mubr.bf16.gmra.mxu0 %v779
        %v4065 = vpop.f32.mrf.mxu0
        %v4066 = vadd.f32 0.0, %v4065
        %v4067 = vpop.f32.mrf.mxu0
        %v4068 = vpop.f32.mrf.mxu0
        %v4069 = vadd.f32 0.0, %v4068
        %v4070 = vpop.f32.mrf.mxu0
        %4071 = vmatprep.mubr.bf16.mxu0 %v784
        %4072 = vmatmul.mubr.bf16.gmra.mxu0 %v783
        %v4073 = vpop.f32.mrf.mxu0
        %v4074 = vadd.f32 0.0, %v4073
        %v4075 = vpop.f32.mrf.mxu0
        %v4076 = vpop.f32.mrf.mxu0
        %v4077 = vadd.f32 0.0, %v4076
        %v4078 = vpop.f32.mrf.mxu0
        %4079 = vmatprep.mubr.bf16.mxu0 %v788
        %4080 = vmatmul.mubr.bf16.gmra.mxu0 %v787
        %v4081 = vpop.f32.mrf.mxu0
        %v4082 = vadd.f32 0.0, %v4081
        %v4083 = vpop.f32.mrf.mxu0
        %v4084 = vpop.f32.mrf.mxu0
        %v4085 = vadd.f32 0.0, %v4084
        %v4086 = vpop.f32.mrf.mxu0
        %4087 = vmatprep.mubr.bf16.mxu0 %v792
        %4088 = vmatmul.mubr.bf16.gmra.mxu0 %v791
        %v4089 = vpop.f32.mrf.mxu0
        %v4090 = vadd.f32 0.0, %v4089
        %v4091 = vpop.f32.mrf.mxu0
        %v4092 = vpop.f32.mrf.mxu0
        %v4093 = vadd.f32 0.0, %v4092
        %v4094 = vpop.f32.mrf.mxu0
        %4095 = vmatprep.mubr.bf16.mxu0 %v796
        %4096 = vmatmul.mubr.bf16.gmra.mxu0 %v795
        %v4097 = vpop.f32.mrf.mxu0
        %v4098 = vadd.f32 0.0, %v4097
        %v4099 = vpop.f32.mrf.mxu0
        %v4100 = vpop.f32.mrf.mxu0
        %v4101 = vadd.f32 0.0, %v4100
        %v4102 = vpop.f32.mrf.mxu0
        %4103 = vmatprep.mubr.bf16.mxu0 %v800
        %4104 = vmatmul.mubr.bf16.gmra.mxu0 %v799
        %v4105 = vpop.f32.mrf.mxu0
        %v4106 = vadd.f32 0.0, %v4105
        %v4107 = vpop.f32.mrf.mxu0
        %v4108 = vpop.f32.mrf.mxu0
        %v4109 = vadd.f32 0.0, %v4108
        %v4110 = vpop.f32.mrf.mxu0
        %4111 = vmatprep.mubr.bf16.mxu0 %v804
        %4112 = vmatmul.mubr.bf16.gmra.mxu0 %v803
        %v4113 = vpop.f32.mrf.mxu0
        %v4114 = vadd.f32 0.0, %v4113
        %v4115 = vpop.f32.mrf.mxu0
        %v4116 = vpop.f32.mrf.mxu0
        %v4117 = vadd.f32 0.0, %v4116
        %v4118 = vpop.f32.mrf.mxu0
        %4119 = vmatprep.mubr.bf16.mxu0 %v808
        %4120 = vmatmul.mubr.bf16.gmra.mxu0 %v807
        %v4121 = vpop.f32.mrf.mxu0
        %v4122 = vadd.f32 0.0, %v4121
        %v4123 = vpop.f32.mrf.mxu0
        %v4124 = vpop.f32.mrf.mxu0
        %v4125 = vadd.f32 0.0, %v4124
        %v4126 = vpop.f32.mrf.mxu0
        %4127 = vmatprep.mubr.bf16.mxu0 %v812
        %4128 = vmatmul.mubr.bf16.gmra.mxu0 %v811
        %v4129 = vpop.f32.mrf.mxu0
        %v4130 = vadd.f32 0.0, %v4129
        %v4131 = vpop.f32.mrf.mxu0
        %v4132 = vpop.f32.mrf.mxu0
        %v4133 = vadd.f32 0.0, %v4132
        %v4134 = vpop.f32.mrf.mxu0
        %4135 = vmatprep.mubr.bf16.mxu0 %v816
        %4136 = vmatmul.mubr.bf16.gmra.mxu0 %v815
        %v4137 = vpop.f32.mrf.mxu0
        %v4138 = vadd.f32 0.0, %v4137
        %v4139 = vpop.f32.mrf.mxu0
        %v4140 = vpop.f32.mrf.mxu0
        %v4141 = vadd.f32 0.0, %v4140
        %v4142 = vpop.f32.mrf.mxu0
        %4143 = vmatprep.mubr.bf16.mxu0 %v820
        %4144 = vmatmul.mubr.bf16.gmra.mxu0 %v819
        %v4145 = vpop.f32.mrf.mxu0
        %v4146 = vadd.f32 0.0, %v4145
        %v4147 = vpop.f32.mrf.mxu0
        %v4148 = vpop.f32.mrf.mxu0
        %v4149 = vadd.f32 0.0, %v4148
        %v4150 = vpop.f32.mrf.mxu0
        %4151 = vmatprep.mubr.bf16.mxu0 %v1176
        %4152 = vmatmul.mubr.bf16.gmra.mxu0 %v1175
        %v4153 = vpop.f32.mrf.mxu0
        %v4154 = vadd.f32 0.0, %v4153
        %v4155 = vpop.f32.mrf.mxu0
        %v4156 = vpop.f32.mrf.mxu0
        %v4157 = vadd.f32 0.0, %v4156
        %v4158 = vpop.f32.mrf.mxu0
        %4159 = vmatprep.mubr.bf16.mxu0 %v1180
        %4160 = vmatmul.mubr.bf16.gmra.mxu0 %v1179
        %v4161 = vpop.f32.mrf.mxu0
        %v4162 = vadd.f32 0.0, %v4161
        %v4163 = vpop.f32.mrf.mxu0
        %v4164 = vpop.f32.mrf.mxu0
        %v4165 = vadd.f32 0.0, %v4164
        %v4166 = vpop.f32.mrf.mxu0
        %4167 = vmatprep.mubr.bf16.mxu0 %v1184
        %4168 = vmatmul.mubr.bf16.gmra.mxu0 %v1183
        %v4169 = vpop.f32.mrf.mxu0
        %v4170 = vadd.f32 0.0, %v4169
        %v4171 = vpop.f32.mrf.mxu0
        %v4172 = vpop.f32.mrf.mxu0
        %v4173 = vadd.f32 0.0, %v4172
        %v4174 = vpop.f32.mrf.mxu0
        %4175 = vmatprep.mubr.bf16.mxu0 %v1188
        %4176 = vmatmul.mubr.bf16.gmra.mxu0 %v1187
        %v4177 = vpop.f32.mrf.mxu0
        %v4178 = vadd.f32 0.0, %v4177
        %v4179 = vpop.f32.mrf.mxu0
        %v4180 = vpop.f32.mrf.mxu0
        %v4181 = vadd.f32 0.0, %v4180
        %v4182 = vpop.f32.mrf.mxu0
        %4183 = vmatprep.mubr.bf16.mxu0 %v1192
        %4184 = vmatmul.mubr.bf16.gmra.mxu0 %v1191
        %v4185 = vpop.f32.mrf.mxu0
        %v4186 = vadd.f32 0.0, %v4185
        %v4187 = vpop.f32.mrf.mxu0
        %v4188 = vpop.f32.mrf.mxu0
        %v4189 = vadd.f32 0.0, %v4188
        %v4190 = vpop.f32.mrf.mxu0
        %4191 = vmatprep.mubr.bf16.mxu0 %v1196
        %4192 = vmatmul.mubr.bf16.gmra.mxu0 %v1195
        %v4193 = vpop.f32.mrf.mxu0
        %v4194 = vadd.f32 0.0, %v4193
        %v4195 = vpop.f32.mrf.mxu0
        %v4196 = vpop.f32.mrf.mxu0
        %v4197 = vadd.f32 0.0, %v4196
        %v4198 = vpop.f32.mrf.mxu0
        %4199 = vmatprep.mubr.bf16.mxu0 %v1200
        %4200 = vmatmul.mubr.bf16.gmra.mxu0 %v1199
        %v4201 = vpop.f32.mrf.mxu0
        %v4202 = vadd.f32 0.0, %v4201
        %v4203 = vpop.f32.mrf.mxu0
        %v4204 = vpop.f32.mrf.mxu0
        %v4205 = vadd.f32 0.0, %v4204
        %v4206 = vpop.f32.mrf.mxu0
        %4207 = vmatprep.mubr.bf16.mxu0 %v1204
        %4208 = vmatmul.mubr.bf16.gmra.mxu0 %v1203
        %v4209 = vpop.f32.mrf.mxu0
        %v4210 = vadd.f32 0.0, %v4209
        %v4211 = vpop.f32.mrf.mxu0
        %v4212 = vpop.f32.mrf.mxu0
        %v4213 = vadd.f32 0.0, %v4212
        %v4214 = vpop.f32.mrf.mxu0
        %4215 = vmatprep.mubr.bf16.mxu0 %v1208
        %4216 = vmatmul.mubr.bf16.gmra.mxu0 %v1207
        %v4217 = vpop.f32.mrf.mxu0
        %v4218 = vadd.f32 0.0, %v4217
        %v4219 = vpop.f32.mrf.mxu0
        %v4220 = vpop.f32.mrf.mxu0
        %v4221 = vadd.f32 0.0, %v4220
        %v4222 = vpop.f32.mrf.mxu0
        %4223 = vmatprep.mubr.bf16.mxu0 %v1212
        %4224 = vmatmul.mubr.bf16.gmra.mxu0 %v1211
        %v4225 = vpop.f32.mrf.mxu0
        %v4226 = vadd.f32 0.0, %v4225
        %v4227 = vpop.f32.mrf.mxu0
        %v4228 = vpop.f32.mrf.mxu0
        %v4229 = vadd.f32 0.0, %v4228
        %v4230 = vpop.f32.mrf.mxu0
        %4231 = vmatprep.mubr.bf16.mxu0 %v1216
        %4232 = vmatmul.mubr.bf16.gmra.mxu0 %v1215
        %v4233 = vpop.f32.mrf.mxu0
        %v4234 = vadd.f32 0.0, %v4233
        %v4235 = vpop.f32.mrf.mxu0
        %v4236 = vpop.f32.mrf.mxu0
        %v4237 = vadd.f32 0.0, %v4236
        %v4238 = vpop.f32.mrf.mxu0
        %4239 = vmatprep.mubr.bf16.mxu0 %v1220
        %4240 = vmatmul.mubr.bf16.gmra.mxu0 %v1219
        %v4241 = vpop.f32.mrf.mxu0
        %v4242 = vadd.f32 0.0, %v4241
        %v4243 = vpop.f32.mrf.mxu0
        %v4244 = vpop.f32.mrf.mxu0
        %v4245 = vadd.f32 0.0, %v4244
        %v4246 = vpop.f32.mrf.mxu0
        %4247 = vmatprep.mubr.bf16.mxu0 %v1224
        %4248 = vmatmul.mubr.bf16.gmra.mxu0 %v1223
        %v4249 = vpop.f32.mrf.mxu0
        %v4250 = vadd.f32 0.0, %v4249
        %v4251 = vpop.f32.mrf.mxu0
        %v4252 = vpop.f32.mrf.mxu0
        %v4253 = vadd.f32 0.0, %v4252
        %v4254 = vpop.f32.mrf.mxu0
        %4255 = vmatprep.mubr.bf16.mxu0 %v1228
        %4256 = vmatmul.mubr.bf16.gmra.mxu0 %v1227
        %v4257 = vpop.f32.mrf.mxu0
        %v4258 = vadd.f32 0.0, %v4257
        %v4259 = vpop.f32.mrf.mxu0
        %v4260 = vpop.f32.mrf.mxu0
        %v4261 = vadd.f32 0.0, %v4260
        %v4262 = vpop.f32.mrf.mxu0
        %4263 = vmatprep.mubr.bf16.mxu0 %v1232
        %4264 = vmatmul.mubr.bf16.gmra.mxu0 %v1231
        %v4265 = vpop.f32.mrf.mxu0
        %v4266 = vadd.f32 0.0, %v4265
        %v4267 = vpop.f32.mrf.mxu0
        %v4268 = vpop.f32.mrf.mxu0
        %v4269 = vadd.f32 0.0, %v4268
        %v4270 = vpop.f32.mrf.mxu0
        %4271 = vmatprep.mubr.bf16.mxu0 %v1236
        %4272 = vmatmul.mubr.bf16.gmra.mxu0 %v1235
        %v4273 = vpop.f32.mrf.mxu0
        %v4274 = vadd.f32 0.0, %v4273
        %v4275 = vpop.f32.mrf.mxu0
        %v4276 = vpop.f32.mrf.mxu0
        %v4277 = vadd.f32 0.0, %v4276
        %v4278 = vpop.f32.mrf.mxu0
        %4279 = vmatprep.mubr.bf16.mxu0 %v1592
        %4280 = vmatmul.mubr.bf16.gmra.mxu0 %v1591
        %v4281 = vpop.f32.mrf.mxu0
        %v4282 = vadd.f32 0.0, %v4281
        %v4283 = vpop.f32.mrf.mxu0
        %v4284 = vpop.f32.mrf.mxu0
        %v4285 = vadd.f32 0.0, %v4284
        %v4286 = vpop.f32.mrf.mxu0
        %4287 = vmatprep.mubr.bf16.mxu0 %v1596
        %4288 = vmatmul.mubr.bf16.gmra.mxu0 %v1595
        %v4289 = vpop.f32.mrf.mxu0
        %v4290 = vadd.f32 0.0, %v4289
        %v4291 = vpop.f32.mrf.mxu0
        %v4292 = vpop.f32.mrf.mxu0
        %v4293 = vadd.f32 0.0, %v4292
        %v4294 = vpop.f32.mrf.mxu0
        %4295 = vmatprep.mubr.bf16.mxu0 %v1600
        %4296 = vmatmul.mubr.bf16.gmra.mxu0 %v1599
        %v4297 = vpop.f32.mrf.mxu0
        %v4298 = vadd.f32 0.0, %v4297
        %v4299 = vpop.f32.mrf.mxu0
        %v4300 = vpop.f32.mrf.mxu0
        %v4301 = vadd.f32 0.0, %v4300
        %v4302 = vpop.f32.mrf.mxu0
        %4303 = vmatprep.mubr.bf16.mxu0 %v1604
        %4304 = vmatmul.mubr.bf16.gmra.mxu0 %v1603
        %v4305 = vpop.f32.mrf.mxu0
        %v4306 = vadd.f32 0.0, %v4305
        %v4307 = vpop.f32.mrf.mxu0
        %v4308 = vpop.f32.mrf.mxu0
        %v4309 = vadd.f32 0.0, %v4308
        %v4310 = vpop.f32.mrf.mxu0
        %4311 = vmatprep.mubr.bf16.mxu0 %v1608
        %4312 = vmatmul.mubr.bf16.gmra.mxu0 %v1607
        %v4313 = vpop.f32.mrf.mxu0
        %v4314 = vadd.f32 0.0, %v4313
        %v4315 = vpop.f32.mrf.mxu0
        %v4316 = vpop.f32.mrf.mxu0
        %v4317 = vadd.f32 0.0, %v4316
        %v4318 = vpop.f32.mrf.mxu0
        %4319 = vmatprep.mubr.bf16.mxu0 %v1612
        %4320 = vmatmul.mubr.bf16.gmra.mxu0 %v1611
        %v4321 = vpop.f32.mrf.mxu0
        %v4322 = vadd.f32 0.0, %v4321
        %v4323 = vpop.f32.mrf.mxu0
        %v4324 = vpop.f32.mrf.mxu0
        %v4325 = vadd.f32 0.0, %v4324
        %v4326 = vpop.f32.mrf.mxu0
        %4327 = vmatprep.mubr.bf16.mxu0 %v1616
        %4328 = vmatmul.mubr.bf16.gmra.mxu0 %v1615
        %v4329 = vpop.f32.mrf.mxu0
        %v4330 = vadd.f32 0.0, %v4329
        %v4331 = vpop.f32.mrf.mxu0
        %v4332 = vpop.f32.mrf.mxu0
        %v4333 = vadd.f32 0.0, %v4332
        %v4334 = vpop.f32.mrf.mxu0
        %4335 = vmatprep.mubr.bf16.mxu0 %v1620
        %4336 = vmatmul.mubr.bf16.gmra.mxu0 %v1619
        %v4337 = vpop.f32.mrf.mxu0
        %v4338 = vadd.f32 0.0, %v4337
        %v4339 = vpop.f32.mrf.mxu0
        %v4340 = vpop.f32.mrf.mxu0
        %v4341 = vadd.f32 0.0, %v4340
        %v4342 = vpop.f32.mrf.mxu0
        %4343 = vmatprep.mubr.bf16.mxu0 %v1624
        %4344 = vmatmul.mubr.bf16.gmra.mxu0 %v1623
        %v4345 = vpop.f32.mrf.mxu0
        %v4346 = vadd.f32 0.0, %v4345
        %v4347 = vpop.f32.mrf.mxu0
        %v4348 = vpop.f32.mrf.mxu0
        %v4349 = vadd.f32 0.0, %v4348
        %v4350 = vpop.f32.mrf.mxu0
        %4351 = vmatprep.mubr.bf16.mxu0 %v1628
        %4352 = vmatmul.mubr.bf16.gmra.mxu0 %v1627
        %v4353 = vpop.f32.mrf.mxu0
        %v4354 = vadd.f32 0.0, %v4353
        %v4355 = vpop.f32.mrf.mxu0
        %v4356 = vpop.f32.mrf.mxu0
        %v4357 = vadd.f32 0.0, %v4356
        %v4358 = vpop.f32.mrf.mxu0
        %4359 = vmatprep.mubr.bf16.mxu0 %v1632
        %4360 = vmatmul.mubr.bf16.gmra.mxu0 %v1631
        %v4361 = vpop.f32.mrf.mxu0
        %v4362 = vadd.f32 0.0, %v4361
        %v4363 = vpop.f32.mrf.mxu0
        %v4364 = vpop.f32.mrf.mxu0
        %v4365 = vadd.f32 0.0, %v4364
        %v4366 = vpop.f32.mrf.mxu0
        %4367 = vmatprep.mubr.bf16.mxu0 %v1636
        %4368 = vmatmul.mubr.bf16.gmra.mxu0 %v1635
        %v4369 = vpop.f32.mrf.mxu0
        %v4370 = vadd.f32 0.0, %v4369
        %v4371 = vpop.f32.mrf.mxu0
        %v4372 = vpop.f32.mrf.mxu0
        %v4373 = vadd.f32 0.0, %v4372
        %v4374 = vpop.f32.mrf.mxu0
        %4375 = vmatprep.mubr.bf16.mxu0 %v1640
        %4376 = vmatmul.mubr.bf16.gmra.mxu0 %v1639
        %v4377 = vpop.f32.mrf.mxu0
        %v4378 = vadd.f32 0.0, %v4377
        %v4379 = vpop.f32.mrf.mxu0
        %v4380 = vpop.f32.mrf.mxu0
        %v4381 = vadd.f32 0.0, %v4380
        %v4382 = vpop.f32.mrf.mxu0
        %4383 = vmatprep.mubr.bf16.mxu0 %v1644
        %4384 = vmatmul.mubr.bf16.gmra.mxu0 %v1643
        %v4385 = vpop.f32.mrf.mxu0
        %v4386 = vadd.f32 0.0, %v4385
        %v4387 = vpop.f32.mrf.mxu0
        %v4388 = vpop.f32.mrf.mxu0
        %v4389 = vadd.f32 0.0, %v4388
        %v4390 = vpop.f32.mrf.mxu0
        %4391 = vmatprep.mubr.bf16.mxu0 %v1648
        %4392 = vmatmul.mubr.bf16.gmra.mxu0 %v1647
        %v4393 = vpop.f32.mrf.mxu0
        %v4394 = vadd.f32 0.0, %v4393
        %v4395 = vpop.f32.mrf.mxu0
        %v4396 = vpop.f32.mrf.mxu0
        %v4397 = vadd.f32 0.0, %v4396
        %v4398 = vpop.f32.mrf.mxu0
        %4399 = vmatprep.mubr.bf16.mxu0 %v1652
        %4400 = vmatmul.mubr.bf16.gmra.mxu0 %v1651
        %v4401 = vpop.f32.mrf.mxu0
        %v4402 = vadd.f32 0.0, %v4401
        %v4403 = vpop.f32.mrf.mxu0
        %v4404 = vpop.f32.mrf.mxu0
        %v4405 = vadd.f32 0.0, %v4404
        %v4406 = vpop.f32.mrf.mxu0
        %4407 = vmatprep.mubr.bf16.mxu0 %v2008
        %4408 = vmatmul.mubr.bf16.gmra.mxu0 %v2007
        %v4409 = vpop.f32.mrf.mxu0
        %v4410 = vadd.f32 0.0, %v4409
        %v4411 = vpop.f32.mrf.mxu0
        %v4412 = vpop.f32.mrf.mxu0
        %v4413 = vadd.f32 0.0, %v4412
        %v4414 = vpop.f32.mrf.mxu0
        %4415 = vmatprep.mubr.bf16.mxu0 %v2012
        %4416 = vmatmul.mubr.bf16.gmra.mxu0 %v2011
        %v4417 = vpop.f32.mrf.mxu0
        %v4418 = vadd.f32 0.0, %v4417
        %v4419 = vpop.f32.mrf.mxu0
        %v4420 = vpop.f32.mrf.mxu0
        %v4421 = vadd.f32 0.0, %v4420
        %v4422 = vpop.f32.mrf.mxu0
        %4423 = vmatprep.mubr.bf16.mxu0 %v2016
        %4424 = vmatmul.mubr.bf16.gmra.mxu0 %v2015
        %v4425 = vpop.f32.mrf.mxu0
        %v4426 = vadd.f32 0.0, %v4425
        %v4427 = vpop.f32.mrf.mxu0
        %v4428 = vpop.f32.mrf.mxu0
        %v4429 = vadd.f32 0.0, %v4428
        %v4430 = vpop.f32.mrf.mxu0
        %4431 = vmatprep.mubr.bf16.mxu0 %v2020
        %4432 = vmatmul.mubr.bf16.gmra.mxu0 %v2019
        %v4433 = vpop.f32.mrf.mxu0
        %v4434 = vadd.f32 0.0, %v4433
        %v4435 = vpop.f32.mrf.mxu0
        %v4436 = vpop.f32.mrf.mxu0
        %v4437 = vadd.f32 0.0, %v4436
        %v4438 = vpop.f32.mrf.mxu0
        %4439 = vmatprep.mubr.bf16.mxu0 %v2024
        %4440 = vmatmul.mubr.bf16.gmra.mxu0 %v2023
        %v4441 = vpop.f32.mrf.mxu0
        %v4442 = vadd.f32 0.0, %v4441
        %v4443 = vpop.f32.mrf.mxu0
        %v4444 = vpop.f32.mrf.mxu0
        %v4445 = vadd.f32 0.0, %v4444
        %v4446 = vpop.f32.mrf.mxu0
        %4447 = vmatprep.mubr.bf16.mxu0 %v2028
        %4448 = vmatmul.mubr.bf16.gmra.mxu0 %v2027
        %v4449 = vpop.f32.mrf.mxu0
        %v4450 = vadd.f32 0.0, %v4449
        %v4451 = vpop.f32.mrf.mxu0
        %v4452 = vpop.f32.mrf.mxu0
        %v4453 = vadd.f32 0.0, %v4452
        %v4454 = vpop.f32.mrf.mxu0
        %4455 = vmatprep.mubr.bf16.mxu0 %v2032
        %4456 = vmatmul.mubr.bf16.gmra.mxu0 %v2031
        %v4457 = vpop.f32.mrf.mxu0
        %v4458 = vadd.f32 0.0, %v4457
        %v4459 = vpop.f32.mrf.mxu0
        %v4460 = vpop.f32.mrf.mxu0
        %v4461 = vadd.f32 0.0, %v4460
        %v4462 = vpop.f32.mrf.mxu0
        %4463 = vmatprep.mubr.bf16.mxu0 %v2036
        %4464 = vmatmul.mubr.bf16.gmra.mxu0 %v2035
        %v4465 = vpop.f32.mrf.mxu0
        %v4466 = vadd.f32 0.0, %v4465
        %v4467 = vpop.f32.mrf.mxu0
        %v4468 = vpop.f32.mrf.mxu0
        %v4469 = vadd.f32 0.0, %v4468
        %v4470 = vpop.f32.mrf.mxu0
        %4471 = vmatprep.mubr.bf16.mxu0 %v2040
        %4472 = vmatmul.mubr.bf16.gmra.mxu0 %v2039
        %v4473 = vpop.f32.mrf.mxu0
        %v4474 = vadd.f32 0.0, %v4473
        %v4475 = vpop.f32.mrf.mxu0
        %v4476 = vpop.f32.mrf.mxu0
        %v4477 = vadd.f32 0.0, %v4476
        %v4478 = vpop.f32.mrf.mxu0
        %4479 = vmatprep.mubr.bf16.mxu0 %v2044
        %4480 = vmatmul.mubr.bf16.gmra.mxu0 %v2043
        %v4481 = vpop.f32.mrf.mxu0
        %v4482 = vadd.f32 0.0, %v4481
        %v4483 = vpop.f32.mrf.mxu0
        %v4484 = vpop.f32.mrf.mxu0
        %v4485 = vadd.f32 0.0, %v4484
        %v4486 = vpop.f32.mrf.mxu0
        %4487 = vmatprep.mubr.bf16.mxu0 %v2048
        %4488 = vmatmul.mubr.bf16.gmra.mxu0 %v2047
        %v4489 = vpop.f32.mrf.mxu0
        %v4490 = vadd.f32 0.0, %v4489
        %v4491 = vpop.f32.mrf.mxu0
        %v4492 = vpop.f32.mrf.mxu0
        %v4493 = vadd.f32 0.0, %v4492
        %v4494 = vpop.f32.mrf.mxu0
        %4495 = vmatprep.mubr.bf16.mxu0 %v2052
        %4496 = vmatmul.mubr.bf16.gmra.mxu0 %v2051
        %v4497 = vpop.f32.mrf.mxu0
        %v4498 = vadd.f32 0.0, %v4497
        %v4499 = vpop.f32.mrf.mxu0
        %v4500 = vpop.f32.mrf.mxu0
        %v4501 = vadd.f32 0.0, %v4500
        %v4502 = vpop.f32.mrf.mxu0
        %4503 = vmatprep.mubr.bf16.mxu0 %v2056
        %4504 = vmatmul.mubr.bf16.gmra.mxu0 %v2055
        %v4505 = vpop.f32.mrf.mxu0
        %v4506 = vadd.f32 0.0, %v4505
        %v4507 = vpop.f32.mrf.mxu0
        %v4508 = vpop.f32.mrf.mxu0
        %v4509 = vadd.f32 0.0, %v4508
        %v4510 = vpop.f32.mrf.mxu0
        %4511 = vmatprep.mubr.bf16.mxu0 %v2060
        %4512 = vmatmul.mubr.bf16.gmra.mxu0 %v2059
        %v4513 = vpop.f32.mrf.mxu0
        %v4514 = vadd.f32 0.0, %v4513
        %v4515 = vpop.f32.mrf.mxu0
        %v4516 = vpop.f32.mrf.mxu0
        %v4517 = vadd.f32 0.0, %v4516
        %v4518 = vpop.f32.mrf.mxu0
        %4519 = vmatprep.mubr.bf16.mxu0 %v2064
        %4520 = vmatmul.mubr.bf16.gmra.mxu0 %v2063
        %v4521 = vpop.f32.mrf.mxu0
        %v4522 = vadd.f32 0.0, %v4521
        %v4523 = vpop.f32.mrf.mxu0
        %v4524 = vpop.f32.mrf.mxu0
        %v4525 = vadd.f32 0.0, %v4524
        %v4526 = vpop.f32.mrf.mxu0
        %4527 = vmatprep.mubr.bf16.mxu0 %v2068
        %4528 = vmatmul.mubr.bf16.gmra.mxu0 %v2067
        %v4529 = vpop.f32.mrf.mxu0
        %v4530 = vadd.f32 0.0, %v4529
        %v4531 = vpop.f32.mrf.mxu0
        %v4532 = vpop.f32.mrf.mxu0
        %v4533 = vadd.f32 0.0, %v4532
        %v4534 = vpop.f32.mrf.mxu0
        %4535 = vmatprep.mubr.bf16.mxu0 %v2424
        %4536 = vmatmul.mubr.bf16.gmra.mxu0 %v2423
        %v4537 = vpop.f32.mrf.mxu0
        %v4538 = vadd.f32 0.0, %v4537
        %v4539 = vpop.f32.mrf.mxu0
        %v4540 = vpop.f32.mrf.mxu0
        %v4541 = vadd.f32 0.0, %v4540
        %v4542 = vpop.f32.mrf.mxu0
        %4543 = vmatprep.mubr.bf16.mxu0 %v2428
        %4544 = vmatmul.mubr.bf16.gmra.mxu0 %v2427
        %v4545 = vpop.f32.mrf.mxu0
        %v4546 = vadd.f32 0.0, %v4545
        %v4547 = vpop.f32.mrf.mxu0
        %v4548 = vpop.f32.mrf.mxu0
        %v4549 = vadd.f32 0.0, %v4548
        %v4550 = vpop.f32.mrf.mxu0
        %4551 = vmatprep.mubr.bf16.mxu0 %v2432
        %4552 = vmatmul.mubr.bf16.gmra.mxu0 %v2431
        %v4553 = vpop.f32.mrf.mxu0
        %v4554 = vadd.f32 0.0, %v4553
        %v4555 = vpop.f32.mrf.mxu0
        %v4556 = vpop.f32.mrf.mxu0
        %v4557 = vadd.f32 0.0, %v4556
        %v4558 = vpop.f32.mrf.mxu0
        %4559 = vmatprep.mubr.bf16.mxu0 %v2436
        %4560 = vmatmul.mubr.bf16.gmra.mxu0 %v2435
        %v4561 = vpop.f32.mrf.mxu0
        %v4562 = vadd.f32 0.0, %v4561
        %v4563 = vpop.f32.mrf.mxu0
        %v4564 = vpop.f32.mrf.mxu0
        %v4565 = vadd.f32 0.0, %v4564
        %v4566 = vpop.f32.mrf.mxu0
        %4567 = vmatprep.mubr.bf16.mxu0 %v2440
        %4568 = vmatmul.mubr.bf16.gmra.mxu0 %v2439
        %v4569 = vpop.f32.mrf.mxu0
        %v4570 = vadd.f32 0.0, %v4569
        %v4571 = vpop.f32.mrf.mxu0
        %v4572 = vpop.f32.mrf.mxu0
        %v4573 = vadd.f32 0.0, %v4572
        %v4574 = vpop.f32.mrf.mxu0
        %4575 = vmatprep.mubr.bf16.mxu0 %v2444
        %4576 = vmatmul.mubr.bf16.gmra.mxu0 %v2443
        %v4577 = vpop.f32.mrf.mxu0
        %v4578 = vadd.f32 0.0, %v4577
        %v4579 = vpop.f32.mrf.mxu0
        %v4580 = vpop.f32.mrf.mxu0
        %v4581 = vadd.f32 0.0, %v4580
        %v4582 = vpop.f32.mrf.mxu0
        %4583 = vmatprep.mubr.bf16.mxu0 %v2448
        %4584 = vmatmul.mubr.bf16.gmra.mxu0 %v2447
        %v4585 = vpop.f32.mrf.mxu0
        %v4586 = vadd.f32 0.0, %v4585
        %v4587 = vpop.f32.mrf.mxu0
        %v4588 = vpop.f32.mrf.mxu0
        %v4589 = vadd.f32 0.0, %v4588
        %v4590 = vpop.f32.mrf.mxu0
        %4591 = vmatprep.mubr.bf16.mxu0 %v2452
        %4592 = vmatmul.mubr.bf16.gmra.mxu0 %v2451
        %v4593 = vpop.f32.mrf.mxu0
        %v4594 = vadd.f32 0.0, %v4593
        %v4595 = vpop.f32.mrf.mxu0
        %v4596 = vpop.f32.mrf.mxu0
        %v4597 = vadd.f32 0.0, %v4596
        %v4598 = vpop.f32.mrf.mxu0
        %4599 = vmatprep.mubr.bf16.mxu0 %v2456
        %4600 = vmatmul.mubr.bf16.gmra.mxu0 %v2455
        %v4601 = vpop.f32.mrf.mxu0
        %v4602 = vadd.f32 0.0, %v4601
        %v4603 = vpop.f32.mrf.mxu0
        %v4604 = vpop.f32.mrf.mxu0
        %v4605 = vadd.f32 0.0, %v4604
        %v4606 = vpop.f32.mrf.mxu0
        %4607 = vmatprep.mubr.bf16.mxu0 %v2460
        %4608 = vmatmul.mubr.bf16.gmra.mxu0 %v2459
        %v4609 = vpop.f32.mrf.mxu0
        %v4610 = vadd.f32 0.0, %v4609
        %v4611 = vpop.f32.mrf.mxu0
        %v4612 = vpop.f32.mrf.mxu0
        %v4613 = vadd.f32 0.0, %v4612
        %v4614 = vpop.f32.mrf.mxu0
        %4615 = vmatprep.mubr.bf16.mxu0 %v2464
        %4616 = vmatmul.mubr.bf16.gmra.mxu0 %v2463
        %v4617 = vpop.f32.mrf.mxu0
        %v4618 = vadd.f32 0.0, %v4617
        %v4619 = vpop.f32.mrf.mxu0
        %v4620 = vpop.f32.mrf.mxu0
        %v4621 = vadd.f32 0.0, %v4620
        %v4622 = vpop.f32.mrf.mxu0
        %4623 = vmatprep.mubr.bf16.mxu0 %v2468
        %4624 = vmatmul.mubr.bf16.gmra.mxu0 %v2467
        %v4625 = vpop.f32.mrf.mxu0
        %v4626 = vadd.f32 0.0, %v4625
        %v4627 = vpop.f32.mrf.mxu0
        %v4628 = vpop.f32.mrf.mxu0
        %v4629 = vadd.f32 0.0, %v4628
        %v4630 = vpop.f32.mrf.mxu0
        %4631 = vmatprep.mubr.bf16.mxu0 %v2472
        %4632 = vmatmul.mubr.bf16.gmra.mxu0 %v2471
        %v4633 = vpop.f32.mrf.mxu0
        %v4634 = vadd.f32 0.0, %v4633
        %v4635 = vpop.f32.mrf.mxu0
        %v4636 = vpop.f32.mrf.mxu0
        %v4637 = vadd.f32 0.0, %v4636
        %v4638 = vpop.f32.mrf.mxu0
        %4639 = vmatprep.mubr.bf16.mxu0 %v2476
        %4640 = vmatmul.mubr.bf16.gmra.mxu0 %v2475
        %v4641 = vpop.f32.mrf.mxu0
        %v4642 = vadd.f32 0.0, %v4641
        %v4643 = vpop.f32.mrf.mxu0
        %v4644 = vpop.f32.mrf.mxu0
        %v4645 = vadd.f32 0.0, %v4644
        %v4646 = vpop.f32.mrf.mxu0
        %4647 = vmatprep.mubr.bf16.mxu0 %v2480
        %4648 = vmatmul.mubr.bf16.gmra.mxu0 %v2479
        %v4649 = vpop.f32.mrf.mxu0
        %v4650 = vadd.f32 0.0, %v4649
        %v4651 = vpop.f32.mrf.mxu0
        %v4652 = vpop.f32.mrf.mxu0
        %v4653 = vadd.f32 0.0, %v4652
        %v4654 = vpop.f32.mrf.mxu0
        %4655 = vmatprep.mubr.bf16.mxu0 %v2484
        %4656 = vmatmul.mubr.bf16.gmra.mxu0 %v2483
        %v4657 = vpop.f32.mrf.mxu0
        %v4658 = vadd.f32 0.0, %v4657
        %v4659 = vpop.f32.mrf.mxu0
        %v4660 = vpop.f32.mrf.mxu0
        %v4661 = vadd.f32 0.0, %v4660
        %v4662 = vpop.f32.mrf.mxu0
        %4663 = vmatprep.mubr.bf16.mxu0 %v2840
        %4664 = vmatmul.mubr.bf16.gmra.mxu0 %v2839
        %v4665 = vpop.f32.mrf.mxu0
        %v4666 = vadd.f32 0.0, %v4665
        %v4667 = vpop.f32.mrf.mxu0
        %v4668 = vpop.f32.mrf.mxu0
        %v4669 = vadd.f32 0.0, %v4668
        %v4670 = vpop.f32.mrf.mxu0
        %4671 = vmatprep.mubr.bf16.mxu0 %v2844
        %4672 = vmatmul.mubr.bf16.gmra.mxu0 %v2843
        %v4673 = vpop.f32.mrf.mxu0
        %v4674 = vadd.f32 0.0, %v4673
        %v4675 = vpop.f32.mrf.mxu0
        %v4676 = vpop.f32.mrf.mxu0
        %v4677 = vadd.f32 0.0, %v4676
        %v4678 = vpop.f32.mrf.mxu0
        %4679 = vmatprep.mubr.bf16.mxu0 %v2848
        %4680 = vmatmul.mubr.bf16.gmra.mxu0 %v2847
        %v4681 = vpop.f32.mrf.mxu0
        %v4682 = vadd.f32 0.0, %v4681
        %v4683 = vpop.f32.mrf.mxu0
        %v4684 = vpop.f32.mrf.mxu0
        %v4685 = vadd.f32 0.0, %v4684
        %v4686 = vpop.f32.mrf.mxu0
        %4687 = vmatprep.mubr.bf16.mxu0 %v2852
        %4688 = vmatmul.mubr.bf16.gmra.mxu0 %v2851
        %v4689 = vpop.f32.mrf.mxu0
        %v4690 = vadd.f32 0.0, %v4689
        %v4691 = vpop.f32.mrf.mxu0
        %v4692 = vpop.f32.mrf.mxu0
        %v4693 = vadd.f32 0.0, %v4692
        %v4694 = vpop.f32.mrf.mxu0
        %4695 = vmatprep.mubr.bf16.mxu0 %v2856
        %4696 = vmatmul.mubr.bf16.gmra.mxu0 %v2855
        %v4697 = vpop.f32.mrf.mxu0
        %v4698 = vadd.f32 0.0, %v4697
        %v4699 = vpop.f32.mrf.mxu0
        %v4700 = vpop.f32.mrf.mxu0
        %v4701 = vadd.f32 0.0, %v4700
        %v4702 = vpop.f32.mrf.mxu0
        %4703 = vmatprep.mubr.bf16.mxu0 %v2860
        %4704 = vmatmul.mubr.bf16.gmra.mxu0 %v2859
        %v4705 = vpop.f32.mrf.mxu0
        %v4706 = vadd.f32 0.0, %v4705
        %v4707 = vpop.f32.mrf.mxu0
        %v4708 = vpop.f32.mrf.mxu0
        %v4709 = vadd.f32 0.0, %v4708
        %v4710 = vpop.f32.mrf.mxu0
        %4711 = vmatprep.mubr.bf16.mxu0 %v2864
        %4712 = vmatmul.mubr.bf16.gmra.mxu0 %v2863
        %v4713 = vpop.f32.mrf.mxu0
        %v4714 = vadd.f32 0.0, %v4713
        %v4715 = vpop.f32.mrf.mxu0
        %v4716 = vpop.f32.mrf.mxu0
        %v4717 = vadd.f32 0.0, %v4716
        %v4718 = vpop.f32.mrf.mxu0
        %4719 = vmatprep.mubr.bf16.mxu0 %v2868
        %4720 = vmatmul.mubr.bf16.gmra.mxu0 %v2867
        %v4721 = vpop.f32.mrf.mxu0
        %v4722 = vadd.f32 0.0, %v4721
        %v4723 = vpop.f32.mrf.mxu0
        %v4724 = vpop.f32.mrf.mxu0
        %v4725 = vadd.f32 0.0, %v4724
        %v4726 = vpop.f32.mrf.mxu0
        %4727 = vmatprep.mubr.bf16.mxu0 %v2872
        %4728 = vmatmul.mubr.bf16.gmra.mxu0 %v2871
        %v4729 = vpop.f32.mrf.mxu0
        %v4730 = vadd.f32 0.0, %v4729
        %v4731 = vpop.f32.mrf.mxu0
        %v4732 = vpop.f32.mrf.mxu0
        %v4733 = vadd.f32 0.0, %v4732
        %v4734 = vpop.f32.mrf.mxu0
        %4735 = vmatprep.mubr.bf16.mxu0 %v2876
        %4736 = vmatmul.mubr.bf16.gmra.mxu0 %v2875
        %v4737 = vpop.f32.mrf.mxu0
        %v4738 = vadd.f32 0.0, %v4737
        %v4739 = vpop.f32.mrf.mxu0
        %v4740 = vpop.f32.mrf.mxu0
        %v4741 = vadd.f32 0.0, %v4740
        %v4742 = vpop.f32.mrf.mxu0
        %4743 = vmatprep.mubr.bf16.mxu0 %v2880
        %4744 = vmatmul.mubr.bf16.gmra.mxu0 %v2879
        %v4745 = vpop.f32.mrf.mxu0
        %v4746 = vadd.f32 0.0, %v4745
        %v4747 = vpop.f32.mrf.mxu0
        %v4748 = vpop.f32.mrf.mxu0
        %v4749 = vadd.f32 0.0, %v4748
        %v4750 = vpop.f32.mrf.mxu0
        %4751 = vmatprep.mubr.bf16.mxu0 %v2884
        %4752 = vmatmul.mubr.bf16.gmra.mxu0 %v2883
        %v4753 = vpop.f32.mrf.mxu0
        %v4754 = vadd.f32 0.0, %v4753
        %v4755 = vpop.f32.mrf.mxu0
        %v4756 = vpop.f32.mrf.mxu0
        %v4757 = vadd.f32 0.0, %v4756
        %v4758 = vpop.f32.mrf.mxu0
        %4759 = vmatprep.mubr.bf16.mxu0 %v2888
        %4760 = vmatmul.mubr.bf16.gmra.mxu0 %v2887
        %v4761 = vpop.f32.mrf.mxu0
        %v4762 = vadd.f32 0.0, %v4761
        %v4763 = vpop.f32.mrf.mxu0
        %v4764 = vpop.f32.mrf.mxu0
        %v4765 = vadd.f32 0.0, %v4764
        %v4766 = vpop.f32.mrf.mxu0
        %4767 = vmatprep.mubr.bf16.mxu0 %v2892
        %4768 = vmatmul.mubr.bf16.gmra.mxu0 %v2891
        %v4769 = vpop.f32.mrf.mxu0
        %v4770 = vadd.f32 0.0, %v4769
        %v4771 = vpop.f32.mrf.mxu0
        %v4772 = vpop.f32.mrf.mxu0
        %v4773 = vadd.f32 0.0, %v4772
        %v4774 = vpop.f32.mrf.mxu0
        %4775 = vmatprep.mubr.bf16.mxu0 %v2896
        %4776 = vmatmul.mubr.bf16.gmra.mxu0 %v2895
        %v4777 = vpop.f32.mrf.mxu0
        %v4778 = vadd.f32 0.0, %v4777
        %v4779 = vpop.f32.mrf.mxu0
        %v4780 = vpop.f32.mrf.mxu0
        %v4781 = vadd.f32 0.0, %v4780
        %v4782 = vpop.f32.mrf.mxu0
        %4783 = vmatprep.mubr.bf16.mxu0 %v2900
        %4784 = vmatmul.mubr.bf16.gmra.mxu0 %v2899
        %v4785 = vpop.f32.mrf.mxu0
        %v4786 = vadd.f32 0.0, %v4785
        %v4787 = vpop.f32.mrf.mxu0
        %v4788 = vpop.f32.mrf.mxu0
        %v4789 = vadd.f32 0.0, %v4788
        %v4790 = vpop.f32.mrf.mxu0
        %4791 = vmatprep.mubr.bf16.mxu0 %v3256
        %4792 = vmatmul.mubr.bf16.gmra.mxu0 %v3255
        %v4793 = vpop.f32.mrf.mxu0
        %v4794 = vadd.f32 0.0, %v4793
        %v4795 = vpop.f32.mrf.mxu0
        %v4796 = vpop.f32.mrf.mxu0
        %v4797 = vadd.f32 0.0, %v4796
        %v4798 = vpop.f32.mrf.mxu0
        %4799 = vmatprep.mubr.bf16.mxu0 %v3260
        %4800 = vmatmul.mubr.bf16.gmra.mxu0 %v3259
        %v4801 = vpop.f32.mrf.mxu0
        %v4802 = vadd.f32 0.0, %v4801
        %v4803 = vpop.f32.mrf.mxu0
        %v4804 = vpop.f32.mrf.mxu0
        %v4805 = vadd.f32 0.0, %v4804
        %v4806 = vpop.f32.mrf.mxu0
        %4807 = vmatprep.mubr.bf16.mxu0 %v3264
        %4808 = vmatmul.mubr.bf16.gmra.mxu0 %v3263
        %v4809 = vpop.f32.mrf.mxu0
        %v4810 = vadd.f32 0.0, %v4809
        %v4811 = vpop.f32.mrf.mxu0
        %v4812 = vpop.f32.mrf.mxu0
        %v4813 = vadd.f32 0.0, %v4812
        %v4814 = vpop.f32.mrf.mxu0
        %4815 = vmatprep.mubr.bf16.mxu0 %v3268
        %4816 = vmatmul.mubr.bf16.gmra.mxu0 %v3267
        %v4817 = vpop.f32.mrf.mxu0
        %v4818 = vadd.f32 0.0, %v4817
        %v4819 = vpop.f32.mrf.mxu0
        %v4820 = vpop.f32.mrf.mxu0
        %v4821 = vadd.f32 0.0, %v4820
        %v4822 = vpop.f32.mrf.mxu0
        %4823 = vmatprep.mubr.bf16.mxu0 %v3272
        %4824 = vmatmul.mubr.bf16.gmra.mxu0 %v3271
        %v4825 = vpop.f32.mrf.mxu0
        %v4826 = vadd.f32 0.0, %v4825
        %v4827 = vpop.f32.mrf.mxu0
        %v4828 = vpop.f32.mrf.mxu0
        %v4829 = vadd.f32 0.0, %v4828
        %v4830 = vpop.f32.mrf.mxu0
        %4831 = vmatprep.mubr.bf16.mxu0 %v3276
        %4832 = vmatmul.mubr.bf16.gmra.mxu0 %v3275
        %v4833 = vpop.f32.mrf.mxu0
        %v4834 = vadd.f32 0.0, %v4833
        %v4835 = vpop.f32.mrf.mxu0
        %v4836 = vpop.f32.mrf.mxu0
        %v4837 = vadd.f32 0.0, %v4836
        %v4838 = vpop.f32.mrf.mxu0
        %4839 = vmatprep.mubr.bf16.mxu0 %v3280
        %4840 = vmatmul.mubr.bf16.gmra.mxu0 %v3279
        %v4841 = vpop.f32.mrf.mxu0
        %v4842 = vadd.f32 0.0, %v4841
        %v4843 = vpop.f32.mrf.mxu0
        %v4844 = vpop.f32.mrf.mxu0
        %v4845 = vadd.f32 0.0, %v4844
        %v4846 = vpop.f32.mrf.mxu0
        %4847 = vmatprep.mubr.bf16.mxu0 %v3284
        %4848 = vmatmul.mubr.bf16.gmra.mxu0 %v3283
        %v4849 = vpop.f32.mrf.mxu0
        %v4850 = vadd.f32 0.0, %v4849
        %v4851 = vpop.f32.mrf.mxu0
        %v4852 = vpop.f32.mrf.mxu0
        %v4853 = vadd.f32 0.0, %v4852
        %v4854 = vpop.f32.mrf.mxu0
        %4855 = vmatprep.mubr.bf16.mxu0 %v3288
        %4856 = vmatmul.mubr.bf16.gmra.mxu0 %v3287
        %v4857 = vpop.f32.mrf.mxu0
        %v4858 = vadd.f32 0.0, %v4857
        %v4859 = vpop.f32.mrf.mxu0
        %v4860 = vpop.f32.mrf.mxu0
        %v4861 = vadd.f32 0.0, %v4860
        %v4862 = vpop.f32.mrf.mxu0
        %4863 = vmatprep.mubr.bf16.mxu0 %v3292
        %4864 = vmatmul.mubr.bf16.gmra.mxu0 %v3291
        %v4865 = vpop.f32.mrf.mxu0
        %v4866 = vadd.f32 0.0, %v4865
        %v4867 = vpop.f32.mrf.mxu0
        %v4868 = vpop.f32.mrf.mxu0
        %v4869 = vadd.f32 0.0, %v4868
        %v4870 = vpop.f32.mrf.mxu0
        %4871 = vmatprep.mubr.bf16.mxu0 %v3296
        %4872 = vmatmul.mubr.bf16.gmra.mxu0 %v3295
        %v4873 = vpop.f32.mrf.mxu0
        %v4874 = vadd.f32 0.0, %v4873
        %v4875 = vpop.f32.mrf.mxu0
        %v4876 = vpop.f32.mrf.mxu0
        %v4877 = vadd.f32 0.0, %v4876
        %v4878 = vpop.f32.mrf.mxu0
        %4879 = vmatprep.mubr.bf16.mxu0 %v3300
        %4880 = vmatmul.mubr.bf16.gmra.mxu0 %v3299
        %v4881 = vpop.f32.mrf.mxu0
        %v4882 = vadd.f32 0.0, %v4881
        %v4883 = vpop.f32.mrf.mxu0
        %v4884 = vpop.f32.mrf.mxu0
        %v4885 = vadd.f32 0.0, %v4884
        %v4886 = vpop.f32.mrf.mxu0
        %4887 = vmatprep.mubr.bf16.mxu0 %v3304
        %4888 = vmatmul.mubr.bf16.gmra.mxu0 %v3303
        %v4889 = vpop.f32.mrf.mxu0
        %v4890 = vadd.f32 0.0, %v4889
        %v4891 = vpop.f32.mrf.mxu0
        %v4892 = vpop.f32.mrf.mxu0
        %v4893 = vadd.f32 0.0, %v4892
        %v4894 = vpop.f32.mrf.mxu0
        %4895 = vmatprep.mubr.bf16.mxu0 %v3308
        %4896 = vmatmul.mubr.bf16.gmra.mxu0 %v3307
        %v4897 = vpop.f32.mrf.mxu0
        %v4898 = vadd.f32 0.0, %v4897
        %v4899 = vpop.f32.mrf.mxu0
        %v4900 = vpop.f32.mrf.mxu0
        %v4901 = vadd.f32 0.0, %v4900
        %v4902 = vpop.f32.mrf.mxu0
        %4903 = vmatprep.mubr.bf16.mxu0 %v3312
        %4904 = vmatmul.mubr.bf16.gmra.mxu0 %v3311
        %v4905 = vpop.f32.mrf.mxu0
        %v4906 = vadd.f32 0.0, %v4905
        %v4907 = vpop.f32.mrf.mxu0
        %v4908 = vpop.f32.mrf.mxu0
        %v4909 = vadd.f32 0.0, %v4908
        %v4910 = vpop.f32.mrf.mxu0
        %4911 = vmatprep.mubr.bf16.mxu0 %v3316
        %4912 = vmatmul.mubr.bf16.gmra.mxu0 %v3315
        %v4913 = vpop.f32.mrf.mxu0
        %v4914 = vadd.f32 0.0, %v4913
        %v4915 = vpop.f32.mrf.mxu0
        %v4916 = vpop.f32.mrf.mxu0
        %v4917 = vadd.f32 0.0, %v4916
        %v4918 = vpop.f32.mrf.mxu0
        %4919 = vmatprep.mubr.bf16.mxu0 %v3672
        %4920 = vmatmul.mubr.bf16.gmra.mxu0 %v3671
        %v4921 = vpop.f32.mrf.mxu0
        %v4922 = vadd.f32 0.0, %v4921
        %v4923 = vpop.f32.mrf.mxu0
        %v4924 = vpop.f32.mrf.mxu0
        %v4925 = vadd.f32 0.0, %v4924
        %v4926 = vpop.f32.mrf.mxu0
        %4927 = vmatprep.mubr.bf16.mxu0 %v3676
        %4928 = vmatmul.mubr.bf16.gmra.mxu0 %v3675
        %v4929 = vpop.f32.mrf.mxu0
        %v4930 = vadd.f32 0.0, %v4929
        %v4931 = vpop.f32.mrf.mxu0
        %v4932 = vpop.f32.mrf.mxu0
        %v4933 = vadd.f32 0.0, %v4932
        %v4934 = vpop.f32.mrf.mxu0
        %4935 = vmatprep.mubr.bf16.mxu0 %v3680
        %4936 = vmatmul.mubr.bf16.gmra.mxu0 %v3679
        %v4937 = vpop.f32.mrf.mxu0
        %v4938 = vadd.f32 0.0, %v4937
        %v4939 = vpop.f32.mrf.mxu0
        %v4940 = vpop.f32.mrf.mxu0
        %v4941 = vadd.f32 0.0, %v4940
        %v4942 = vpop.f32.mrf.mxu0
        %4943 = vmatprep.mubr.bf16.mxu0 %v3684
        %4944 = vmatmul.mubr.bf16.gmra.mxu0 %v3683
        %v4945 = vpop.f32.mrf.mxu0
        %v4946 = vadd.f32 0.0, %v4945
        %v4947 = vpop.f32.mrf.mxu0
        %v4948 = vpop.f32.mrf.mxu0
        %v4949 = vadd.f32 0.0, %v4948
        %v4950 = vpop.f32.mrf.mxu0
        %4951 = vmatprep.mubr.bf16.mxu0 %v3688
        %4952 = vmatmul.mubr.bf16.gmra.mxu0 %v3687
        %v4953 = vpop.f32.mrf.mxu0
        %v4954 = vadd.f32 0.0, %v4953
        %v4955 = vpop.f32.mrf.mxu0
        %v4956 = vpop.f32.mrf.mxu0
        %v4957 = vadd.f32 0.0, %v4956
        %v4958 = vpop.f32.mrf.mxu0
        %4959 = vmatprep.mubr.bf16.mxu0 %v3692
        %4960 = vmatmul.mubr.bf16.gmra.mxu0 %v3691
        %v4961 = vpop.f32.mrf.mxu0
        %v4962 = vadd.f32 0.0, %v4961
        %v4963 = vpop.f32.mrf.mxu0
        %v4964 = vpop.f32.mrf.mxu0
        %v4965 = vadd.f32 0.0, %v4964
        %v4966 = vpop.f32.mrf.mxu0
        %4967 = vmatprep.mubr.bf16.mxu0 %v3696
        %4968 = vmatmul.mubr.bf16.gmra.mxu0 %v3695
        %v4969 = vpop.f32.mrf.mxu0
        %v4970 = vadd.f32 0.0, %v4969
        %v4971 = vpop.f32.mrf.mxu0
        %v4972 = vpop.f32.mrf.mxu0
        %v4973 = vadd.f32 0.0, %v4972
        %v4974 = vpop.f32.mrf.mxu0
        %4975 = vmatprep.mubr.bf16.mxu0 %v3700
        %4976 = vmatmul.mubr.bf16.gmra.mxu0 %v3699
        %v4977 = vpop.f32.mrf.mxu0
        %v4978 = vadd.f32 0.0, %v4977
        %v4979 = vpop.f32.mrf.mxu0
        %v4980 = vpop.f32.mrf.mxu0
        %v4981 = vadd.f32 0.0, %v4980
        %v4982 = vpop.f32.mrf.mxu0
        %4983 = vmatprep.mubr.bf16.mxu0 %v3704
        %4984 = vmatmul.mubr.bf16.gmra.mxu0 %v3703
        %v4985 = vpop.f32.mrf.mxu0
        %v4986 = vadd.f32 0.0, %v4985
        %v4987 = vpop.f32.mrf.mxu0
        %v4988 = vpop.f32.mrf.mxu0
        %v4989 = vadd.f32 0.0, %v4988
        %v4990 = vpop.f32.mrf.mxu0
        %4991 = vmatprep.mubr.bf16.mxu0 %v3708
        %4992 = vmatmul.mubr.bf16.gmra.mxu0 %v3707
        %v4993 = vpop.f32.mrf.mxu0
        %v4994 = vadd.f32 0.0, %v4993
        %v4995 = vpop.f32.mrf.mxu0
        %v4996 = vpop.f32.mrf.mxu0
        %v4997 = vadd.f32 0.0, %v4996
        %v4998 = vpop.f32.mrf.mxu0
        %4999 = vmatprep.mubr.bf16.mxu0 %v3712
        %5000 = vmatmul.mubr.bf16.gmra.mxu0 %v3711
        %v5001 = vpop.f32.mrf.mxu0
        %v5002 = vadd.f32 0.0, %v5001
        %v5003 = vpop.f32.mrf.mxu0
        %v5004 = vpop.f32.mrf.mxu0
        %v5005 = vadd.f32 0.0, %v5004
        %v5006 = vpop.f32.mrf.mxu0
        %5007 = vmatprep.mubr.bf16.mxu0 %v3716
        %5008 = vmatmul.mubr.bf16.gmra.mxu0 %v3715
        %v5009 = vpop.f32.mrf.mxu0
        %v5010 = vadd.f32 0.0, %v5009
        %v5011 = vpop.f32.mrf.mxu0
        %v5012 = vpop.f32.mrf.mxu0
        %v5013 = vadd.f32 0.0, %v5012
        %v5014 = vpop.f32.mrf.mxu0
        %5015 = vmatprep.mubr.bf16.mxu0 %v3720
        %5016 = vmatmul.mubr.bf16.gmra.mxu0 %v3719
        %v5017 = vpop.f32.mrf.mxu0
        %v5018 = vadd.f32 0.0, %v5017
        %v5019 = vpop.f32.mrf.mxu0
        %v5020 = vpop.f32.mrf.mxu0
        %v5021 = vadd.f32 0.0, %v5020
        %v5022 = vpop.f32.mrf.mxu0
        %5023 = vmatprep.mubr.bf16.mxu0 %v3724
        %5024 = vmatmul.mubr.bf16.gmra.mxu0 %v3723
        %v5025 = vpop.f32.mrf.mxu0
        %v5026 = vadd.f32 0.0, %v5025
        %v5027 = vpop.f32.mrf.mxu0
        %v5028 = vpop.f32.mrf.mxu0
        %v5029 = vadd.f32 0.0, %v5028
        %v5030 = vpop.f32.mrf.mxu0
        %5031 = vmatprep.mubr.bf16.mxu0 %v3728
        %5032 = vmatmul.mubr.bf16.gmra.mxu0 %v3727
        %v5033 = vpop.f32.mrf.mxu0
        %v5034 = vadd.f32 0.0, %v5033
        %v5035 = vpop.f32.mrf.mxu0
        %v5036 = vpop.f32.mrf.mxu0
        %v5037 = vadd.f32 0.0, %v5036
        %v5038 = vpop.f32.mrf.mxu0
        %5039 = vmatprep.mubr.bf16.mxu0 %v3732
        %5040 = vmatmul.mubr.bf16.gmra.mxu0 %v3731
        %v5041 = vpop.f32.mrf.mxu0
        %v5042 = vadd.f32 0.0, %v5041
        %v5043 = vpop.f32.mrf.mxu0
        %v5044 = vpop.f32.mrf.mxu0
        %v5045 = vadd.f32 0.0, %v5044
        %v5046 = vpop.f32.mrf.mxu0
        %5047 = vdwg.mxu0
        %5048 = vmatprep.subr.bf16.mxu0 0
        %5049 = vmatpush1.bf16.msra.mxu0 %v3950
        %5050 = vmatprep.subr.bf16.mxu0 0
        %5051 = vmatpush1.bf16.msra.mxu0 %v3949
        %5052 = vmatprep.subr.bf16.mxu0 0
        %5053 = vmatpush1.bf16.msra.mxu0 %v3948
        %5054 = vmatprep.subr.bf16.mxu0 0
        %5055 = vmatpush1.bf16.msra.mxu0 %v3947
        %5056 = vmatprep.subr.bf16.mxu0 0
        %5057 = vmatpush1.bf16.msra.mxu0 %v3946
        %5058 = vmatprep.subr.bf16.mxu0 0
        %5059 = vmatpush1.bf16.msra.mxu0 %v3945
        %5060 = vmatprep.subr.bf16.mxu0 0
        %5061 = vmatpush1.bf16.msra.mxu0 %v3944
        %5062 = vmatprep.subr.bf16.mxu0 0
        %5063 = vmatpush1.bf16.msra.mxu0 %v3943
        %5064 = vmatprep.subr.bf16.mxu0 0
        %5065 = vmatpush2.bf16.msra.mxu0 %v3958
        %5066 = vmatprep.subr.bf16.mxu0 0
        %5067 = vmatpush2.bf16.msra.mxu0 %v3957
        %5068 = vmatprep.subr.bf16.mxu0 0
        %5069 = vmatpush2.bf16.msra.mxu0 %v3956
        %5070 = vmatprep.subr.bf16.mxu0 0
        %5071 = vmatpush2.bf16.msra.mxu0 %v3955
        %5072 = vmatprep.subr.bf16.mxu0 0
        %5073 = vmatpush2.bf16.msra.mxu0 %v3954
        %5074 = vmatprep.subr.bf16.mxu0 0
        %5075 = vmatpush2.bf16.msra.mxu0 %v3953
        %5076 = vmatprep.subr.bf16.mxu0 0
        %5077 = vmatpush2.bf16.msra.mxu0 %v3952
        %5078 = vmatprep.subr.bf16.mxu0 0
        %5079 = vmatpush2.bf16.msra.mxu0 %v3951
        %5080 = vmatprep.mubr.bf16.mxu0 %v762
        %5081 = vmatmul.mubr.bf16.gmra.mxu0 %v761
        %v5082 = vpop.f32.mrf.mxu0
        %v5083 = vadd.f32 %v4026, %v5082
        %v5084 = vpop.f32.mrf.mxu0
        %v5085 = vpop.f32.mrf.mxu0
        %v5086 = vadd.f32 %v4029, %v5085
        %v5087 = vpop.f32.mrf.mxu0
        %5088 = vmatprep.mubr.bf16.mxu0 %v766
        %5089 = vmatmul.mubr.bf16.gmra.mxu0 %v765
        %v5090 = vpop.f32.mrf.mxu0
        %v5091 = vadd.f32 %v4034, %v5090
        %v5092 = vpop.f32.mrf.mxu0
        %v5093 = vpop.f32.mrf.mxu0
        %v5094 = vadd.f32 %v4037, %v5093
        %v5095 = vpop.f32.mrf.mxu0
        %5096 = vmatprep.mubr.bf16.mxu0 %v770
        %5097 = vmatmul.mubr.bf16.gmra.mxu0 %v769
        %v5098 = vpop.f32.mrf.mxu0
        %v5099 = vadd.f32 %v4042, %v5098
        %v5100 = vpop.f32.mrf.mxu0
        %v5101 = vpop.f32.mrf.mxu0
        %v5102 = vadd.f32 %v4045, %v5101
        %v5103 = vpop.f32.mrf.mxu0
        %5104 = vmatprep.mubr.bf16.mxu0 %v774
        %5105 = vmatmul.mubr.bf16.gmra.mxu0 %v773
        %v5106 = vpop.f32.mrf.mxu0
        %v5107 = vadd.f32 %v4050, %v5106
        %v5108 = vpop.f32.mrf.mxu0
        %v5109 = vpop.f32.mrf.mxu0
        %v5110 = vadd.f32 %v4053, %v5109
        %v5111 = vpop.f32.mrf.mxu0
        %5112 = vmatprep.mubr.bf16.mxu0 %v778
        %5113 = vmatmul.mubr.bf16.gmra.mxu0 %v777
        %v5114 = vpop.f32.mrf.mxu0
        %v5115 = vadd.f32 %v4058, %v5114
        %v5116 = vpop.f32.mrf.mxu0
        %v5117 = vpop.f32.mrf.mxu0
        %v5118 = vadd.f32 %v4061, %v5117
        %v5119 = vpop.f32.mrf.mxu0
        %5120 = vmatprep.mubr.bf16.mxu0 %v782
        %5121 = vmatmul.mubr.bf16.gmra.mxu0 %v781
        %v5122 = vpop.f32.mrf.mxu0
        %v5123 = vadd.f32 %v4066, %v5122
        %v5124 = vpop.f32.mrf.mxu0
        %v5125 = vpop.f32.mrf.mxu0
        %v5126 = vadd.f32 %v4069, %v5125
        %v5127 = vpop.f32.mrf.mxu0
        %5128 = vmatprep.mubr.bf16.mxu0 %v786
        %5129 = vmatmul.mubr.bf16.gmra.mxu0 %v785
        %v5130 = vpop.f32.mrf.mxu0
        %v5131 = vadd.f32 %v4074, %v5130
        %v5132 = vpop.f32.mrf.mxu0
        %v5133 = vpop.f32.mrf.mxu0
        %v5134 = vadd.f32 %v4077, %v5133
        %v5135 = vpop.f32.mrf.mxu0
        %5136 = vmatprep.mubr.bf16.mxu0 %v790
        %5137 = vmatmul.mubr.bf16.gmra.mxu0 %v789
        %v5138 = vpop.f32.mrf.mxu0
        %v5139 = vadd.f32 %v4082, %v5138
        %v5140 = vpop.f32.mrf.mxu0
        %v5141 = vpop.f32.mrf.mxu0
        %v5142 = vadd.f32 %v4085, %v5141
        %v5143 = vpop.f32.mrf.mxu0
        %5144 = vmatprep.mubr.bf16.mxu0 %v794
        %5145 = vmatmul.mubr.bf16.gmra.mxu0 %v793
        %v5146 = vpop.f32.mrf.mxu0
        %v5147 = vadd.f32 %v4090, %v5146
        %v5148 = vpop.f32.mrf.mxu0
        %v5149 = vpop.f32.mrf.mxu0
        %v5150 = vadd.f32 %v4093, %v5149
        %v5151 = vpop.f32.mrf.mxu0
        %5152 = vmatprep.mubr.bf16.mxu0 %v798
        %5153 = vmatmul.mubr.bf16.gmra.mxu0 %v797
        %v5154 = vpop.f32.mrf.mxu0
        %v5155 = vadd.f32 %v4098, %v5154
        %v5156 = vpop.f32.mrf.mxu0
        %v5157 = vpop.f32.mrf.mxu0
        %v5158 = vadd.f32 %v4101, %v5157
        %v5159 = vpop.f32.mrf.mxu0
        %5160 = vmatprep.mubr.bf16.mxu0 %v802
        %5161 = vmatmul.mubr.bf16.gmra.mxu0 %v801
        %v5162 = vpop.f32.mrf.mxu0
        %v5163 = vadd.f32 %v4106, %v5162
        %v5164 = vpop.f32.mrf.mxu0
        %v5165 = vpop.f32.mrf.mxu0
        %v5166 = vadd.f32 %v4109, %v5165
        %v5167 = vpop.f32.mrf.mxu0
        %5168 = vmatprep.mubr.bf16.mxu0 %v806
        %5169 = vmatmul.mubr.bf16.gmra.mxu0 %v805
        %v5170 = vpop.f32.mrf.mxu0
        %v5171 = vadd.f32 %v4114, %v5170
        %v5172 = vpop.f32.mrf.mxu0
        %v5173 = vpop.f32.mrf.mxu0
        %v5174 = vadd.f32 %v4117, %v5173
        %v5175 = vpop.f32.mrf.mxu0
        %5176 = vmatprep.mubr.bf16.mxu0 %v810
        %5177 = vmatmul.mubr.bf16.gmra.mxu0 %v809
        %v5178 = vpop.f32.mrf.mxu0
        %v5179 = vadd.f32 %v4122, %v5178
        %v5180 = vpop.f32.mrf.mxu0
        %v5181 = vpop.f32.mrf.mxu0
        %v5182 = vadd.f32 %v4125, %v5181
        %v5183 = vpop.f32.mrf.mxu0
        %5184 = vmatprep.mubr.bf16.mxu0 %v814
        %5185 = vmatmul.mubr.bf16.gmra.mxu0 %v813
        %v5186 = vpop.f32.mrf.mxu0
        %v5187 = vadd.f32 %v4130, %v5186
        %v5188 = vpop.f32.mrf.mxu0
        %v5189 = vpop.f32.mrf.mxu0
        %v5190 = vadd.f32 %v4133, %v5189
        %v5191 = vpop.f32.mrf.mxu0
        %5192 = vmatprep.mubr.bf16.mxu0 %v818
        %5193 = vmatmul.mubr.bf16.gmra.mxu0 %v817
        %v5194 = vpop.f32.mrf.mxu0
        %v5195 = vadd.f32 %v4138, %v5194
        %v5196 = vpop.f32.mrf.mxu0
        %v5197 = vpop.f32.mrf.mxu0
        %v5198 = vadd.f32 %v4141, %v5197
        %v5199 = vpop.f32.mrf.mxu0
        %5200 = vmatprep.mubr.bf16.mxu0 %v822
        %5201 = vmatmul.mubr.bf16.gmra.mxu0 %v821
        %v5202 = vpop.f32.mrf.mxu0
        %v5203 = vadd.f32 %v4146, %v5202
        %v5204 = vpop.f32.mrf.mxu0
        %v5205 = vpop.f32.mrf.mxu0
        %v5206 = vadd.f32 %v4149, %v5205
        %v5207 = vpop.f32.mrf.mxu0
        %5208 = vmatprep.mubr.bf16.mxu0 %v1178
        %5209 = vmatmul.mubr.bf16.gmra.mxu0 %v1177
        %v5210 = vpop.f32.mrf.mxu0
        %v5211 = vadd.f32 %v4154, %v5210
        %v5212 = vpop.f32.mrf.mxu0
        %v5213 = vpop.f32.mrf.mxu0
        %v5214 = vadd.f32 %v4157, %v5213
        %v5215 = vpop.f32.mrf.mxu0
        %5216 = vmatprep.mubr.bf16.mxu0 %v1182
        %5217 = vmatmul.mubr.bf16.gmra.mxu0 %v1181
        %v5218 = vpop.f32.mrf.mxu0
        %v5219 = vadd.f32 %v4162, %v5218
        %v5220 = vpop.f32.mrf.mxu0
        %v5221 = vpop.f32.mrf.mxu0
        %v5222 = vadd.f32 %v4165, %v5221
        %v5223 = vpop.f32.mrf.mxu0
        %5224 = vmatprep.mubr.bf16.mxu0 %v1186
        %5225 = vmatmul.mubr.bf16.gmra.mxu0 %v1185
        %v5226 = vpop.f32.mrf.mxu0
        %v5227 = vadd.f32 %v4170, %v5226
        %v5228 = vpop.f32.mrf.mxu0
        %v5229 = vpop.f32.mrf.mxu0
        %v5230 = vadd.f32 %v4173, %v5229
        %v5231 = vpop.f32.mrf.mxu0
        %5232 = vmatprep.mubr.bf16.mxu0 %v1190
        %5233 = vmatmul.mubr.bf16.gmra.mxu0 %v1189
        %v5234 = vpop.f32.mrf.mxu0
        %v5235 = vadd.f32 %v4178, %v5234
        %v5236 = vpop.f32.mrf.mxu0
        %v5237 = vpop.f32.mrf.mxu0
        %v5238 = vadd.f32 %v4181, %v5237
        %v5239 = vpop.f32.mrf.mxu0
        %5240 = vmatprep.mubr.bf16.mxu0 %v1194
        %5241 = vmatmul.mubr.bf16.gmra.mxu0 %v1193
        %v5242 = vpop.f32.mrf.mxu0
        %v5243 = vadd.f32 %v4186, %v5242
        %v5244 = vpop.f32.mrf.mxu0
        %v5245 = vpop.f32.mrf.mxu0
        %v5246 = vadd.f32 %v4189, %v5245
        %v5247 = vpop.f32.mrf.mxu0
        %5248 = vmatprep.mubr.bf16.mxu0 %v1198
        %5249 = vmatmul.mubr.bf16.gmra.mxu0 %v1197
        %v5250 = vpop.f32.mrf.mxu0
        %v5251 = vadd.f32 %v4194, %v5250
        %v5252 = vpop.f32.mrf.mxu0
        %v5253 = vpop.f32.mrf.mxu0
        %v5254 = vadd.f32 %v4197, %v5253
        %v5255 = vpop.f32.mrf.mxu0
        %5256 = vmatprep.mubr.bf16.mxu0 %v1202
        %5257 = vmatmul.mubr.bf16.gmra.mxu0 %v1201
        %v5258 = vpop.f32.mrf.mxu0
        %v5259 = vadd.f32 %v4202, %v5258
        %v5260 = vpop.f32.mrf.mxu0
        %v5261 = vpop.f32.mrf.mxu0
        %v5262 = vadd.f32 %v4205, %v5261
        %v5263 = vpop.f32.mrf.mxu0
        %5264 = vmatprep.mubr.bf16.mxu0 %v1206
        %5265 = vmatmul.mubr.bf16.gmra.mxu0 %v1205
        %v5266 = vpop.f32.mrf.mxu0
        %v5267 = vadd.f32 %v4210, %v5266
        %v5268 = vpop.f32.mrf.mxu0
        %v5269 = vpop.f32.mrf.mxu0
        %v5270 = vadd.f32 %v4213, %v5269
        %v5271 = vpop.f32.mrf.mxu0
        %5272 = vmatprep.mubr.bf16.mxu0 %v1210
        %5273 = vmatmul.mubr.bf16.gmra.mxu0 %v1209
        %v5274 = vpop.f32.mrf.mxu0
        %v5275 = vadd.f32 %v4218, %v5274
        %v5276 = vpop.f32.mrf.mxu0
        %v5277 = vpop.f32.mrf.mxu0
        %v5278 = vadd.f32 %v4221, %v5277
        %v5279 = vpop.f32.mrf.mxu0
        %5280 = vmatprep.mubr.bf16.mxu0 %v1214
        %5281 = vmatmul.mubr.bf16.gmra.mxu0 %v1213
        %v5282 = vpop.f32.mrf.mxu0
        %v5283 = vadd.f32 %v4226, %v5282
        %v5284 = vpop.f32.mrf.mxu0
        %v5285 = vpop.f32.mrf.mxu0
        %v5286 = vadd.f32 %v4229, %v5285
        %v5287 = vpop.f32.mrf.mxu0
        %5288 = vmatprep.mubr.bf16.mxu0 %v1218
        %5289 = vmatmul.mubr.bf16.gmra.mxu0 %v1217
        %v5290 = vpop.f32.mrf.mxu0
        %v5291 = vadd.f32 %v4234, %v5290
        %v5292 = vpop.f32.mrf.mxu0
        %v5293 = vpop.f32.mrf.mxu0
        %v5294 = vadd.f32 %v4237, %v5293
        %v5295 = vpop.f32.mrf.mxu0
        %5296 = vmatprep.mubr.bf16.mxu0 %v1222
        %5297 = vmatmul.mubr.bf16.gmra.mxu0 %v1221
        %v5298 = vpop.f32.mrf.mxu0
        %v5299 = vadd.f32 %v4242, %v5298
        %v5300 = vpop.f32.mrf.mxu0
        %v5301 = vpop.f32.mrf.mxu0
        %v5302 = vadd.f32 %v4245, %v5301
        %v5303 = vpop.f32.mrf.mxu0
        %5304 = vmatprep.mubr.bf16.mxu0 %v1226
        %5305 = vmatmul.mubr.bf16.gmra.mxu0 %v1225
        %v5306 = vpop.f32.mrf.mxu0
        %v5307 = vadd.f32 %v4250, %v5306
        %v5308 = vpop.f32.mrf.mxu0
        %v5309 = vpop.f32.mrf.mxu0
        %v5310 = vadd.f32 %v4253, %v5309
        %v5311 = vpop.f32.mrf.mxu0
        %5312 = vmatprep.mubr.bf16.mxu0 %v1230
        %5313 = vmatmul.mubr.bf16.gmra.mxu0 %v1229
        %v5314 = vpop.f32.mrf.mxu0
        %v5315 = vadd.f32 %v4258, %v5314
        %v5316 = vpop.f32.mrf.mxu0
        %v5317 = vpop.f32.mrf.mxu0
        %v5318 = vadd.f32 %v4261, %v5317
        %v5319 = vpop.f32.mrf.mxu0
        %5320 = vmatprep.mubr.bf16.mxu0 %v1234
        %5321 = vmatmul.mubr.bf16.gmra.mxu0 %v1233
        %v5322 = vpop.f32.mrf.mxu0
        %v5323 = vadd.f32 %v4266, %v5322
        %v5324 = vpop.f32.mrf.mxu0
        %v5325 = vpop.f32.mrf.mxu0
        %v5326 = vadd.f32 %v4269, %v5325
        %v5327 = vpop.f32.mrf.mxu0
        %5328 = vmatprep.mubr.bf16.mxu0 %v1238
        %5329 = vmatmul.mubr.bf16.gmra.mxu0 %v1237
        %v5330 = vpop.f32.mrf.mxu0
        %v5331 = vadd.f32 %v4274, %v5330
        %v5332 = vpop.f32.mrf.mxu0
        %v5333 = vpop.f32.mrf.mxu0
        %v5334 = vadd.f32 %v4277, %v5333
        %v5335 = vpop.f32.mrf.mxu0
        %5336 = vmatprep.mubr.bf16.mxu0 %v1594
        %5337 = vmatmul.mubr.bf16.gmra.mxu0 %v1593
        %v5338 = vpop.f32.mrf.mxu0
        %v5339 = vadd.f32 %v4282, %v5338
        %v5340 = vpop.f32.mrf.mxu0
        %v5341 = vpop.f32.mrf.mxu0
        %v5342 = vadd.f32 %v4285, %v5341
        %v5343 = vpop.f32.mrf.mxu0
        %5344 = vmatprep.mubr.bf16.mxu0 %v1598
        %5345 = vmatmul.mubr.bf16.gmra.mxu0 %v1597
        %v5346 = vpop.f32.mrf.mxu0
        %v5347 = vadd.f32 %v4290, %v5346
        %v5348 = vpop.f32.mrf.mxu0
        %v5349 = vpop.f32.mrf.mxu0
        %v5350 = vadd.f32 %v4293, %v5349
        %v5351 = vpop.f32.mrf.mxu0
        %5352 = vmatprep.mubr.bf16.mxu0 %v1602
        %5353 = vmatmul.mubr.bf16.gmra.mxu0 %v1601
        %v5354 = vpop.f32.mrf.mxu0
        %v5355 = vadd.f32 %v4298, %v5354
        %v5356 = vpop.f32.mrf.mxu0
        %v5357 = vpop.f32.mrf.mxu0
        %v5358 = vadd.f32 %v4301, %v5357
        %v5359 = vpop.f32.mrf.mxu0
        %5360 = vmatprep.mubr.bf16.mxu0 %v1606
        %5361 = vmatmul.mubr.bf16.gmra.mxu0 %v1605
        %v5362 = vpop.f32.mrf.mxu0
        %v5363 = vadd.f32 %v4306, %v5362
        %v5364 = vpop.f32.mrf.mxu0
        %v5365 = vpop.f32.mrf.mxu0
        %v5366 = vadd.f32 %v4309, %v5365
        %v5367 = vpop.f32.mrf.mxu0
        %5368 = vmatprep.mubr.bf16.mxu0 %v1610
        %5369 = vmatmul.mubr.bf16.gmra.mxu0 %v1609
        %v5370 = vpop.f32.mrf.mxu0
        %v5371 = vadd.f32 %v4314, %v5370
        %v5372 = vpop.f32.mrf.mxu0
        %v5373 = vpop.f32.mrf.mxu0
        %v5374 = vadd.f32 %v4317, %v5373
        %v5375 = vpop.f32.mrf.mxu0
        %5376 = vmatprep.mubr.bf16.mxu0 %v1614
        %5377 = vmatmul.mubr.bf16.gmra.mxu0 %v1613
        %v5378 = vpop.f32.mrf.mxu0
        %v5379 = vadd.f32 %v4322, %v5378
        %v5380 = vpop.f32.mrf.mxu0
        %v5381 = vpop.f32.mrf.mxu0
        %v5382 = vadd.f32 %v4325, %v5381
        %v5383 = vpop.f32.mrf.mxu0
        %5384 = vmatprep.mubr.bf16.mxu0 %v1618
        %5385 = vmatmul.mubr.bf16.gmra.mxu0 %v1617
        %v5386 = vpop.f32.mrf.mxu0
        %v5387 = vadd.f32 %v4330, %v5386
        %v5388 = vpop.f32.mrf.mxu0
        %v5389 = vpop.f32.mrf.mxu0
        %v5390 = vadd.f32 %v4333, %v5389
        %v5391 = vpop.f32.mrf.mxu0
        %5392 = vmatprep.mubr.bf16.mxu0 %v1622
        %5393 = vmatmul.mubr.bf16.gmra.mxu0 %v1621
        %v5394 = vpop.f32.mrf.mxu0
        %v5395 = vadd.f32 %v4338, %v5394
        %v5396 = vpop.f32.mrf.mxu0
        %v5397 = vpop.f32.mrf.mxu0
        %v5398 = vadd.f32 %v4341, %v5397
        %v5399 = vpop.f32.mrf.mxu0
        %5400 = vmatprep.mubr.bf16.mxu0 %v1626
        %5401 = vmatmul.mubr.bf16.gmra.mxu0 %v1625
        %v5402 = vpop.f32.mrf.mxu0
        %v5403 = vadd.f32 %v4346, %v5402
        %v5404 = vpop.f32.mrf.mxu0
        %v5405 = vpop.f32.mrf.mxu0
        %v5406 = vadd.f32 %v4349, %v5405
        %v5407 = vpop.f32.mrf.mxu0
        %5408 = vmatprep.mubr.bf16.mxu0 %v1630
        %5409 = vmatmul.mubr.bf16.gmra.mxu0 %v1629
        %v5410 = vpop.f32.mrf.mxu0
        %v5411 = vadd.f32 %v4354, %v5410
        %v5412 = vpop.f32.mrf.mxu0
        %v5413 = vpop.f32.mrf.mxu0
        %v5414 = vadd.f32 %v4357, %v5413
        %v5415 = vpop.f32.mrf.mxu0
        %5416 = vmatprep.mubr.bf16.mxu0 %v1634
        %5417 = vmatmul.mubr.bf16.gmra.mxu0 %v1633
        %v5418 = vpop.f32.mrf.mxu0
        %v5419 = vadd.f32 %v4362, %v5418
        %v5420 = vpop.f32.mrf.mxu0
        %v5421 = vpop.f32.mrf.mxu0
        %v5422 = vadd.f32 %v4365, %v5421
        %v5423 = vpop.f32.mrf.mxu0
        %5424 = vmatprep.mubr.bf16.mxu0 %v1638
        %5425 = vmatmul.mubr.bf16.gmra.mxu0 %v1637
        %v5426 = vpop.f32.mrf.mxu0
        %v5427 = vadd.f32 %v4370, %v5426
        %v5428 = vpop.f32.mrf.mxu0
        %v5429 = vpop.f32.mrf.mxu0
        %v5430 = vadd.f32 %v4373, %v5429
        %v5431 = vpop.f32.mrf.mxu0
        %5432 = vmatprep.mubr.bf16.mxu0 %v1642
        %5433 = vmatmul.mubr.bf16.gmra.mxu0 %v1641
        %v5434 = vpop.f32.mrf.mxu0
        %v5435 = vadd.f32 %v4378, %v5434
        %v5436 = vpop.f32.mrf.mxu0
        %v5437 = vpop.f32.mrf.mxu0
        %v5438 = vadd.f32 %v4381, %v5437
        %v5439 = vpop.f32.mrf.mxu0
        %5440 = vmatprep.mubr.bf16.mxu0 %v1646
        %5441 = vmatmul.mubr.bf16.gmra.mxu0 %v1645
        %v5442 = vpop.f32.mrf.mxu0
        %v5443 = vadd.f32 %v4386, %v5442
        %v5444 = vpop.f32.mrf.mxu0
        %v5445 = vpop.f32.mrf.mxu0
        %v5446 = vadd.f32 %v4389, %v5445
        %v5447 = vpop.f32.mrf.mxu0
        %5448 = vmatprep.mubr.bf16.mxu0 %v1650
        %5449 = vmatmul.mubr.bf16.gmra.mxu0 %v1649
        %v5450 = vpop.f32.mrf.mxu0
        %v5451 = vadd.f32 %v4394, %v5450
        %v5452 = vpop.f32.mrf.mxu0
        %v5453 = vpop.f32.mrf.mxu0
        %v5454 = vadd.f32 %v4397, %v5453
        %v5455 = vpop.f32.mrf.mxu0
        %5456 = vmatprep.mubr.bf16.mxu0 %v1654
        %5457 = vmatmul.mubr.bf16.gmra.mxu0 %v1653
        %v5458 = vpop.f32.mrf.mxu0
        %v5459 = vadd.f32 %v4402, %v5458
        %v5460 = vpop.f32.mrf.mxu0
        %v5461 = vpop.f32.mrf.mxu0
        %v5462 = vadd.f32 %v4405, %v5461
        %v5463 = vpop.f32.mrf.mxu0
        %5464 = vmatprep.mubr.bf16.mxu0 %v2010
        %5465 = vmatmul.mubr.bf16.gmra.mxu0 %v2009
        %v5466 = vpop.f32.mrf.mxu0
        %v5467 = vadd.f32 %v4410, %v5466
        %v5468 = vpop.f32.mrf.mxu0
        %v5469 = vpop.f32.mrf.mxu0
        %v5470 = vadd.f32 %v4413, %v5469
        %v5471 = vpop.f32.mrf.mxu0
        %5472 = vmatprep.mubr.bf16.mxu0 %v2014
        %5473 = vmatmul.mubr.bf16.gmra.mxu0 %v2013
        %v5474 = vpop.f32.mrf.mxu0
        %v5475 = vadd.f32 %v4418, %v5474
        %v5476 = vpop.f32.mrf.mxu0
        %v5477 = vpop.f32.mrf.mxu0
        %v5478 = vadd.f32 %v4421, %v5477
        %v5479 = vpop.f32.mrf.mxu0
        %5480 = vmatprep.mubr.bf16.mxu0 %v2018
        %5481 = vmatmul.mubr.bf16.gmra.mxu0 %v2017
        %v5482 = vpop.f32.mrf.mxu0
        %v5483 = vadd.f32 %v4426, %v5482
        %v5484 = vpop.f32.mrf.mxu0
        %v5485 = vpop.f32.mrf.mxu0
        %v5486 = vadd.f32 %v4429, %v5485
        %v5487 = vpop.f32.mrf.mxu0
        %5488 = vmatprep.mubr.bf16.mxu0 %v2022
        %5489 = vmatmul.mubr.bf16.gmra.mxu0 %v2021
        %v5490 = vpop.f32.mrf.mxu0
        %v5491 = vadd.f32 %v4434, %v5490
        %v5492 = vpop.f32.mrf.mxu0
        %v5493 = vpop.f32.mrf.mxu0
        %v5494 = vadd.f32 %v4437, %v5493
        %v5495 = vpop.f32.mrf.mxu0
        %5496 = vmatprep.mubr.bf16.mxu0 %v2026
        %5497 = vmatmul.mubr.bf16.gmra.mxu0 %v2025
        %v5498 = vpop.f32.mrf.mxu0
        %v5499 = vadd.f32 %v4442, %v5498
        %v5500 = vpop.f32.mrf.mxu0
        %v5501 = vpop.f32.mrf.mxu0
        %v5502 = vadd.f32 %v4445, %v5501
        %v5503 = vpop.f32.mrf.mxu0
        %5504 = vmatprep.mubr.bf16.mxu0 %v2030
        %5505 = vmatmul.mubr.bf16.gmra.mxu0 %v2029
        %v5506 = vpop.f32.mrf.mxu0
        %v5507 = vadd.f32 %v4450, %v5506
        %v5508 = vpop.f32.mrf.mxu0
        %v5509 = vpop.f32.mrf.mxu0
        %v5510 = vadd.f32 %v4453, %v5509
        %v5511 = vpop.f32.mrf.mxu0
        %5512 = vmatprep.mubr.bf16.mxu0 %v2034
        %5513 = vmatmul.mubr.bf16.gmra.mxu0 %v2033
        %v5514 = vpop.f32.mrf.mxu0
        %v5515 = vadd.f32 %v4458, %v5514
        %v5516 = vpop.f32.mrf.mxu0
        %v5517 = vpop.f32.mrf.mxu0
        %v5518 = vadd.f32 %v4461, %v5517
        %v5519 = vpop.f32.mrf.mxu0
        %5520 = vmatprep.mubr.bf16.mxu0 %v2038
        %5521 = vmatmul.mubr.bf16.gmra.mxu0 %v2037
        %v5522 = vpop.f32.mrf.mxu0
        %v5523 = vadd.f32 %v4466, %v5522
        %v5524 = vpop.f32.mrf.mxu0
        %v5525 = vpop.f32.mrf.mxu0
        %v5526 = vadd.f32 %v4469, %v5525
        %v5527 = vpop.f32.mrf.mxu0
        %5528 = vmatprep.mubr.bf16.mxu0 %v2042
        %5529 = vmatmul.mubr.bf16.gmra.mxu0 %v2041
        %v5530 = vpop.f32.mrf.mxu0
        %v5531 = vadd.f32 %v4474, %v5530
        %v5532 = vpop.f32.mrf.mxu0
        %v5533 = vpop.f32.mrf.mxu0
        %v5534 = vadd.f32 %v4477, %v5533
        %v5535 = vpop.f32.mrf.mxu0
        %5536 = vmatprep.mubr.bf16.mxu0 %v2046
        %5537 = vmatmul.mubr.bf16.gmra.mxu0 %v2045
        %v5538 = vpop.f32.mrf.mxu0
        %v5539 = vadd.f32 %v4482, %v5538
        %v5540 = vpop.f32.mrf.mxu0
        %v5541 = vpop.f32.mrf.mxu0
        %v5542 = vadd.f32 %v4485, %v5541
        %v5543 = vpop.f32.mrf.mxu0
        %5544 = vmatprep.mubr.bf16.mxu0 %v2050
        %5545 = vmatmul.mubr.bf16.gmra.mxu0 %v2049
        %v5546 = vpop.f32.mrf.mxu0
        %v5547 = vadd.f32 %v4490, %v5546
        %v5548 = vpop.f32.mrf.mxu0
        %v5549 = vpop.f32.mrf.mxu0
        %v5550 = vadd.f32 %v4493, %v5549
        %v5551 = vpop.f32.mrf.mxu0
        %5552 = vmatprep.mubr.bf16.mxu0 %v2054
        %5553 = vmatmul.mubr.bf16.gmra.mxu0 %v2053
        %v5554 = vpop.f32.mrf.mxu0
        %v5555 = vadd.f32 %v4498, %v5554
        %v5556 = vpop.f32.mrf.mxu0
        %v5557 = vpop.f32.mrf.mxu0
        %v5558 = vadd.f32 %v4501, %v5557
        %v5559 = vpop.f32.mrf.mxu0
        %5560 = vmatprep.mubr.bf16.mxu0 %v2058
        %5561 = vmatmul.mubr.bf16.gmra.mxu0 %v2057
        %v5562 = vpop.f32.mrf.mxu0
        %v5563 = vadd.f32 %v4506, %v5562
        %v5564 = vpop.f32.mrf.mxu0
        %v5565 = vpop.f32.mrf.mxu0
        %v5566 = vadd.f32 %v4509, %v5565
        %v5567 = vpop.f32.mrf.mxu0
        %5568 = vmatprep.mubr.bf16.mxu0 %v2062
        %5569 = vmatmul.mubr.bf16.gmra.mxu0 %v2061
        %v5570 = vpop.f32.mrf.mxu0
        %v5571 = vadd.f32 %v4514, %v5570
        %v5572 = vpop.f32.mrf.mxu0
        %v5573 = vpop.f32.mrf.mxu0
        %v5574 = vadd.f32 %v4517, %v5573
        %v5575 = vpop.f32.mrf.mxu0
        %5576 = vmatprep.mubr.bf16.mxu0 %v2066
        %5577 = vmatmul.mubr.bf16.gmra.mxu0 %v2065
        %v5578 = vpop.f32.mrf.mxu0
        %v5579 = vadd.f32 %v4522, %v5578
        %v5580 = vpop.f32.mrf.mxu0
        %v5581 = vpop.f32.mrf.mxu0
        %v5582 = vadd.f32 %v4525, %v5581
        %v5583 = vpop.f32.mrf.mxu0
        %5584 = vmatprep.mubr.bf16.mxu0 %v2070
        %5585 = vmatmul.mubr.bf16.gmra.mxu0 %v2069
        %v5586 = vpop.f32.mrf.mxu0
        %v5587 = vadd.f32 %v4530, %v5586
        %v5588 = vpop.f32.mrf.mxu0
        %v5589 = vpop.f32.mrf.mxu0
        %v5590 = vadd.f32 %v4533, %v5589
        %v5591 = vpop.f32.mrf.mxu0
        %5592 = vmatprep.mubr.bf16.mxu0 %v2426
        %5593 = vmatmul.mubr.bf16.gmra.mxu0 %v2425
        %v5594 = vpop.f32.mrf.mxu0
        %v5595 = vadd.f32 %v4538, %v5594
        %v5596 = vpop.f32.mrf.mxu0
        %v5597 = vpop.f32.mrf.mxu0
        %v5598 = vadd.f32 %v4541, %v5597
        %v5599 = vpop.f32.mrf.mxu0
        %5600 = vmatprep.mubr.bf16.mxu0 %v2430
        %5601 = vmatmul.mubr.bf16.gmra.mxu0 %v2429
        %v5602 = vpop.f32.mrf.mxu0
        %v5603 = vadd.f32 %v4546, %v5602
        %v5604 = vpop.f32.mrf.mxu0
        %v5605 = vpop.f32.mrf.mxu0
        %v5606 = vadd.f32 %v4549, %v5605
        %v5607 = vpop.f32.mrf.mxu0
        %5608 = vmatprep.mubr.bf16.mxu0 %v2434
        %5609 = vmatmul.mubr.bf16.gmra.mxu0 %v2433
        %v5610 = vpop.f32.mrf.mxu0
        %v5611 = vadd.f32 %v4554, %v5610
        %v5612 = vpop.f32.mrf.mxu0
        %v5613 = vpop.f32.mrf.mxu0
        %v5614 = vadd.f32 %v4557, %v5613
        %v5615 = vpop.f32.mrf.mxu0
        %5616 = vmatprep.mubr.bf16.mxu0 %v2438
        %5617 = vmatmul.mubr.bf16.gmra.mxu0 %v2437
        %v5618 = vpop.f32.mrf.mxu0
        %v5619 = vadd.f32 %v4562, %v5618
        %v5620 = vpop.f32.mrf.mxu0
        %v5621 = vpop.f32.mrf.mxu0
        %v5622 = vadd.f32 %v4565, %v5621
        %v5623 = vpop.f32.mrf.mxu0
        %5624 = vmatprep.mubr.bf16.mxu0 %v2442
        %5625 = vmatmul.mubr.bf16.gmra.mxu0 %v2441
        %v5626 = vpop.f32.mrf.mxu0
        %v5627 = vadd.f32 %v4570, %v5626
        %v5628 = vpop.f32.mrf.mxu0
        %v5629 = vpop.f32.mrf.mxu0
        %v5630 = vadd.f32 %v4573, %v5629
        %v5631 = vpop.f32.mrf.mxu0
        %5632 = vmatprep.mubr.bf16.mxu0 %v2446
        %5633 = vmatmul.mubr.bf16.gmra.mxu0 %v2445
        %v5634 = vpop.f32.mrf.mxu0
        %v5635 = vadd.f32 %v4578, %v5634
        %v5636 = vpop.f32.mrf.mxu0
        %v5637 = vpop.f32.mrf.mxu0
        %v5638 = vadd.f32 %v4581, %v5637
        %v5639 = vpop.f32.mrf.mxu0
        %5640 = vmatprep.mubr.bf16.mxu0 %v2450
        %5641 = vmatmul.mubr.bf16.gmra.mxu0 %v2449
        %v5642 = vpop.f32.mrf.mxu0
        %v5643 = vadd.f32 %v4586, %v5642
        %v5644 = vpop.f32.mrf.mxu0
        %v5645 = vpop.f32.mrf.mxu0
        %v5646 = vadd.f32 %v4589, %v5645
        %v5647 = vpop.f32.mrf.mxu0
        %5648 = vmatprep.mubr.bf16.mxu0 %v2454
        %5649 = vmatmul.mubr.bf16.gmra.mxu0 %v2453
        %v5650 = vpop.f32.mrf.mxu0
        %v5651 = vadd.f32 %v4594, %v5650
        %v5652 = vpop.f32.mrf.mxu0
        %v5653 = vpop.f32.mrf.mxu0
        %v5654 = vadd.f32 %v4597, %v5653
        %v5655 = vpop.f32.mrf.mxu0
        %5656 = vmatprep.mubr.bf16.mxu0 %v2458
        %5657 = vmatmul.mubr.bf16.gmra.mxu0 %v2457
        %v5658 = vpop.f32.mrf.mxu0
        %v5659 = vadd.f32 %v4602, %v5658
        %v5660 = vpop.f32.mrf.mxu0
        %v5661 = vpop.f32.mrf.mxu0
        %v5662 = vadd.f32 %v4605, %v5661
        %v5663 = vpop.f32.mrf.mxu0
        %5664 = vmatprep.mubr.bf16.mxu0 %v2462
        %5665 = vmatmul.mubr.bf16.gmra.mxu0 %v2461
        %v5666 = vpop.f32.mrf.mxu0
        %v5667 = vadd.f32 %v4610, %v5666
        %v5668 = vpop.f32.mrf.mxu0
        %v5669 = vpop.f32.mrf.mxu0
        %v5670 = vadd.f32 %v4613, %v5669
        %v5671 = vpop.f32.mrf.mxu0
        %5672 = vmatprep.mubr.bf16.mxu0 %v2466
        %5673 = vmatmul.mubr.bf16.gmra.mxu0 %v2465
        %v5674 = vpop.f32.mrf.mxu0
        %v5675 = vadd.f32 %v4618, %v5674
        %v5676 = vpop.f32.mrf.mxu0
        %v5677 = vpop.f32.mrf.mxu0
        %v5678 = vadd.f32 %v4621, %v5677
        %v5679 = vpop.f32.mrf.mxu0
        %5680 = vmatprep.mubr.bf16.mxu0 %v2470
        %5681 = vmatmul.mubr.bf16.gmra.mxu0 %v2469
        %v5682 = vpop.f32.mrf.mxu0
        %v5683 = vadd.f32 %v4626, %v5682
        %v5684 = vpop.f32.mrf.mxu0
        %v5685 = vpop.f32.mrf.mxu0
        %v5686 = vadd.f32 %v4629, %v5685
        %v5687 = vpop.f32.mrf.mxu0
        %5688 = vmatprep.mubr.bf16.mxu0 %v2474
        %5689 = vmatmul.mubr.bf16.gmra.mxu0 %v2473
        %v5690 = vpop.f32.mrf.mxu0
        %v5691 = vadd.f32 %v4634, %v5690
        %v5692 = vpop.f32.mrf.mxu0
        %v5693 = vpop.f32.mrf.mxu0
        %v5694 = vadd.f32 %v4637, %v5693
        %v5695 = vpop.f32.mrf.mxu0
        %5696 = vmatprep.mubr.bf16.mxu0 %v2478
        %5697 = vmatmul.mubr.bf16.gmra.mxu0 %v2477
        %v5698 = vpop.f32.mrf.mxu0
        %v5699 = vadd.f32 %v4642, %v5698
        %v5700 = vpop.f32.mrf.mxu0
        %v5701 = vpop.f32.mrf.mxu0
        %v5702 = vadd.f32 %v4645, %v5701
        %v5703 = vpop.f32.mrf.mxu0
        %5704 = vmatprep.mubr.bf16.mxu0 %v2482
        %5705 = vmatmul.mubr.bf16.gmra.mxu0 %v2481
        %v5706 = vpop.f32.mrf.mxu0
        %v5707 = vadd.f32 %v4650, %v5706
        %v5708 = vpop.f32.mrf.mxu0
        %v5709 = vpop.f32.mrf.mxu0
        %v5710 = vadd.f32 %v4653, %v5709
        %v5711 = vpop.f32.mrf.mxu0
        %5712 = vmatprep.mubr.bf16.mxu0 %v2486
        %5713 = vmatmul.mubr.bf16.gmra.mxu0 %v2485
        %v5714 = vpop.f32.mrf.mxu0
        %v5715 = vadd.f32 %v4658, %v5714
        %v5716 = vpop.f32.mrf.mxu0
        %v5717 = vpop.f32.mrf.mxu0
        %v5718 = vadd.f32 %v4661, %v5717
        %v5719 = vpop.f32.mrf.mxu0
        %5720 = vmatprep.mubr.bf16.mxu0 %v2842
        %5721 = vmatmul.mubr.bf16.gmra.mxu0 %v2841
        %v5722 = vpop.f32.mrf.mxu0
        %v5723 = vadd.f32 %v4666, %v5722
        %v5724 = vpop.f32.mrf.mxu0
        %v5725 = vpop.f32.mrf.mxu0
        %v5726 = vadd.f32 %v4669, %v5725
        %v5727 = vpop.f32.mrf.mxu0
        %5728 = vmatprep.mubr.bf16.mxu0 %v2846
        %5729 = vmatmul.mubr.bf16.gmra.mxu0 %v2845
        %v5730 = vpop.f32.mrf.mxu0
        %v5731 = vadd.f32 %v4674, %v5730
        %v5732 = vpop.f32.mrf.mxu0
        %v5733 = vpop.f32.mrf.mxu0
        %v5734 = vadd.f32 %v4677, %v5733
        %v5735 = vpop.f32.mrf.mxu0
        %5736 = vmatprep.mubr.bf16.mxu0 %v2850
        %5737 = vmatmul.mubr.bf16.gmra.mxu0 %v2849
        %v5738 = vpop.f32.mrf.mxu0
        %v5739 = vadd.f32 %v4682, %v5738
        %v5740 = vpop.f32.mrf.mxu0
        %v5741 = vpop.f32.mrf.mxu0
        %v5742 = vadd.f32 %v4685, %v5741
        %v5743 = vpop.f32.mrf.mxu0
        %5744 = vmatprep.mubr.bf16.mxu0 %v2854
        %5745 = vmatmul.mubr.bf16.gmra.mxu0 %v2853
        %v5746 = vpop.f32.mrf.mxu0
        %v5747 = vadd.f32 %v4690, %v5746
        %v5748 = vpop.f32.mrf.mxu0
        %v5749 = vpop.f32.mrf.mxu0
        %v5750 = vadd.f32 %v4693, %v5749
        %v5751 = vpop.f32.mrf.mxu0
        %5752 = vmatprep.mubr.bf16.mxu0 %v2858
        %5753 = vmatmul.mubr.bf16.gmra.mxu0 %v2857
        %v5754 = vpop.f32.mrf.mxu0
        %v5755 = vadd.f32 %v4698, %v5754
        %v5756 = vpop.f32.mrf.mxu0
        %v5757 = vpop.f32.mrf.mxu0
        %v5758 = vadd.f32 %v4701, %v5757
        %v5759 = vpop.f32.mrf.mxu0
        %5760 = vmatprep.mubr.bf16.mxu0 %v2862
        %5761 = vmatmul.mubr.bf16.gmra.mxu0 %v2861
        %v5762 = vpop.f32.mrf.mxu0
        %v5763 = vadd.f32 %v4706, %v5762
        %v5764 = vpop.f32.mrf.mxu0
        %v5765 = vpop.f32.mrf.mxu0
        %v5766 = vadd.f32 %v4709, %v5765
        %v5767 = vpop.f32.mrf.mxu0
        %5768 = vmatprep.mubr.bf16.mxu0 %v2866
        %5769 = vmatmul.mubr.bf16.gmra.mxu0 %v2865
        %v5770 = vpop.f32.mrf.mxu0
        %v5771 = vadd.f32 %v4714, %v5770
        %v5772 = vpop.f32.mrf.mxu0
        %v5773 = vpop.f32.mrf.mxu0
        %v5774 = vadd.f32 %v4717, %v5773
        %v5775 = vpop.f32.mrf.mxu0
        %5776 = vmatprep.mubr.bf16.mxu0 %v2870
        %5777 = vmatmul.mubr.bf16.gmra.mxu0 %v2869
        %v5778 = vpop.f32.mrf.mxu0
        %v5779 = vadd.f32 %v4722, %v5778
        %v5780 = vpop.f32.mrf.mxu0
        %v5781 = vpop.f32.mrf.mxu0
        %v5782 = vadd.f32 %v4725, %v5781
        %v5783 = vpop.f32.mrf.mxu0
        %5784 = vmatprep.mubr.bf16.mxu0 %v2874
        %5785 = vmatmul.mubr.bf16.gmra.mxu0 %v2873
        %v5786 = vpop.f32.mrf.mxu0
        %v5787 = vadd.f32 %v4730, %v5786
        %v5788 = vpop.f32.mrf.mxu0
        %v5789 = vpop.f32.mrf.mxu0
        %v5790 = vadd.f32 %v4733, %v5789
        %v5791 = vpop.f32.mrf.mxu0
        %5792 = vmatprep.mubr.bf16.mxu0 %v2878
        %5793 = vmatmul.mubr.bf16.gmra.mxu0 %v2877
        %v5794 = vpop.f32.mrf.mxu0
        %v5795 = vadd.f32 %v4738, %v5794
        %v5796 = vpop.f32.mrf.mxu0
        %v5797 = vpop.f32.mrf.mxu0
        %v5798 = vadd.f32 %v4741, %v5797
        %v5799 = vpop.f32.mrf.mxu0
        %5800 = vmatprep.mubr.bf16.mxu0 %v2882
        %5801 = vmatmul.mubr.bf16.gmra.mxu0 %v2881
        %v5802 = vpop.f32.mrf.mxu0
        %v5803 = vadd.f32 %v4746, %v5802
        %v5804 = vpop.f32.mrf.mxu0
        %v5805 = vpop.f32.mrf.mxu0
        %v5806 = vadd.f32 %v4749, %v5805
        %v5807 = vpop.f32.mrf.mxu0
        %5808 = vmatprep.mubr.bf16.mxu0 %v2886
        %5809 = vmatmul.mubr.bf16.gmra.mxu0 %v2885
        %v5810 = vpop.f32.mrf.mxu0
        %v5811 = vadd.f32 %v4754, %v5810
        %v5812 = vpop.f32.mrf.mxu0
        %v5813 = vpop.f32.mrf.mxu0
        %v5814 = vadd.f32 %v4757, %v5813
        %v5815 = vpop.f32.mrf.mxu0
        %5816 = vmatprep.mubr.bf16.mxu0 %v2890
        %5817 = vmatmul.mubr.bf16.gmra.mxu0 %v2889
        %v5818 = vpop.f32.mrf.mxu0
        %v5819 = vadd.f32 %v4762, %v5818
        %v5820 = vpop.f32.mrf.mxu0
        %v5821 = vpop.f32.mrf.mxu0
        %v5822 = vadd.f32 %v4765, %v5821
        %v5823 = vpop.f32.mrf.mxu0
        %5824 = vmatprep.mubr.bf16.mxu0 %v2894
        %5825 = vmatmul.mubr.bf16.gmra.mxu0 %v2893
        %v5826 = vpop.f32.mrf.mxu0
        %v5827 = vadd.f32 %v4770, %v5826
        %v5828 = vpop.f32.mrf.mxu0
        %v5829 = vpop.f32.mrf.mxu0
        %v5830 = vadd.f32 %v4773, %v5829
        %v5831 = vpop.f32.mrf.mxu0
        %5832 = vmatprep.mubr.bf16.mxu0 %v2898
        %5833 = vmatmul.mubr.bf16.gmra.mxu0 %v2897
        %v5834 = vpop.f32.mrf.mxu0
        %v5835 = vadd.f32 %v4778, %v5834
        %v5836 = vpop.f32.mrf.mxu0
        %v5837 = vpop.f32.mrf.mxu0
        %v5838 = vadd.f32 %v4781, %v5837
        %v5839 = vpop.f32.mrf.mxu0
        %5840 = vmatprep.mubr.bf16.mxu0 %v2902
        %5841 = vmatmul.mubr.bf16.gmra.mxu0 %v2901
        %v5842 = vpop.f32.mrf.mxu0
        %v5843 = vadd.f32 %v4786, %v5842
        %v5844 = vpop.f32.mrf.mxu0
        %v5845 = vpop.f32.mrf.mxu0
        %v5846 = vadd.f32 %v4789, %v5845
        %v5847 = vpop.f32.mrf.mxu0
        %5848 = vmatprep.mubr.bf16.mxu0 %v3258
        %5849 = vmatmul.mubr.bf16.gmra.mxu0 %v3257
        %v5850 = vpop.f32.mrf.mxu0
        %v5851 = vadd.f32 %v4794, %v5850
        %v5852 = vpop.f32.mrf.mxu0
        %v5853 = vpop.f32.mrf.mxu0
        %v5854 = vadd.f32 %v4797, %v5853
        %v5855 = vpop.f32.mrf.mxu0
        %5856 = vmatprep.mubr.bf16.mxu0 %v3262
        %5857 = vmatmul.mubr.bf16.gmra.mxu0 %v3261
        %v5858 = vpop.f32.mrf.mxu0
        %v5859 = vadd.f32 %v4802, %v5858
        %v5860 = vpop.f32.mrf.mxu0
        %v5861 = vpop.f32.mrf.mxu0
        %v5862 = vadd.f32 %v4805, %v5861
        %v5863 = vpop.f32.mrf.mxu0
        %5864 = vmatprep.mubr.bf16.mxu0 %v3266
        %5865 = vmatmul.mubr.bf16.gmra.mxu0 %v3265
        %v5866 = vpop.f32.mrf.mxu0
        %v5867 = vadd.f32 %v4810, %v5866
        %v5868 = vpop.f32.mrf.mxu0
        %v5869 = vpop.f32.mrf.mxu0
        %v5870 = vadd.f32 %v4813, %v5869
        %v5871 = vpop.f32.mrf.mxu0
        %5872 = vmatprep.mubr.bf16.mxu0 %v3270
        %5873 = vmatmul.mubr.bf16.gmra.mxu0 %v3269
        %v5874 = vpop.f32.mrf.mxu0
        %v5875 = vadd.f32 %v4818, %v5874
        %v5876 = vpop.f32.mrf.mxu0
        %v5877 = vpop.f32.mrf.mxu0
        %v5878 = vadd.f32 %v4821, %v5877
        %v5879 = vpop.f32.mrf.mxu0
        %5880 = vmatprep.mubr.bf16.mxu0 %v3274
        %5881 = vmatmul.mubr.bf16.gmra.mxu0 %v3273
        %v5882 = vpop.f32.mrf.mxu0
        %v5883 = vadd.f32 %v4826, %v5882
        %v5884 = vpop.f32.mrf.mxu0
        %v5885 = vpop.f32.mrf.mxu0
        %v5886 = vadd.f32 %v4829, %v5885
        %v5887 = vpop.f32.mrf.mxu0
        %5888 = vmatprep.mubr.bf16.mxu0 %v3278
        %5889 = vmatmul.mubr.bf16.gmra.mxu0 %v3277
        %v5890 = vpop.f32.mrf.mxu0
        %v5891 = vadd.f32 %v4834, %v5890
        %v5892 = vpop.f32.mrf.mxu0
        %v5893 = vpop.f32.mrf.mxu0
        %v5894 = vadd.f32 %v4837, %v5893
        %v5895 = vpop.f32.mrf.mxu0
        %5896 = vmatprep.mubr.bf16.mxu0 %v3282
        %5897 = vmatmul.mubr.bf16.gmra.mxu0 %v3281
        %v5898 = vpop.f32.mrf.mxu0
        %v5899 = vadd.f32 %v4842, %v5898
        %v5900 = vpop.f32.mrf.mxu0
        %v5901 = vpop.f32.mrf.mxu0
        %v5902 = vadd.f32 %v4845, %v5901
        %v5903 = vpop.f32.mrf.mxu0
        %5904 = vmatprep.mubr.bf16.mxu0 %v3286
        %5905 = vmatmul.mubr.bf16.gmra.mxu0 %v3285
        %v5906 = vpop.f32.mrf.mxu0
        %v5907 = vadd.f32 %v4850, %v5906
        %v5908 = vpop.f32.mrf.mxu0
        %v5909 = vpop.f32.mrf.mxu0
        %v5910 = vadd.f32 %v4853, %v5909
        %v5911 = vpop.f32.mrf.mxu0
        %5912 = vmatprep.mubr.bf16.mxu0 %v3290
        %5913 = vmatmul.mubr.bf16.gmra.mxu0 %v3289
        %v5914 = vpop.f32.mrf.mxu0
        %v5915 = vadd.f32 %v4858, %v5914
        %v5916 = vpop.f32.mrf.mxu0
        %v5917 = vpop.f32.mrf.mxu0
        %v5918 = vadd.f32 %v4861, %v5917
        %v5919 = vpop.f32.mrf.mxu0
        %5920 = vmatprep.mubr.bf16.mxu0 %v3294
        %5921 = vmatmul.mubr.bf16.gmra.mxu0 %v3293
        %v5922 = vpop.f32.mrf.mxu0
        %v5923 = vadd.f32 %v4866, %v5922
        %v5924 = vpop.f32.mrf.mxu0
        %v5925 = vpop.f32.mrf.mxu0
        %v5926 = vadd.f32 %v4869, %v5925
        %v5927 = vpop.f32.mrf.mxu0
        %5928 = vmatprep.mubr.bf16.mxu0 %v3298
        %5929 = vmatmul.mubr.bf16.gmra.mxu0 %v3297
        %v5930 = vpop.f32.mrf.mxu0
        %v5931 = vadd.f32 %v4874, %v5930
        %v5932 = vpop.f32.mrf.mxu0
        %v5933 = vpop.f32.mrf.mxu0
        %v5934 = vadd.f32 %v4877, %v5933
        %v5935 = vpop.f32.mrf.mxu0
        %5936 = vmatprep.mubr.bf16.mxu0 %v3302
        %5937 = vmatmul.mubr.bf16.gmra.mxu0 %v3301
        %v5938 = vpop.f32.mrf.mxu0
        %v5939 = vadd.f32 %v4882, %v5938
        %v5940 = vpop.f32.mrf.mxu0
        %v5941 = vpop.f32.mrf.mxu0
        %v5942 = vadd.f32 %v4885, %v5941
        %v5943 = vpop.f32.mrf.mxu0
        %5944 = vmatprep.mubr.bf16.mxu0 %v3306
        %5945 = vmatmul.mubr.bf16.gmra.mxu0 %v3305
        %v5946 = vpop.f32.mrf.mxu0
        %v5947 = vadd.f32 %v4890, %v5946
        %v5948 = vpop.f32.mrf.mxu0
        %v5949 = vpop.f32.mrf.mxu0
        %v5950 = vadd.f32 %v4893, %v5949
        %v5951 = vpop.f32.mrf.mxu0
        %5952 = vmatprep.mubr.bf16.mxu0 %v3310
        %5953 = vmatmul.mubr.bf16.gmra.mxu0 %v3309
        %v5954 = vpop.f32.mrf.mxu0
        %v5955 = vadd.f32 %v4898, %v5954
        %v5956 = vpop.f32.mrf.mxu0
        %v5957 = vpop.f32.mrf.mxu0
        %v5958 = vadd.f32 %v4901, %v5957
        %v5959 = vpop.f32.mrf.mxu0
        %5960 = vmatprep.mubr.bf16.mxu0 %v3314
        %5961 = vmatmul.mubr.bf16.gmra.mxu0 %v3313
        %v5962 = vpop.f32.mrf.mxu0
        %v5963 = vadd.f32 %v4906, %v5962
        %v5964 = vpop.f32.mrf.mxu0
        %v5965 = vpop.f32.mrf.mxu0
        %v5966 = vadd.f32 %v4909, %v5965
        %v5967 = vpop.f32.mrf.mxu0
        %5968 = vmatprep.mubr.bf16.mxu0 %v3318
        %5969 = vmatmul.mubr.bf16.gmra.mxu0 %v3317
        %v5970 = vpop.f32.mrf.mxu0
        %v5971 = vadd.f32 %v4914, %v5970
        %v5972 = vpop.f32.mrf.mxu0
        %v5973 = vpop.f32.mrf.mxu0
        %v5974 = vadd.f32 %v4917, %v5973
        %v5975 = vpop.f32.mrf.mxu0
        %5976 = vmatprep.mubr.bf16.mxu0 %v3674
        %5977 = vmatmul.mubr.bf16.gmra.mxu0 %v3673
        %v5978 = vpop.f32.mrf.mxu0
        %v5979 = vadd.f32 %v4922, %v5978
        %v5980 = vpop.f32.mrf.mxu0
        %v5981 = vpop.f32.mrf.mxu0
        %v5982 = vadd.f32 %v4925, %v5981
        %v5983 = vpop.f32.mrf.mxu0
        %5984 = vmatprep.mubr.bf16.mxu0 %v3678
        %5985 = vmatmul.mubr.bf16.gmra.mxu0 %v3677
        %v5986 = vpop.f32.mrf.mxu0
        %v5987 = vadd.f32 %v4930, %v5986
        %v5988 = vpop.f32.mrf.mxu0
        %v5989 = vpop.f32.mrf.mxu0
        %v5990 = vadd.f32 %v4933, %v5989
        %v5991 = vpop.f32.mrf.mxu0
        %5992 = vmatprep.mubr.bf16.mxu0 %v3682
        %5993 = vmatmul.mubr.bf16.gmra.mxu0 %v3681
        %v5994 = vpop.f32.mrf.mxu0
        %v5995 = vadd.f32 %v4938, %v5994
        %v5996 = vpop.f32.mrf.mxu0
        %v5997 = vpop.f32.mrf.mxu0
        %v5998 = vadd.f32 %v4941, %v5997
        %v5999 = vpop.f32.mrf.mxu0
        %6000 = vmatprep.mubr.bf16.mxu0 %v3686
        %6001 = vmatmul.mubr.bf16.gmra.mxu0 %v3685
        %v6002 = vpop.f32.mrf.mxu0
        %v6003 = vadd.f32 %v4946, %v6002
        %v6004 = vpop.f32.mrf.mxu0
        %v6005 = vpop.f32.mrf.mxu0
        %v6006 = vadd.f32 %v4949, %v6005
        %v6007 = vpop.f32.mrf.mxu0
        %6008 = vmatprep.mubr.bf16.mxu0 %v3690
        %6009 = vmatmul.mubr.bf16.gmra.mxu0 %v3689
        %v6010 = vpop.f32.mrf.mxu0
        %v6011 = vadd.f32 %v4954, %v6010
        %v6012 = vpop.f32.mrf.mxu0
        %v6013 = vpop.f32.mrf.mxu0
        %v6014 = vadd.f32 %v4957, %v6013
        %v6015 = vpop.f32.mrf.mxu0
        %6016 = vmatprep.mubr.bf16.mxu0 %v3694
        %6017 = vmatmul.mubr.bf16.gmra.mxu0 %v3693
        %v6018 = vpop.f32.mrf.mxu0
        %v6019 = vadd.f32 %v4962, %v6018
        %v6020 = vpop.f32.mrf.mxu0
        %v6021 = vpop.f32.mrf.mxu0
        %v6022 = vadd.f32 %v4965, %v6021
        %v6023 = vpop.f32.mrf.mxu0
        %6024 = vmatprep.mubr.bf16.mxu0 %v3698
        %6025 = vmatmul.mubr.bf16.gmra.mxu0 %v3697
        %v6026 = vpop.f32.mrf.mxu0
        %v6027 = vadd.f32 %v4970, %v6026
        %v6028 = vpop.f32.mrf.mxu0
        %v6029 = vpop.f32.mrf.mxu0
        %v6030 = vadd.f32 %v4973, %v6029
        %v6031 = vpop.f32.mrf.mxu0
        %6032 = vmatprep.mubr.bf16.mxu0 %v3702
        %6033 = vmatmul.mubr.bf16.gmra.mxu0 %v3701
        %v6034 = vpop.f32.mrf.mxu0
        %v6035 = vadd.f32 %v4978, %v6034
        %v6036 = vpop.f32.mrf.mxu0
        %v6037 = vpop.f32.mrf.mxu0
        %v6038 = vadd.f32 %v4981, %v6037
        %v6039 = vpop.f32.mrf.mxu0
        %6040 = vmatprep.mubr.bf16.mxu0 %v3706
        %6041 = vmatmul.mubr.bf16.gmra.mxu0 %v3705
        %v6042 = vpop.f32.mrf.mxu0
        %v6043 = vadd.f32 %v4986, %v6042
        %v6044 = vpop.f32.mrf.mxu0
        %v6045 = vpop.f32.mrf.mxu0
        %v6046 = vadd.f32 %v4989, %v6045
        %v6047 = vpop.f32.mrf.mxu0
        %6048 = vmatprep.mubr.bf16.mxu0 %v3710
        %6049 = vmatmul.mubr.bf16.gmra.mxu0 %v3709
        %v6050 = vpop.f32.mrf.mxu0
        %v6051 = vadd.f32 %v4994, %v6050
        %v6052 = vpop.f32.mrf.mxu0
        %v6053 = vpop.f32.mrf.mxu0
        %v6054 = vadd.f32 %v4997, %v6053
        %v6055 = vpop.f32.mrf.mxu0
        %6056 = vmatprep.mubr.bf16.mxu0 %v3714
        %6057 = vmatmul.mubr.bf16.gmra.mxu0 %v3713
        %v6058 = vpop.f32.mrf.mxu0
        %v6059 = vadd.f32 %v5002, %v6058
        %v6060 = vpop.f32.mrf.mxu0
        %v6061 = vpop.f32.mrf.mxu0
        %v6062 = vadd.f32 %v5005, %v6061
        %v6063 = vpop.f32.mrf.mxu0
        %6064 = vmatprep.mubr.bf16.mxu0 %v3718
        %6065 = vmatmul.mubr.bf16.gmra.mxu0 %v3717
        %v6066 = vpop.f32.mrf.mxu0
        %v6067 = vadd.f32 %v5010, %v6066
        %v6068 = vpop.f32.mrf.mxu0
        %v6069 = vpop.f32.mrf.mxu0
        %v6070 = vadd.f32 %v5013, %v6069
        %v6071 = vpop.f32.mrf.mxu0
        %6072 = vmatprep.mubr.bf16.mxu0 %v3722
        %6073 = vmatmul.mubr.bf16.gmra.mxu0 %v3721
        %v6074 = vpop.f32.mrf.mxu0
        %v6075 = vadd.f32 %v5018, %v6074
        %v6076 = vpop.f32.mrf.mxu0
        %v6077 = vpop.f32.mrf.mxu0
        %v6078 = vadd.f32 %v5021, %v6077
        %v6079 = vpop.f32.mrf.mxu0
        %6080 = vmatprep.mubr.bf16.mxu0 %v3726
        %6081 = vmatmul.mubr.bf16.gmra.mxu0 %v3725
        %v6082 = vpop.f32.mrf.mxu0
        %v6083 = vadd.f32 %v5026, %v6082
        %v6084 = vpop.f32.mrf.mxu0
        %v6085 = vpop.f32.mrf.mxu0
        %v6086 = vadd.f32 %v5029, %v6085
        %v6087 = vpop.f32.mrf.mxu0
        %6088 = vmatprep.mubr.bf16.mxu0 %v3730
        %6089 = vmatmul.mubr.bf16.gmra.mxu0 %v3729
        %v6090 = vpop.f32.mrf.mxu0
        %v6091 = vadd.f32 %v5034, %v6090
        %v6092 = vpop.f32.mrf.mxu0
        %v6093 = vpop.f32.mrf.mxu0
        %v6094 = vadd.f32 %v5037, %v6093
        %v6095 = vpop.f32.mrf.mxu0
        %6096 = vmatprep.mubr.bf16.mxu0 %v3734
        %6097 = vmatmul.mubr.bf16.gmra.mxu0 %v3733
        %v6098 = vpop.f32.mrf.mxu0
        %v6099 = vadd.f32 %v5042, %v6098
        %v6100 = vpop.f32.mrf.mxu0
        %v6101 = vpop.f32.mrf.mxu0
        %v6102 = vadd.f32 %v5045, %v6101
        %v6103 = vpop.f32.mrf.mxu0
        %6104 = vdwg.mxu0
        %v6105 = vadd.f32 %v5083, %v5211
        %v6106 = vadd.f32 %v5086, %v5214
        %v6107 = vadd.f32 %v5091, %v5219
        %v6108 = vadd.f32 %v5094, %v5222
        %v6109 = vadd.f32 %v5099, %v5227
        %v6110 = vadd.f32 %v5102, %v5230
        %v6111 = vadd.f32 %v5107, %v5235
        %v6112 = vadd.f32 %v5110, %v5238
        %v6113 = vadd.f32 %v5115, %v5243
        %v6114 = vadd.f32 %v5118, %v5246
        %v6115 = vadd.f32 %v5123, %v5251
        %v6116 = vadd.f32 %v5126, %v5254
        %v6117 = vadd.f32 %v5131, %v5259
        %v6118 = vadd.f32 %v5134, %v5262
        %v6119 = vadd.f32 %v5139, %v5267
        %v6120 = vadd.f32 %v5142, %v5270
        %v6121 = vadd.f32 %v5147, %v5275
        %v6122 = vadd.f32 %v5150, %v5278
        %v6123 = vadd.f32 %v5155, %v5283
        %v6124 = vadd.f32 %v5158, %v5286
        %v6125 = vadd.f32 %v5163, %v5291
        %v6126 = vadd.f32 %v5166, %v5294
        %v6127 = vadd.f32 %v5171, %v5299
        %v6128 = vadd.f32 %v5174, %v5302
        %v6129 = vadd.f32 %v5179, %v5307
        %v6130 = vadd.f32 %v5182, %v5310
        %v6131 = vadd.f32 %v5187, %v5315
        %v6132 = vadd.f32 %v5190, %v5318
        %v6133 = vadd.f32 %v5195, %v5323
        %v6134 = vadd.f32 %v5198, %v5326
        %v6135 = vadd.f32 %v5203, %v5331
        %v6136 = vadd.f32 %v5206, %v5334
        %v6137 = vadd.f32 %v6105, %v5339
        %v6138 = vadd.f32 %v6106, %v5342
        %v6139 = vadd.f32 %v6107, %v5347
        %v6140 = vadd.f32 %v6108, %v5350
        %v6141 = vadd.f32 %v6109, %v5355
        %v6142 = vadd.f32 %v6110, %v5358
        %v6143 = vadd.f32 %v6111, %v5363
        %v6144 = vadd.f32 %v6112, %v5366
        %v6145 = vadd.f32 %v6113, %v5371
        %v6146 = vadd.f32 %v6114, %v5374
        %v6147 = vadd.f32 %v6115, %v5379
        %v6148 = vadd.f32 %v6116, %v5382
        %v6149 = vadd.f32 %v6117, %v5387
        %v6150 = vadd.f32 %v6118, %v5390
        %v6151 = vadd.f32 %v6119, %v5395
        %v6152 = vadd.f32 %v6120, %v5398
        %v6153 = vadd.f32 %v6121, %v5403
        %v6154 = vadd.f32 %v6122, %v5406
        %v6155 = vadd.f32 %v6123, %v5411
        %v6156 = vadd.f32 %v6124, %v5414
        %v6157 = vadd.f32 %v6125, %v5419
        %v6158 = vadd.f32 %v6126, %v5422
        %v6159 = vadd.f32 %v6127, %v5427
        %v6160 = vadd.f32 %v6128, %v5430
        %v6161 = vadd.f32 %v6129, %v5435
        %v6162 = vadd.f32 %v6130, %v5438
        %v6163 = vadd.f32 %v6131, %v5443
        %v6164 = vadd.f32 %v6132, %v5446
        %v6165 = vadd.f32 %v6133, %v5451
        %v6166 = vadd.f32 %v6134, %v5454
        %v6167 = vadd.f32 %v6135, %v5459
        %v6168 = vadd.f32 %v6136, %v5462
        %v6169 = vadd.f32 %v6137, %v5467
        %v6170 = vadd.f32 %v6138, %v5470
        %v6171 = vadd.f32 %v6139, %v5475
        %v6172 = vadd.f32 %v6140, %v5478
        %v6173 = vadd.f32 %v6141, %v5483
        %v6174 = vadd.f32 %v6142, %v5486
        %v6175 = vadd.f32 %v6143, %v5491
        %v6176 = vadd.f32 %v6144, %v5494
        %v6177 = vadd.f32 %v6145, %v5499
        %v6178 = vadd.f32 %v6146, %v5502
        %v6179 = vadd.f32 %v6147, %v5507
        %v6180 = vadd.f32 %v6148, %v5510
        %v6181 = vadd.f32 %v6149, %v5515
        %v6182 = vadd.f32 %v6150, %v5518
        %v6183 = vadd.f32 %v6151, %v5523
        %v6184 = vadd.f32 %v6152, %v5526
        %v6185 = vadd.f32 %v6153, %v5531
        %v6186 = vadd.f32 %v6154, %v5534
        %v6187 = vadd.f32 %v6155, %v5539
        %v6188 = vadd.f32 %v6156, %v5542
        %v6189 = vadd.f32 %v6157, %v5547
        %v6190 = vadd.f32 %v6158, %v5550
        %v6191 = vadd.f32 %v6159, %v5555
        %v6192 = vadd.f32 %v6160, %v5558
        %v6193 = vadd.f32 %v6161, %v5563
        %v6194 = vadd.f32 %v6162, %v5566
        %v6195 = vadd.f32 %v6163, %v5571
        %v6196 = vadd.f32 %v6164, %v5574
        %v6197 = vadd.f32 %v6165, %v5579
        %v6198 = vadd.f32 %v6166, %v5582
        %v6199 = vadd.f32 %v6167, %v5587
        %v6200 = vadd.f32 %v6168, %v5590
        %v6201 = vadd.f32 %v6169, %v5595
        %v6202 = vadd.f32 %v6170, %v5598
        %v6203 = vadd.f32 %v6171, %v5603
        %v6204 = vadd.f32 %v6172, %v5606
        %v6205 = vadd.f32 %v6173, %v5611
        %v6206 = vadd.f32 %v6174, %v5614
        %v6207 = vadd.f32 %v6175, %v5619
        %v6208 = vadd.f32 %v6176, %v5622
        %v6209 = vadd.f32 %v6177, %v5627
        %v6210 = vadd.f32 %v6178, %v5630
        %v6211 = vadd.f32 %v6179, %v5635
        %v6212 = vadd.f32 %v6180, %v5638
        %v6213 = vadd.f32 %v6181, %v5643
        %v6214 = vadd.f32 %v6182, %v5646
        %v6215 = vadd.f32 %v6183, %v5651
        %v6216 = vadd.f32 %v6184, %v5654
        %v6217 = vadd.f32 %v6185, %v5659
        %v6218 = vadd.f32 %v6186, %v5662
        %v6219 = vadd.f32 %v6187, %v5667
        %v6220 = vadd.f32 %v6188, %v5670
        %v6221 = vadd.f32 %v6189, %v5675
        %v6222 = vadd.f32 %v6190, %v5678
        %v6223 = vadd.f32 %v6191, %v5683
        %v6224 = vadd.f32 %v6192, %v5686
        %v6225 = vadd.f32 %v6193, %v5691
        %v6226 = vadd.f32 %v6194, %v5694
        %v6227 = vadd.f32 %v6195, %v5699
        %v6228 = vadd.f32 %v6196, %v5702
        %v6229 = vadd.f32 %v6197, %v5707
        %v6230 = vadd.f32 %v6198, %v5710
        %v6231 = vadd.f32 %v6199, %v5715
        %v6232 = vadd.f32 %v6200, %v5718
        %v6233 = vadd.f32 %v6201, %v5723
        %v6234 = vadd.f32 %v6202, %v5726
        %v6235 = vadd.f32 %v6203, %v5731
        %v6236 = vadd.f32 %v6204, %v5734
        %v6237 = vadd.f32 %v6205, %v5739
        %v6238 = vadd.f32 %v6206, %v5742
        %v6239 = vadd.f32 %v6207, %v5747
        %v6240 = vadd.f32 %v6208, %v5750
        %v6241 = vadd.f32 %v6209, %v5755
        %v6242 = vadd.f32 %v6210, %v5758
        %v6243 = vadd.f32 %v6211, %v5763
        %v6244 = vadd.f32 %v6212, %v5766
        %v6245 = vadd.f32 %v6213, %v5771
        %v6246 = vadd.f32 %v6214, %v5774
        %v6247 = vadd.f32 %v6215, %v5779
        %v6248 = vadd.f32 %v6216, %v5782
        %v6249 = vadd.f32 %v6217, %v5787
        %v6250 = vadd.f32 %v6218, %v5790
        %v6251 = vadd.f32 %v6219, %v5795
        %v6252 = vadd.f32 %v6220, %v5798
        %v6253 = vadd.f32 %v6221, %v5803
        %v6254 = vadd.f32 %v6222, %v5806
        %v6255 = vadd.f32 %v6223, %v5811
        %v6256 = vadd.f32 %v6224, %v5814
        %v6257 = vadd.f32 %v6225, %v5819
        %v6258 = vadd.f32 %v6226, %v5822
        %v6259 = vadd.f32 %v6227, %v5827
        %v6260 = vadd.f32 %v6228, %v5830
        %v6261 = vadd.f32 %v6229, %v5835
        %v6262 = vadd.f32 %v6230, %v5838
        %v6263 = vadd.f32 %v6231, %v5843
        %v6264 = vadd.f32 %v6232, %v5846
        %v6265 = vadd.f32 %v6233, %v5851
        %v6266 = vadd.f32 %v6234, %v5854
        %v6267 = vadd.f32 %v6235, %v5859
        %v6268 = vadd.f32 %v6236, %v5862
        %v6269 = vadd.f32 %v6237, %v5867
        %v6270 = vadd.f32 %v6238, %v5870
        %v6271 = vadd.f32 %v6239, %v5875
        %v6272 = vadd.f32 %v6240, %v5878
        %v6273 = vadd.f32 %v6241, %v5883
        %v6274 = vadd.f32 %v6242, %v5886
        %v6275 = vadd.f32 %v6243, %v5891
        %v6276 = vadd.f32 %v6244, %v5894
        %v6277 = vadd.f32 %v6245, %v5899
        %v6278 = vadd.f32 %v6246, %v5902
        %v6279 = vadd.f32 %v6247, %v5907
        %v6280 = vadd.f32 %v6248, %v5910
        %v6281 = vadd.f32 %v6249, %v5915
        %v6282 = vadd.f32 %v6250, %v5918
        %v6283 = vadd.f32 %v6251, %v5923
        %v6284 = vadd.f32 %v6252, %v5926
        %v6285 = vadd.f32 %v6253, %v5931
        %v6286 = vadd.f32 %v6254, %v5934
        %v6287 = vadd.f32 %v6255, %v5939
        %v6288 = vadd.f32 %v6256, %v5942
        %v6289 = vadd.f32 %v6257, %v5947
        %v6290 = vadd.f32 %v6258, %v5950
        %v6291 = vadd.f32 %v6259, %v5955
        %v6292 = vadd.f32 %v6260, %v5958
        %v6293 = vadd.f32 %v6261, %v5963
        %v6294 = vadd.f32 %v6262, %v5966
        %v6295 = vadd.f32 %v6263, %v5971
        %v6296 = vadd.f32 %v6264, %v5974
        %v6297 = vadd.f32 %v6265, %v5979
        %v6298 = vadd.f32 %v6266, %v5982
        %v6299 = vadd.f32 %v6267, %v5987
        %v6300 = vadd.f32 %v6268, %v5990
        %v6301 = vadd.f32 %v6269, %v5995
        %v6302 = vadd.f32 %v6270, %v5998
        %v6303 = vadd.f32 %v6271, %v6003
        %v6304 = vadd.f32 %v6272, %v6006
        %v6305 = vadd.f32 %v6273, %v6011
        %v6306 = vadd.f32 %v6274, %v6014
        %v6307 = vadd.f32 %v6275, %v6019
        %v6308 = vadd.f32 %v6276, %v6022
        %v6309 = vadd.f32 %v6277, %v6027
        %v6310 = vadd.f32 %v6278, %v6030
        %v6311 = vadd.f32 %v6279, %v6035
        %v6312 = vadd.f32 %v6280, %v6038
        %v6313 = vadd.f32 %v6281, %v6043
        %v6314 = vadd.f32 %v6282, %v6046
        %v6315 = vadd.f32 %v6283, %v6051
        %v6316 = vadd.f32 %v6284, %v6054
        %v6317 = vadd.f32 %v6285, %v6059
        %v6318 = vadd.f32 %v6286, %v6062
        %v6319 = vadd.f32 %v6287, %v6067
        %v6320 = vadd.f32 %v6288, %v6070
        %v6321 = vadd.f32 %v6289, %v6075
        %v6322 = vadd.f32 %v6290, %v6078
        %v6323 = vadd.f32 %v6291, %v6083
        %v6324 = vadd.f32 %v6292, %v6086
        %v6325 = vadd.f32 %v6293, %v6091
        %v6326 = vadd.f32 %v6294, %v6094
        %v6327 = vadd.f32 %v6295, %v6099
        %v6328 = vadd.f32 %v6296, %v6102
        %v6329 = vmul.f32 %v6297, %v6297
        %v6330 = vmul.f32 %v6298, %v6298
        %v6331 = vmul.f32 %v6299, %v6299
        %v6332 = vmul.f32 %v6300, %v6300
        %v6333 = vmul.f32 %v6301, %v6301
        %v6334 = vmul.f32 %v6302, %v6302
        %v6335 = vmul.f32 %v6303, %v6303
        %v6336 = vmul.f32 %v6304, %v6304
        %v6337 = vmul.f32 %v6305, %v6305
        %v6338 = vmul.f32 %v6306, %v6306
        %v6339 = vmul.f32 %v6307, %v6307
        %v6340 = vmul.f32 %v6308, %v6308
        %v6341 = vmul.f32 %v6309, %v6309
        %v6342 = vmul.f32 %v6310, %v6310
        %v6343 = vmul.f32 %v6311, %v6311
        %v6344 = vmul.f32 %v6312, %v6312
        %v6345 = vmul.f32 %v6313, %v6313
        %v6346 = vmul.f32 %v6314, %v6314
        %v6347 = vmul.f32 %v6315, %v6315
        %v6348 = vmul.f32 %v6316, %v6316
        %v6349 = vmul.f32 %v6317, %v6317
        %v6350 = vmul.f32 %v6318, %v6318
        %v6351 = vmul.f32 %v6319, %v6319
        %v6352 = vmul.f32 %v6320, %v6320
        %v6353 = vmul.f32 %v6321, %v6321
        %v6354 = vmul.f32 %v6322, %v6322
        %v6355 = vmul.f32 %v6323, %v6323
        %v6356 = vmul.f32 %v6324, %v6324
        %v6357 = vmul.f32 %v6325, %v6325
        %v6358 = vmul.f32 %v6326, %v6326
        %v6359 = vmul.f32 %v6327, %v6327
        %v6360 = vmul.f32 %v6328, %v6328
        %6393 = vrot.lane.b32.xlu0 %v6297, 96
        %v6394 = vpop.permute.xlu0 %6393
        %6395 = vrot.lane.b32.xlu0 %v6298, 96
        %v6396 = vpop.permute.xlu0 %6395
        %6397 = vrot.lane.b32.xlu0 %v6299, 96
        %v6398 = vpop.permute.xlu0 %6397
        %6399 = vrot.lane.b32.xlu0 %v6300, 96
        %v6400 = vpop.permute.xlu0 %6399
        %6401 = vrot.lane.b32.xlu0 %v6301, 96
        %v6402 = vpop.permute.xlu0 %6401
        %6403 = vrot.lane.b32.xlu0 %v6302, 96
        %v6404 = vpop.permute.xlu0 %6403
        %6405 = vrot.lane.b32.xlu0 %v6303, 96
        %v6406 = vpop.permute.xlu0 %6405
        %6407 = vrot.lane.b32.xlu0 %v6304, 96
        %v6408 = vpop.permute.xlu0 %6407
        %6409 = vrot.lane.b32.xlu0 %v6305, 96
        %v6410 = vpop.permute.xlu0 %6409
        %6411 = vrot.lane.b32.xlu0 %v6306, 96
        %v6412 = vpop.permute.xlu0 %6411
        %6413 = vrot.lane.b32.xlu0 %v6307, 96
        %v6414 = vpop.permute.xlu0 %6413
        %6415 = vrot.lane.b32.xlu0 %v6308, 96
        %v6416 = vpop.permute.xlu0 %6415
        %6417 = vrot.lane.b32.xlu0 %v6309, 96
        %v6418 = vpop.permute.xlu0 %6417
        %6419 = vrot.lane.b32.xlu0 %v6310, 96
        %v6420 = vpop.permute.xlu0 %6419
        %6421 = vrot.lane.b32.xlu0 %v6311, 96
        %v6422 = vpop.permute.xlu0 %6421
        %6423 = vrot.lane.b32.xlu0 %v6312, 96
        %v6424 = vpop.permute.xlu0 %6423
        %6425 = vrot.lane.b32.xlu0 %v6313, 96
        %v6426 = vpop.permute.xlu0 %6425
        %6427 = vrot.lane.b32.xlu0 %v6314, 96
        %v6428 = vpop.permute.xlu0 %6427
        %6429 = vrot.lane.b32.xlu0 %v6315, 96
        %v6430 = vpop.permute.xlu0 %6429
        %6431 = vrot.lane.b32.xlu0 %v6316, 96
        %v6432 = vpop.permute.xlu0 %6431
        %6433 = vrot.lane.b32.xlu0 %v6317, 96
        %v6434 = vpop.permute.xlu0 %6433
        %6435 = vrot.lane.b32.xlu0 %v6318, 96
        %v6436 = vpop.permute.xlu0 %6435
        %6437 = vrot.lane.b32.xlu0 %v6319, 96
        %v6438 = vpop.permute.xlu0 %6437
        %6439 = vrot.lane.b32.xlu0 %v6320, 96
        %v6440 = vpop.permute.xlu0 %6439
        %6441 = vrot.lane.b32.xlu0 %v6321, 96
        %v6442 = vpop.permute.xlu0 %6441
        %6443 = vrot.lane.b32.xlu0 %v6322, 96
        %v6444 = vpop.permute.xlu0 %6443
        %6445 = vrot.lane.b32.xlu0 %v6323, 96
        %v6446 = vpop.permute.xlu0 %6445
        %6447 = vrot.lane.b32.xlu0 %v6324, 96
        %v6448 = vpop.permute.xlu0 %6447
        %6449 = vrot.lane.b32.xlu0 %v6325, 96
        %v6450 = vpop.permute.xlu0 %6449
        %6451 = vrot.lane.b32.xlu0 %v6326, 96
        %v6452 = vpop.permute.xlu0 %6451
        %6453 = vrot.lane.b32.xlu0 %v6327, 96
        %v6454 = vpop.permute.xlu0 %6453
        %6455 = vrot.lane.b32.xlu0 %v6328, 96
        %v6456 = vpop.permute.xlu0 %6455
        %v6489 = vsub.f32 %v6329, %v6394
        %v6490 = vsub.f32 %v6330, %v6396
        %v6491 = vsub.f32 %v6331, %v6398
        %v6492 = vsub.f32 %v6332, %v6400
        %v6493 = vsub.f32 %v6333, %v6402
        %v6494 = vsub.f32 %v6334, %v6404
        %v6495 = vsub.f32 %v6335, %v6406
        %v6496 = vsub.f32 %v6336, %v6408
        %v6497 = vsub.f32 %v6337, %v6410
        %v6498 = vsub.f32 %v6338, %v6412
        %v6499 = vsub.f32 %v6339, %v6414
        %v6500 = vsub.f32 %v6340, %v6416
        %v6501 = vsub.f32 %v6341, %v6418
        %v6502 = vsub.f32 %v6342, %v6420
        %v6503 = vsub.f32 %v6343, %v6422
        %v6504 = vsub.f32 %v6344, %v6424
        %v6505 = vsub.f32 %v6345, %v6426
        %v6506 = vsub.f32 %v6346, %v6428
        %v6507 = vsub.f32 %v6347, %v6430
        %v6508 = vsub.f32 %v6348, %v6432
        %v6509 = vsub.f32 %v6349, %v6434
        %v6510 = vsub.f32 %v6350, %v6436
        %v6511 = vsub.f32 %v6351, %v6438
        %v6512 = vsub.f32 %v6352, %v6440
        %v6513 = vsub.f32 %v6353, %v6442
        %v6514 = vsub.f32 %v6354, %v6444
        %v6515 = vsub.f32 %v6355, %v6446
        %v6516 = vsub.f32 %v6356, %v6448
        %v6517 = vsub.f32 %v6357, %v6450
        %v6518 = vsub.f32 %v6358, %v6452
        %v6519 = vsub.f32 %v6359, %v6454
        %v6520 = vsub.f32 %v6360, %v6456
        %vm6521 = vcmask 261120
        %v6522 = vsel %vm6521, %v6489, 0.0
        %6523 = vadd.xlane.f32.xlu0 %v6522
        %v6524 = vpop.xlane.xlu0 %6523
        %v6525 = vsel %vm6521, %v6490, 0.0
        %6526 = vadd.xlane.f32.xlu0 %v6525
        %v6527 = vpop.xlane.xlu0 %6526
        %v6528 = vsel %vm6521, %v6491, 0.0
        %6529 = vadd.xlane.f32.xlu0 %v6528
        %v6530 = vpop.xlane.xlu0 %6529
        %v6531 = vsel %vm6521, %v6492, 0.0
        %6532 = vadd.xlane.f32.xlu0 %v6531
        %v6533 = vpop.xlane.xlu0 %6532
        %v6534 = vsel %vm6521, %v6493, 0.0
        %6535 = vadd.xlane.f32.xlu0 %v6534
        %v6536 = vpop.xlane.xlu0 %6535
        %v6537 = vsel %vm6521, %v6494, 0.0
        %6538 = vadd.xlane.f32.xlu0 %v6537
        %v6539 = vpop.xlane.xlu0 %6538
        %v6540 = vsel %vm6521, %v6495, 0.0
        %6541 = vadd.xlane.f32.xlu0 %v6540
        %v6542 = vpop.xlane.xlu0 %6541
        %v6543 = vsel %vm6521, %v6496, 0.0
        %6544 = vadd.xlane.f32.xlu0 %v6543
        %v6545 = vpop.xlane.xlu0 %6544
        %v6546 = vsel %vm6521, %v6497, 0.0
        %6547 = vadd.xlane.f32.xlu0 %v6546
        %v6548 = vpop.xlane.xlu0 %6547
        %v6549 = vsel %vm6521, %v6498, 0.0
        %6550 = vadd.xlane.f32.xlu0 %v6549
        %v6551 = vpop.xlane.xlu0 %6550
        %v6552 = vsel %vm6521, %v6499, 0.0
        %6553 = vadd.xlane.f32.xlu0 %v6552
        %v6554 = vpop.xlane.xlu0 %6553
        %v6555 = vsel %vm6521, %v6500, 0.0
        %6556 = vadd.xlane.f32.xlu0 %v6555
        %v6557 = vpop.xlane.xlu0 %6556
        %v6558 = vsel %vm6521, %v6501, 0.0
        %6559 = vadd.xlane.f32.xlu0 %v6558
        %v6560 = vpop.xlane.xlu0 %6559
        %v6561 = vsel %vm6521, %v6502, 0.0
        %6562 = vadd.xlane.f32.xlu0 %v6561
        %v6563 = vpop.xlane.xlu0 %6562
        %v6564 = vsel %vm6521, %v6503, 0.0
        %6565 = vadd.xlane.f32.xlu0 %v6564
        %v6566 = vpop.xlane.xlu0 %6565
        %v6567 = vsel %vm6521, %v6504, 0.0
        %6568 = vadd.xlane.f32.xlu0 %v6567
        %v6569 = vpop.xlane.xlu0 %6568
        %v6570 = vsel %vm6521, %v6505, 0.0
        %6571 = vadd.xlane.f32.xlu0 %v6570
        %v6572 = vpop.xlane.xlu0 %6571
        %v6573 = vsel %vm6521, %v6506, 0.0
        %6574 = vadd.xlane.f32.xlu0 %v6573
        %v6575 = vpop.xlane.xlu0 %6574
        %v6576 = vsel %vm6521, %v6507, 0.0
        %6577 = vadd.xlane.f32.xlu0 %v6576
        %v6578 = vpop.xlane.xlu0 %6577
        %v6579 = vsel %vm6521, %v6508, 0.0
        %6580 = vadd.xlane.f32.xlu0 %v6579
        %v6581 = vpop.xlane.xlu0 %6580
        %v6582 = vsel %vm6521, %v6509, 0.0
        %6583 = vadd.xlane.f32.xlu0 %v6582
        %v6584 = vpop.xlane.xlu0 %6583
        %v6585 = vsel %vm6521, %v6510, 0.0
        %6586 = vadd.xlane.f32.xlu0 %v6585
        %v6587 = vpop.xlane.xlu0 %6586
        %v6588 = vsel %vm6521, %v6511, 0.0
        %6589 = vadd.xlane.f32.xlu0 %v6588
        %v6590 = vpop.xlane.xlu0 %6589
        %v6591 = vsel %vm6521, %v6512, 0.0
        %6592 = vadd.xlane.f32.xlu0 %v6591
        %v6593 = vpop.xlane.xlu0 %6592
        %v6594 = vsel %vm6521, %v6513, 0.0
        %6595 = vadd.xlane.f32.xlu0 %v6594
        %v6596 = vpop.xlane.xlu0 %6595
        %v6597 = vsel %vm6521, %v6514, 0.0
        %6598 = vadd.xlane.f32.xlu0 %v6597
        %v6599 = vpop.xlane.xlu0 %6598
        %v6600 = vsel %vm6521, %v6515, 0.0
        %6601 = vadd.xlane.f32.xlu0 %v6600
        %v6602 = vpop.xlane.xlu0 %6601
        %v6603 = vsel %vm6521, %v6516, 0.0
        %6604 = vadd.xlane.f32.xlu0 %v6603
        %v6605 = vpop.xlane.xlu0 %6604
        %v6606 = vsel %vm6521, %v6517, 0.0
        %6607 = vadd.xlane.f32.xlu0 %v6606
        %v6608 = vpop.xlane.xlu0 %6607
        %v6609 = vsel %vm6521, %v6518, 0.0
        %6610 = vadd.xlane.f32.xlu0 %v6609
        %v6611 = vpop.xlane.xlu0 %6610
        %v6612 = vsel %vm6521, %v6519, 0.0
        %6613 = vadd.xlane.f32.xlu0 %v6612
        %v6614 = vpop.xlane.xlu0 %6613
        %v6615 = vsel %vm6521, %v6520, 0.0
        %6616 = vadd.xlane.f32.xlu0 %v6615
        %v6617 = vpop.xlane.xlu0 %6616
        %v6618 = vmul.f32 %v6524, 0.5
        %v6619 = vmul.f32 %v6527, 0.5
        %v6620 = vmul.f32 %v6530, 0.5
        %v6621 = vmul.f32 %v6533, 0.5
        %v6622 = vmul.f32 %v6536, 0.5
        %v6623 = vmul.f32 %v6539, 0.5
        %v6624 = vmul.f32 %v6542, 0.5
        %v6625 = vmul.f32 %v6545, 0.5
        %v6626 = vmul.f32 %v6548, 0.5
        %v6627 = vmul.f32 %v6551, 0.5
        %v6628 = vmul.f32 %v6554, 0.5
        %v6629 = vmul.f32 %v6557, 0.5
        %v6630 = vmul.f32 %v6560, 0.5
        %v6631 = vmul.f32 %v6563, 0.5
        %v6632 = vmul.f32 %v6566, 0.5
        %v6633 = vmul.f32 %v6569, 0.5
        %v6634 = vmul.f32 %v6572, 0.5
        %v6635 = vmul.f32 %v6575, 0.5
        %v6636 = vmul.f32 %v6578, 0.5
        %v6637 = vmul.f32 %v6581, 0.5
        %v6638 = vmul.f32 %v6584, 0.5
        %v6639 = vmul.f32 %v6587, 0.5
        %v6640 = vmul.f32 %v6590, 0.5
        %v6641 = vmul.f32 %v6593, 0.5
        %v6642 = vmul.f32 %v6596, 0.5
        %v6643 = vmul.f32 %v6599, 0.5
        %v6644 = vmul.f32 %v6602, 0.5
        %v6645 = vmul.f32 %v6605, 0.5
        %v6646 = vmul.f32 %v6608, 0.5
        %v6647 = vmul.f32 %v6611, 0.5
        %v6648 = vmul.f32 %v6614, 0.5
        %v6649 = vmul.f32 %v6617, 0.5
        %6650 = vst.msk [vmem:[#allocation2] sm:$0xff] %vm6521, %v5083
        %6651 = vst.msk [vmem:[#allocation2 + $0x18] sm:$0xff] %vm6521, %v5086
        %6652 = vst.msk [vmem:[#allocation2 + $0x30] sm:$0xff] %vm6521, %v5091
        %6653 = vst.msk [vmem:[#allocation2 + $0x48] sm:$0xff] %vm6521, %v5094
        %6654 = vst.msk [vmem:[#allocation2 + $0x60] sm:$0xff] %vm6521, %v5099
        %6655 = vst.msk [vmem:[#allocation2 + $0x78] sm:$0xff] %vm6521, %v5102
        %6656 = vst.msk [vmem:[#allocation2 + $0x90] sm:$0xff] %vm6521, %v5107
        %6657 = vst.msk [vmem:[#allocation2 + $0xa8] sm:$0xff] %vm6521, %v5110
        %6658 = vst.msk [vmem:[#allocation2 + $0xc0] sm:$0xff] %vm6521, %v5115
        %6659 = vst.msk [vmem:[#allocation2 + $0xd8] sm:$0xff] %vm6521, %v5118
        %6660 = vst.msk [vmem:[#allocation2 + $0xf0] sm:$0xff] %vm6521, %v5123
        %6661 = vst.msk [vmem:[#allocation2 + $0x108] sm:$0xff] %vm6521, %v5126
        %6662 = vst.msk [vmem:[#allocation2 + $0x120] sm:$0xff] %vm6521, %v5131
        %6663 = vst.msk [vmem:[#allocation2 + $0x138] sm:$0xff] %vm6521, %v5134
        %6664 = vst.msk [vmem:[#allocation2 + $0x150] sm:$0xff] %vm6521, %v5139
        %6665 = vst.msk [vmem:[#allocation2 + $0x168] sm:$0xff] %vm6521, %v5142
        %6666 = vst.msk [vmem:[#allocation2 + $0x180] sm:$0xff] %vm6521, %v5147
        %6667 = vst.msk [vmem:[#allocation2 + $0x198] sm:$0xff] %vm6521, %v5150
        %6668 = vst.msk [vmem:[#allocation2 + $0x1b0] sm:$0xff] %vm6521, %v5155
        %6669 = vst.msk [vmem:[#allocation2 + $0x1c8] sm:$0xff] %vm6521, %v5158
        %6670 = vst.msk [vmem:[#allocation2 + $0x1e0] sm:$0xff] %vm6521, %v5163
        %6671 = vst.msk [vmem:[#allocation2 + $0x1f8] sm:$0xff] %vm6521, %v5166
        %6672 = vst.msk [vmem:[#allocation2 + $0x210] sm:$0xff] %vm6521, %v5171
        %6673 = vst.msk [vmem:[#allocation2 + $0x228] sm:$0xff] %vm6521, %v5174
        %6674 = vst.msk [vmem:[#allocation2 + $0x240] sm:$0xff] %vm6521, %v5179
        %6675 = vst.msk [vmem:[#allocation2 + $0x258] sm:$0xff] %vm6521, %v5182
        %6676 = vst.msk [vmem:[#allocation2 + $0x270] sm:$0xff] %vm6521, %v5187
        %6677 = vst.msk [vmem:[#allocation2 + $0x288] sm:$0xff] %vm6521, %v5190
        %6678 = vst.msk [vmem:[#allocation2 + $0x2a0] sm:$0xff] %vm6521, %v5195
        %6679 = vst.msk [vmem:[#allocation2 + $0x2b8] sm:$0xff] %vm6521, %v5198
        %6680 = vst.msk [vmem:[#allocation2 + $0x2d0] sm:$0xff] %vm6521, %v5203
        %6681 = vst.msk [vmem:[#allocation2 + $0x2e8] sm:$0xff] %vm6521, %v5206
        %6714 = vrot.lane.b32.xlu0 %v5211, 32
        %v6715 = vpop.permute.xlu0 %6714
        %6716 = vrot.lane.b32.xlu0 %v5214, 32
        %v6717 = vpop.permute.xlu0 %6716
        %6718 = vrot.lane.b32.xlu0 %v5219, 32
        %v6719 = vpop.permute.xlu0 %6718
        %6720 = vrot.lane.b32.xlu0 %v5222, 32
        %v6721 = vpop.permute.xlu0 %6720
        %6722 = vrot.lane.b32.xlu0 %v5227, 32
        %v6723 = vpop.permute.xlu0 %6722
        %6724 = vrot.lane.b32.xlu0 %v5230, 32
        %v6725 = vpop.permute.xlu0 %6724
        %6726 = vrot.lane.b32.xlu0 %v5235, 32
        %v6727 = vpop.permute.xlu0 %6726
        %6728 = vrot.lane.b32.xlu0 %v5238, 32
        %v6729 = vpop.permute.xlu0 %6728
        %6730 = vrot.lane.b32.xlu0 %v5243, 32
        %v6731 = vpop.permute.xlu0 %6730
        %6732 = vrot.lane.b32.xlu0 %v5246, 32
        %v6733 = vpop.permute.xlu0 %6732
        %6734 = vrot.lane.b32.xlu0 %v5251, 32
        %v6735 = vpop.permute.xlu0 %6734
        %6736 = vrot.lane.b32.xlu0 %v5254, 32
        %v6737 = vpop.permute.xlu0 %6736
        %6738 = vrot.lane.b32.xlu0 %v5259, 32
        %v6739 = vpop.permute.xlu0 %6738
        %6740 = vrot.lane.b32.xlu0 %v5262, 32
        %v6741 = vpop.permute.xlu0 %6740
        %6742 = vrot.lane.b32.xlu0 %v5267, 32
        %v6743 = vpop.permute.xlu0 %6742
        %6744 = vrot.lane.b32.xlu0 %v5270, 32
        %v6745 = vpop.permute.xlu0 %6744
        %6746 = vrot.lane.b32.xlu0 %v5275, 32
        %v6747 = vpop.permute.xlu0 %6746
        %6748 = vrot.lane.b32.xlu0 %v5278, 32
        %v6749 = vpop.permute.xlu0 %6748
        %6750 = vrot.lane.b32.xlu0 %v5283, 32
        %v6751 = vpop.permute.xlu0 %6750
        %6752 = vrot.lane.b32.xlu0 %v5286, 32
        %v6753 = vpop.permute.xlu0 %6752
        %6754 = vrot.lane.b32.xlu0 %v5291, 32
        %v6755 = vpop.permute.xlu0 %6754
        %6756 = vrot.lane.b32.xlu0 %v5294, 32
        %v6757 = vpop.permute.xlu0 %6756
        %6758 = vrot.lane.b32.xlu0 %v5299, 32
        %v6759 = vpop.permute.xlu0 %6758
        %6760 = vrot.lane.b32.xlu0 %v5302, 32
        %v6761 = vpop.permute.xlu0 %6760
        %6762 = vrot.lane.b32.xlu0 %v5307, 32
        %v6763 = vpop.permute.xlu0 %6762
        %6764 = vrot.lane.b32.xlu0 %v5310, 32
        %v6765 = vpop.permute.xlu0 %6764
        %6766 = vrot.lane.b32.xlu0 %v5315, 32
        %v6767 = vpop.permute.xlu0 %6766
        %6768 = vrot.lane.b32.xlu0 %v5318, 32
        %v6769 = vpop.permute.xlu0 %6768
        %6770 = vrot.lane.b32.xlu0 %v5323, 32
        %v6771 = vpop.permute.xlu0 %6770
        %6772 = vrot.lane.b32.xlu0 %v5326, 32
        %v6773 = vpop.permute.xlu0 %6772
        %6774 = vrot.lane.b32.xlu0 %v5331, 32
        %v6775 = vpop.permute.xlu0 %6774
        %6776 = vrot.lane.b32.xlu0 %v5334, 32
        %v6777 = vpop.permute.xlu0 %6776
        %vm6810 = vcmask 523520
        %6811 = vst.msk [vmem:[#allocation2] sm:$0xff] %vm6810, %v6715
        %6812 = vst.msk [vmem:[#allocation2 + $0x18] sm:$0xff] %vm6810, %v6717
        %6813 = vst.msk [vmem:[#allocation2 + $0x30] sm:$0xff] %vm6810, %v6719
        %6814 = vst.msk [vmem:[#allocation2 + $0x48] sm:$0xff] %vm6810, %v6721
        %6815 = vst.msk [vmem:[#allocation2 + $0x60] sm:$0xff] %vm6810, %v6723
        %6816 = vst.msk [vmem:[#allocation2 + $0x78] sm:$0xff] %vm6810, %v6725
        %6817 = vst.msk [vmem:[#allocation2 + $0x90] sm:$0xff] %vm6810, %v6727
        %6818 = vst.msk [vmem:[#allocation2 + $0xa8] sm:$0xff] %vm6810, %v6729
        %6819 = vst.msk [vmem:[#allocation2 + $0xc0] sm:$0xff] %vm6810, %v6731
        %6820 = vst.msk [vmem:[#allocation2 + $0xd8] sm:$0xff] %vm6810, %v6733
        %6821 = vst.msk [vmem:[#allocation2 + $0xf0] sm:$0xff] %vm6810, %v6735
        %6822 = vst.msk [vmem:[#allocation2 + $0x108] sm:$0xff] %vm6810, %v6737
        %6823 = vst.msk [vmem:[#allocation2 + $0x120] sm:$0xff] %vm6810, %v6739
        %6824 = vst.msk [vmem:[#allocation2 + $0x138] sm:$0xff] %vm6810, %v6741
        %6825 = vst.msk [vmem:[#allocation2 + $0x150] sm:$0xff] %vm6810, %v6743
        %6826 = vst.msk [vmem:[#allocation2 + $0x168] sm:$0xff] %vm6810, %v6745
        %6827 = vst.msk [vmem:[#allocation2 + $0x180] sm:$0xff] %vm6810, %v6747
        %6828 = vst.msk [vmem:[#allocation2 + $0x198] sm:$0xff] %vm6810, %v6749
        %6829 = vst.msk [vmem:[#allocation2 + $0x1b0] sm:$0xff] %vm6810, %v6751
        %6830 = vst.msk [vmem:[#allocation2 + $0x1c8] sm:$0xff] %vm6810, %v6753
        %6831 = vst.msk [vmem:[#allocation2 + $0x1e0] sm:$0xff] %vm6810, %v6755
        %6832 = vst.msk [vmem:[#allocation2 + $0x1f8] sm:$0xff] %vm6810, %v6757
        %6833 = vst.msk [vmem:[#allocation2 + $0x210] sm:$0xff] %vm6810, %v6759
        %6834 = vst.msk [vmem:[#allocation2 + $0x228] sm:$0xff] %vm6810, %v6761
        %6835 = vst.msk [vmem:[#allocation2 + $0x240] sm:$0xff] %vm6810, %v6763
        %6836 = vst.msk [vmem:[#allocation2 + $0x258] sm:$0xff] %vm6810, %v6765
        %6837 = vst.msk [vmem:[#allocation2 + $0x270] sm:$0xff] %vm6810, %v6767
        %6838 = vst.msk [vmem:[#allocation2 + $0x288] sm:$0xff] %vm6810, %v6769
        %6839 = vst.msk [vmem:[#allocation2 + $0x2a0] sm:$0xff] %vm6810, %v6771
        %6840 = vst.msk [vmem:[#allocation2 + $0x2b8] sm:$0xff] %vm6810, %v6773
        %6841 = vst.msk [vmem:[#allocation2 + $0x2d0] sm:$0xff] %vm6810, %v6775
        %6842 = vst.msk [vmem:[#allocation2 + $0x2e8] sm:$0xff] %vm6810, %v6777
        %6875 = vrot.lane.b32.xlu0 %v5339, 64
        %v6876 = vpop.permute.xlu0 %6875
        %6877 = vrot.lane.b32.xlu0 %v5342, 64
        %v6878 = vpop.permute.xlu0 %6877
        %6879 = vrot.lane.b32.xlu0 %v5347, 64
        %v6880 = vpop.permute.xlu0 %6879
        %6881 = vrot.lane.b32.xlu0 %v5350, 64
        %v6882 = vpop.permute.xlu0 %6881
        %6883 = vrot.lane.b32.xlu0 %v5355, 64
        %v6884 = vpop.permute.xlu0 %6883
        %6885 = vrot.lane.b32.xlu0 %v5358, 64
        %v6886 = vpop.permute.xlu0 %6885
        %6887 = vrot.lane.b32.xlu0 %v5363, 64
        %v6888 = vpop.permute.xlu0 %6887
        %6889 = vrot.lane.b32.xlu0 %v5366, 64
        %v6890 = vpop.permute.xlu0 %6889
        %6891 = vrot.lane.b32.xlu0 %v5371, 64
        %v6892 = vpop.permute.xlu0 %6891
        %6893 = vrot.lane.b32.xlu0 %v5374, 64
        %v6894 = vpop.permute.xlu0 %6893
        %6895 = vrot.lane.b32.xlu0 %v5379, 64
        %v6896 = vpop.permute.xlu0 %6895
        %6897 = vrot.lane.b32.xlu0 %v5382, 64
        %v6898 = vpop.permute.xlu0 %6897
        %6899 = vrot.lane.b32.xlu0 %v5387, 64
        %v6900 = vpop.permute.xlu0 %6899
        %6901 = vrot.lane.b32.xlu0 %v5390, 64
        %v6902 = vpop.permute.xlu0 %6901
        %6903 = vrot.lane.b32.xlu0 %v5395, 64
        %v6904 = vpop.permute.xlu0 %6903
        %6905 = vrot.lane.b32.xlu0 %v5398, 64
        %v6906 = vpop.permute.xlu0 %6905
        %6907 = vrot.lane.b32.xlu0 %v5403, 64
        %v6908 = vpop.permute.xlu0 %6907
        %6909 = vrot.lane.b32.xlu0 %v5406, 64
        %v6910 = vpop.permute.xlu0 %6909
        %6911 = vrot.lane.b32.xlu0 %v5411, 64
        %v6912 = vpop.permute.xlu0 %6911
        %6913 = vrot.lane.b32.xlu0 %v5414, 64
        %v6914 = vpop.permute.xlu0 %6913
        %6915 = vrot.lane.b32.xlu0 %v5419, 64
        %v6916 = vpop.permute.xlu0 %6915
        %6917 = vrot.lane.b32.xlu0 %v5422, 64
        %v6918 = vpop.permute.xlu0 %6917
        %6919 = vrot.lane.b32.xlu0 %v5427, 64
        %v6920 = vpop.permute.xlu0 %6919
        %6921 = vrot.lane.b32.xlu0 %v5430, 64
        %v6922 = vpop.permute.xlu0 %6921
        %6923 = vrot.lane.b32.xlu0 %v5435, 64
        %v6924 = vpop.permute.xlu0 %6923
        %6925 = vrot.lane.b32.xlu0 %v5438, 64
        %v6926 = vpop.permute.xlu0 %6925
        %6927 = vrot.lane.b32.xlu0 %v5443, 64
        %v6928 = vpop.permute.xlu0 %6927
        %6929 = vrot.lane.b32.xlu0 %v5446, 64
        %v6930 = vpop.permute.xlu0 %6929
        %6931 = vrot.lane.b32.xlu0 %v5451, 64
        %v6932 = vpop.permute.xlu0 %6931
        %6933 = vrot.lane.b32.xlu0 %v5454, 64
        %v6934 = vpop.permute.xlu0 %6933
        %6935 = vrot.lane.b32.xlu0 %v5459, 64
        %v6936 = vpop.permute.xlu0 %6935
        %6937 = vrot.lane.b32.xlu0 %v5462, 64
        %v6938 = vpop.permute.xlu0 %6937
        %vm6971 = vcmask 785920
        %6972 = vst.msk [vmem:[#allocation2] sm:$0xff] %vm6971, %v6876
        %6973 = vst.msk [vmem:[#allocation2 + $0x18] sm:$0xff] %vm6971, %v6878
        %6974 = vst.msk [vmem:[#allocation2 + $0x30] sm:$0xff] %vm6971, %v6880
        %6975 = vst.msk [vmem:[#allocation2 + $0x48] sm:$0xff] %vm6971, %v6882
        %6976 = vst.msk [vmem:[#allocation2 + $0x60] sm:$0xff] %vm6971, %v6884
        %6977 = vst.msk [vmem:[#allocation2 + $0x78] sm:$0xff] %vm6971, %v6886
        %6978 = vst.msk [vmem:[#allocation2 + $0x90] sm:$0xff] %vm6971, %v6888
        %6979 = vst.msk [vmem:[#allocation2 + $0xa8] sm:$0xff] %vm6971, %v6890
        %6980 = vst.msk [vmem:[#allocation2 + $0xc0] sm:$0xff] %vm6971, %v6892
        %6981 = vst.msk [vmem:[#allocation2 + $0xd8] sm:$0xff] %vm6971, %v6894
        %6982 = vst.msk [vmem:[#allocation2 + $0xf0] sm:$0xff] %vm6971, %v6896
        %6983 = vst.msk [vmem:[#allocation2 + $0x108] sm:$0xff] %vm6971, %v6898
        %6984 = vst.msk [vmem:[#allocation2 + $0x120] sm:$0xff] %vm6971, %v6900
        %6985 = vst.msk [vmem:[#allocation2 + $0x138] sm:$0xff] %vm6971, %v6902
        %6986 = vst.msk [vmem:[#allocation2 + $0x150] sm:$0xff] %vm6971, %v6904
        %6987 = vst.msk [vmem:[#allocation2 + $0x168] sm:$0xff] %vm6971, %v6906
        %6988 = vst.msk [vmem:[#allocation2 + $0x180] sm:$0xff] %vm6971, %v6908
        %6989 = vst.msk [vmem:[#allocation2 + $0x198] sm:$0xff] %vm6971, %v6910
        %6990 = vst.msk [vmem:[#allocation2 + $0x1b0] sm:$0xff] %vm6971, %v6912
        %6991 = vst.msk [vmem:[#allocation2 + $0x1c8] sm:$0xff] %vm6971, %v6914
        %6992 = vst.msk [vmem:[#allocation2 + $0x1e0] sm:$0xff] %vm6971, %v6916
        %6993 = vst.msk [vmem:[#allocation2 + $0x1f8] sm:$0xff] %vm6971, %v6918
        %6994 = vst.msk [vmem:[#allocation2 + $0x210] sm:$0xff] %vm6971, %v6920
        %6995 = vst.msk [vmem:[#allocation2 + $0x228] sm:$0xff] %vm6971, %v6922
        %6996 = vst.msk [vmem:[#allocation2 + $0x240] sm:$0xff] %vm6971, %v6924
        %6997 = vst.msk [vmem:[#allocation2 + $0x258] sm:$0xff] %vm6971, %v6926
        %6998 = vst.msk [vmem:[#allocation2 + $0x270] sm:$0xff] %vm6971, %v6928
        %6999 = vst.msk [vmem:[#allocation2 + $0x288] sm:$0xff] %vm6971, %v6930
        %7000 = vst.msk [vmem:[#allocation2 + $0x2a0] sm:$0xff] %vm6971, %v6932
        %7001 = vst.msk [vmem:[#allocation2 + $0x2b8] sm:$0xff] %vm6971, %v6934
        %7002 = vst.msk [vmem:[#allocation2 + $0x2d0] sm:$0xff] %vm6971, %v6936
        %7003 = vst.msk [vmem:[#allocation2 + $0x2e8] sm:$0xff] %vm6971, %v6938
        %7036 = vrot.lane.b32.xlu0 %v5467, 96
        %v7037 = vpop.permute.xlu0 %7036
        %7038 = vrot.lane.b32.xlu0 %v5470, 96
        %v7039 = vpop.permute.xlu0 %7038
        %7040 = vrot.lane.b32.xlu0 %v5475, 96
        %v7041 = vpop.permute.xlu0 %7040
        %7042 = vrot.lane.b32.xlu0 %v5478, 96
        %v7043 = vpop.permute.xlu0 %7042
        %7044 = vrot.lane.b32.xlu0 %v5483, 96
        %v7045 = vpop.permute.xlu0 %7044
        %7046 = vrot.lane.b32.xlu0 %v5486, 96
        %v7047 = vpop.permute.xlu0 %7046
        %7048 = vrot.lane.b32.xlu0 %v5491, 96
        %v7049 = vpop.permute.xlu0 %7048
        %7050 = vrot.lane.b32.xlu0 %v5494, 96
        %v7051 = vpop.permute.xlu0 %7050
        %7052 = vrot.lane.b32.xlu0 %v5499, 96
        %v7053 = vpop.permute.xlu0 %7052
        %7054 = vrot.lane.b32.xlu0 %v5502, 96
        %v7055 = vpop.permute.xlu0 %7054
        %7056 = vrot.lane.b32.xlu0 %v5507, 96
        %v7057 = vpop.permute.xlu0 %7056
        %7058 = vrot.lane.b32.xlu0 %v5510, 96
        %v7059 = vpop.permute.xlu0 %7058
        %7060 = vrot.lane.b32.xlu0 %v5515, 96
        %v7061 = vpop.permute.xlu0 %7060
        %7062 = vrot.lane.b32.xlu0 %v5518, 96
        %v7063 = vpop.permute.xlu0 %7062
        %7064 = vrot.lane.b32.xlu0 %v5523, 96
        %v7065 = vpop.permute.xlu0 %7064
        %7066 = vrot.lane.b32.xlu0 %v5526, 96
        %v7067 = vpop.permute.xlu0 %7066
        %7068 = vrot.lane.b32.xlu0 %v5531, 96
        %v7069 = vpop.permute.xlu0 %7068
        %7070 = vrot.lane.b32.xlu0 %v5534, 96
        %v7071 = vpop.permute.xlu0 %7070
        %7072 = vrot.lane.b32.xlu0 %v5539, 96
        %v7073 = vpop.permute.xlu0 %7072
        %7074 = vrot.lane.b32.xlu0 %v5542, 96
        %v7075 = vpop.permute.xlu0 %7074
        %7076 = vrot.lane.b32.xlu0 %v5547, 96
        %v7077 = vpop.permute.xlu0 %7076
        %7078 = vrot.lane.b32.xlu0 %v5550, 96
        %v7079 = vpop.permute.xlu0 %7078
        %7080 = vrot.lane.b32.xlu0 %v5555, 96
        %v7081 = vpop.permute.xlu0 %7080
        %7082 = vrot.lane.b32.xlu0 %v5558, 96
        %v7083 = vpop.permute.xlu0 %7082
        %7084 = vrot.lane.b32.xlu0 %v5563, 96
        %v7085 = vpop.permute.xlu0 %7084
        %7086 = vrot.lane.b32.xlu0 %v5566, 96
        %v7087 = vpop.permute.xlu0 %7086
        %7088 = vrot.lane.b32.xlu0 %v5571, 96
        %v7089 = vpop.permute.xlu0 %7088
        %7090 = vrot.lane.b32.xlu0 %v5574, 96
        %v7091 = vpop.permute.xlu0 %7090
        %7092 = vrot.lane.b32.xlu0 %v5579, 96
        %v7093 = vpop.permute.xlu0 %7092
        %7094 = vrot.lane.b32.xlu0 %v5582, 96
        %v7095 = vpop.permute.xlu0 %7094
        %7096 = vrot.lane.b32.xlu0 %v5587, 96
        %v7097 = vpop.permute.xlu0 %7096
        %7098 = vrot.lane.b32.xlu0 %v5590, 96
        %v7099 = vpop.permute.xlu0 %7098
        %vm7132 = vcmask 1048320
        %7133 = vst.msk [vmem:[#allocation2] sm:$0xff] %vm7132, %v7037
        %7134 = vst.msk [vmem:[#allocation2 + $0x18] sm:$0xff] %vm7132, %v7039
        %7135 = vst.msk [vmem:[#allocation2 + $0x30] sm:$0xff] %vm7132, %v7041
        %7136 = vst.msk [vmem:[#allocation2 + $0x48] sm:$0xff] %vm7132, %v7043
        %7137 = vst.msk [vmem:[#allocation2 + $0x60] sm:$0xff] %vm7132, %v7045
        %7138 = vst.msk [vmem:[#allocation2 + $0x78] sm:$0xff] %vm7132, %v7047
        %7139 = vst.msk [vmem:[#allocation2 + $0x90] sm:$0xff] %vm7132, %v7049
        %7140 = vst.msk [vmem:[#allocation2 + $0xa8] sm:$0xff] %vm7132, %v7051
        %7141 = vst.msk [vmem:[#allocation2 + $0xc0] sm:$0xff] %vm7132, %v7053
        %7142 = vst.msk [vmem:[#allocation2 + $0xd8] sm:$0xff] %vm7132, %v7055
        %7143 = vst.msk [vmem:[#allocation2 + $0xf0] sm:$0xff] %vm7132, %v7057
        %7144 = vst.msk [vmem:[#allocation2 + $0x108] sm:$0xff] %vm7132, %v7059
        %7145 = vst.msk [vmem:[#allocation2 + $0x120] sm:$0xff] %vm7132, %v7061
        %7146 = vst.msk [vmem:[#allocation2 + $0x138] sm:$0xff] %vm7132, %v7063
        %7147 = vst.msk [vmem:[#allocation2 + $0x150] sm:$0xff] %vm7132, %v7065
        %7148 = vst.msk [vmem:[#allocation2 + $0x168] sm:$0xff] %vm7132, %v7067
        %7149 = vst.msk [vmem:[#allocation2 + $0x180] sm:$0xff] %vm7132, %v7069
        %7150 = vst.msk [vmem:[#allocation2 + $0x198] sm:$0xff] %vm7132, %v7071
        %7151 = vst.msk [vmem:[#allocation2 + $0x1b0] sm:$0xff] %vm7132, %v7073
        %7152 = vst.msk [vmem:[#allocation2 + $0x1c8] sm:$0xff] %vm7132, %v7075
        %7153 = vst.msk [vmem:[#allocation2 + $0x1e0] sm:$0xff] %vm7132, %v7077
        %7154 = vst.msk [vmem:[#allocation2 + $0x1f8] sm:$0xff] %vm7132, %v7079
        %7155 = vst.msk [vmem:[#allocation2 + $0x210] sm:$0xff] %vm7132, %v7081
        %7156 = vst.msk [vmem:[#allocation2 + $0x228] sm:$0xff] %vm7132, %v7083
        %7157 = vst.msk [vmem:[#allocation2 + $0x240] sm:$0xff] %vm7132, %v7085
        %7158 = vst.msk [vmem:[#allocation2 + $0x258] sm:$0xff] %vm7132, %v7087
        %7159 = vst.msk [vmem:[#allocation2 + $0x270] sm:$0xff] %vm7132, %v7089
        %7160 = vst.msk [vmem:[#allocation2 + $0x288] sm:$0xff] %vm7132, %v7091
        %7161 = vst.msk [vmem:[#allocation2 + $0x2a0] sm:$0xff] %vm7132, %v7093
        %7162 = vst.msk [vmem:[#allocation2 + $0x2b8] sm:$0xff] %vm7132, %v7095
        %7163 = vst.msk [vmem:[#allocation2 + $0x2d0] sm:$0xff] %vm7132, %v7097
        %7164 = vst.msk [vmem:[#allocation2 + $0x2e8] sm:$0xff] %vm7132, %v7099
        %7165 = vst.msk [vmem:[#allocation2 + $0x8] sm:$0xff] %vm6521, %v5595
        %7166 = vst.msk [vmem:[#allocation2 + $0x20] sm:$0xff] %vm6521, %v5598
        %7167 = vst.msk [vmem:[#allocation2 + $0x38] sm:$0xff] %vm6521, %v5603
        %7168 = vst.msk [vmem:[#allocation2 + $0x50] sm:$0xff] %vm6521, %v5606
        %7169 = vst.msk [vmem:[#allocation2 + $0x68] sm:$0xff] %vm6521, %v5611
        %7170 = vst.msk [vmem:[#allocation2 + $0x80] sm:$0xff] %vm6521, %v5614
        %7171 = vst.msk [vmem:[#allocation2 + $0x98] sm:$0xff] %vm6521, %v5619
        %7172 = vst.msk [vmem:[#allocation2 + $0xb0] sm:$0xff] %vm6521, %v5622
        %7173 = vst.msk [vmem:[#allocation2 + $0xc8] sm:$0xff] %vm6521, %v5627
        %7174 = vst.msk [vmem:[#allocation2 + $0xe0] sm:$0xff] %vm6521, %v5630
        %7175 = vst.msk [vmem:[#allocation2 + $0xf8] sm:$0xff] %vm6521, %v5635
        %7176 = vst.msk [vmem:[#allocation2 + $0x110] sm:$0xff] %vm6521, %v5638
        %7177 = vst.msk [vmem:[#allocation2 + $0x128] sm:$0xff] %vm6521, %v5643
        %7178 = vst.msk [vmem:[#allocation2 + $0x140] sm:$0xff] %vm6521, %v5646
        %7179 = vst.msk [vmem:[#allocation2 + $0x158] sm:$0xff] %vm6521, %v5651
        %7180 = vst.msk [vmem:[#allocation2 + $0x170] sm:$0xff] %vm6521, %v5654
        %7181 = vst.msk [vmem:[#allocation2 + $0x188] sm:$0xff] %vm6521, %v5659
        %7182 = vst.msk [vmem:[#allocation2 + $0x1a0] sm:$0xff] %vm6521, %v5662
        %7183 = vst.msk [vmem:[#allocation2 + $0x1b8] sm:$0xff] %vm6521, %v5667
        %7184 = vst.msk [vmem:[#allocation2 + $0x1d0] sm:$0xff] %vm6521, %v5670
        %7185 = vst.msk [vmem:[#allocation2 + $0x1e8] sm:$0xff] %vm6521, %v5675
        %7186 = vst.msk [vmem:[#allocation2 + $0x200] sm:$0xff] %vm6521, %v5678
        %7187 = vst.msk [vmem:[#allocation2 + $0x218] sm:$0xff] %vm6521, %v5683
        %7188 = vst.msk [vmem:[#allocation2 + $0x230] sm:$0xff] %vm6521, %v5686
        %7189 = vst.msk [vmem:[#allocation2 + $0x248] sm:$0xff] %vm6521, %v5691
        %7190 = vst.msk [vmem:[#allocation2 + $0x260] sm:$0xff] %vm6521, %v5694
        %7191 = vst.msk [vmem:[#allocation2 + $0x278] sm:$0xff] %vm6521, %v5699
        %7192 = vst.msk [vmem:[#allocation2 + $0x290] sm:$0xff] %vm6521, %v5702
        %7193 = vst.msk [vmem:[#allocation2 + $0x2a8] sm:$0xff] %vm6521, %v5707
        %7194 = vst.msk [vmem:[#allocation2 + $0x2c0] sm:$0xff] %vm6521, %v5710
        %7195 = vst.msk [vmem:[#allocation2 + $0x2d8] sm:$0xff] %vm6521, %v5715
        %7196 = vst.msk [vmem:[#allocation2 + $0x2f0] sm:$0xff] %vm6521, %v5718
        %7229 = vrot.lane.b32.xlu0 %v5723, 32
        %v7230 = vpop.permute.xlu0 %7229
        %7231 = vrot.lane.b32.xlu0 %v5726, 32
        %v7232 = vpop.permute.xlu0 %7231
        %7233 = vrot.lane.b32.xlu0 %v5731, 32
        %v7234 = vpop.permute.xlu0 %7233
        %7235 = vrot.lane.b32.xlu0 %v5734, 32
        %v7236 = vpop.permute.xlu0 %7235
        %7237 = vrot.lane.b32.xlu0 %v5739, 32
        %v7238 = vpop.permute.xlu0 %7237
        %7239 = vrot.lane.b32.xlu0 %v5742, 32
        %v7240 = vpop.permute.xlu0 %7239
        %7241 = vrot.lane.b32.xlu0 %v5747, 32
        %v7242 = vpop.permute.xlu0 %7241
        %7243 = vrot.lane.b32.xlu0 %v5750, 32
        %v7244 = vpop.permute.xlu0 %7243
        %7245 = vrot.lane.b32.xlu0 %v5755, 32
        %v7246 = vpop.permute.xlu0 %7245
        %7247 = vrot.lane.b32.xlu0 %v5758, 32
        %v7248 = vpop.permute.xlu0 %7247
        %7249 = vrot.lane.b32.xlu0 %v5763, 32
        %v7250 = vpop.permute.xlu0 %7249
        %7251 = vrot.lane.b32.xlu0 %v5766, 32
        %v7252 = vpop.permute.xlu0 %7251
        %7253 = vrot.lane.b32.xlu0 %v5771, 32
        %v7254 = vpop.permute.xlu0 %7253
        %7255 = vrot.lane.b32.xlu0 %v5774, 32
        %v7256 = vpop.permute.xlu0 %7255
        %7257 = vrot.lane.b32.xlu0 %v5779, 32
        %v7258 = vpop.permute.xlu0 %7257
        %7259 = vrot.lane.b32.xlu0 %v5782, 32
        %v7260 = vpop.permute.xlu0 %7259
        %7261 = vrot.lane.b32.xlu0 %v5787, 32
        %v7262 = vpop.permute.xlu0 %7261
        %7263 = vrot.lane.b32.xlu0 %v5790, 32
        %v7264 = vpop.permute.xlu0 %7263
        %7265 = vrot.lane.b32.xlu0 %v5795, 32
        %v7266 = vpop.permute.xlu0 %7265
        %7267 = vrot.lane.b32.xlu0 %v5798, 32
        %v7268 = vpop.permute.xlu0 %7267
        %7269 = vrot.lane.b32.xlu0 %v5803, 32
        %v7270 = vpop.permute.xlu0 %7269
        %7271 = vrot.lane.b32.xlu0 %v5806, 32
        %v7272 = vpop.permute.xlu0 %7271
        %7273 = vrot.lane.b32.xlu0 %v5811, 32
        %v7274 = vpop.permute.xlu0 %7273
        %7275 = vrot.lane.b32.xlu0 %v5814, 32
        %v7276 = vpop.permute.xlu0 %7275
        %7277 = vrot.lane.b32.xlu0 %v5819, 32
        %v7278 = vpop.permute.xlu0 %7277
        %7279 = vrot.lane.b32.xlu0 %v5822, 32
        %v7280 = vpop.permute.xlu0 %7279
        %7281 = vrot.lane.b32.xlu0 %v5827, 32
        %v7282 = vpop.permute.xlu0 %7281
        %7283 = vrot.lane.b32.xlu0 %v5830, 32
        %v7284 = vpop.permute.xlu0 %7283
        %7285 = vrot.lane.b32.xlu0 %v5835, 32
        %v7286 = vpop.permute.xlu0 %7285
        %7287 = vrot.lane.b32.xlu0 %v5838, 32
        %v7288 = vpop.permute.xlu0 %7287
        %7289 = vrot.lane.b32.xlu0 %v5843, 32
        %v7290 = vpop.permute.xlu0 %7289
        %7291 = vrot.lane.b32.xlu0 %v5846, 32
        %v7292 = vpop.permute.xlu0 %7291
        %7325 = vst.msk [vmem:[#allocation2 + $0x8] sm:$0xff] %vm6810, %v7230
        %7326 = vst.msk [vmem:[#allocation2 + $0x20] sm:$0xff] %vm6810, %v7232
        %7327 = vst.msk [vmem:[#allocation2 + $0x38] sm:$0xff] %vm6810, %v7234
        %7328 = vst.msk [vmem:[#allocation2 + $0x50] sm:$0xff] %vm6810, %v7236
        %7329 = vst.msk [vmem:[#allocation2 + $0x68] sm:$0xff] %vm6810, %v7238
        %7330 = vst.msk [vmem:[#allocation2 + $0x80] sm:$0xff] %vm6810, %v7240
        %7331 = vst.msk [vmem:[#allocation2 + $0x98] sm:$0xff] %vm6810, %v7242
        %7332 = vst.msk [vmem:[#allocation2 + $0xb0] sm:$0xff] %vm6810, %v7244
        %7333 = vst.msk [vmem:[#allocation2 + $0xc8] sm:$0xff] %vm6810, %v7246
        %7334 = vst.msk [vmem:[#allocation2 + $0xe0] sm:$0xff] %vm6810, %v7248
        %7335 = vst.msk [vmem:[#allocation2 + $0xf8] sm:$0xff] %vm6810, %v7250
        %7336 = vst.msk [vmem:[#allocation2 + $0x110] sm:$0xff] %vm6810, %v7252
        %7337 = vst.msk [vmem:[#allocation2 + $0x128] sm:$0xff] %vm6810, %v7254
        %7338 = vst.msk [vmem:[#allocation2 + $0x140] sm:$0xff] %vm6810, %v7256
        %7339 = vst.msk [vmem:[#allocation2 + $0x158] sm:$0xff] %vm6810, %v7258
        %7340 = vst.msk [vmem:[#allocation2 + $0x170] sm:$0xff] %vm6810, %v7260
        %7341 = vst.msk [vmem:[#allocation2 + $0x188] sm:$0xff] %vm6810, %v7262
        %7342 = vst.msk [vmem:[#allocation2 + $0x1a0] sm:$0xff] %vm6810, %v7264
        %7343 = vst.msk [vmem:[#allocation2 + $0x1b8] sm:$0xff] %vm6810, %v7266
        %7344 = vst.msk [vmem:[#allocation2 + $0x1d0] sm:$0xff] %vm6810, %v7268
        %7345 = vst.msk [vmem:[#allocation2 + $0x1e8] sm:$0xff] %vm6810, %v7270
        %7346 = vst.msk [vmem:[#allocation2 + $0x200] sm:$0xff] %vm6810, %v7272
        %7347 = vst.msk [vmem:[#allocation2 + $0x218] sm:$0xff] %vm6810, %v7274
        %7348 = vst.msk [vmem:[#allocation2 + $0x230] sm:$0xff] %vm6810, %v7276
        %7349 = vst.msk [vmem:[#allocation2 + $0x248] sm:$0xff] %vm6810, %v7278
        %7350 = vst.msk [vmem:[#allocation2 + $0x260] sm:$0xff] %vm6810, %v7280
        %7351 = vst.msk [vmem:[#allocation2 + $0x278] sm:$0xff] %vm6810, %v7282
        %7352 = vst.msk [vmem:[#allocation2 + $0x290] sm:$0xff] %vm6810, %v7284
        %7353 = vst.msk [vmem:[#allocation2 + $0x2a8] sm:$0xff] %vm6810, %v7286
        %7354 = vst.msk [vmem:[#allocation2 + $0x2c0] sm:$0xff] %vm6810, %v7288
        %7355 = vst.msk [vmem:[#allocation2 + $0x2d8] sm:$0xff] %vm6810, %v7290
        %7356 = vst.msk [vmem:[#allocation2 + $0x2f0] sm:$0xff] %vm6810, %v7292
        %7389 = vrot.lane.b32.xlu0 %v5851, 64
        %v7390 = vpop.permute.xlu0 %7389
        %7391 = vrot.lane.b32.xlu0 %v5854, 64
        %v7392 = vpop.permute.xlu0 %7391
        %7393 = vrot.lane.b32.xlu0 %v5859, 64
        %v7394 = vpop.permute.xlu0 %7393
        %7395 = vrot.lane.b32.xlu0 %v5862, 64
        %v7396 = vpop.permute.xlu0 %7395
        %7397 = vrot.lane.b32.xlu0 %v5867, 64
        %v7398 = vpop.permute.xlu0 %7397
        %7399 = vrot.lane.b32.xlu0 %v5870, 64
        %v7400 = vpop.permute.xlu0 %7399
        %7401 = vrot.lane.b32.xlu0 %v5875, 64
        %v7402 = vpop.permute.xlu0 %7401
        %7403 = vrot.lane.b32.xlu0 %v5878, 64
        %v7404 = vpop.permute.xlu0 %7403
        %7405 = vrot.lane.b32.xlu0 %v5883, 64
        %v7406 = vpop.permute.xlu0 %7405
        %7407 = vrot.lane.b32.xlu0 %v5886, 64
        %v7408 = vpop.permute.xlu0 %7407
        %7409 = vrot.lane.b32.xlu0 %v5891, 64
        %v7410 = vpop.permute.xlu0 %7409
        %7411 = vrot.lane.b32.xlu0 %v5894, 64
        %v7412 = vpop.permute.xlu0 %7411
        %7413 = vrot.lane.b32.xlu0 %v5899, 64
        %v7414 = vpop.permute.xlu0 %7413
        %7415 = vrot.lane.b32.xlu0 %v5902, 64
        %v7416 = vpop.permute.xlu0 %7415
        %7417 = vrot.lane.b32.xlu0 %v5907, 64
        %v7418 = vpop.permute.xlu0 %7417
        %7419 = vrot.lane.b32.xlu0 %v5910, 64
        %v7420 = vpop.permute.xlu0 %7419
        %7421 = vrot.lane.b32.xlu0 %v5915, 64
        %v7422 = vpop.permute.xlu0 %7421
        %7423 = vrot.lane.b32.xlu0 %v5918, 64
        %v7424 = vpop.permute.xlu0 %7423
        %7425 = vrot.lane.b32.xlu0 %v5923, 64
        %v7426 = vpop.permute.xlu0 %7425
        %7427 = vrot.lane.b32.xlu0 %v5926, 64
        %v7428 = vpop.permute.xlu0 %7427
        %7429 = vrot.lane.b32.xlu0 %v5931, 64
        %v7430 = vpop.permute.xlu0 %7429
        %7431 = vrot.lane.b32.xlu0 %v5934, 64
        %v7432 = vpop.permute.xlu0 %7431
        %7433 = vrot.lane.b32.xlu0 %v5939, 64
        %v7434 = vpop.permute.xlu0 %7433
        %7435 = vrot.lane.b32.xlu0 %v5942, 64
        %v7436 = vpop.permute.xlu0 %7435
        %7437 = vrot.lane.b32.xlu0 %v5947, 64
        %v7438 = vpop.permute.xlu0 %7437
        %7439 = vrot.lane.b32.xlu0 %v5950, 64
        %v7440 = vpop.permute.xlu0 %7439
        %7441 = vrot.lane.b32.xlu0 %v5955, 64
        %v7442 = vpop.permute.xlu0 %7441
        %7443 = vrot.lane.b32.xlu0 %v5958, 64
        %v7444 = vpop.permute.xlu0 %7443
        %7445 = vrot.lane.b32.xlu0 %v5963, 64
        %v7446 = vpop.permute.xlu0 %7445
        %7447 = vrot.lane.b32.xlu0 %v5966, 64
        %v7448 = vpop.permute.xlu0 %7447
        %7449 = vrot.lane.b32.xlu0 %v5971, 64
        %v7450 = vpop.permute.xlu0 %7449
        %7451 = vrot.lane.b32.xlu0 %v5974, 64
        %v7452 = vpop.permute.xlu0 %7451
        %7485 = vst.msk [vmem:[#allocation2 + $0x8] sm:$0xff] %vm6971, %v7390
        %7486 = vst.msk [vmem:[#allocation2 + $0x20] sm:$0xff] %vm6971, %v7392
        %7487 = vst.msk [vmem:[#allocation2 + $0x38] sm:$0xff] %vm6971, %v7394
        %7488 = vst.msk [vmem:[#allocation2 + $0x50] sm:$0xff] %vm6971, %v7396
        %7489 = vst.msk [vmem:[#allocation2 + $0x68] sm:$0xff] %vm6971, %v7398
        %7490 = vst.msk [vmem:[#allocation2 + $0x80] sm:$0xff] %vm6971, %v7400
        %7491 = vst.msk [vmem:[#allocation2 + $0x98] sm:$0xff] %vm6971, %v7402
        %7492 = vst.msk [vmem:[#allocation2 + $0xb0] sm:$0xff] %vm6971, %v7404
        %7493 = vst.msk [vmem:[#allocation2 + $0xc8] sm:$0xff] %vm6971, %v7406
        %7494 = vst.msk [vmem:[#allocation2 + $0xe0] sm:$0xff] %vm6971, %v7408
        %7495 = vst.msk [vmem:[#allocation2 + $0xf8] sm:$0xff] %vm6971, %v7410
        %7496 = vst.msk [vmem:[#allocation2 + $0x110] sm:$0xff] %vm6971, %v7412
        %7497 = vst.msk [vmem:[#allocation2 + $0x128] sm:$0xff] %vm6971, %v7414
        %7498 = vst.msk [vmem:[#allocation2 + $0x140] sm:$0xff] %vm6971, %v7416
        %7499 = vst.msk [vmem:[#allocation2 + $0x158] sm:$0xff] %vm6971, %v7418
        %7500 = vst.msk [vmem:[#allocation2 + $0x170] sm:$0xff] %vm6971, %v7420
        %7501 = vst.msk [vmem:[#allocation2 + $0x188] sm:$0xff] %vm6971, %v7422
        %7502 = vst.msk [vmem:[#allocation2 + $0x1a0] sm:$0xff] %vm6971, %v7424
        %7503 = vst.msk [vmem:[#allocation2 + $0x1b8] sm:$0xff] %vm6971, %v7426
        %7504 = vst.msk [vmem:[#allocation2 + $0x1d0] sm:$0xff] %vm6971, %v7428
        %7505 = vst.msk [vmem:[#allocation2 + $0x1e8] sm:$0xff] %vm6971, %v7430
        %7506 = vst.msk [vmem:[#allocation2 + $0x200] sm:$0xff] %vm6971, %v7432
        %7507 = vst.msk [vmem:[#allocation2 + $0x218] sm:$0xff] %vm6971, %v7434
        %7508 = vst.msk [vmem:[#allocation2 + $0x230] sm:$0xff] %vm6971, %v7436
        %7509 = vst.msk [vmem:[#allocation2 + $0x248] sm:$0xff] %vm6971, %v7438
        %7510 = vst.msk [vmem:[#allocation2 + $0x260] sm:$0xff] %vm6971, %v7440
        %7511 = vst.msk [vmem:[#allocation2 + $0x278] sm:$0xff] %vm6971, %v7442
        %7512 = vst.msk [vmem:[#allocation2 + $0x290] sm:$0xff] %vm6971, %v7444
        %7513 = vst.msk [vmem:[#allocation2 + $0x2a8] sm:$0xff] %vm6971, %v7446
        %7514 = vst.msk [vmem:[#allocation2 + $0x2c0] sm:$0xff] %vm6971, %v7448
        %7515 = vst.msk [vmem:[#allocation2 + $0x2d8] sm:$0xff] %vm6971, %v7450
        %7516 = vst.msk [vmem:[#allocation2 + $0x2f0] sm:$0xff] %vm6971, %v7452
        %7549 = vrot.lane.b32.xlu0 %v5979, 96
        %v7550 = vpop.permute.xlu0 %7549
        %7551 = vrot.lane.b32.xlu0 %v5982, 96
        %v7552 = vpop.permute.xlu0 %7551
        %7553 = vrot.lane.b32.xlu0 %v5987, 96
        %v7554 = vpop.permute.xlu0 %7553
        %7555 = vrot.lane.b32.xlu0 %v5990, 96
        %v7556 = vpop.permute.xlu0 %7555
        %7557 = vrot.lane.b32.xlu0 %v5995, 96
        %v7558 = vpop.permute.xlu0 %7557
        %7559 = vrot.lane.b32.xlu0 %v5998, 96
        %v7560 = vpop.permute.xlu0 %7559
        %7561 = vrot.lane.b32.xlu0 %v6003, 96
        %v7562 = vpop.permute.xlu0 %7561
        %7563 = vrot.lane.b32.xlu0 %v6006, 96
        %v7564 = vpop.permute.xlu0 %7563
        %7565 = vrot.lane.b32.xlu0 %v6011, 96
        %v7566 = vpop.permute.xlu0 %7565
        %7567 = vrot.lane.b32.xlu0 %v6014, 96
        %v7568 = vpop.permute.xlu0 %7567
        %7569 = vrot.lane.b32.xlu0 %v6019, 96
        %v7570 = vpop.permute.xlu0 %7569
        %7571 = vrot.lane.b32.xlu0 %v6022, 96
        %v7572 = vpop.permute.xlu0 %7571
        %7573 = vrot.lane.b32.xlu0 %v6027, 96
        %v7574 = vpop.permute.xlu0 %7573
        %7575 = vrot.lane.b32.xlu0 %v6030, 96
        %v7576 = vpop.permute.xlu0 %7575
        %7577 = vrot.lane.b32.xlu0 %v6035, 96
        %v7578 = vpop.permute.xlu0 %7577
        %7579 = vrot.lane.b32.xlu0 %v6038, 96
        %v7580 = vpop.permute.xlu0 %7579
        %7581 = vrot.lane.b32.xlu0 %v6043, 96
        %v7582 = vpop.permute.xlu0 %7581
        %7583 = vrot.lane.b32.xlu0 %v6046, 96
        %v7584 = vpop.permute.xlu0 %7583
        %7585 = vrot.lane.b32.xlu0 %v6051, 96
        %v7586 = vpop.permute.xlu0 %7585
        %7587 = vrot.lane.b32.xlu0 %v6054, 96
        %v7588 = vpop.permute.xlu0 %7587
        %7589 = vrot.lane.b32.xlu0 %v6059, 96
        %v7590 = vpop.permute.xlu0 %7589
        %7591 = vrot.lane.b32.xlu0 %v6062, 96
        %v7592 = vpop.permute.xlu0 %7591
        %7593 = vrot.lane.b32.xlu0 %v6067, 96
        %v7594 = vpop.permute.xlu0 %7593
        %7595 = vrot.lane.b32.xlu0 %v6070, 96
        %v7596 = vpop.permute.xlu0 %7595
        %7597 = vrot.lane.b32.xlu0 %v6075, 96
        %v7598 = vpop.permute.xlu0 %7597
        %7599 = vrot.lane.b32.xlu0 %v6078, 96
        %v7600 = vpop.permute.xlu0 %7599
        %7601 = vrot.lane.b32.xlu0 %v6083, 96
        %v7602 = vpop.permute.xlu0 %7601
        %7603 = vrot.lane.b32.xlu0 %v6086, 96
        %v7604 = vpop.permute.xlu0 %7603
        %7605 = vrot.lane.b32.xlu0 %v6091, 96
        %v7606 = vpop.permute.xlu0 %7605
        %7607 = vrot.lane.b32.xlu0 %v6094, 96
        %v7608 = vpop.permute.xlu0 %7607
        %7609 = vrot.lane.b32.xlu0 %v6099, 96
        %v7610 = vpop.permute.xlu0 %7609
        %7611 = vrot.lane.b32.xlu0 %v6102, 96
        %v7612 = vpop.permute.xlu0 %7611
        %7645 = vst.msk [vmem:[#allocation2 + $0x8] sm:$0xff] %vm7132, %v7550
        %7646 = vst.msk [vmem:[#allocation2 + $0x20] sm:$0xff] %vm7132, %v7552
        %7647 = vst.msk [vmem:[#allocation2 + $0x38] sm:$0xff] %vm7132, %v7554
        %7648 = vst.msk [vmem:[#allocation2 + $0x50] sm:$0xff] %vm7132, %v7556
        %7649 = vst.msk [vmem:[#allocation2 + $0x68] sm:$0xff] %vm7132, %v7558
        %7650 = vst.msk [vmem:[#allocation2 + $0x80] sm:$0xff] %vm7132, %v7560
        %7651 = vst.msk [vmem:[#allocation2 + $0x98] sm:$0xff] %vm7132, %v7562
        %7652 = vst.msk [vmem:[#allocation2 + $0xb0] sm:$0xff] %vm7132, %v7564
        %7653 = vst.msk [vmem:[#allocation2 + $0xc8] sm:$0xff] %vm7132, %v7566
        %7654 = vst.msk [vmem:[#allocation2 + $0xe0] sm:$0xff] %vm7132, %v7568
        %7655 = vst.msk [vmem:[#allocation2 + $0xf8] sm:$0xff] %vm7132, %v7570
        %7656 = vst.msk [vmem:[#allocation2 + $0x110] sm:$0xff] %vm7132, %v7572
        %7657 = vst.msk [vmem:[#allocation2 + $0x128] sm:$0xff] %vm7132, %v7574
        %7658 = vst.msk [vmem:[#allocation2 + $0x140] sm:$0xff] %vm7132, %v7576
        %7659 = vst.msk [vmem:[#allocation2 + $0x158] sm:$0xff] %vm7132, %v7578
        %7660 = vst.msk [vmem:[#allocation2 + $0x170] sm:$0xff] %vm7132, %v7580
        %7661 = vst.msk [vmem:[#allocation2 + $0x188] sm:$0xff] %vm7132, %v7582
        %7662 = vst.msk [vmem:[#allocation2 + $0x1a0] sm:$0xff] %vm7132, %v7584
        %7663 = vst.msk [vmem:[#allocation2 + $0x1b8] sm:$0xff] %vm7132, %v7586
        %7664 = vst.msk [vmem:[#allocation2 + $0x1d0] sm:$0xff] %vm7132, %v7588
        %7665 = vst.msk [vmem:[#allocation2 + $0x1e8] sm:$0xff] %vm7132, %v7590
        %7666 = vst.msk [vmem:[#allocation2 + $0x200] sm:$0xff] %vm7132, %v7592
        %7667 = vst.msk [vmem:[#allocation2 + $0x218] sm:$0xff] %vm7132, %v7594
        %7668 = vst.msk [vmem:[#allocation2 + $0x230] sm:$0xff] %vm7132, %v7596
        %7669 = vst.msk [vmem:[#allocation2 + $0x248] sm:$0xff] %vm7132, %v7598
        %7670 = vst.msk [vmem:[#allocation2 + $0x260] sm:$0xff] %vm7132, %v7600
        %7671 = vst.msk [vmem:[#allocation2 + $0x278] sm:$0xff] %vm7132, %v7602
        %7672 = vst.msk [vmem:[#allocation2 + $0x290] sm:$0xff] %vm7132, %v7604
        %7673 = vst.msk [vmem:[#allocation2 + $0x2a8] sm:$0xff] %vm7132, %v7606
        %7674 = vst.msk [vmem:[#allocation2 + $0x2c0] sm:$0xff] %vm7132, %v7608
        %7675 = vst.msk [vmem:[#allocation2 + $0x2d8] sm:$0xff] %vm7132, %v7610
        %7676 = vst.msk [vmem:[#allocation2 + $0x2f0] sm:$0xff] %vm7132, %v7612
        %v7677 = vld [vmem:[%s367] sm:$0xff]
        %v7678 = vld [vmem:[%s367 + $0x8] sm:$0xff]
        %v7679 = vld [vmem:[%s367 + $0x10] sm:$0xff]
        %v7680 = vld [vmem:[%s367 + $0x18] sm:$0xff]
        %v7681 = vld [vmem:[%s367 + $0x20] sm:$0xff]
        %v7682 = vld [vmem:[%s367 + $0x28] sm:$0xff]
        %v7683 = vld [vmem:[%s367 + $0x30] sm:$0xff]
        %v7684 = vld [vmem:[%s367 + $0x38] sm:$0xff]
        %v7685 = vld [vmem:[%s367 + $0x40] sm:$0xff]
        %v7686 = vld [vmem:[%s367 + $0x48] sm:$0xff]
        %v7687 = vld [vmem:[%s367 + $0x50] sm:$0xff]
        %v7688 = vld [vmem:[%s367 + $0x58] sm:$0xff]
        %v7689 = vld [vmem:[%s367 + $0x60] sm:$0xff]
        %v7690 = vld [vmem:[%s367 + $0x68] sm:$0xff]
        %v7691 = vld [vmem:[%s367 + $0x70] sm:$0xff]
        %v7692 = vld [vmem:[%s367 + $0x78] sm:$0xff]
        %v7693 = vld [vmem:[%s367 + $0x80] sm:$0xff]
        %v7694 = vld [vmem:[%s367 + $0x88] sm:$0xff]
        %v7695 = vld [vmem:[%s367 + $0x90] sm:$0xff]
        %v7696 = vld [vmem:[%s367 + $0x98] sm:$0xff]
        %v7697 = vld [vmem:[%s367 + $0xa0] sm:$0xff]
        %v7698 = vld [vmem:[%s367 + $0xa8] sm:$0xff]
        %v7699 = vld [vmem:[%s367 + $0xb0] sm:$0xff]
        %v7700 = vld [vmem:[%s367 + $0xb8] sm:$0xff]
        %v7701 = vld [vmem:[%s367 + $0xc0] sm:$0xff]
        %v7702 = vld [vmem:[%s367 + $0xc8] sm:$0xff]
        %v7703 = vld [vmem:[%s367 + $0xd0] sm:$0xff]
        %v7704 = vld [vmem:[%s367 + $0xd8] sm:$0xff]
        %v7705 = vld [vmem:[%s367 + $0xe0] sm:$0xff]
        %v7706 = vld [vmem:[%s367 + $0xe8] sm:$0xff]
        %v7707 = vld [vmem:[%s367 + $0xf0] sm:$0xff]
        %v7708 = vld [vmem:[%s367 + $0xf8] sm:$0xff]
        %vm7709 = vcmask 130048
        %7710 = vst.msk [vmem:[#allocation2 + $0x10] sm:$0xff] %vm7709, %v7677
        %7711 = vst.msk [vmem:[#allocation2 + $0x28] sm:$0xff] %vm7709, %v7678
        %7712 = vst.msk [vmem:[#allocation2 + $0x40] sm:$0xff] %vm7709, %v7679
        %7713 = vst.msk [vmem:[#allocation2 + $0x58] sm:$0xff] %vm7709, %v7680
        %7714 = vst.msk [vmem:[#allocation2 + $0x70] sm:$0xff] %vm7709, %v7681
        %7715 = vst.msk [vmem:[#allocation2 + $0x88] sm:$0xff] %vm7709, %v7682
        %7716 = vst.msk [vmem:[#allocation2 + $0xa0] sm:$0xff] %vm7709, %v7683
        %7717 = vst.msk [vmem:[#allocation2 + $0xb8] sm:$0xff] %vm7709, %v7684
        %7718 = vst.msk [vmem:[#allocation2 + $0xd0] sm:$0xff] %vm7709, %v7685
        %7719 = vst.msk [vmem:[#allocation2 + $0xe8] sm:$0xff] %vm7709, %v7686
        %7720 = vst.msk [vmem:[#allocation2 + $0x100] sm:$0xff] %vm7709, %v7687
        %7721 = vst.msk [vmem:[#allocation2 + $0x118] sm:$0xff] %vm7709, %v7688
        %7722 = vst.msk [vmem:[#allocation2 + $0x130] sm:$0xff] %vm7709, %v7689
        %7723 = vst.msk [vmem:[#allocation2 + $0x148] sm:$0xff] %vm7709, %v7690
        %7724 = vst.msk [vmem:[#allocation2 + $0x160] sm:$0xff] %vm7709, %v7691
        %7725 = vst.msk [vmem:[#allocation2 + $0x178] sm:$0xff] %vm7709, %v7692
        %7726 = vst.msk [vmem:[#allocation2 + $0x190] sm:$0xff] %vm7709, %v7693
        %7727 = vst.msk [vmem:[#allocation2 + $0x1a8] sm:$0xff] %vm7709, %v7694
        %7728 = vst.msk [vmem:[#allocation2 + $0x1c0] sm:$0xff] %vm7709, %v7695
        %7729 = vst.msk [vmem:[#allocation2 + $0x1d8] sm:$0xff] %vm7709, %v7696
        %7730 = vst.msk [vmem:[#allocation2 + $0x1f0] sm:$0xff] %vm7709, %v7697
        %7731 = vst.msk [vmem:[#allocation2 + $0x208] sm:$0xff] %vm7709, %v7698
        %7732 = vst.msk [vmem:[#allocation2 + $0x220] sm:$0xff] %vm7709, %v7699
        %7733 = vst.msk [vmem:[#allocation2 + $0x238] sm:$0xff] %vm7709, %v7700
        %7734 = vst.msk [vmem:[#allocation2 + $0x250] sm:$0xff] %vm7709, %v7701
        %7735 = vst.msk [vmem:[#allocation2 + $0x268] sm:$0xff] %vm7709, %v7702
        %7736 = vst.msk [vmem:[#allocation2 + $0x280] sm:$0xff] %vm7709, %v7703
        %7737 = vst.msk [vmem:[#allocation2 + $0x298] sm:$0xff] %vm7709, %v7704
        %7738 = vst.msk [vmem:[#allocation2 + $0x2b0] sm:$0xff] %vm7709, %v7705
        %7739 = vst.msk [vmem:[#allocation2 + $0x2c8] sm:$0xff] %vm7709, %v7706
        %7740 = vst.msk [vmem:[#allocation2 + $0x2e0] sm:$0xff] %vm7709, %v7707
        %7741 = vst.msk [vmem:[#allocation2 + $0x2f8] sm:$0xff] %vm7709, %v7708
        %vm7742 = vcmask 1047680
        %7743 = vst.msk [vmem:[#allocation2 + $0x10] sm:$0xff] %vm7742, 0.0
        %7744 = vst.msk [vmem:[#allocation2 + $0x28] sm:$0xff] %vm7742, 0.0
        %7745 = vst.msk [vmem:[#allocation2 + $0x40] sm:$0xff] %vm7742, 0.0
        %7746 = vst.msk [vmem:[#allocation2 + $0x58] sm:$0xff] %vm7742, 0.0
        %7747 = vst.msk [vmem:[#allocation2 + $0x70] sm:$0xff] %vm7742, 0.0
        %7748 = vst.msk [vmem:[#allocation2 + $0x88] sm:$0xff] %vm7742, 0.0
        %7749 = vst.msk [vmem:[#allocation2 + $0xa0] sm:$0xff] %vm7742, 0.0
        %7750 = vst.msk [vmem:[#allocation2 + $0xb8] sm:$0xff] %vm7742, 0.0
        %7751 = vst.msk [vmem:[#allocation2 + $0xd0] sm:$0xff] %vm7742, 0.0
        %7752 = vst.msk [vmem:[#allocation2 + $0xe8] sm:$0xff] %vm7742, 0.0
        %7753 = vst.msk [vmem:[#allocation2 + $0x100] sm:$0xff] %vm7742, 0.0
        %7754 = vst.msk [vmem:[#allocation2 + $0x118] sm:$0xff] %vm7742, 0.0
        %7755 = vst.msk [vmem:[#allocation2 + $0x130] sm:$0xff] %vm7742, 0.0
        %7756 = vst.msk [vmem:[#allocation2 + $0x148] sm:$0xff] %vm7742, 0.0
        %7757 = vst.msk [vmem:[#allocation2 + $0x160] sm:$0xff] %vm7742, 0.0
        %7758 = vst.msk [vmem:[#allocation2 + $0x178] sm:$0xff] %vm7742, 0.0
        %7759 = vst.msk [vmem:[#allocation2 + $0x190] sm:$0xff] %vm7742, 0.0
        %7760 = vst.msk [vmem:[#allocation2 + $0x1a8] sm:$0xff] %vm7742, 0.0
        %7761 = vst.msk [vmem:[#allocation2 + $0x1c0] sm:$0xff] %vm7742, 0.0
        %7762 = vst.msk [vmem:[#allocation2 + $0x1d8] sm:$0xff] %vm7742, 0.0
        %7763 = vst.msk [vmem:[#allocation2 + $0x1f0] sm:$0xff] %vm7742, 0.0
        %7764 = vst.msk [vmem:[#allocation2 + $0x208] sm:$0xff] %vm7742, 0.0
        %7765 = vst.msk [vmem:[#allocation2 + $0x220] sm:$0xff] %vm7742, 0.0
        %7766 = vst.msk [vmem:[#allocation2 + $0x238] sm:$0xff] %vm7742, 0.0
        %7767 = vst.msk [vmem:[#allocation2 + $0x250] sm:$0xff] %vm7742, 0.0
        %7768 = vst.msk [vmem:[#allocation2 + $0x268] sm:$0xff] %vm7742, 0.0
        %7769 = vst.msk [vmem:[#allocation2 + $0x280] sm:$0xff] %vm7742, 0.0
        %7770 = vst.msk [vmem:[#allocation2 + $0x298] sm:$0xff] %vm7742, 0.0
        %7771 = vst.msk [vmem:[#allocation2 + $0x2b0] sm:$0xff] %vm7742, 0.0
        %7772 = vst.msk [vmem:[#allocation2 + $0x2c8] sm:$0xff] %vm7742, 0.0
        %7773 = vst.msk [vmem:[#allocation2 + $0x2e0] sm:$0xff] %vm7742, 0.0
        %7774 = vst.msk [vmem:[#allocation2 + $0x2f8] sm:$0xff] %vm7742, 0.0
        %v7775 = vld [vmem:[#allocation2] sm:$0xff]
        %v7776 = vld [vmem:[#allocation2 + $0x8] sm:$0xff]
        %v7777 = vld [vmem:[#allocation2 + $0x10] sm:$0xff]
        %v7778 = vld [vmem:[#allocation2 + $0x18] sm:$0xff]
        %v7779 = vld [vmem:[#allocation2 + $0x20] sm:$0xff]
        %v7780 = vld [vmem:[#allocation2 + $0x28] sm:$0xff]
        %v7781 = vld [vmem:[#allocation2 + $0x30] sm:$0xff]
        %v7782 = vld [vmem:[#allocation2 + $0x38] sm:$0xff]
        %v7783 = vld [vmem:[#allocation2 + $0x40] sm:$0xff]
        %v7784 = vld [vmem:[#allocation2 + $0x48] sm:$0xff]
        %v7785 = vld [vmem:[#allocation2 + $0x50] sm:$0xff]
        %v7786 = vld [vmem:[#allocation2 + $0x58] sm:$0xff]
        %v7787 = vld [vmem:[#allocation2 + $0x60] sm:$0xff]
        %v7788 = vld [vmem:[#allocation2 + $0x68] sm:$0xff]
        %v7789 = vld [vmem:[#allocation2 + $0x70] sm:$0xff]
        %v7790 = vld [vmem:[#allocation2 + $0x78] sm:$0xff]
        %v7791 = vld [vmem:[#allocation2 + $0x80] sm:$0xff]
        %v7792 = vld [vmem:[#allocation2 + $0x88] sm:$0xff]
        %v7793 = vld [vmem:[#allocation2 + $0x90] sm:$0xff]
        %v7794 = vld [vmem:[#allocation2 + $0x98] sm:$0xff]
        %v7795 = vld [vmem:[#allocation2 + $0xa0] sm:$0xff]
        %v7796 = vld [vmem:[#allocation2 + $0xa8] sm:$0xff]
        %v7797 = vld [vmem:[#allocation2 + $0xb0] sm:$0xff]
        %v7798 = vld [vmem:[#allocation2 + $0xb8] sm:$0xff]
        %v7799 = vld [vmem:[#allocation2 + $0xc0] sm:$0xff]
        %v7800 = vld [vmem:[#allocation2 + $0xc8] sm:$0xff]
        %v7801 = vld [vmem:[#allocation2 + $0xd0] sm:$0xff]
        %v7802 = vld [vmem:[#allocation2 + $0xd8] sm:$0xff]
        %v7803 = vld [vmem:[#allocation2 + $0xe0] sm:$0xff]
        %v7804 = vld [vmem:[#allocation2 + $0xe8] sm:$0xff]
        %v7805 = vld [vmem:[#allocation2 + $0xf0] sm:$0xff]
        %v7806 = vld [vmem:[#allocation2 + $0xf8] sm:$0xff]
        %v7807 = vld [vmem:[#allocation2 + $0x100] sm:$0xff]
        %v7808 = vld [vmem:[#allocation2 + $0x108] sm:$0xff]
        %v7809 = vld [vmem:[#allocation2 + $0x110] sm:$0xff]
        %v7810 = vld [vmem:[#allocation2 + $0x118] sm:$0xff]
        %v7811 = vld [vmem:[#allocation2 + $0x120] sm:$0xff]
        %v7812 = vld [vmem:[#allocation2 + $0x128] sm:$0xff]
        %v7813 = vld [vmem:[#allocation2 + $0x130] sm:$0xff]
        %v7814 = vld [vmem:[#allocation2 + $0x138] sm:$0xff]
        %v7815 = vld [vmem:[#allocation2 + $0x140] sm:$0xff]
        %v7816 = vld [vmem:[#allocation2 + $0x148] sm:$0xff]
        %v7817 = vld [vmem:[#allocation2 + $0x150] sm:$0xff]
        %v7818 = vld [vmem:[#allocation2 + $0x158] sm:$0xff]
        %v7819 = vld [vmem:[#allocation2 + $0x160] sm:$0xff]
        %v7820 = vld [vmem:[#allocation2 + $0x168] sm:$0xff]
        %v7821 = vld [vmem:[#allocation2 + $0x170] sm:$0xff]
        %v7822 = vld [vmem:[#allocation2 + $0x178] sm:$0xff]
        %v7823 = vld [vmem:[#allocation2 + $0x180] sm:$0xff]
        %v7824 = vld [vmem:[#allocation2 + $0x188] sm:$0xff]
        %v7825 = vld [vmem:[#allocation2 + $0x190] sm:$0xff]
        %v7826 = vld [vmem:[#allocation2 + $0x198] sm:$0xff]
        %v7827 = vld [vmem:[#allocation2 + $0x1a0] sm:$0xff]
        %v7828 = vld [vmem:[#allocation2 + $0x1a8] sm:$0xff]
        %v7829 = vld [vmem:[#allocation2 + $0x1b0] sm:$0xff]
        %v7830 = vld [vmem:[#allocation2 + $0x1b8] sm:$0xff]
        %v7831 = vld [vmem:[#allocation2 + $0x1c0] sm:$0xff]
        %v7832 = vld [vmem:[#allocation2 + $0x1c8] sm:$0xff]
        %v7833 = vld [vmem:[#allocation2 + $0x1d0] sm:$0xff]
        %v7834 = vld [vmem:[#allocation2 + $0x1d8] sm:$0xff]
        %v7835 = vld [vmem:[#allocation2 + $0x1e0] sm:$0xff]
        %v7836 = vld [vmem:[#allocation2 + $0x1e8] sm:$0xff]
        %v7837 = vld [vmem:[#allocation2 + $0x1f0] sm:$0xff]
        %v7838 = vld [vmem:[#allocation2 + $0x1f8] sm:$0xff]
        %v7839 = vld [vmem:[#allocation2 + $0x200] sm:$0xff]
        %v7840 = vld [vmem:[#allocation2 + $0x208] sm:$0xff]
        %v7841 = vld [vmem:[#allocation2 + $0x210] sm:$0xff]
        %v7842 = vld [vmem:[#allocation2 + $0x218] sm:$0xff]
        %v7843 = vld [vmem:[#allocation2 + $0x220] sm:$0xff]
        %v7844 = vld [vmem:[#allocation2 + $0x228] sm:$0xff]
        %v7845 = vld [vmem:[#allocation2 + $0x230] sm:$0xff]
        %v7846 = vld [vmem:[#allocation2 + $0x238] sm:$0xff]
        %v7847 = vld [vmem:[#allocation2 + $0x240] sm:$0xff]
        %v7848 = vld [vmem:[#allocation2 + $0x248] sm:$0xff]
        %v7849 = vld [vmem:[#allocation2 + $0x250] sm:$0xff]
        %v7850 = vld [vmem:[#allocation2 + $0x258] sm:$0xff]
        %v7851 = vld [vmem:[#allocation2 + $0x260] sm:$0xff]
        %v7852 = vld [vmem:[#allocation2 + $0x268] sm:$0xff]
        %v7853 = vld [vmem:[#allocation2 + $0x270] sm:$0xff]
        %v7854 = vld [vmem:[#allocation2 + $0x278] sm:$0xff]
        %v7855 = vld [vmem:[#allocation2 + $0x280] sm:$0xff]
        %v7856 = vld [vmem:[#allocation2 + $0x288] sm:$0xff]
        %v7857 = vld [vmem:[#allocation2 + $0x290] sm:$0xff]
        %v7858 = vld [vmem:[#allocation2 + $0x298] sm:$0xff]
        %v7859 = vld [vmem:[#allocation2 + $0x2a0] sm:$0xff]
        %v7860 = vld [vmem:[#allocation2 + $0x2a8] sm:$0xff]
        %v7861 = vld [vmem:[#allocation2 + $0x2b0] sm:$0xff]
        %v7862 = vld [vmem:[#allocation2 + $0x2b8] sm:$0xff]
        %v7863 = vld [vmem:[#allocation2 + $0x2c0] sm:$0xff]
        %v7864 = vld [vmem:[#allocation2 + $0x2c8] sm:$0xff]
        %v7865 = vld [vmem:[#allocation2 + $0x2d0] sm:$0xff]
        %v7866 = vld [vmem:[#allocation2 + $0x2d8] sm:$0xff]
        %v7867 = vld [vmem:[#allocation2 + $0x2e0] sm:$0xff]
        %v7868 = vld [vmem:[#allocation2 + $0x2e8] sm:$0xff]
        %v7869 = vld [vmem:[#allocation2 + $0x2f0] sm:$0xff]
        %v7870 = vld [vmem:[#allocation2 + $0x2f8] sm:$0xff]
        %v7871 = vld [vmem:[%s3] sm:$0xff]
        %v7872 = vld [vmem:[%s3 + $0x8] sm:$0xff]
        %v7873 = vld [vmem:[%s3 + $0x10] sm:$0xff]
        %v7874 = vld [vmem:[%s3 + $0x18] sm:$0xff]
        %v7875 = vld [vmem:[%s3 + $0x20] sm:$0xff]
        %v7876 = vld [vmem:[%s3 + $0x28] sm:$0xff]
        %v7877 = vld [vmem:[%s3 + $0x30] sm:$0xff]
        %v7878 = vld [vmem:[%s3 + $0x38] sm:$0xff]
        %v7879 = vld [vmem:[%s3 + $0x40] sm:$0xff]
        %v7880 = vld [vmem:[%s3 + $0x48] sm:$0xff]
        %v7881 = vld [vmem:[%s3 + $0x50] sm:$0xff]
        %v7882 = vld [vmem:[%s3 + $0x58] sm:$0xff]
        %v7883 = vld [vmem:[%s3 + $0x60] sm:$0xff]
        %v7884 = vld [vmem:[%s3 + $0x68] sm:$0xff]
        %v7885 = vld [vmem:[%s3 + $0x70] sm:$0xff]
        %v7886 = vld [vmem:[%s3 + $0x78] sm:$0xff]
        %v7887 = vld [vmem:[%s3 + $0x80] sm:$0xff]
        %v7888 = vld [vmem:[%s3 + $0x88] sm:$0xff]
        %v7889 = vld [vmem:[%s3 + $0x90] sm:$0xff]
        %v7890 = vld [vmem:[%s3 + $0x98] sm:$0xff]
        %v7891 = vld [vmem:[%s3 + $0xa0] sm:$0xff]
        %v7892 = vld [vmem:[%s3 + $0xa8] sm:$0xff]
        %v7893 = vld [vmem:[%s3 + $0xb0] sm:$0xff]
        %v7894 = vld [vmem:[%s3 + $0xb8] sm:$0xff]
        %v7895 = vld [vmem:[%s3 + $0xc0] sm:$0xff]
        %v7896 = vld [vmem:[%s3 + $0xc8] sm:$0xff]
        %v7897 = vld [vmem:[%s3 + $0xd0] sm:$0xff]
        %v7898 = vld [vmem:[%s3 + $0xd8] sm:$0xff]
        %v7899 = vld [vmem:[%s3 + $0xe0] sm:$0xff]
        %v7900 = vld [vmem:[%s3 + $0xe8] sm:$0xff]
        %v7901 = vld [vmem:[%s3 + $0xf0] sm:$0xff]
        %v7902 = vld [vmem:[%s3 + $0xf8] sm:$0xff]
        %v7903 = vld [vmem:[%s3 + $0x100] sm:$0xff]
        %v7904 = vld [vmem:[%s3 + $0x108] sm:$0xff]
        %v7905 = vld [vmem:[%s3 + $0x110] sm:$0xff]
        %v7906 = vld [vmem:[%s3 + $0x118] sm:$0xff]
        %v7907 = vld [vmem:[%s3 + $0x120] sm:$0xff]
        %v7908 = vld [vmem:[%s3 + $0x128] sm:$0xff]
        %v7909 = vld [vmem:[%s3 + $0x130] sm:$0xff]
        %v7910 = vld [vmem:[%s3 + $0x138] sm:$0xff]
        %v7911 = vld [vmem:[%s3 + $0x140] sm:$0xff]
        %v7912 = vld [vmem:[%s3 + $0x148] sm:$0xff]
        %v7913 = vld [vmem:[%s3 + $0x150] sm:$0xff]
        %v7914 = vld [vmem:[%s3 + $0x158] sm:$0xff]
        %v7915 = vld [vmem:[%s3 + $0x160] sm:$0xff]
        %v7916 = vld [vmem:[%s3 + $0x168] sm:$0xff]
        %v7917 = vld [vmem:[%s3 + $0x170] sm:$0xff]
        %v7918 = vld [vmem:[%s3 + $0x178] sm:$0xff]
        %v7919 = vld [vmem:[%s4] sm:$0x1]
        %v7921 = vlaneseq
        %v7922 = vshrl.u32 %v7921, 7
        %v7923 = vsub.s32 0, %v7922
        %v7924 = vrot.slane %v7919, %v7923
        %7926 = vmatprep.subr.mxu0 0.0
        %7927 = vmatpush1.msra.mxu0 %v7886
        %7928 = vmatprep.subr.mxu0 0.0
        %7929 = vmatpush1.msra.mxu0 %v7885
        %7930 = vmatprep.subr.mxu0 0.0
        %7931 = vmatpush1.msra.mxu0 %v7884
        %7932 = vmatprep.subr.mxu0 0.0
        %7933 = vmatpush1.msra.mxu0 %v7883
        %7934 = vmatprep.subr.mxu0 0.0
        %7935 = vmatpush1.msra.mxu0 %v7882
        %7936 = vmatprep.subr.mxu0 0.0
        %7937 = vmatpush1.msra.mxu0 %v7881
        %7938 = vmatprep.subr.mxu0 0.0
        %7939 = vmatpush1.msra.mxu0 %v7880
        %7940 = vmatprep.subr.mxu0 0.0
        %7941 = vmatpush1.msra.mxu0 %v7879
        %7942 = vmatprep.subr.mxu0 0.0
        %7943 = vmatpush1.msra.mxu0 %v7878
        %7944 = vmatprep.subr.mxu0 0.0
        %7945 = vmatpush1.msra.mxu0 %v7877
        %7946 = vmatprep.subr.mxu0 0.0
        %7947 = vmatpush1.msra.mxu0 %v7876
        %7948 = vmatprep.subr.mxu0 0.0
        %7949 = vmatpush1.msra.mxu0 %v7875
        %7950 = vmatprep.subr.mxu0 0.0
        %7951 = vmatpush1.msra.mxu0 %v7874
        %7952 = vmatprep.subr.mxu0 0.0
        %7953 = vmatpush1.msra.mxu0 %v7873
        %7954 = vmatprep.subr.mxu0 0.0
        %7955 = vmatpush1.msra.mxu0 %v7872
        %7956 = vmatprep.subr.mxu0 0.0
        %7957 = vmatpush1.msra.mxu0 %v7871
        %7958 = vmatprep.subr.mxu0 0.0
        %7959 = vmatpush2.msra.mxu0 %v7902
        %7960 = vmatprep.subr.mxu0 0.0
        %7961 = vmatpush2.msra.mxu0 %v7901
        %7962 = vmatprep.subr.mxu0 0.0
        %7963 = vmatpush2.msra.mxu0 %v7900
        %7964 = vmatprep.subr.mxu0 0.0
        %7965 = vmatpush2.msra.mxu0 %v7899
        %7966 = vmatprep.subr.mxu0 0.0
        %7967 = vmatpush2.msra.mxu0 %v7898
        %7968 = vmatprep.subr.mxu0 0.0
        %7969 = vmatpush2.msra.mxu0 %v7897
        %7970 = vmatprep.subr.mxu0 0.0
        %7971 = vmatpush2.msra.mxu0 %v7896
        %7972 = vmatprep.subr.mxu0 0.0
        %7973 = vmatpush2.msra.mxu0 %v7895
        %7974 = vmatprep.subr.mxu0 0.0
        %7975 = vmatpush2.msra.mxu0 %v7894
        %7976 = vmatprep.subr.mxu0 0.0
        %7977 = vmatpush2.msra.mxu0 %v7893
        %7978 = vmatprep.subr.mxu0 0.0
        %7979 = vmatpush2.msra.mxu0 %v7892
        %7980 = vmatprep.subr.mxu0 0.0
        %7981 = vmatpush2.msra.mxu0 %v7891
        %7982 = vmatprep.subr.mxu0 0.0
        %7983 = vmatpush2.msra.mxu0 %v7890
        %7984 = vmatprep.subr.mxu0 0.0
        %7985 = vmatpush2.msra.mxu0 %v7889
        %7986 = vmatprep.subr.mxu0 0.0
        %7987 = vmatpush2.msra.mxu0 %v7888
        %7988 = vmatprep.subr.mxu0 0.0
        %7989 = vmatpush2.msra.mxu0 %v7887
        %7990 = vmatprep.mubr.f32.mxu0 %v7776
        %7991 = vmatmul.mubr.f32.gmra.mxu0 %v7775
        %v7992 = vpop.f32.mrf.mxu0
        %v7993 = vadd.f32 %v7924, %v7992
        %v7994 = vpop.f32.mrf.mxu0
        %7995 = vmatprep.mubr.f32.mxu0 %v7779
        %7996 = vmatmul.mubr.f32.gmra.mxu0 %v7778
        %v7997 = vpop.f32.mrf.mxu0
        %v7998 = vadd.f32 %v7924, %v7997
        %v7999 = vpop.f32.mrf.mxu0
        %8000 = vmatprep.mubr.f32.mxu0 %v7782
        %8001 = vmatmul.mubr.f32.gmra.mxu0 %v7781
        %v8002 = vpop.f32.mrf.mxu0
        %v8003 = vadd.f32 %v7924, %v8002
        %v8004 = vpop.f32.mrf.mxu0
        %8005 = vmatprep.mubr.f32.mxu0 %v7785
        %8006 = vmatmul.mubr.f32.gmra.mxu0 %v7784
        %v8007 = vpop.f32.mrf.mxu0
        %v8008 = vadd.f32 %v7924, %v8007
        %v8009 = vpop.f32.mrf.mxu0
        %8010 = vmatprep.mubr.f32.mxu0 %v7788
        %8011 = vmatmul.mubr.f32.gmra.mxu0 %v7787
        %v8012 = vpop.f32.mrf.mxu0
        %v8013 = vadd.f32 %v7924, %v8012
        %v8014 = vpop.f32.mrf.mxu0
        %8015 = vmatprep.mubr.f32.mxu0 %v7791
        %8016 = vmatmul.mubr.f32.gmra.mxu0 %v7790
        %v8017 = vpop.f32.mrf.mxu0
        %v8018 = vadd.f32 %v7924, %v8017
        %v8019 = vpop.f32.mrf.mxu0
        %8020 = vmatprep.mubr.f32.mxu0 %v7794
        %8021 = vmatmul.mubr.f32.gmra.mxu0 %v7793
        %v8022 = vpop.f32.mrf.mxu0
        %v8023 = vadd.f32 %v7924, %v8022
        %v8024 = vpop.f32.mrf.mxu0
        %8025 = vmatprep.mubr.f32.mxu0 %v7797
        %8026 = vmatmul.mubr.f32.gmra.mxu0 %v7796
        %v8027 = vpop.f32.mrf.mxu0
        %v8028 = vadd.f32 %v7924, %v8027
        %v8029 = vpop.f32.mrf.mxu0
        %8030 = vmatprep.mubr.f32.mxu0 %v7800
        %8031 = vmatmul.mubr.f32.gmra.mxu0 %v7799
        %v8032 = vpop.f32.mrf.mxu0
        %v8033 = vadd.f32 %v7924, %v8032
        %v8034 = vpop.f32.mrf.mxu0
        %8035 = vmatprep.mubr.f32.mxu0 %v7803
        %8036 = vmatmul.mubr.f32.gmra.mxu0 %v7802
        %v8037 = vpop.f32.mrf.mxu0
        %v8038 = vadd.f32 %v7924, %v8037
        %v8039 = vpop.f32.mrf.mxu0
        %8040 = vmatprep.mubr.f32.mxu0 %v7806
        %8041 = vmatmul.mubr.f32.gmra.mxu0 %v7805
        %v8042 = vpop.f32.mrf.mxu0
        %v8043 = vadd.f32 %v7924, %v8042
        %v8044 = vpop.f32.mrf.mxu0
        %8045 = vmatprep.mubr.f32.mxu0 %v7809
        %8046 = vmatmul.mubr.f32.gmra.mxu0 %v7808
        %v8047 = vpop.f32.mrf.mxu0
        %v8048 = vadd.f32 %v7924, %v8047
        %v8049 = vpop.f32.mrf.mxu0
        %8050 = vmatprep.mubr.f32.mxu0 %v7812
        %8051 = vmatmul.mubr.f32.gmra.mxu0 %v7811
        %v8052 = vpop.f32.mrf.mxu0
        %v8053 = vadd.f32 %v7924, %v8052
        %v8054 = vpop.f32.mrf.mxu0
        %8055 = vmatprep.mubr.f32.mxu0 %v7815
        %8056 = vmatmul.mubr.f32.gmra.mxu0 %v7814
        %v8057 = vpop.f32.mrf.mxu0
        %v8058 = vadd.f32 %v7924, %v8057
        %v8059 = vpop.f32.mrf.mxu0
        %8060 = vmatprep.mubr.f32.mxu0 %v7818
        %8061 = vmatmul.mubr.f32.gmra.mxu0 %v7817
        %v8062 = vpop.f32.mrf.mxu0
        %v8063 = vadd.f32 %v7924, %v8062
        %v8064 = vpop.f32.mrf.mxu0
        %8065 = vmatprep.mubr.f32.mxu0 %v7821
        %8066 = vmatmul.mubr.f32.gmra.mxu0 %v7820
        %v8067 = vpop.f32.mrf.mxu0
        %v8068 = vadd.f32 %v7924, %v8067
        %v8069 = vpop.f32.mrf.mxu0
        %8070 = vmatprep.mubr.f32.mxu0 %v7824
        %8071 = vmatmul.mubr.f32.gmra.mxu0 %v7823
        %v8072 = vpop.f32.mrf.mxu0
        %v8073 = vadd.f32 %v7924, %v8072
        %v8074 = vpop.f32.mrf.mxu0
        %8075 = vmatprep.mubr.f32.mxu0 %v7827
        %8076 = vmatmul.mubr.f32.gmra.mxu0 %v7826
        %v8077 = vpop.f32.mrf.mxu0
        %v8078 = vadd.f32 %v7924, %v8077
        %v8079 = vpop.f32.mrf.mxu0
        %8080 = vmatprep.mubr.f32.mxu0 %v7830
        %8081 = vmatmul.mubr.f32.gmra.mxu0 %v7829
        %v8082 = vpop.f32.mrf.mxu0
        %v8083 = vadd.f32 %v7924, %v8082
        %v8084 = vpop.f32.mrf.mxu0
        %8085 = vmatprep.mubr.f32.mxu0 %v7833
        %8086 = vmatmul.mubr.f32.gmra.mxu0 %v7832
        %v8087 = vpop.f32.mrf.mxu0
        %v8088 = vadd.f32 %v7924, %v8087
        %v8089 = vpop.f32.mrf.mxu0
        %8090 = vmatprep.mubr.f32.mxu0 %v7836
        %8091 = vmatmul.mubr.f32.gmra.mxu0 %v7835
        %v8092 = vpop.f32.mrf.mxu0
        %v8093 = vadd.f32 %v7924, %v8092
        %v8094 = vpop.f32.mrf.mxu0
        %8095 = vmatprep.mubr.f32.mxu0 %v7839
        %8096 = vmatmul.mubr.f32.gmra.mxu0 %v7838
        %v8097 = vpop.f32.mrf.mxu0
        %v8098 = vadd.f32 %v7924, %v8097
        %v8099 = vpop.f32.mrf.mxu0
        %8100 = vmatprep.mubr.f32.mxu0 %v7842
        %8101 = vmatmul.mubr.f32.gmra.mxu0 %v7841
        %v8102 = vpop.f32.mrf.mxu0
        %v8103 = vadd.f32 %v7924, %v8102
        %v8104 = vpop.f32.mrf.mxu0
        %8105 = vmatprep.mubr.f32.mxu0 %v7845
        %8106 = vmatmul.mubr.f32.gmra.mxu0 %v7844
        %v8107 = vpop.f32.mrf.mxu0
        %v8108 = vadd.f32 %v7924, %v8107
        %v8109 = vpop.f32.mrf.mxu0
        %8110 = vmatprep.mubr.f32.mxu0 %v7848
        %8111 = vmatmul.mubr.f32.gmra.mxu0 %v7847
        %v8112 = vpop.f32.mrf.mxu0
        %v8113 = vadd.f32 %v7924, %v8112
        %v8114 = vpop.f32.mrf.mxu0
        %8115 = vmatprep.mubr.f32.mxu0 %v7851
        %8116 = vmatmul.mubr.f32.gmra.mxu0 %v7850
        %v8117 = vpop.f32.mrf.mxu0
        %v8118 = vadd.f32 %v7924, %v8117
        %v8119 = vpop.f32.mrf.mxu0
        %8120 = vmatprep.mubr.f32.mxu0 %v7854
        %8121 = vmatmul.mubr.f32.gmra.mxu0 %v7853
        %v8122 = vpop.f32.mrf.mxu0
        %v8123 = vadd.f32 %v7924, %v8122
        %v8124 = vpop.f32.mrf.mxu0
        %8125 = vmatprep.mubr.f32.mxu0 %v7857
        %8126 = vmatmul.mubr.f32.gmra.mxu0 %v7856
        %v8127 = vpop.f32.mrf.mxu0
        %v8128 = vadd.f32 %v7924, %v8127
        %v8129 = vpop.f32.mrf.mxu0
        %8130 = vmatprep.mubr.f32.mxu0 %v7860
        %8131 = vmatmul.mubr.f32.gmra.mxu0 %v7859
        %v8132 = vpop.f32.mrf.mxu0
        %v8133 = vadd.f32 %v7924, %v8132
        %v8134 = vpop.f32.mrf.mxu0
        %8135 = vmatprep.mubr.f32.mxu0 %v7863
        %8136 = vmatmul.mubr.f32.gmra.mxu0 %v7862
        %v8137 = vpop.f32.mrf.mxu0
        %v8138 = vadd.f32 %v7924, %v8137
        %v8139 = vpop.f32.mrf.mxu0
        %8140 = vmatprep.mubr.f32.mxu0 %v7866
        %8141 = vmatmul.mubr.f32.gmra.mxu0 %v7865
        %v8142 = vpop.f32.mrf.mxu0
        %v8143 = vadd.f32 %v7924, %v8142
        %v8144 = vpop.f32.mrf.mxu0
        %8145 = vmatprep.mubr.f32.mxu0 %v7869
        %8146 = vmatmul.mubr.f32.gmra.mxu0 %v7868
        %v8147 = vpop.f32.mrf.mxu0
        %v8148 = vadd.f32 %v7924, %v8147
        %v8149 = vpop.f32.mrf.mxu0
        %8150 = vdwg.mxu0
        %8151 = vmatprep.subr.mxu0 0.0
        %8152 = vmatpush1.msra.mxu0 %v7918
        %8153 = vmatprep.subr.mxu0 0.0
        %8154 = vmatpush1.msra.mxu0 %v7917
        %8155 = vmatprep.subr.mxu0 0.0
        %8156 = vmatpush1.msra.mxu0 %v7916
        %8157 = vmatprep.subr.mxu0 0.0
        %8158 = vmatpush1.msra.mxu0 %v7915
        %8159 = vmatprep.subr.mxu0 0.0
        %8160 = vmatpush1.msra.mxu0 %v7914
        %8161 = vmatprep.subr.mxu0 0.0
        %8162 = vmatpush1.msra.mxu0 %v7913
        %8163 = vmatprep.subr.mxu0 0.0
        %8164 = vmatpush1.msra.mxu0 %v7912
        %8165 = vmatprep.subr.mxu0 0.0
        %8166 = vmatpush1.msra.mxu0 %v7911
        %8167 = vmatprep.subr.mxu0 0.0
        %8168 = vmatpush1.msra.mxu0 %v7910
        %8169 = vmatprep.subr.mxu0 0.0
        %8170 = vmatpush1.msra.mxu0 %v7909
        %8171 = vmatprep.subr.mxu0 0.0
        %8172 = vmatpush1.msra.mxu0 %v7908
        %8173 = vmatprep.subr.mxu0 0.0
        %8174 = vmatpush1.msra.mxu0 %v7907
        %8175 = vmatprep.subr.mxu0 0.0
        %8176 = vmatpush1.msra.mxu0 %v7906
        %8177 = vmatprep.subr.mxu0 0.0
        %8178 = vmatpush1.msra.mxu0 %v7905
        %8179 = vmatprep.subr.mxu0 0.0
        %8180 = vmatpush1.msra.mxu0 %v7904
        %8181 = vmatprep.subr.mxu0 0.0
        %8182 = vmatpush1.msra.mxu0 %v7903
        %8183 = vmatprep.subr.mxu0 0.0
        %8184 = vmatpush2.msra.mxu0 0.0
        %8185 = vmatprep.subr.mxu0 0.0
        %8186 = vmatpush2.msra.mxu0 0.0
        %8187 = vmatprep.subr.mxu0 0.0
        %8188 = vmatpush2.msra.mxu0 0.0
        %8189 = vmatprep.subr.mxu0 0.0
        %8190 = vmatpush2.msra.mxu0 0.0
        %8191 = vmatprep.subr.mxu0 0.0
        %8192 = vmatpush2.msra.mxu0 0.0
        %8193 = vmatprep.subr.mxu0 0.0
        %8194 = vmatpush2.msra.mxu0 0.0
        %8195 = vmatprep.subr.mxu0 0.0
        %8196 = vmatpush2.msra.mxu0 0.0
        %8197 = vmatprep.subr.mxu0 0.0
        %8198 = vmatpush2.msra.mxu0 0.0
        %8199 = vmatprep.subr.mxu0 0.0
        %8200 = vmatpush2.msra.mxu0 0.0
        %8201 = vmatprep.subr.mxu0 0.0
        %8202 = vmatpush2.msra.mxu0 0.0
        %8203 = vmatprep.subr.mxu0 0.0
        %8204 = vmatpush2.msra.mxu0 0.0
        %8205 = vmatprep.subr.mxu0 0.0
        %8206 = vmatpush2.msra.mxu0 0.0
        %8207 = vmatprep.subr.mxu0 0.0
        %8208 = vmatpush2.msra.mxu0 0.0
        %8209 = vmatprep.subr.mxu0 0.0
        %8210 = vmatpush2.msra.mxu0 0.0
        %8211 = vmatprep.subr.mxu0 0.0
        %8212 = vmatpush2.msra.mxu0 0.0
        %8213 = vmatprep.subr.mxu0 0.0
        %8214 = vmatpush2.msra.mxu0 0.0
        %8215 = vmatprep.mubr.f32.mxu0 0.0
        %8216 = vmatmul.mubr.f32.gmra.mxu0 %v7777
        %v8217 = vpop.f32.mrf.mxu0
        %v8218 = vadd.f32 %v7993, %v8217
        %v8219 = vpop.f32.mrf.mxu0
        %8220 = vmatprep.mubr.f32.mxu0 0.0
        %8221 = vmatmul.mubr.f32.gmra.mxu0 %v7780
        %v8222 = vpop.f32.mrf.mxu0
        %v8223 = vadd.f32 %v7998, %v8222
        %v8224 = vpop.f32.mrf.mxu0
        %8225 = vmatprep.mubr.f32.mxu0 0.0
        %8226 = vmatmul.mubr.f32.gmra.mxu0 %v7783
        %v8227 = vpop.f32.mrf.mxu0
        %v8228 = vadd.f32 %v8003, %v8227
        %v8229 = vpop.f32.mrf.mxu0
        %8230 = vmatprep.mubr.f32.mxu0 0.0
        %8231 = vmatmul.mubr.f32.gmra.mxu0 %v7786
        %v8232 = vpop.f32.mrf.mxu0
        %v8233 = vadd.f32 %v8008, %v8232
        %v8234 = vpop.f32.mrf.mxu0
        %8235 = vmatprep.mubr.f32.mxu0 0.0
        %8236 = vmatmul.mubr.f32.gmra.mxu0 %v7789
        %v8237 = vpop.f32.mrf.mxu0
        %v8238 = vadd.f32 %v8013, %v8237
        %v8239 = vpop.f32.mrf.mxu0
        %8240 = vmatprep.mubr.f32.mxu0 0.0
        %8241 = vmatmul.mubr.f32.gmra.mxu0 %v7792
        %v8242 = vpop.f32.mrf.mxu0
        %v8243 = vadd.f32 %v8018, %v8242
        %v8244 = vpop.f32.mrf.mxu0
        %8245 = vmatprep.mubr.f32.mxu0 0.0
        %8246 = vmatmul.mubr.f32.gmra.mxu0 %v7795
        %v8247 = vpop.f32.mrf.mxu0
        %v8248 = vadd.f32 %v8023, %v8247
        %v8249 = vpop.f32.mrf.mxu0
        %8250 = vmatprep.mubr.f32.mxu0 0.0
        %8251 = vmatmul.mubr.f32.gmra.mxu0 %v7798
        %v8252 = vpop.f32.mrf.mxu0
        %v8253 = vadd.f32 %v8028, %v8252
        %v8254 = vpop.f32.mrf.mxu0
        %8255 = vmatprep.mubr.f32.mxu0 0.0
        %8256 = vmatmul.mubr.f32.gmra.mxu0 %v7801
        %v8257 = vpop.f32.mrf.mxu0
        %v8258 = vadd.f32 %v8033, %v8257
        %v8259 = vpop.f32.mrf.mxu0
        %8260 = vmatprep.mubr.f32.mxu0 0.0
        %8261 = vmatmul.mubr.f32.gmra.mxu0 %v7804
        %v8262 = vpop.f32.mrf.mxu0
        %v8263 = vadd.f32 %v8038, %v8262
        %v8264 = vpop.f32.mrf.mxu0
        %8265 = vmatprep.mubr.f32.mxu0 0.0
        %8266 = vmatmul.mubr.f32.gmra.mxu0 %v7807
        %v8267 = vpop.f32.mrf.mxu0
        %v8268 = vadd.f32 %v8043, %v8267
        %v8269 = vpop.f32.mrf.mxu0
        %8270 = vmatprep.mubr.f32.mxu0 0.0
        %8271 = vmatmul.mubr.f32.gmra.mxu0 %v7810
        %v8272 = vpop.f32.mrf.mxu0
        %v8273 = vadd.f32 %v8048, %v8272
        %v8274 = vpop.f32.mrf.mxu0
        %8275 = vmatprep.mubr.f32.mxu0 0.0
        %8276 = vmatmul.mubr.f32.gmra.mxu0 %v7813
        %v8277 = vpop.f32.mrf.mxu0
        %v8278 = vadd.f32 %v8053, %v8277
        %v8279 = vpop.f32.mrf.mxu0
        %8280 = vmatprep.mubr.f32.mxu0 0.0
        %8281 = vmatmul.mubr.f32.gmra.mxu0 %v7816
        %v8282 = vpop.f32.mrf.mxu0
        %v8283 = vadd.f32 %v8058, %v8282
        %v8284 = vpop.f32.mrf.mxu0
        %8285 = vmatprep.mubr.f32.mxu0 0.0
        %8286 = vmatmul.mubr.f32.gmra.mxu0 %v7819
        %v8287 = vpop.f32.mrf.mxu0
        %v8288 = vadd.f32 %v8063, %v8287
        %v8289 = vpop.f32.mrf.mxu0
        %8290 = vmatprep.mubr.f32.mxu0 0.0
        %8291 = vmatmul.mubr.f32.gmra.mxu0 %v7822
        %v8292 = vpop.f32.mrf.mxu0
        %v8293 = vadd.f32 %v8068, %v8292
        %v8294 = vpop.f32.mrf.mxu0
        %8295 = vmatprep.mubr.f32.mxu0 0.0
        %8296 = vmatmul.mubr.f32.gmra.mxu0 %v7825
        %v8297 = vpop.f32.mrf.mxu0
        %v8298 = vadd.f32 %v8073, %v8297
        %v8299 = vpop.f32.mrf.mxu0
        %8300 = vmatprep.mubr.f32.mxu0 0.0
        %8301 = vmatmul.mubr.f32.gmra.mxu0 %v7828
        %v8302 = vpop.f32.mrf.mxu0
        %v8303 = vadd.f32 %v8078, %v8302
        %v8304 = vpop.f32.mrf.mxu0
        %8305 = vmatprep.mubr.f32.mxu0 0.0
        %8306 = vmatmul.mubr.f32.gmra.mxu0 %v7831
        %v8307 = vpop.f32.mrf.mxu0
        %v8308 = vadd.f32 %v8083, %v8307
        %v8309 = vpop.f32.mrf.mxu0
        %8310 = vmatprep.mubr.f32.mxu0 0.0
        %8311 = vmatmul.mubr.f32.gmra.mxu0 %v7834
        %v8312 = vpop.f32.mrf.mxu0
        %v8313 = vadd.f32 %v8088, %v8312
        %v8314 = vpop.f32.mrf.mxu0
        %8315 = vmatprep.mubr.f32.mxu0 0.0
        %8316 = vmatmul.mubr.f32.gmra.mxu0 %v7837
        %v8317 = vpop.f32.mrf.mxu0
        %v8318 = vadd.f32 %v8093, %v8317
        %v8319 = vpop.f32.mrf.mxu0
        %8320 = vmatprep.mubr.f32.mxu0 0.0
        %8321 = vmatmul.mubr.f32.gmra.mxu0 %v7840
        %v8322 = vpop.f32.mrf.mxu0
        %v8323 = vadd.f32 %v8098, %v8322
        %v8324 = vpop.f32.mrf.mxu0
        %8325 = vmatprep.mubr.f32.mxu0 0.0
        %8326 = vmatmul.mubr.f32.gmra.mxu0 %v7843
        %v8327 = vpop.f32.mrf.mxu0
        %v8328 = vadd.f32 %v8103, %v8327
        %v8329 = vpop.f32.mrf.mxu0
        %8330 = vmatprep.mubr.f32.mxu0 0.0
        %8331 = vmatmul.mubr.f32.gmra.mxu0 %v7846
        %v8332 = vpop.f32.mrf.mxu0
        %v8333 = vadd.f32 %v8108, %v8332
        %v8334 = vpop.f32.mrf.mxu0
        %8335 = vmatprep.mubr.f32.mxu0 0.0
        %8336 = vmatmul.mubr.f32.gmra.mxu0 %v7849
        %v8337 = vpop.f32.mrf.mxu0
        %v8338 = vadd.f32 %v8113, %v8337
        %v8339 = vpop.f32.mrf.mxu0
        %8340 = vmatprep.mubr.f32.mxu0 0.0
        %8341 = vmatmul.mubr.f32.gmra.mxu0 %v7852
        %v8342 = vpop.f32.mrf.mxu0
        %v8343 = vadd.f32 %v8118, %v8342
        %v8344 = vpop.f32.mrf.mxu0
        %8345 = vmatprep.mubr.f32.mxu0 0.0
        %8346 = vmatmul.mubr.f32.gmra.mxu0 %v7855
        %v8347 = vpop.f32.mrf.mxu0
        %v8348 = vadd.f32 %v8123, %v8347
        %v8349 = vpop.f32.mrf.mxu0
        %8350 = vmatprep.mubr.f32.mxu0 0.0
        %8351 = vmatmul.mubr.f32.gmra.mxu0 %v7858
        %v8352 = vpop.f32.mrf.mxu0
        %v8353 = vadd.f32 %v8128, %v8352
        %v8354 = vpop.f32.mrf.mxu0
        %8355 = vmatprep.mubr.f32.mxu0 0.0
        %8356 = vmatmul.mubr.f32.gmra.mxu0 %v7861
        %v8357 = vpop.f32.mrf.mxu0
        %v8358 = vadd.f32 %v8133, %v8357
        %v8359 = vpop.f32.mrf.mxu0
        %8360 = vmatprep.mubr.f32.mxu0 0.0
        %8361 = vmatmul.mubr.f32.gmra.mxu0 %v7864
        %v8362 = vpop.f32.mrf.mxu0
        %v8363 = vadd.f32 %v8138, %v8362
        %v8364 = vpop.f32.mrf.mxu0
        %8365 = vmatprep.mubr.f32.mxu0 0.0
        %8366 = vmatmul.mubr.f32.gmra.mxu0 %v7867
        %v8367 = vpop.f32.mrf.mxu0
        %v8368 = vadd.f32 %v8143, %v8367
        %v8369 = vpop.f32.mrf.mxu0
        %8370 = vmatprep.mubr.f32.mxu0 0.0
        %8371 = vmatmul.mubr.f32.gmra.mxu0 %v7870
        %v8372 = vpop.f32.mrf.mxu0
        %v8373 = vadd.f32 %v8148, %v8372
        %v8374 = vpop.f32.mrf.mxu0
        %8375 = vdwg.mxu0
        %v8376 = vmax.f32 %v8218, 0.0
        %v8377 = vmax.f32 %v8223, 0.0
        %v8378 = vmax.f32 %v8228, 0.0
        %v8379 = vmax.f32 %v8233, 0.0
        %v8380 = vmax.f32 %v8238, 0.0
        %v8381 = vmax.f32 %v8243, 0.0
        %v8382 = vmax.f32 %v8248, 0.0
        %v8383 = vmax.f32 %v8253, 0.0
        %v8384 = vmax.f32 %v8258, 0.0
        %v8385 = vmax.f32 %v8263, 0.0
        %v8386 = vmax.f32 %v8268, 0.0
        %v8387 = vmax.f32 %v8273, 0.0
        %v8388 = vmax.f32 %v8278, 0.0
        %v8389 = vmax.f32 %v8283, 0.0
        %v8390 = vmax.f32 %v8288, 0.0
        %v8391 = vmax.f32 %v8293, 0.0
        %v8392 = vmax.f32 %v8298, 0.0
        %v8393 = vmax.f32 %v8303, 0.0
        %v8394 = vmax.f32 %v8308, 0.0
        %v8395 = vmax.f32 %v8313, 0.0
        %v8396 = vmax.f32 %v8318, 0.0
        %v8397 = vmax.f32 %v8323, 0.0
        %v8398 = vmax.f32 %v8328, 0.0
        %v8399 = vmax.f32 %v8333, 0.0
        %v8400 = vmax.f32 %v8338, 0.0
        %v8401 = vmax.f32 %v8343, 0.0
        %v8402 = vmax.f32 %v8348, 0.0
        %v8403 = vmax.f32 %v8353, 0.0
        %v8404 = vmax.f32 %v8358, 0.0
        %v8405 = vmax.f32 %v8363, 0.0
        %v8406 = vmax.f32 %v8368, 0.0
        %v8407 = vmax.f32 %v8373, 0.0
        %v8408 = vld [vmem:[%s5] sm:$0xff]
        %v8409 = vld [vmem:[%s5 + $0x8] sm:$0xff]
        %v8410 = vld [vmem:[%s5 + $0x10] sm:$0xff]
        %v8411 = vld [vmem:[%s5 + $0x18] sm:$0xff]
        %v8412 = vld [vmem:[%s5 + $0x20] sm:$0xff]
        %v8413 = vld [vmem:[%s5 + $0x28] sm:$0xff]
        %v8414 = vld [vmem:[%s5 + $0x30] sm:$0xff]
        %v8415 = vld [vmem:[%s5 + $0x38] sm:$0xff]
        %v8416 = vld [vmem:[%s6] sm:$0x1]
        %v8418 = vlaneseq
        %v8419 = vshrl.u32 %v8418, 7
        %v8420 = vsub.s32 0, %v8419
        %v8421 = vrot.slane %v8416, %v8420
        %vm8423 = vcmask 523264
        %v8425 = vsel %vm8423, %v8376, 0
        %v8428 = vsel %vm8423, %v8377, 0
        %v8431 = vsel %vm8423, %v8378, 0
        %v8434 = vsel %vm8423, %v8379, 0
        %v8437 = vsel %vm8423, %v8380, 0
        %v8440 = vsel %vm8423, %v8381, 0
        %v8443 = vsel %vm8423, %v8382, 0
        %v8446 = vsel %vm8423, %v8383, 0
        %v8449 = vsel %vm8423, %v8384, 0
        %v8452 = vsel %vm8423, %v8385, 0
        %v8455 = vsel %vm8423, %v8386, 0
        %v8458 = vsel %vm8423, %v8387, 0
        %v8461 = vsel %vm8423, %v8388, 0
        %v8464 = vsel %vm8423, %v8389, 0
        %v8467 = vsel %vm8423, %v8390, 0
        %v8470 = vsel %vm8423, %v8391, 0
        %v8473 = vsel %vm8423, %v8392, 0
        %v8476 = vsel %vm8423, %v8393, 0
        %v8479 = vsel %vm8423, %v8394, 0
        %v8482 = vsel %vm8423, %v8395, 0
        %v8485 = vsel %vm8423, %v8396, 0
        %v8488 = vsel %vm8423, %v8397, 0
        %v8491 = vsel %vm8423, %v8398, 0
        %v8494 = vsel %vm8423, %v8399, 0
        %v8497 = vsel %vm8423, %v8400, 0
        %v8500 = vsel %vm8423, %v8401, 0
        %v8503 = vsel %vm8423, %v8402, 0
        %v8506 = vsel %vm8423, %v8403, 0
        %v8509 = vsel %vm8423, %v8404, 0
        %v8512 = vsel %vm8423, %v8405, 0
        %v8515 = vsel %vm8423, %v8406, 0
        %v8518 = vsel %vm8423, %v8407, 0
        %8520 = vmatprep.subr.mxu0 0.0
        %8521 = vmatpush1.msra.mxu0 0.0
        %8522 = vmatprep.subr.mxu0 0.0
        %8523 = vmatpush1.msra.mxu0 0.0
        %8524 = vmatprep.subr.mxu0 0.0
        %8525 = vmatpush1.msra.mxu0 0.0
        %8526 = vmatprep.subr.mxu0 0.0
        %8527 = vmatpush1.msra.mxu0 0.0
        %8528 = vmatprep.subr.mxu0 0.0
        %8529 = vmatpush1.msra.mxu0 0.0
        %8530 = vmatprep.subr.mxu0 0.0
        %8531 = vmatpush1.msra.mxu0 0.0
        %8532 = vmatprep.subr.mxu0 0.0
        %8533 = vmatpush1.msra.mxu0 0.0
        %8534 = vmatprep.subr.mxu0 0.0
        %8535 = vmatpush1.msra.mxu0 0.0
        %8536 = vmatprep.subr.mxu0 0.0
        %8537 = vmatpush1.msra.mxu0 %v8415
        %8538 = vmatprep.subr.mxu0 0.0
        %8539 = vmatpush1.msra.mxu0 %v8414
        %8540 = vmatprep.subr.mxu0 0.0
        %8541 = vmatpush1.msra.mxu0 %v8413
        %8542 = vmatprep.subr.mxu0 0.0
        %8543 = vmatpush1.msra.mxu0 %v8412
        %8544 = vmatprep.subr.mxu0 0.0
        %8545 = vmatpush1.msra.mxu0 %v8411
        %8546 = vmatprep.subr.mxu0 0.0
        %8547 = vmatpush1.msra.mxu0 %v8410
        %8548 = vmatprep.subr.mxu0 0.0
        %8549 = vmatpush1.msra.mxu0 %v8409
        %8550 = vmatprep.subr.mxu0 0.0
        %8551 = vmatpush1.msra.mxu0 %v8408
        %8552 = vmatprep.subr.mxu0 0.0
        %8553 = vmatpush2.msra.mxu0 0.0
        %8554 = vmatprep.subr.mxu0 0.0
        %8555 = vmatpush2.msra.mxu0 0.0
        %8556 = vmatprep.subr.mxu0 0.0
        %8557 = vmatpush2.msra.mxu0 0.0
        %8558 = vmatprep.subr.mxu0 0.0
        %8559 = vmatpush2.msra.mxu0 0.0
        %8560 = vmatprep.subr.mxu0 0.0
        %8561 = vmatpush2.msra.mxu0 0.0
        %8562 = vmatprep.subr.mxu0 0.0
        %8563 = vmatpush2.msra.mxu0 0.0
        %8564 = vmatprep.subr.mxu0 0.0
        %8565 = vmatpush2.msra.mxu0 0.0
        %8566 = vmatprep.subr.mxu0 0.0
        %8567 = vmatpush2.msra.mxu0 0.0
        %8568 = vmatprep.subr.mxu0 0.0
        %8569 = vmatpush2.msra.mxu0 0.0
        %8570 = vmatprep.subr.mxu0 0.0
        %8571 = vmatpush2.msra.mxu0 0.0
        %8572 = vmatprep.subr.mxu0 0.0
        %8573 = vmatpush2.msra.mxu0 0.0
        %8574 = vmatprep.subr.mxu0 0.0
        %8575 = vmatpush2.msra.mxu0 0.0
        %8576 = vmatprep.subr.mxu0 0.0
        %8577 = vmatpush2.msra.mxu0 0.0
        %8578 = vmatprep.subr.mxu0 0.0
        %8579 = vmatpush2.msra.mxu0 0.0
        %8580 = vmatprep.subr.mxu0 0.0
        %8581 = vmatpush2.msra.mxu0 0.0
        %8582 = vmatprep.subr.mxu0 0.0
        %8583 = vmatpush2.msra.mxu0 0.0
        %8584 = vmatprep.mubr.f32.mxu0 0.0
        %8585 = vmatmul.mubr.f32.gmra.mxu0 %v8425
        %v8586 = vpop.f32.mrf.mxu0
        %v8587 = vadd.f32 %v8421, %v8586
        %v8588 = vpop.f32.mrf.mxu0
        %8589 = vmatprep.mubr.f32.mxu0 0.0
        %8590 = vmatmul.mubr.f32.gmra.mxu0 %v8428
        %v8591 = vpop.f32.mrf.mxu0
        %v8592 = vadd.f32 %v8421, %v8591
        %v8593 = vpop.f32.mrf.mxu0
        %8594 = vmatprep.mubr.f32.mxu0 0.0
        %8595 = vmatmul.mubr.f32.gmra.mxu0 %v8431
        %v8596 = vpop.f32.mrf.mxu0
        %v8597 = vadd.f32 %v8421, %v8596
        %v8598 = vpop.f32.mrf.mxu0
        %8599 = vmatprep.mubr.f32.mxu0 0.0
        %8600 = vmatmul.mubr.f32.gmra.mxu0 %v8434
        %v8601 = vpop.f32.mrf.mxu0
        %v8602 = vadd.f32 %v8421, %v8601
        %v8603 = vpop.f32.mrf.mxu0
        %8604 = vmatprep.mubr.f32.mxu0 0.0
        %8605 = vmatmul.mubr.f32.gmra.mxu0 %v8437
        %v8606 = vpop.f32.mrf.mxu0
        %v8607 = vadd.f32 %v8421, %v8606
        %v8608 = vpop.f32.mrf.mxu0
        %8609 = vmatprep.mubr.f32.mxu0 0.0
        %8610 = vmatmul.mubr.f32.gmra.mxu0 %v8440
        %v8611 = vpop.f32.mrf.mxu0
        %v8612 = vadd.f32 %v8421, %v8611
        %v8613 = vpop.f32.mrf.mxu0
        %8614 = vmatprep.mubr.f32.mxu0 0.0
        %8615 = vmatmul.mubr.f32.gmra.mxu0 %v8443
        %v8616 = vpop.f32.mrf.mxu0
        %v8617 = vadd.f32 %v8421, %v8616
        %v8618 = vpop.f32.mrf.mxu0
        %8619 = vmatprep.mubr.f32.mxu0 0.0
        %8620 = vmatmul.mubr.f32.gmra.mxu0 %v8446
        %v8621 = vpop.f32.mrf.mxu0
        %v8622 = vadd.f32 %v8421, %v8621
        %v8623 = vpop.f32.mrf.mxu0
        %8624 = vmatprep.mubr.f32.mxu0 0.0
        %8625 = vmatmul.mubr.f32.gmra.mxu0 %v8449
        %v8626 = vpop.f32.mrf.mxu0
        %v8627 = vadd.f32 %v8421, %v8626
        %v8628 = vpop.f32.mrf.mxu0
        %8629 = vmatprep.mubr.f32.mxu0 0.0
        %8630 = vmatmul.mubr.f32.gmra.mxu0 %v8452
        %v8631 = vpop.f32.mrf.mxu0
        %v8632 = vadd.f32 %v8421, %v8631
        %v8633 = vpop.f32.mrf.mxu0
        %8634 = vmatprep.mubr.f32.mxu0 0.0
        %8635 = vmatmul.mubr.f32.gmra.mxu0 %v8455
        %v8636 = vpop.f32.mrf.mxu0
        %v8637 = vadd.f32 %v8421, %v8636
        %v8638 = vpop.f32.mrf.mxu0
        %8639 = vmatprep.mubr.f32.mxu0 0.0
        %8640 = vmatmul.mubr.f32.gmra.mxu0 %v8458
        %v8641 = vpop.f32.mrf.mxu0
        %v8642 = vadd.f32 %v8421, %v8641
        %v8643 = vpop.f32.mrf.mxu0
        %8644 = vmatprep.mubr.f32.mxu0 0.0
        %8645 = vmatmul.mubr.f32.gmra.mxu0 %v8461
        %v8646 = vpop.f32.mrf.mxu0
        %v8647 = vadd.f32 %v8421, %v8646
        %v8648 = vpop.f32.mrf.mxu0
        %8649 = vmatprep.mubr.f32.mxu0 0.0
        %8650 = vmatmul.mubr.f32.gmra.mxu0 %v8464
        %v8651 = vpop.f32.mrf.mxu0
        %v8652 = vadd.f32 %v8421, %v8651
        %v8653 = vpop.f32.mrf.mxu0
        %8654 = vmatprep.mubr.f32.mxu0 0.0
        %8655 = vmatmul.mubr.f32.gmra.mxu0 %v8467
        %v8656 = vpop.f32.mrf.mxu0
        %v8657 = vadd.f32 %v8421, %v8656
        %v8658 = vpop.f32.mrf.mxu0
        %8659 = vmatprep.mubr.f32.mxu0 0.0
        %8660 = vmatmul.mubr.f32.gmra.mxu0 %v8470
        %v8661 = vpop.f32.mrf.mxu0
        %v8662 = vadd.f32 %v8421, %v8661
        %v8663 = vpop.f32.mrf.mxu0
        %8664 = vmatprep.mubr.f32.mxu0 0.0
        %8665 = vmatmul.mubr.f32.gmra.mxu0 %v8473
        %v8666 = vpop.f32.mrf.mxu0
        %v8667 = vadd.f32 %v8421, %v8666
        %v8668 = vpop.f32.mrf.mxu0
        %8669 = vmatprep.mubr.f32.mxu0 0.0
        %8670 = vmatmul.mubr.f32.gmra.mxu0 %v8476
        %v8671 = vpop.f32.mrf.mxu0
        %v8672 = vadd.f32 %v8421, %v8671
        %v8673 = vpop.f32.mrf.mxu0
        %8674 = vmatprep.mubr.f32.mxu0 0.0
        %8675 = vmatmul.mubr.f32.gmra.mxu0 %v8479
        %v8676 = vpop.f32.mrf.mxu0
        %v8677 = vadd.f32 %v8421, %v8676
        %v8678 = vpop.f32.mrf.mxu0
        %8679 = vmatprep.mubr.f32.mxu0 0.0
        %8680 = vmatmul.mubr.f32.gmra.mxu0 %v8482
        %v8681 = vpop.f32.mrf.mxu0
        %v8682 = vadd.f32 %v8421, %v8681
        %v8683 = vpop.f32.mrf.mxu0
        %8684 = vmatprep.mubr.f32.mxu0 0.0
        %8685 = vmatmul.mubr.f32.gmra.mxu0 %v8485
        %v8686 = vpop.f32.mrf.mxu0
        %v8687 = vadd.f32 %v8421, %v8686
        %v8688 = vpop.f32.mrf.mxu0
        %8689 = vmatprep.mubr.f32.mxu0 0.0
        %8690 = vmatmul.mubr.f32.gmra.mxu0 %v8488
        %v8691 = vpop.f32.mrf.mxu0
        %v8692 = vadd.f32 %v8421, %v8691
        %v8693 = vpop.f32.mrf.mxu0
        %8694 = vmatprep.mubr.f32.mxu0 0.0
        %8695 = vmatmul.mubr.f32.gmra.mxu0 %v8491
        %v8696 = vpop.f32.mrf.mxu0
        %v8697 = vadd.f32 %v8421, %v8696
        %v8698 = vpop.f32.mrf.mxu0
        %8699 = vmatprep.mubr.f32.mxu0 0.0
        %8700 = vmatmul.mubr.f32.gmra.mxu0 %v8494
        %v8701 = vpop.f32.mrf.mxu0
        %v8702 = vadd.f32 %v8421, %v8701
        %v8703 = vpop.f32.mrf.mxu0
        %8704 = vmatprep.mubr.f32.mxu0 0.0
        %8705 = vmatmul.mubr.f32.gmra.mxu0 %v8497
        %v8706 = vpop.f32.mrf.mxu0
        %v8707 = vadd.f32 %v8421, %v8706
        %v8708 = vpop.f32.mrf.mxu0
        %8709 = vmatprep.mubr.f32.mxu0 0.0
        %8710 = vmatmul.mubr.f32.gmra.mxu0 %v8500
        %v8711 = vpop.f32.mrf.mxu0
        %v8712 = vadd.f32 %v8421, %v8711
        %v8713 = vpop.f32.mrf.mxu0
        %8714 = vmatprep.mubr.f32.mxu0 0.0
        %8715 = vmatmul.mubr.f32.gmra.mxu0 %v8503
        %v8716 = vpop.f32.mrf.mxu0
        %v8717 = vadd.f32 %v8421, %v8716
        %v8718 = vpop.f32.mrf.mxu0
        %8719 = vmatprep.mubr.f32.mxu0 0.0
        %8720 = vmatmul.mubr.f32.gmra.mxu0 %v8506
        %v8721 = vpop.f32.mrf.mxu0
        %v8722 = vadd.f32 %v8421, %v8721
        %v8723 = vpop.f32.mrf.mxu0
        %8724 = vmatprep.mubr.f32.mxu0 0.0
        %8725 = vmatmul.mubr.f32.gmra.mxu0 %v8509
        %v8726 = vpop.f32.mrf.mxu0
        %v8727 = vadd.f32 %v8421, %v8726
        %v8728 = vpop.f32.mrf.mxu0
        %8729 = vmatprep.mubr.f32.mxu0 0.0
        %8730 = vmatmul.mubr.f32.gmra.mxu0 %v8512
        %v8731 = vpop.f32.mrf.mxu0
        %v8732 = vadd.f32 %v8421, %v8731
        %v8733 = vpop.f32.mrf.mxu0
        %8734 = vmatprep.mubr.f32.mxu0 0.0
        %8735 = vmatmul.mubr.f32.gmra.mxu0 %v8515
        %v8736 = vpop.f32.mrf.mxu0
        %v8737 = vadd.f32 %v8421, %v8736
        %v8738 = vpop.f32.mrf.mxu0
        %8739 = vmatprep.mubr.f32.mxu0 0.0
        %8740 = vmatmul.mubr.f32.gmra.mxu0 %v8518
        %v8741 = vpop.f32.mrf.mxu0
        %v8742 = vadd.f32 %v8421, %v8741
        %v8743 = vpop.f32.mrf.mxu0
        %8744 = vdwg.mxu0
        %v8745 = vmax.f32 %v8587, 0.0
        %v8746 = vmax.f32 %v8592, 0.0
        %v8747 = vmax.f32 %v8597, 0.0
        %v8748 = vmax.f32 %v8602, 0.0
        %v8749 = vmax.f32 %v8607, 0.0
        %v8750 = vmax.f32 %v8612, 0.0
        %v8751 = vmax.f32 %v8617, 0.0
        %v8752 = vmax.f32 %v8622, 0.0
        %v8753 = vmax.f32 %v8627, 0.0
        %v8754 = vmax.f32 %v8632, 0.0
        %v8755 = vmax.f32 %v8637, 0.0
        %v8756 = vmax.f32 %v8642, 0.0
        %v8757 = vmax.f32 %v8647, 0.0
        %v8758 = vmax.f32 %v8652, 0.0
        %v8759 = vmax.f32 %v8657, 0.0
        %v8760 = vmax.f32 %v8662, 0.0
        %v8761 = vmax.f32 %v8667, 0.0
        %v8762 = vmax.f32 %v8672, 0.0
        %v8763 = vmax.f32 %v8677, 0.0
        %v8764 = vmax.f32 %v8682, 0.0
        %v8765 = vmax.f32 %v8687, 0.0
        %v8766 = vmax.f32 %v8692, 0.0
        %v8767 = vmax.f32 %v8697, 0.0
        %v8768 = vmax.f32 %v8702, 0.0
        %v8769 = vmax.f32 %v8707, 0.0
        %v8770 = vmax.f32 %v8712, 0.0
        %v8771 = vmax.f32 %v8717, 0.0
        %v8772 = vmax.f32 %v8722, 0.0
        %v8773 = vmax.f32 %v8727, 0.0
        %v8774 = vmax.f32 %v8732, 0.0
        %v8775 = vmax.f32 %v8737, 0.0
        %v8776 = vmax.f32 %v8742, 0.0
        %s8777 = sld [smem:[#allocation3]]
        %s8778 = sld [smem:[#allocation3 + $0x1]]
        %s8779 = sld [smem:[#allocation3 + $0x2]]
        %v8780 = vld [vmem:[%s7] sm:$0x1]
        %v8782 = vlaneseq
        %v8783 = vshrl.u32 %v8782, 7
        %v8784 = vsub.s32 0, %v8783
        %v8785 = vrot.slane %v8780, %v8784
        %v8787 = vmul.f32 %v8745, %v8785
        %v8788 = vmul.f32 %v8746, %v8785
        %v8789 = vmul.f32 %v8747, %v8785
        %v8790 = vmul.f32 %v8748, %v8785
        %v8791 = vmul.f32 %v8749, %v8785
        %v8792 = vmul.f32 %v8750, %v8785
        %v8793 = vmul.f32 %v8751, %v8785
        %v8794 = vmul.f32 %v8752, %v8785
        %v8795 = vmul.f32 %v8753, %v8785
        %v8796 = vmul.f32 %v8754, %v8785
        %v8797 = vmul.f32 %v8755, %v8785
        %v8798 = vmul.f32 %v8756, %v8785
        %v8799 = vmul.f32 %v8757, %v8785
        %v8800 = vmul.f32 %v8758, %v8785
        %v8801 = vmul.f32 %v8759, %v8785
        %v8802 = vmul.f32 %v8760, %v8785
        %v8803 = vmul.f32 %v8761, %v8785
        %v8804 = vmul.f32 %v8762, %v8785
        %v8805 = vmul.f32 %v8763, %v8785
        %v8806 = vmul.f32 %v8764, %v8785
        %v8807 = vmul.f32 %v8765, %v8785
        %v8808 = vmul.f32 %v8766, %v8785
        %v8809 = vmul.f32 %v8767, %v8785
        %v8810 = vmul.f32 %v8768, %v8785
        %v8811 = vmul.f32 %v8769, %v8785
        %v8812 = vmul.f32 %v8770, %v8785
        %v8813 = vmul.f32 %v8771, %v8785
        %v8814 = vmul.f32 %v8772, %v8785
        %v8815 = vmul.f32 %v8773, %v8785
        %v8816 = vmul.f32 %v8774, %v8785
        %v8817 = vmul.f32 %v8775, %v8785
        %v8818 = vmul.f32 %v8776, %v8785
        %v8819 = vsel %vm6521, %v8787, 0.0
        %8820 = vadd.xlane.f32.xlu0 %v8819
        %v8821 = vpop.xlane.xlu0 %8820
        %v8822 = vsel %vm6521, %v8788, 0.0
        %8823 = vadd.xlane.f32.xlu0 %v8822
        %v8824 = vpop.xlane.xlu0 %8823
        %v8825 = vsel %vm6521, %v8789, 0.0
        %8826 = vadd.xlane.f32.xlu0 %v8825
        %v8827 = vpop.xlane.xlu0 %8826
        %v8828 = vsel %vm6521, %v8790, 0.0
        %8829 = vadd.xlane.f32.xlu0 %v8828
        %v8830 = vpop.xlane.xlu0 %8829
        %v8831 = vsel %vm6521, %v8791, 0.0
        %8832 = vadd.xlane.f32.xlu0 %v8831
        %v8833 = vpop.xlane.xlu0 %8832
        %v8834 = vsel %vm6521, %v8792, 0.0
        %8835 = vadd.xlane.f32.xlu0 %v8834
        %v8836 = vpop.xlane.xlu0 %8835
        %v8837 = vsel %vm6521, %v8793, 0.0
        %8838 = vadd.xlane.f32.xlu0 %v8837
        %v8839 = vpop.xlane.xlu0 %8838
        %v8840 = vsel %vm6521, %v8794, 0.0
        %8841 = vadd.xlane.f32.xlu0 %v8840
        %v8842 = vpop.xlane.xlu0 %8841
        %v8843 = vsel %vm6521, %v8795, 0.0
        %8844 = vadd.xlane.f32.xlu0 %v8843
        %v8845 = vpop.xlane.xlu0 %8844
        %v8846 = vsel %vm6521, %v8796, 0.0
        %8847 = vadd.xlane.f32.xlu0 %v8846
        %v8848 = vpop.xlane.xlu0 %8847
        %v8849 = vsel %vm6521, %v8797, 0.0
        %8850 = vadd.xlane.f32.xlu0 %v8849
        %v8851 = vpop.xlane.xlu0 %8850
        %v8852 = vsel %vm6521, %v8798, 0.0
        %8853 = vadd.xlane.f32.xlu0 %v8852
        %v8854 = vpop.xlane.xlu0 %8853
        %v8855 = vsel %vm6521, %v8799, 0.0
        %8856 = vadd.xlane.f32.xlu0 %v8855
        %v8857 = vpop.xlane.xlu0 %8856
        %v8858 = vsel %vm6521, %v8800, 0.0
        %8859 = vadd.xlane.f32.xlu0 %v8858
        %v8860 = vpop.xlane.xlu0 %8859
        %v8861 = vsel %vm6521, %v8801, 0.0
        %8862 = vadd.xlane.f32.xlu0 %v8861
        %v8863 = vpop.xlane.xlu0 %8862
        %v8864 = vsel %vm6521, %v8802, 0.0
        %8865 = vadd.xlane.f32.xlu0 %v8864
        %v8866 = vpop.xlane.xlu0 %8865
        %v8867 = vsel %vm6521, %v8803, 0.0
        %8868 = vadd.xlane.f32.xlu0 %v8867
        %v8869 = vpop.xlane.xlu0 %8868
        %v8870 = vsel %vm6521, %v8804, 0.0
        %8871 = vadd.xlane.f32.xlu0 %v8870
        %v8872 = vpop.xlane.xlu0 %8871
        %v8873 = vsel %vm6521, %v8805, 0.0
        %8874 = vadd.xlane.f32.xlu0 %v8873
        %v8875 = vpop.xlane.xlu0 %8874
        %v8876 = vsel %vm6521, %v8806, 0.0
        %8877 = vadd.xlane.f32.xlu0 %v8876
        %v8878 = vpop.xlane.xlu0 %8877
        %v8879 = vsel %vm6521, %v8807, 0.0
        %8880 = vadd.xlane.f32.xlu0 %v8879
        %v8881 = vpop.xlane.xlu0 %8880
        %v8882 = vsel %vm6521, %v8808, 0.0
        %8883 = vadd.xlane.f32.xlu0 %v8882
        %v8884 = vpop.xlane.xlu0 %8883
        %v8885 = vsel %vm6521, %v8809, 0.0
        %8886 = vadd.xlane.f32.xlu0 %v8885
        %v8887 = vpop.xlane.xlu0 %8886
        %v8888 = vsel %vm6521, %v8810, 0.0
        %8889 = vadd.xlane.f32.xlu0 %v8888
        %v8890 = vpop.xlane.xlu0 %8889
        %v8891 = vsel %vm6521, %v8811, 0.0
        %8892 = vadd.xlane.f32.xlu0 %v8891
        %v8893 = vpop.xlane.xlu0 %8892
        %v8894 = vsel %vm6521, %v8812, 0.0
        %8895 = vadd.xlane.f32.xlu0 %v8894
        %v8896 = vpop.xlane.xlu0 %8895
        %v8897 = vsel %vm6521, %v8813, 0.0
        %8898 = vadd.xlane.f32.xlu0 %v8897
        %v8899 = vpop.xlane.xlu0 %8898
        %v8900 = vsel %vm6521, %v8814, 0.0
        %8901 = vadd.xlane.f32.xlu0 %v8900
        %v8902 = vpop.xlane.xlu0 %8901
        %v8903 = vsel %vm6521, %v8815, 0.0
        %8904 = vadd.xlane.f32.xlu0 %v8903
        %v8905 = vpop.xlane.xlu0 %8904
        %v8906 = vsel %vm6521, %v8816, 0.0
        %8907 = vadd.xlane.f32.xlu0 %v8906
        %v8908 = vpop.xlane.xlu0 %8907
        %v8909 = vsel %vm6521, %v8817, 0.0
        %8910 = vadd.xlane.f32.xlu0 %v8909
        %v8911 = vpop.xlane.xlu0 %8910
        %v8912 = vsel %vm6521, %v8818, 0.0
        %8913 = vadd.xlane.f32.xlu0 %v8912
        %v8914 = vpop.xlane.xlu0 %8913
        %v8915 = vstv %s8777
        %v8916 = vmul.f32 %v6297, %v8915
        %v8917 = vmul.f32 %v6298, %v8915
        %v8918 = vmul.f32 %v6299, %v8915
        %v8919 = vmul.f32 %v6300, %v8915
        %v8920 = vmul.f32 %v6301, %v8915
        %v8921 = vmul.f32 %v6302, %v8915
        %v8922 = vmul.f32 %v6303, %v8915
        %v8923 = vmul.f32 %v6304, %v8915
        %v8924 = vmul.f32 %v6305, %v8915
        %v8925 = vmul.f32 %v6306, %v8915
        %v8926 = vmul.f32 %v6307, %v8915
        %v8927 = vmul.f32 %v6308, %v8915
        %v8928 = vmul.f32 %v6309, %v8915
        %v8929 = vmul.f32 %v6310, %v8915
        %v8930 = vmul.f32 %v6311, %v8915
        %v8931 = vmul.f32 %v6312, %v8915
        %v8932 = vmul.f32 %v6313, %v8915
        %v8933 = vmul.f32 %v6314, %v8915
        %v8934 = vmul.f32 %v6315, %v8915
        %v8935 = vmul.f32 %v6316, %v8915
        %v8936 = vmul.f32 %v6317, %v8915
        %v8937 = vmul.f32 %v6318, %v8915
        %v8938 = vmul.f32 %v6319, %v8915
        %v8939 = vmul.f32 %v6320, %v8915
        %v8940 = vmul.f32 %v6321, %v8915
        %v8941 = vmul.f32 %v6322, %v8915
        %v8942 = vmul.f32 %v6323, %v8915
        %v8943 = vmul.f32 %v6324, %v8915
        %v8944 = vmul.f32 %v6325, %v8915
        %v8945 = vmul.f32 %v6326, %v8915
        %v8946 = vmul.f32 %v6327, %v8915
        %v8947 = vmul.f32 %v6328, %v8915
        %v8948 = vstv %s8778
        %v8949 = vmul.f32 %v6618, %v8948
        %v8950 = vmul.f32 %v6619, %v8948
        %v8951 = vmul.f32 %v6620, %v8948
        %v8952 = vmul.f32 %v6621, %v8948
        %v8953 = vmul.f32 %v6622, %v8948
        %v8954 = vmul.f32 %v6623, %v8948
        %v8955 = vmul.f32 %v6624, %v8948
        %v8956 = vmul.f32 %v6625, %v8948
        %v8957 = vmul.f32 %v6626, %v8948
        %v8958 = vmul.f32 %v6627, %v8948
        %v8959 = vmul.f32 %v6628, %v8948
        %v8960 = vmul.f32 %v6629, %v8948
        %v8961 = vmul.f32 %v6630, %v8948
        %v8962 = vmul.f32 %v6631, %v8948
        %v8963 = vmul.f32 %v6632, %v8948
        %v8964 = vmul.f32 %v6633, %v8948
        %v8965 = vmul.f32 %v6634, %v8948
        %v8966 = vmul.f32 %v6635, %v8948
        %v8967 = vmul.f32 %v6636, %v8948
        %v8968 = vmul.f32 %v6637, %v8948
        %v8969 = vmul.f32 %v6638, %v8948
        %v8970 = vmul.f32 %v6639, %v8948
        %v8971 = vmul.f32 %v6640, %v8948
        %v8972 = vmul.f32 %v6641, %v8948
        %v8973 = vmul.f32 %v6642, %v8948
        %v8974 = vmul.f32 %v6643, %v8948
        %v8975 = vmul.f32 %v6644, %v8948
        %v8976 = vmul.f32 %v6645, %v8948
        %v8977 = vmul.f32 %v6646, %v8948
        %v8978 = vmul.f32 %v6647, %v8948
        %v8979 = vmul.f32 %v6648, %v8948
        %v8980 = vmul.f32 %v6649, %v8948
        %v8981 = vadd.f32 %v8916, %v8949
        %v8982 = vadd.f32 %v8917, %v8950
        %v8983 = vadd.f32 %v8918, %v8951
        %v8984 = vadd.f32 %v8919, %v8952
        %v8985 = vadd.f32 %v8920, %v8953
        %v8986 = vadd.f32 %v8921, %v8954
        %v8987 = vadd.f32 %v8922, %v8955
        %v8988 = vadd.f32 %v8923, %v8956
        %v8989 = vadd.f32 %v8924, %v8957
        %v8990 = vadd.f32 %v8925, %v8958
        %v8991 = vadd.f32 %v8926, %v8959
        %v8992 = vadd.f32 %v8927, %v8960
        %v8993 = vadd.f32 %v8928, %v8961
        %v8994 = vadd.f32 %v8929, %v8962
        %v8995 = vadd.f32 %v8930, %v8963
        %v8996 = vadd.f32 %v8931, %v8964
        %v8997 = vadd.f32 %v8932, %v8965
        %v8998 = vadd.f32 %v8933, %v8966
        %v8999 = vadd.f32 %v8934, %v8967
        %v9000 = vadd.f32 %v8935, %v8968
        %v9001 = vadd.f32 %v8936, %v8969
        %v9002 = vadd.f32 %v8937, %v8970
        %v9003 = vadd.f32 %v8938, %v8971
        %v9004 = vadd.f32 %v8939, %v8972
        %v9005 = vadd.f32 %v8940, %v8973
        %v9006 = vadd.f32 %v8941, %v8974
        %v9007 = vadd.f32 %v8942, %v8975
        %v9008 = vadd.f32 %v8943, %v8976
        %v9009 = vadd.f32 %v8944, %v8977
        %v9010 = vadd.f32 %v8945, %v8978
        %v9011 = vadd.f32 %v8946, %v8979
        %v9012 = vadd.f32 %v8947, %v8980
        %v9013 = vadd.f32 %v8981, %v8821
        %v9014 = vadd.f32 %v8982, %v8824
        %v9015 = vadd.f32 %v8983, %v8827
        %v9016 = vadd.f32 %v8984, %v8830
        %v9017 = vadd.f32 %v8985, %v8833
        %v9018 = vadd.f32 %v8986, %v8836
        %v9019 = vadd.f32 %v8987, %v8839
        %v9020 = vadd.f32 %v8988, %v8842
        %v9021 = vadd.f32 %v8989, %v8845
        %v9022 = vadd.f32 %v8990, %v8848
        %v9023 = vadd.f32 %v8991, %v8851
        %v9024 = vadd.f32 %v8992, %v8854
        %v9025 = vadd.f32 %v8993, %v8857
        %v9026 = vadd.f32 %v8994, %v8860
        %v9027 = vadd.f32 %v8995, %v8863
        %v9028 = vadd.f32 %v8996, %v8866
        %v9029 = vadd.f32 %v8997, %v8869
        %v9030 = vadd.f32 %v8998, %v8872
        %v9031 = vadd.f32 %v8999, %v8875
        %v9032 = vadd.f32 %v9000, %v8878
        %v9033 = vadd.f32 %v9001, %v8881
        %v9034 = vadd.f32 %v9002, %v8884
        %v9035 = vadd.f32 %v9003, %v8887
        %v9036 = vadd.f32 %v9004, %v8890
        %v9037 = vadd.f32 %v9005, %v8893
        %v9038 = vadd.f32 %v9006, %v8896
        %v9039 = vadd.f32 %v9007, %v8899
        %v9040 = vadd.f32 %v9008, %v8902
        %v9041 = vadd.f32 %v9009, %v8905
        %v9042 = vadd.f32 %v9010, %v8908
        %v9043 = vadd.f32 %v9011, %v8911
        %v9044 = vadd.f32 %v9012, %v8914
        %v9045 = vstv %s8779
        %v9046 = vadd.f32 %v9013, %v9045
        %v9047 = vadd.f32 %v9014, %v9045
        %v9048 = vadd.f32 %v9015, %v9045
        %v9049 = vadd.f32 %v9016, %v9045
        %v9050 = vadd.f32 %v9017, %v9045
        %v9051 = vadd.f32 %v9018, %v9045
        %v9052 = vadd.f32 %v9019, %v9045
        %v9053 = vadd.f32 %v9020, %v9045
        %v9054 = vadd.f32 %v9021, %v9045
        %v9055 = vadd.f32 %v9022, %v9045
        %v9056 = vadd.f32 %v9023, %v9045
        %v9057 = vadd.f32 %v9024, %v9045
        %v9058 = vadd.f32 %v9025, %v9045
        %v9059 = vadd.f32 %v9026, %v9045
        %v9060 = vadd.f32 %v9027, %v9045
        %v9061 = vadd.f32 %v9028, %v9045
        %v9062 = vadd.f32 %v9029, %v9045
        %v9063 = vadd.f32 %v9030, %v9045
        %v9064 = vadd.f32 %v9031, %v9045
        %v9065 = vadd.f32 %v9032, %v9045
        %v9066 = vadd.f32 %v9033, %v9045
        %v9067 = vadd.f32 %v9034, %v9045
        %v9068 = vadd.f32 %v9035, %v9045
        %v9069 = vadd.f32 %v9036, %v9045
        %v9070 = vadd.f32 %v9037, %v9045
        %v9071 = vadd.f32 %v9038, %v9045
        %v9072 = vadd.f32 %v9039, %v9045
        %v9073 = vadd.f32 %v9040, %v9045
        %v9074 = vadd.f32 %v9041, %v9045
        %v9075 = vadd.f32 %v9042, %v9045
        %v9076 = vadd.f32 %v9043, %v9045
        %v9077 = vadd.f32 %v9044, %v9045
        %v9078 = vxor.u32 %v9046, 2147483648
        %v9079 = vxor.u32 %v9047, 2147483648
        %v9080 = vxor.u32 %v9048, 2147483648
        %v9081 = vxor.u32 %v9049, 2147483648
        %v9082 = vxor.u32 %v9050, 2147483648
        %v9083 = vxor.u32 %v9051, 2147483648
        %v9084 = vxor.u32 %v9052, 2147483648
        %v9085 = vxor.u32 %v9053, 2147483648
        %v9086 = vxor.u32 %v9054, 2147483648
        %v9087 = vxor.u32 %v9055, 2147483648
        %v9088 = vxor.u32 %v9056, 2147483648
        %v9089 = vxor.u32 %v9057, 2147483648
        %v9090 = vxor.u32 %v9058, 2147483648
        %v9091 = vxor.u32 %v9059, 2147483648
        %v9092 = vxor.u32 %v9060, 2147483648
        %v9093 = vxor.u32 %v9061, 2147483648
        %v9094 = vxor.u32 %v9062, 2147483648
        %v9095 = vxor.u32 %v9063, 2147483648
        %v9096 = vxor.u32 %v9064, 2147483648
        %v9097 = vxor.u32 %v9065, 2147483648
        %v9098 = vxor.u32 %v9066, 2147483648
        %v9099 = vxor.u32 %v9067, 2147483648
        %v9100 = vxor.u32 %v9068, 2147483648
        %v9101 = vxor.u32 %v9069, 2147483648
        %v9102 = vxor.u32 %v9070, 2147483648
        %v9103 = vxor.u32 %v9071, 2147483648
        %v9104 = vxor.u32 %v9072, 2147483648
        %v9105 = vxor.u32 %v9073, 2147483648
        %v9106 = vxor.u32 %v9074, 2147483648
        %v9107 = vxor.u32 %v9075, 2147483648
        %v9108 = vxor.u32 %v9076, 2147483648
        %v9109 = vxor.u32 %v9077, 2147483648
        %v9110 = vmul.f32 %v9078, 1.442695
        %v9111 = vpow.pop %v9110
        %v9112 = vmul.f32 %v9079, 1.442695
        %v9113 = vpow.pop %v9112
        %v9114 = vmul.f32 %v9080, 1.442695
        %v9115 = vpow.pop %v9114
        %v9116 = vmul.f32 %v9081, 1.442695
        %v9117 = vpow.pop %v9116
        %v9118 = vmul.f32 %v9082, 1.442695
        %v9119 = vpow.pop %v9118
        %v9120 = vmul.f32 %v9083, 1.442695
        %v9121 = vpow.pop %v9120
        %v9122 = vmul.f32 %v9084, 1.442695
        %v9123 = vpow.pop %v9122
        %v9124 = vmul.f32 %v9085, 1.442695
        %v9125 = vpow.pop %v9124
        %v9126 = vmul.f32 %v9086, 1.442695
        %v9127 = vpow.pop %v9126
        %v9128 = vmul.f32 %v9087, 1.442695
        %v9129 = vpow.pop %v9128
        %v9130 = vmul.f32 %v9088, 1.442695
        %v9131 = vpow.pop %v9130
        %v9132 = vmul.f32 %v9089, 1.442695
        %v9133 = vpow.pop %v9132
        %v9134 = vmul.f32 %v9090, 1.442695
        %v9135 = vpow.pop %v9134
        %v9136 = vmul.f32 %v9091, 1.442695
        %v9137 = vpow.pop %v9136
        %v9138 = vmul.f32 %v9092, 1.442695
        %v9139 = vpow.pop %v9138
        %v9140 = vmul.f32 %v9093, 1.442695
        %v9141 = vpow.pop %v9140
        %v9142 = vmul.f32 %v9094, 1.442695
        %v9143 = vpow.pop %v9142
        %v9144 = vmul.f32 %v9095, 1.442695
        %v9145 = vpow.pop %v9144
        %v9146 = vmul.f32 %v9096, 1.442695
        %v9147 = vpow.pop %v9146
        %v9148 = vmul.f32 %v9097, 1.442695
        %v9149 = vpow.pop %v9148
        %v9150 = vmul.f32 %v9098, 1.442695
        %v9151 = vpow.pop %v9150
        %v9152 = vmul.f32 %v9099, 1.442695
        %v9153 = vpow.pop %v9152
        %v9154 = vmul.f32 %v9100, 1.442695
        %v9155 = vpow.pop %v9154
        %v9156 = vmul.f32 %v9101, 1.442695
        %v9157 = vpow.pop %v9156
        %v9158 = vmul.f32 %v9102, 1.442695
        %v9159 = vpow.pop %v9158
        %v9160 = vmul.f32 %v9103, 1.442695
        %v9161 = vpow.pop %v9160
        %v9162 = vmul.f32 %v9104, 1.442695
        %v9163 = vpow.pop %v9162
        %v9164 = vmul.f32 %v9105, 1.442695
        %v9165 = vpow.pop %v9164
        %v9166 = vmul.f32 %v9106, 1.442695
        %v9167 = vpow.pop %v9166
        %v9168 = vmul.f32 %v9107, 1.442695
        %v9169 = vpow.pop %v9168
        %v9170 = vmul.f32 %v9108, 1.442695
        %v9171 = vpow.pop %v9170
        %v9172 = vmul.f32 %v9109, 1.442695
        %v9173 = vpow.pop %v9172
        %v9174 = vadd.f32 %v9111, 1.0
        %v9175 = vadd.f32 %v9113, 1.0
        %v9176 = vadd.f32 %v9115, 1.0
        %v9177 = vadd.f32 %v9117, 1.0
        %v9178 = vadd.f32 %v9119, 1.0
        %v9179 = vadd.f32 %v9121, 1.0
        %v9180 = vadd.f32 %v9123, 1.0
        %v9181 = vadd.f32 %v9125, 1.0
        %v9182 = vadd.f32 %v9127, 1.0
        %v9183 = vadd.f32 %v9129, 1.0
        %v9184 = vadd.f32 %v9131, 1.0
        %v9185 = vadd.f32 %v9133, 1.0
        %v9186 = vadd.f32 %v9135, 1.0
        %v9187 = vadd.f32 %v9137, 1.0
        %v9188 = vadd.f32 %v9139, 1.0
        %v9189 = vadd.f32 %v9141, 1.0
        %v9190 = vadd.f32 %v9143, 1.0
        %v9191 = vadd.f32 %v9145, 1.0
        %v9192 = vadd.f32 %v9147, 1.0
        %v9193 = vadd.f32 %v9149, 1.0
        %v9194 = vadd.f32 %v9151, 1.0
        %v9195 = vadd.f32 %v9153, 1.0
        %v9196 = vadd.f32 %v9155, 1.0
        %v9197 = vadd.f32 %v9157, 1.0
        %v9198 = vadd.f32 %v9159, 1.0
        %v9199 = vadd.f32 %v9161, 1.0
        %v9200 = vadd.f32 %v9163, 1.0
        %v9201 = vadd.f32 %v9165, 1.0
        %v9202 = vadd.f32 %v9167, 1.0
        %v9203 = vadd.f32 %v9169, 1.0
        %v9204 = vadd.f32 %v9171, 1.0
        %v9205 = vadd.f32 %v9173, 1.0
        %v9206 = vrcp.pop %v9174
        %v9207 = vmul.f32 1.0, %v9206
        %v9208 = vrcp.pop %v9175
        %v9209 = vmul.f32 1.0, %v9208
        %v9210 = vrcp.pop %v9176
        %v9211 = vmul.f32 1.0, %v9210
        %v9212 = vrcp.pop %v9177
        %v9213 = vmul.f32 1.0, %v9212
        %v9214 = vrcp.pop %v9178
        %v9215 = vmul.f32 1.0, %v9214
        %v9216 = vrcp.pop %v9179
        %v9217 = vmul.f32 1.0, %v9216
        %v9218 = vrcp.pop %v9180
        %v9219 = vmul.f32 1.0, %v9218
        %v9220 = vrcp.pop %v9181
        %v9221 = vmul.f32 1.0, %v9220
        %v9222 = vrcp.pop %v9182
        %v9223 = vmul.f32 1.0, %v9222
        %v9224 = vrcp.pop %v9183
        %v9225 = vmul.f32 1.0, %v9224
        %v9226 = vrcp.pop %v9184
        %v9227 = vmul.f32 1.0, %v9226
        %v9228 = vrcp.pop %v9185
        %v9229 = vmul.f32 1.0, %v9228
        %v9230 = vrcp.pop %v9186
        %v9231 = vmul.f32 1.0, %v9230
        %v9232 = vrcp.pop %v9187
        %v9233 = vmul.f32 1.0, %v9232
        %v9234 = vrcp.pop %v9188
        %v9235 = vmul.f32 1.0, %v9234
        %v9236 = vrcp.pop %v9189
        %v9237 = vmul.f32 1.0, %v9236
        %v9238 = vrcp.pop %v9190
        %v9239 = vmul.f32 1.0, %v9238
        %v9240 = vrcp.pop %v9191
        %v9241 = vmul.f32 1.0, %v9240
        %v9242 = vrcp.pop %v9192
        %v9243 = vmul.f32 1.0, %v9242
        %v9244 = vrcp.pop %v9193
        %v9245 = vmul.f32 1.0, %v9244
        %v9246 = vrcp.pop %v9194
        %v9247 = vmul.f32 1.0, %v9246
        %v9248 = vrcp.pop %v9195
        %v9249 = vmul.f32 1.0, %v9248
        %v9250 = vrcp.pop %v9196
        %v9251 = vmul.f32 1.0, %v9250
        %v9252 = vrcp.pop %v9197
        %v9253 = vmul.f32 1.0, %v9252
        %v9254 = vrcp.pop %v9198
        %v9255 = vmul.f32 1.0, %v9254
        %v9256 = vrcp.pop %v9199
        %v9257 = vmul.f32 1.0, %v9256
        %v9258 = vrcp.pop %v9200
        %v9259 = vmul.f32 1.0, %v9258
        %v9260 = vrcp.pop %v9201
        %v9261 = vmul.f32 1.0, %v9260
        %v9262 = vrcp.pop %v9202
        %v9263 = vmul.f32 1.0, %v9262
        %v9264 = vrcp.pop %v9203
        %v9265 = vmul.f32 1.0, %v9264
        %v9266 = vrcp.pop %v9204
        %v9267 = vmul.f32 1.0, %v9266
        %v9268 = vrcp.pop %v9205
        %v9269 = vmul.f32 1.0, %v9268
        %v9270 = vlaneseq
        %v9271 = vshrl.u32 %v9270, 7
        %v9272 = vadd.s32 %v9271, 8
        %v9273 = vadd.s32 %v9271, 16
        %v9274 = vadd.s32 %v9271, 24
        %v9275 = vadd.s32 %v9271, 32
        %v9276 = vadd.s32 %v9271, 40
        %v9277 = vadd.s32 %v9271, 48
        %v9278 = vadd.s32 %v9271, 56
        %v9279 = vadd.s32 %v9271, 64
        %v9280 = vadd.s32 %v9271, 72
        %v9281 = vadd.s32 %v9271, 80
        %v9282 = vadd.s32 %v9271, 88
        %v9283 = vadd.s32 %v9271, 96
        %v9284 = vadd.s32 %v9271, 104
        %v9285 = vadd.s32 %v9271, 112
        %v9286 = vadd.s32 %v9271, 120
        %v9287 = vadd.s32 %v9271, 128
        %v9288 = vadd.s32 %v9271, 136
        %v9289 = vadd.s32 %v9271, 144
        %v9290 = vadd.s32 %v9271, 152
        %v9291 = vadd.s32 %v9271, 160
        %v9292 = vadd.s32 %v9271, 168
        %v9293 = vadd.s32 %v9271, 176
        %v9294 = vadd.s32 %v9271, 184
        %v9295 = vadd.s32 %v9271, 192
        %v9296 = vadd.s32 %v9271, 200
        %v9297 = vadd.s32 %v9271, 208
        %v9298 = vadd.s32 %v9271, 216
        %v9299 = vadd.s32 %v9271, 224
        %v9300 = vadd.s32 %v9271, 232
        %v9301 = vadd.s32 %v9271, 240
        %v9302 = vadd.s32 %v9271, 248
        %vm9303 = vcmp.eq.s32.totalorder %v9271, %v403
        %vm9304 = vcmp.eq.s32.totalorder %v9271, %v404
        %vm9305 = vcmp.eq.s32.totalorder %v9272, %v403
        %vm9306 = vcmp.eq.s32.totalorder %v9272, %v404
        %vm9307 = vcmp.eq.s32.totalorder %v9273, %v403
        %vm9308 = vcmp.eq.s32.totalorder %v9273, %v404
        %vm9309 = vcmp.eq.s32.totalorder %v9274, %v403
        %vm9310 = vcmp.eq.s32.totalorder %v9274, %v404
        %vm9311 = vcmp.eq.s32.totalorder %v9275, %v403
        %vm9312 = vcmp.eq.s32.totalorder %v9275, %v404
        %vm9313 = vcmp.eq.s32.totalorder %v9276, %v403
        %vm9314 = vcmp.eq.s32.totalorder %v9276, %v404
        %vm9315 = vcmp.eq.s32.totalorder %v9277, %v403
        %vm9316 = vcmp.eq.s32.totalorder %v9277, %v404
        %vm9317 = vcmp.eq.s32.totalorder %v9278, %v403
        %vm9318 = vcmp.eq.s32.totalorder %v9278, %v404
        %vm9319 = vcmp.eq.s32.totalorder %v9279, %v403
        %vm9320 = vcmp.eq.s32.totalorder %v9279, %v404
        %vm9321 = vcmp.eq.s32.totalorder %v9280, %v403
        %vm9322 = vcmp.eq.s32.totalorder %v9280, %v404
        %vm9323 = vcmp.eq.s32.totalorder %v9281, %v403
        %vm9324 = vcmp.eq.s32.totalorder %v9281, %v404
        %vm9325 = vcmp.eq.s32.totalorder %v9282, %v403
        %vm9326 = vcmp.eq.s32.totalorder %v9282, %v404
        %vm9327 = vcmp.eq.s32.totalorder %v9283, %v403
        %vm9328 = vcmp.eq.s32.totalorder %v9283, %v404
        %vm9329 = vcmp.eq.s32.totalorder %v9284, %v403
        %vm9330 = vcmp.eq.s32.totalorder %v9284, %v404
        %vm9331 = vcmp.eq.s32.totalorder %v9285, %v403
        %vm9332 = vcmp.eq.s32.totalorder %v9285, %v404
        %vm9333 = vcmp.eq.s32.totalorder %v9286, %v403
        %vm9334 = vcmp.eq.s32.totalorder %v9286, %v404
        %vm9335 = vcmp.eq.s32.totalorder %v9287, %v403
        %vm9336 = vcmp.eq.s32.totalorder %v9287, %v404
        %vm9337 = vcmp.eq.s32.totalorder %v9288, %v403
        %vm9338 = vcmp.eq.s32.totalorder %v9288, %v404
        %vm9339 = vcmp.eq.s32.totalorder %v9289, %v403
        %vm9340 = vcmp.eq.s32.totalorder %v9289, %v404
        %vm9341 = vcmp.eq.s32.totalorder %v9290, %v403
        %vm9342 = vcmp.eq.s32.totalorder %v9290, %v404
        %vm9343 = vcmp.eq.s32.totalorder %v9291, %v403
        %vm9344 = vcmp.eq.s32.totalorder %v9291, %v404
        %vm9345 = vcmp.eq.s32.totalorder %v9292, %v403
        %vm9346 = vcmp.eq.s32.totalorder %v9292, %v404
        %vm9347 = vcmp.eq.s32.totalorder %v9293, %v403
        %vm9348 = vcmp.eq.s32.totalorder %v9293, %v404
        %vm9349 = vcmp.eq.s32.totalorder %v9294, %v403
        %vm9350 = vcmp.eq.s32.totalorder %v9294, %v404
        %vm9351 = vcmp.eq.s32.totalorder %v9295, %v403
        %vm9352 = vcmp.eq.s32.totalorder %v9295, %v404
        %vm9353 = vcmp.eq.s32.totalorder %v9296, %v403
        %vm9354 = vcmp.eq.s32.totalorder %v9296, %v404
        %vm9355 = vcmp.eq.s32.totalorder %v9297, %v403
        %vm9356 = vcmp.eq.s32.totalorder %v9297, %v404
        %vm9357 = vcmp.eq.s32.totalorder %v9298, %v403
        %vm9358 = vcmp.eq.s32.totalorder %v9298, %v404
        %vm9359 = vcmp.eq.s32.totalorder %v9299, %v403
        %vm9360 = vcmp.eq.s32.totalorder %v9299, %v404
        %vm9361 = vcmp.eq.s32.totalorder %v9300, %v403
        %vm9362 = vcmp.eq.s32.totalorder %v9300, %v404
        %vm9363 = vcmp.eq.s32.totalorder %v9301, %v403
        %vm9364 = vcmp.eq.s32.totalorder %v9301, %v404
        %vm9365 = vcmp.eq.s32.totalorder %v9302, %v403
        %vm9366 = vcmp.eq.s32.totalorder %v9302, %v404
        %9368 = vset.pattern.permute.xlu0 64
        %9369 = vperm.xlu0 %9368, %v9207
        %v9370 = vpop.permute.xlu0 %9369
        %9373 = vset.pattern.permute.xlu0 64
        %9374 = vperm.xlu0 %9373, %v9209
        %v9375 = vpop.permute.xlu0 %9374
        %9378 = vset.pattern.permute.xlu0 64
        %9379 = vperm.xlu0 %9378, %v9211
        %v9380 = vpop.permute.xlu0 %9379
        %9383 = vset.pattern.permute.xlu0 64
        %9384 = vperm.xlu0 %9383, %v9213
        %v9385 = vpop.permute.xlu0 %9384
        %9388 = vset.pattern.permute.xlu0 64
        %9389 = vperm.xlu0 %9388, %v9215
        %v9390 = vpop.permute.xlu0 %9389
        %9393 = vset.pattern.permute.xlu0 64
        %9394 = vperm.xlu0 %9393, %v9217
        %v9395 = vpop.permute.xlu0 %9394
        %9398 = vset.pattern.permute.xlu0 64
        %9399 = vperm.xlu0 %9398, %v9219
        %v9400 = vpop.permute.xlu0 %9399
        %9403 = vset.pattern.permute.xlu0 64
        %9404 = vperm.xlu0 %9403, %v9221
        %v9405 = vpop.permute.xlu0 %9404
        %9408 = vset.pattern.permute.xlu0 64
        %9409 = vperm.xlu0 %9408, %v9223
        %v9410 = vpop.permute.xlu0 %9409
        %9413 = vset.pattern.permute.xlu0 64
        %9414 = vperm.xlu0 %9413, %v9225
        %v9415 = vpop.permute.xlu0 %9414
        %9418 = vset.pattern.permute.xlu0 64
        %9419 = vperm.xlu0 %9418, %v9227
        %v9420 = vpop.permute.xlu0 %9419
        %9423 = vset.pattern.permute.xlu0 64
        %9424 = vperm.xlu0 %9423, %v9229
        %v9425 = vpop.permute.xlu0 %9424
        %9428 = vset.pattern.permute.xlu0 64
        %9429 = vperm.xlu0 %9428, %v9231
        %v9430 = vpop.permute.xlu0 %9429
        %9433 = vset.pattern.permute.xlu0 64
        %9434 = vperm.xlu0 %9433, %v9233
        %v9435 = vpop.permute.xlu0 %9434
        %9438 = vset.pattern.permute.xlu0 64
        %9439 = vperm.xlu0 %9438, %v9235
        %v9440 = vpop.permute.xlu0 %9439
        %9443 = vset.pattern.permute.xlu0 64
        %9444 = vperm.xlu0 %9443, %v9237
        %v9445 = vpop.permute.xlu0 %9444
        %9448 = vset.pattern.permute.xlu0 64
        %9449 = vperm.xlu0 %9448, %v9239
        %v9450 = vpop.permute.xlu0 %9449
        %9453 = vset.pattern.permute.xlu0 64
        %9454 = vperm.xlu0 %9453, %v9241
        %v9455 = vpop.permute.xlu0 %9454
        %9458 = vset.pattern.permute.xlu0 64
        %9459 = vperm.xlu0 %9458, %v9243
        %v9460 = vpop.permute.xlu0 %9459
        %9463 = vset.pattern.permute.xlu0 64
        %9464 = vperm.xlu0 %9463, %v9245
        %v9465 = vpop.permute.xlu0 %9464
        %9468 = vset.pattern.permute.xlu0 64
        %9469 = vperm.xlu0 %9468, %v9247
        %v9470 = vpop.permute.xlu0 %9469
        %9473 = vset.pattern.permute.xlu0 64
        %9474 = vperm.xlu0 %9473, %v9249
        %v9475 = vpop.permute.xlu0 %9474
        %9478 = vset.pattern.permute.xlu0 64
        %9479 = vperm.xlu0 %9478, %v9251
        %v9480 = vpop.permute.xlu0 %9479
        %9483 = vset.pattern.permute.xlu0 64
        %9484 = vperm.xlu0 %9483, %v9253
        %v9485 = vpop.permute.xlu0 %9484
        %9488 = vset.pattern.permute.xlu0 64
        %9489 = vperm.xlu0 %9488, %v9255
        %v9490 = vpop.permute.xlu0 %9489
        %9493 = vset.pattern.permute.xlu0 64
        %9494 = vperm.xlu0 %9493, %v9257
        %v9495 = vpop.permute.xlu0 %9494
        %9498 = vset.pattern.permute.xlu0 64
        %9499 = vperm.xlu0 %9498, %v9259
        %v9500 = vpop.permute.xlu0 %9499
        %9503 = vset.pattern.permute.xlu0 64
        %9504 = vperm.xlu0 %9503, %v9261
        %v9505 = vpop.permute.xlu0 %9504
        %9508 = vset.pattern.permute.xlu0 64
        %9509 = vperm.xlu0 %9508, %v9263
        %v9510 = vpop.permute.xlu0 %9509
        %9513 = vset.pattern.permute.xlu0 64
        %9514 = vperm.xlu0 %9513, %v9265
        %v9515 = vpop.permute.xlu0 %9514
        %9518 = vset.pattern.permute.xlu0 64
        %9519 = vperm.xlu0 %9518, %v9267
        %v9520 = vpop.permute.xlu0 %9519
        %9523 = vset.pattern.permute.xlu0 64
        %9524 = vperm.xlu0 %9523, %v9269
        %v9525 = vpop.permute.xlu0 %9524
        %v9527 = vsel %vm9303, %v9370, 0.0
        %v9528 = vsel %vm9304, %v9370, 0.0
        %v9529 = vsel %vm9305, %v9375, 0.0
        %v9530 = vsel %vm9306, %v9375, 0.0
        %v9531 = vsel %vm9307, %v9380, 0.0
        %v9532 = vsel %vm9308, %v9380, 0.0
        %v9533 = vsel %vm9309, %v9385, 0.0
        %v9534 = vsel %vm9310, %v9385, 0.0
        %v9535 = vsel %vm9311, %v9390, 0.0
        %v9536 = vsel %vm9312, %v9390, 0.0
        %v9537 = vsel %vm9313, %v9395, 0.0
        %v9538 = vsel %vm9314, %v9395, 0.0
        %v9539 = vsel %vm9315, %v9400, 0.0
        %v9540 = vsel %vm9316, %v9400, 0.0
        %v9541 = vsel %vm9317, %v9405, 0.0
        %v9542 = vsel %vm9318, %v9405, 0.0
        %v9543 = vsel %vm9319, %v9410, 0.0
        %v9544 = vsel %vm9320, %v9410, 0.0
        %v9545 = vsel %vm9321, %v9415, 0.0
        %v9546 = vsel %vm9322, %v9415, 0.0
        %v9547 = vsel %vm9323, %v9420, 0.0
        %v9548 = vsel %vm9324, %v9420, 0.0
        %v9549 = vsel %vm9325, %v9425, 0.0
        %v9550 = vsel %vm9326, %v9425, 0.0
        %v9551 = vsel %vm9327, %v9430, 0.0
        %v9552 = vsel %vm9328, %v9430, 0.0
        %v9553 = vsel %vm9329, %v9435, 0.0
        %v9554 = vsel %vm9330, %v9435, 0.0
        %v9555 = vsel %vm9331, %v9440, 0.0
        %v9556 = vsel %vm9332, %v9440, 0.0
        %v9557 = vsel %vm9333, %v9445, 0.0
        %v9558 = vsel %vm9334, %v9445, 0.0
        %v9559 = vsel %vm9335, %v9450, 0.0
        %v9560 = vsel %vm9336, %v9450, 0.0
        %v9561 = vsel %vm9337, %v9455, 0.0
        %v9562 = vsel %vm9338, %v9455, 0.0
        %v9563 = vsel %vm9339, %v9460, 0.0
        %v9564 = vsel %vm9340, %v9460, 0.0
        %v9565 = vsel %vm9341, %v9465, 0.0
        %v9566 = vsel %vm9342, %v9465, 0.0
        %v9567 = vsel %vm9343, %v9470, 0.0
        %v9568 = vsel %vm9344, %v9470, 0.0
        %v9569 = vsel %vm9345, %v9475, 0.0
        %v9570 = vsel %vm9346, %v9475, 0.0
        %v9571 = vsel %vm9347, %v9480, 0.0
        %v9572 = vsel %vm9348, %v9480, 0.0
        %v9573 = vsel %vm9349, %v9485, 0.0
        %v9574 = vsel %vm9350, %v9485, 0.0
        %v9575 = vsel %vm9351, %v9490, 0.0
        %v9576 = vsel %vm9352, %v9490, 0.0
        %v9577 = vsel %vm9353, %v9495, 0.0
        %v9578 = vsel %vm9354, %v9495, 0.0
        %v9579 = vsel %vm9355, %v9500, 0.0
        %v9580 = vsel %vm9356, %v9500, 0.0
        %v9581 = vsel %vm9357, %v9505, 0.0
        %v9582 = vsel %vm9358, %v9505, 0.0
        %v9583 = vsel %vm9359, %v9510, 0.0
        %v9584 = vsel %vm9360, %v9510, 0.0
        %v9585 = vsel %vm9361, %v9515, 0.0
        %v9586 = vsel %vm9362, %v9515, 0.0
        %v9587 = vsel %vm9363, %v9520, 0.0
        %v9588 = vsel %vm9364, %v9520, 0.0
        %v9589 = vsel %vm9365, %v9525, 0.0
        %v9590 = vsel %vm9366, %v9525, 0.0
        %v9591 = vadd.f32 %v9527, %v9529
        %v9592 = vadd.f32 %v9591, %v9531
        %v9593 = vadd.f32 %v9592, %v9533
        %v9594 = vadd.f32 %v9593, %v9535
        %v9595 = vadd.f32 %v9594, %v9537
        %v9596 = vadd.f32 %v9595, %v9539
        %v9597 = vadd.f32 %v9596, %v9541
        %v9598 = vadd.f32 %v9597, %v9543
        %v9599 = vadd.f32 %v9598, %v9545
        %v9600 = vadd.f32 %v9599, %v9547
        %v9601 = vadd.f32 %v9600, %v9549
        %v9602 = vadd.f32 %v9601, %v9551
        %v9603 = vadd.f32 %v9602, %v9553
        %v9604 = vadd.f32 %v9603, %v9555
        %v9605 = vadd.f32 %v9604, %v9557
        %v9606 = vadd.f32 %v9605, %v9559
        %v9607 = vadd.f32 %v9606, %v9561
        %v9608 = vadd.f32 %v9607, %v9563
        %v9609 = vadd.f32 %v9608, %v9565
        %v9610 = vadd.f32 %v9609, %v9567
        %v9611 = vadd.f32 %v9610, %v9569
        %v9612 = vadd.f32 %v9611, %v9571
        %v9613 = vadd.f32 %v9612, %v9573
        %v9614 = vadd.f32 %v9613, %v9575
        %v9615 = vadd.f32 %v9614, %v9577
        %v9616 = vadd.f32 %v9615, %v9579
        %v9617 = vadd.f32 %v9616, %v9581
        %v9618 = vadd.f32 %v9617, %v9583
        %v9619 = vadd.f32 %v9618, %v9585
        %v9620 = vadd.f32 %v9619, %v9587
        %v9621 = vadd.f32 %v9620, %v9589
        %v9622 = vrot.slane %v9621, 4
        %v9623 = vadd.f32 %v9621, %v9622
        %v9624 = vrot.slane %v9623, 2
        %v9625 = vadd.f32 %v9623, %v9624
        %v9626 = vrot.slane %v9625, 1
        %v9627 = vadd.f32 %v9625, %v9626
        %v9628 = vadd.f32 %v9528, %v9530
        %v9629 = vadd.f32 %v9628, %v9532
        %v9630 = vadd.f32 %v9629, %v9534
        %v9631 = vadd.f32 %v9630, %v9536
        %v9632 = vadd.f32 %v9631, %v9538
        %v9633 = vadd.f32 %v9632, %v9540
        %v9634 = vadd.f32 %v9633, %v9542
        %v9635 = vadd.f32 %v9634, %v9544
        %v9636 = vadd.f32 %v9635, %v9546
        %v9637 = vadd.f32 %v9636, %v9548
        %v9638 = vadd.f32 %v9637, %v9550
        %v9639 = vadd.f32 %v9638, %v9552
        %v9640 = vadd.f32 %v9639, %v9554
        %v9641 = vadd.f32 %v9640, %v9556
        %v9642 = vadd.f32 %v9641, %v9558
        %v9643 = vadd.f32 %v9642, %v9560
        %v9644 = vadd.f32 %v9643, %v9562
        %v9645 = vadd.f32 %v9644, %v9564
        %v9646 = vadd.f32 %v9645, %v9566
        %v9647 = vadd.f32 %v9646, %v9568
        %v9648 = vadd.f32 %v9647, %v9570
        %v9649 = vadd.f32 %v9648, %v9572
        %v9650 = vadd.f32 %v9649, %v9574
        %v9651 = vadd.f32 %v9650, %v9576
        %v9652 = vadd.f32 %v9651, %v9578
        %v9653 = vadd.f32 %v9652, %v9580
        %v9654 = vadd.f32 %v9653, %v9582
        %v9655 = vadd.f32 %v9654, %v9584
        %v9656 = vadd.f32 %v9655, %v9586
        %v9657 = vadd.f32 %v9656, %v9588
        %v9658 = vadd.f32 %v9657, %v9590
        %v9659 = vrot.slane %v9658, 4
        %v9660 = vadd.f32 %v9658, %v9659
        %v9661 = vrot.slane %v9660, 2
        %v9662 = vadd.f32 %v9660, %v9661
        %v9663 = vrot.slane %v9662, 1
        %v9664 = vadd.f32 %v9662, %v9663
        %v9667 = vcombine.low %v9627, %v9664
        %v9669 = vunpack.c.l.s4 1966171168
        %v9670 = vunpack.c.0.s8 %v9669
        %v9671 = vlaneseq
        %v9672 = vshrl.u32 %v9671, 7
        %v9673 = vsub.s32 %v9670, %v9672
        %v9674 = vrot.slane %v9667, %v9673
        %v9676 = vunpack.c.l.s4 1966171168
        %v9677 = vunpack.c.0.s8 %v9676
        %v9678 = vlaneseq
        %v9679 = vshrl.u32 %v9678, 7
        %v9680 = vsub.s32 %v9677, %v9679
        %v9681 = vrot.slane %v9674, %v9680
        %v9683 = vlaneseq
        %vm9684 = vcmp.ge.s32.totalorder %v9683, 0
        %vm9685 = vcmp.lt.s32.totalorder %v9683, 256
        %vm9686 = vmand %vm9684, %vm9685
        %9687 = vst.msk [vmem:[%s356] sm:$0x3] %vm9686, %v9681
        %s9688 = sand.u32 %s231, 1
        %s9689 = scalar_lea.sflag [#allocation4], %s9688
        %s9690 = sand.u32 %s231, 1
        %s9691 = smul.addr %s9690, 2
        %s9692 = scalar_lea.vmem [#allocation6], %s9691
        // Predicated region
        $region61: #{tpu_custom_call.1} parent=55 // pred_check
          %p9693 = pneg %p241
        $region62: #{tpu_custom_call.1} parent=55 // pred_check_branch
          %9695 = sbr.rel (%p9693) target = $region64
        $region63: #{tpu_custom_call.1} parent=55 // pred_region
          %s9697 = ssub.s32 32, 32
          %9698 = vsyncadd %s9689, %s9697
          %s9699 = smul.addr %s24, 2
          %s9700 = smul.addr %s9699, 16
          %s9701 = scalar_lea.hbm %s9, %s9700
          %s9703 = sshll.u32 %s9692, 4
          %s9704 = int_to_ptr.vmem [resolvable:$true] %s9703
          %9706 = dma.vmem_to_hbm [thread:$0]  %s9704, 32, %s9701, %s9689
        $region64: #{tpu_custom_call.1} parent=55 // pred_fallthru
          _
      $region56: #{tpu_custom_call.1} parent=5 // pred_fallthru
        _
      %p9707 = scmp.le.s32.totalorder 2, %s19
      // Predicated region
      $region65: #{tpu_custom_call.1} parent=5 // pred_check
        %p9708 = pneg %p9707
      $region66: #{tpu_custom_call.1} parent=5 // pred_check_branch
        %9710 = sbr.rel (%p9708) target = $region68
      $region67: #{tpu_custom_call.1} parent=5 // pred_region
        %s9711 = ssub.s32 %s19, 2
        // Predicated region
        $region69: #{tpu_custom_call.1} parent=67 // pred_check
          %p9712 = pneg %p247
        $region70: #{tpu_custom_call.1} parent=67 // pred_check_branch
          %9714 = sbr.rel (%p9712) target = $region72
        $region71: #{tpu_custom_call.1} parent=67 // pred_region
          %s9715 = sand.u32 %s232, 1
          %s9716 = scalar_lea.sflag [#allocation4], %s9715
          %s9717 = sand.u32 %s232, 1
          %s9718 = smul.addr %s9717, 2
          %s9719 = scalar_lea.vmem [#allocation6], %s9718
          %9720 = dma.done %s9716, 32
        $region72: #{tpu_custom_call.1} parent=67 // pred_fallthru
          _
      $region68: #{tpu_custom_call.1} parent=5 // pred_fallthru
        _
    $region6: #{tpu_custom_call.1} parent=1 // loop_footer
      %s23 = sadd.s32 1, %s19
    $region7: #{tpu_custom_call.1} parent=1 // loop_footer_branch
      %18 = sbr.rel target = $region3
    $region8: #{tpu_custom_call.1} parent=1 // loop_exit
      _
    %9721 = vsyncpa [#allocation4], 1
    %s9722 = scalar_lea.sflag [#allocation4], 1
    %9723 = vsyncpa %s9722, 1
    %9724 = vsyncpa [#allocation5], 1
    %s9725 = scalar_lea.sflag [#allocation5], 1
    %9726 = vsyncpa %s9725, 1

</llo_original>
